<compile_context>
chip_gen: v6e
topology: v6e:2x2x1
jax: 0.10.0
libtpu: 0.0.40
codegen_flags: <defaults>
</compile_context>

<pallas_src>
import numpy as np
import jax
import jax.numpy as jnp
from jax.experimental import pallas as pl
from jax.experimental.pallas import tpu as pltpu

# ---------------- config ----------------
INPUT_DIM = 24
EMB_DIM = 32
NUM_MODES = 2                       # num_modes_pred
VDIM = NUM_MODES * 3
NUM_BASIS = 4
EDGE_DIM = 9 + 9 * NUM_BASIS        # quats(4)+trans(3)+chain(1)+logdist(1)+radial(36) = 45
NUM_LAYERS = 2
MAX_DIST = 20.0
SIGMA = 1.0
MSG_IN_DIM = 2 * EMB_DIM + EDGE_DIM + 3 * VDIM   # 127
LN_EPS = 1e-5
_SLAB_W = 2 * EMB_DIM               # lane width of the packed weight/constant slab (64)
_VMEM = pltpu.MemorySpace.VMEM


def _round8(r):
    return ((r + 7) // 8) * 8


# ------------- constant expand/contract matrices (flat convention: R_flat[3r+c] = R[r,c]) ----
def _rot_expand_constants():
    # apply:  out[3m+c] = sum_k R[c,k] * v[3m+k]
    #   v_exp = v @ P ; rot_exp = R_flat @ Q ; out = (v_exp * rot_exp) @ S
    p = np.zeros((VDIM, NUM_MODES * 9), np.float32)
    q = np.zeros((9, NUM_MODES * 9), np.float32)
    s = np.zeros((NUM_MODES * 9, VDIM), np.float32)
    for m in range(NUM_MODES):
        for c in range(3):
            for k in range(3):
                p[3 * m + k, 9 * m + 3 * c + k] = 1.0
                q[3 * c + k, 9 * m + 3 * c + k] = 1.0
                s[9 * m + 3 * c + k, 3 * m + c] = 1.0
    return p, q, s


def _compose_constants():
    # R_ij[p,q] = sum_a R_i[a,p]*R_j[a,q]  ->  R_ij_flat = ((R_i_flat@EI)*(R_j_flat@EJ))@C27
    ei = np.zeros((9, 27), np.float32)
    ej = np.zeros((9, 27), np.float32)
    c27 = np.zeros((27, 9), np.float32)
    for a in range(3):
        for pp in range(3):
            for qq in range(3):
                idx = 9 * a + 3 * pp + qq
                ei[3 * a + pp, idx] = 1.0
                ej[3 * a + qq, idx] = 1.0
                c27[idx, 3 * pp + qq] = 1.0
    return ei, ej, c27


def _trans_constants():
    # t_ij[c] = sum_k R_i[k,c]*dt[k]  ->  t_ij = ((dt@D3) * R_i_flat) @ S3
    d3 = np.zeros((3, 9), np.float32)
    s3 = np.zeros((9, 3), np.float32)
    for k in range(3):
        for c in range(3):
            d3[k, 3 * k + c] = 1.0
            s3[3 * k + c, c] = 1.0
    return d3, s3


_P_NP, _Q_NP, _S_NP = _rot_expand_constants()
_EI_NP, _EJ_NP, _C27_NP = _compose_constants()
_D3_NP, _S3_NP = _trans_constants()


# ---------------- packed slab layout (static, 8-row aligned blocks) ----------------
def _build_slab_layout():
    blocks = [("P", (VDIM, 18)), ("Q", (9, 18)), ("S", (18, VDIM)),
              ("EI", (9, 27)), ("EJ", (9, 27)), ("C27", (27, 9)),
              ("D3", (3, 9)), ("S3", (9, 3)),
              ("IN_G", (1, INPUT_DIM)), ("IN_B", (1, INPUT_DIM)),
              ("IN_W", (INPUT_DIM, EMB_DIM)), ("IN_BIAS", (1, EMB_DIM)),
              ("W_EA", (EDGE_DIM, 2 * EMB_DIM)), ("B1", (1, 2 * EMB_DIM))]
    for li in range(NUM_LAYERS):
        blocks += [(f"WXIXJ{li}", (EMB_DIM, 2 * EMB_DIM)),
                   (f"WVI{li}", (VDIM, EMB_DIM)),
                   (f"WVJ{li}", (VDIM, EMB_DIM)),
                   (f"W2{li}", (EMB_DIM, EMB_DIM)),
                   (f"W3{li}", (EMB_DIM, EMB_DIM)),
                   (f"B2{li}", (1, EMB_DIM)),
                   (f"B3{li}", (1, EMB_DIM)),
                   (f"LNG{li}", (1, EMB_DIM)),
                   (f"LNB{li}", (1, EMB_DIM)),
                   (f"WVX{li}", (EMB_DIM, VDIM)),
                   (f"WVV{li}", (VDIM, VDIM))]
    layout, off = {}, 0
    for name, shp in blocks:
        off = _round8(off)
        layout[name] = (off, shp)
        off += shp[0]
    return layout, _round8(off)


_SLAB_LAYOUT, _SLAB_ROWS = _build_slab_layout()


def _blk(w_ref, name):
    off, (r, c) = _SLAB_LAYOUT[name]
    return w_ref[off:off + r, 0:c]


# ---------------- in-kernel math helpers ----------------
def _erf(x):
    # Abramowitz & Stegun 7.1.26 rational approximation (max abs err ~1.5e-7).
    a1, a2, a3, a4, a5 = 0.254829592, -0.284496736, 1.421413741, -1.453152027, 1.061405429
    p = 0.3275911
    s = jnp.where(x >= 0.0, 1.0, -1.0)
    ax = jnp.abs(x)
    t = pl.reciprocal(1.0 + p * ax, approx=True)   # EUP slot (parity-neutral vs poly error)
    poly = ((((a5 * t + a4) * t + a3) * t + a2) * t + a1) * t
    return s * (1.0 - poly * jnp.exp(-ax * ax))


def _gelu(x):
    # exact (erf-based) GELU, matching torch.nn.GELU() default
    return 0.5 * x * (1.0 + _erf(x * 0.7071067811865476))


def _layernorm(x, gamma, beta):
    mu = jnp.mean(x, axis=-1, keepdims=True)
    var = jnp.mean((x - mu) ** 2, axis=-1, keepdims=True)
    return (x - mu) * jax.lax.rsqrt(var + LN_EPS) * gamma + beta


def _apply_rot(rot_exp, vecs, p_mat, s_mat):
    # rot_exp = R_flat @ Q (rows, 18); vecs (rows, VDIM) per-mode 3-vectors.
    v_exp = jnp.dot(vecs, p_mat, preferred_element_type=jnp.float32)
    return jnp.dot(v_exp * rot_exp, s_mat, preferred_element_type=jnp.float32)


# ---------------- fused Pallas kernel ----------------
def _fused_forward_kernel(nodes_ref, edges_ref, w_ref, emb_out_ref, v_out_ref):
    f32 = jnp.float32
    n = nodes_ref.shape[0]          # padded node count
    e = edges_ref.shape[0]          # padded edge count

    # ---- constants / shared weights (loaded once from the packed slab) ----
    p_mat = _blk(w_ref, "P")
    q_mat = _blk(w_ref, "Q")
    s_mat = _blk(w_ref, "S")
    ei_mat = _blk(w_ref, "EI")
    ej_mat = _blk(w_ref, "EJ")
    c27_mat = _blk(w_ref, "C27")
    d3_mat = _blk(w_ref, "D3")
    s3_mat = _blk(w_ref, "S3")

    # ---- node inputs ----
    x = nodes_ref[:, 0:INPUT_DIM]
    bb = nodes_ref[:, INPUT_DIM:INPUT_DIM + 9]    # [N(3) | CA(3) | C(3)] per residue

    # ---- input embedding: LayerNorm -> Linear (dropout = identity in eval) ----
    xin = _layernorm(x, _blk(w_ref, "IN_G"), _blk(w_ref, "IN_B"))
    emb = (jnp.dot(xin, _blk(w_ref, "IN_W"), preferred_element_type=f32)
           + _blk(w_ref, "IN_BIAS"))

    # ---- gather / scatter operators from the edge indices (one (E, 2N) one-hot) ----
    row_idx = edges_ref[:, 0:1]
    col_idx = edges_ref[:, 1:2]
    iota2 = jax.lax.broadcasted_iota(jnp.int32, (e, 2 * n), 1)
    tgt = jnp.where(iota2 < n, row_idx, col_idx + n)       # padded edges (-1) match nothing
    sel_cat = (iota2 == tgt).astype(f32)                   # (E, 2N): [row one-hot | col one-hot]
    sel_row = sel_cat[:, :n]                               # (E, N)
    sel_col = sel_cat[:, n:]                               # (E, N)
    deg = jnp.sum(sel_row, axis=0, keepdims=True)          # (1, N) in-degree at `row`
    sel_row_mean = sel_row * (1.0 / jnp.maximum(deg, 1.0))  # pre-scaled for scatter-mean

    # ---- node rigid frames (Gram-Schmidt, as Rigid.make_transform_from_reference) ----
    n_at = bb[:, 0:3]
    ca = bb[:, 3:6]
    c_at = bb[:, 6:9]
    eps = 1e-20
    d1 = c_at - ca
    e1 = d1 * jax.lax.rsqrt(jnp.sum(d1 * d1, -1, keepdims=True) + eps)
    u = n_at - ca
    u = u - jnp.sum(u * e1, -1, keepdims=True) * e1
    e2 = u * jax.lax.rsqrt(jnp.sum(u * u, -1, keepdims=True) + eps)
    e1x, e1y, e1z = e1[:, 0:1], e1[:, 1:2], e1[:, 2:3]
    e2x, e2y, e2z = e2[:, 0:1], e2[:, 1:2], e2[:, 2:3]
    e3x = e1y * e2z - e1z * e2y
    e3y = e1z * e2x - e1x * e2z
    e3z = e1x * e2y - e1y * e2x
    # rot_flat[:, 3*i + j] = R[i, j] = e_{j+1}[i]   (columns of R are e1, e2, e3)
    rot_flat = jnp.concatenate(
        [e1x, e2x, e3x, e1y, e2y, e3y, e1z, e2z, e3z], axis=-1)   # (N, 9)
    nrot_exp = jnp.dot(rot_flat, q_mat, preferred_element_type=f32)   # (N, 18)

    # ---- per-edge geometry via the one-hot gathers (R | bb fused in one table) ----
    node_geo = jnp.concatenate([rot_flat, bb], axis=-1)               # (N, 18)
    geo_i = jnp.dot(sel_row, node_geo, preferred_element_type=f32)    # (E, 18)
    geo_j = jnp.dot(sel_col, node_geo, preferred_element_type=f32)    # (E, 18)
    ri = geo_i[:, 0:9]
    rj = geo_j[:, 0:9]
    bb_i = geo_i[:, 9:18]
    bb_j = geo_j[:, 9:18]
    ca_i = geo_i[:, 12:15]
    ca_j = geo_j[:, 12:15]

    # ---- relative rotation R_ij = R_i^T R_j (expand / multiply / contract) ----
    rij = jnp.dot(jnp.dot(ri, ei_mat, preferred_element_type=f32)
                  * jnp.dot(rj, ej_mat, preferred_element_type=f32),
                  c27_mat, preferred_element_type=f32)                # (E, 9)
    erot_exp = jnp.dot(rij, q_mat, preferred_element_type=f32)        # (E, 18)

    # ---- quaternion edge feature (closed-form Shepperd; sign matches the eigh-based
    #      reference only up to the arbitrary eigenvector sign) ----
    xx, xy, xz = rij[:, 0:1], rij[:, 1:2], rij[:, 2:3]
    yx, yy, yz = rij[:, 3:4], rij[:, 4:5], rij[:, 5:6]
    zx, zy, zz = rij[:, 6:7], rij[:, 7:8], rij[:, 8:9]
    l0 = 1.0 + xx + yy + zz
    l1 = 1.0 + xx - yy - zz
    l2 = 1.0 + yy - xx - zz
    l3 = 1.0 + zz - xx - yy
    qw = jnp.concatenate([l0, zy - yz, xz - zx, yx - xy], axis=-1)
    qx = jnp.concatenate([zy - yz, l1, xy + yx, xz + zx], axis=-1)
    qy = jnp.concatenate([xz - zx, xy + yx, l2, yz + zy], axis=-1)
    qz = jnp.concatenate([yx - xy, xz + zx, yz + zy, l3], axis=-1)
    lmax = jnp.maximum(jnp.maximum(l0, l1), jnp.maximum(l2, l3))
    quat = jnp.where(l0 >= lmax, qw,
                     jnp.where(l1 >= lmax, qx,
                               jnp.where(l2 >= lmax, qy, qz)))
    quat = quat * jax.lax.rsqrt(jnp.sum(quat * quat, -1, keepdims=True) + 1e-20)

    # ---- translation / distance features ----
    dt = ca_j - ca_i
    tij = jnp.dot(jnp.dot(dt, d3_mat, preferred_element_type=f32) * ri,
                  s3_mat, preferred_element_type=f32)                  # (E, 3) = R_i^T (t_j - t_i)
    log_dist = jnp.log(jnp.sqrt(jnp.sum(tij * tij, -1, keepdims=True)) + 1e-8)
    chain = jnp.log(jnp.abs((row_idx - col_idx).astype(f32)) + 1.0)

    # ---- radial basis over the 3x3 backbone-atom distances ----
    mu = (jax.lax.broadcasted_iota(jnp.int32, (1, NUM_BASIS), 1).astype(f32)
          * (MAX_DIST / (NUM_BASIS - 1)))
    inv2s2 = 1.0 / (2.0 * SIGMA * SIGMA)
    radial_blocks = []
    for a in range(3):
        for b in range(3):
            diff = bb_i[:, 3 * a:3 * a + 3] - bb_j[:, 3 * b:3 * b + 3]
            d = jnp.sqrt(jnp.sum(diff * diff, -1, keepdims=True))      # (E, 1)
            radial_blocks.append(jnp.exp(-(d - mu) ** 2 * inv2s2))     # (E, NUM_BASIS)

    edge_attr = jnp.concatenate([quat, tij, chain, log_dist] + radial_blocks,
                                axis=-1)                                # (E, 45)
    # edge-attr part of BOTH layers' first message matmuls (b1 folded in), one push
    ea_msg = (jnp.dot(edge_attr, _blk(w_ref, "W_EA"), preferred_element_type=f32)
              + _blk(w_ref, "B1"))                                      # (E, 64)

    # ---- MPNN layers (shared_layers=False -> static unroll; v==0 before layer 0) ----
    v = None
    for li in range(NUM_LAYERS):
        # per-node contributions to the message concat [x_i | x_j | v_i | vj_rot | s1 | ea]
        nc = jnp.dot(emb, _blk(w_ref, f"WXIXJ{li}"), preferred_element_type=f32)  # (N, 64)
        rc = nc[:, :EMB_DIM]
        cc = nc[:, EMB_DIM:]
        if v is not None:
            rc = rc + jnp.dot(v, _blk(w_ref, f"WVI{li}"), preferred_element_type=f32)
        node_stack = jnp.concatenate([rc, cc], axis=0)                  # (2N, 32)
        h = jnp.dot(sel_cat, node_stack, preferred_element_type=f32)    # (E, 32) = rc_i + cc_j
        h = h + ea_msg[:, EMB_DIM * li:EMB_DIM * (li + 1)]
        if v is not None:
            v_j = jnp.dot(sel_col, v, preferred_element_type=f32)       # (E, 6)
            vj_rot = _apply_rot(erot_exp, v_j, p_mat, s_mat)            # (E, 6) = R_ij v_j
            h = h + jnp.dot(vj_rot, _blk(w_ref, f"WVJ{li}"), preferred_element_type=f32)
        h = _gelu(h)
        h = _gelu(jnp.dot(h, _blk(w_ref, f"W2{li}"), preferred_element_type=f32)
                  + _blk(w_ref, f"B2{li}"))
        msg = (jnp.dot(h, _blk(w_ref, f"W3{li}"), preferred_element_type=f32)
               + _blk(w_ref, f"B3{li}"))                                # (E, 32)

        # aggr='mean' at `row`: transposed contraction of the pre-scaled one-hot over E
        x_upd = jax.lax.dot_general(sel_row_mean, msg, (((0,), (0,)), ((), ())),
                                    preferred_element_type=f32)         # (N, 32)
        emb = _layernorm(emb + x_upd, _blk(w_ref, f"LNG{li}"), _blk(w_ref, f"LNB{li}"))
        v_upd = jnp.dot(emb, _blk(w_ref, f"WVX{li}"), preferred_element_type=f32)
        if v is not None:
            v_upd = v_upd + jnp.dot(v, _blk(w_ref, f"WVV{li}"), preferred_element_type=f32)
            v = v + v_upd
        else:
            v = v_upd                                                   # v was exactly zero

    # ---- final global rotation: v_global = R_node @ v ----
    v_glob = _apply_rot(nrot_exp, v, p_mat, s_mat)                      # (N, 6)

    emb_out_ref[...] = emb
    v_out_ref[...] = v_glob


# ---------------- host-side weight/constant packing (done once, outside jit) -------------
def pack_params(params):
    slab = np.zeros((_SLAB_ROWS, _SLAB_W), np.float32)

    def put(name, arr):
        arr = np.asarray(arr, np.float32)
        off, shp = _SLAB_LAYOUT[name]
        assert arr.shape == shp, (name, arr.shape, shp)
        slab[off:off + shp[0], :shp[1]] = arr

    put("P", _P_NP); put("Q", _Q_NP); put("S", _S_NP)
    put("EI", _EI_NP); put("EJ", _EJ_NP); put("C27", _C27_NP)
    put("D3", _D3_NP); put("S3", _S3_NP)
    put("IN_G", params["in_gamma"]); put("IN_B", params["in_beta"])
    put("IN_W", params["in_w"]); put("IN_BIAS", params["in_b"])

    # W1 is pre-split into row blocks of the message concat
    # [x_i | x_j | v_i | vj_rot | s1 | edge_attr], folding s1 = v_i - vj_rot.
    w_ea_cols, b1_cols = [], []
    for li, lp in enumerate(params["layers"]):
        w1 = np.asarray(lp["w1"], np.float32)
        w_xi = w1[:EMB_DIM]
        w_xj = w1[EMB_DIM:2 * EMB_DIM]
        w_vi = w1[2 * EMB_DIM:2 * EMB_DIM + VDIM]
        w_vj = w1[2 * EMB_DIM + VDIM:2 * EMB_DIM + 2 * VDIM]
        w_s1 = w1[2 * EMB_DIM + 2 * VDIM:2 * EMB_DIM + 3 * VDIM]
        w_ea_cols.append(w1[2 * EMB_DIM + 3 * VDIM:])
        b1_cols.append(np.asarray(lp["b1"], np.float32))
        put(f"WXIXJ{li}", np.concatenate([w_xi, w_xj], axis=1))
        put(f"WVI{li}", w_vi + w_s1)
        put(f"WVJ{li}", w_vj - w_s1)
        put(f"W2{li}", lp["w2"]); put(f"W3{li}", lp["w3"])
        put(f"B2{li}", lp["b2"]); put(f"B3{li}", lp["b3"])
        put(f"LNG{li}", lp["ln_gamma"]); put(f"LNB{li}", lp["ln_beta"])
        put(f"WVX{li}", lp["wv_x"]); put(f"WVV{li}", lp["wv_v"])
    put("W_EA", np.concatenate(w_ea_cols, axis=1))
    put("B1", np.concatenate(b1_cols, axis=1))
    return jnp.asarray(slab)


# ---------------- full forward (single fused pallas_call) ----------------
def protein_motion_mpnn_forward(wslab, x, bb, row, col):
    n, e = x.shape[0], row.shape[0]
    n_pad = max(_round8(n), 8)
    e_pad = max(_round8(e), 8)

    nodes = jnp.concatenate([x, bb.reshape(n, 9)], axis=-1)
    nodes = jnp.pad(nodes, ((0, n_pad - n), (0, 0)))
    edges = jnp.stack([row.astype(jnp.int32), col.astype(jnp.int32)], axis=-1)
    edges = jnp.pad(edges, ((0, e_pad - e), (0, 0)), constant_values=-1)

    # TODO(synk): add a node-tiled "parallel" grid axis for v7x (2 TensorCores) once the
    #             dense one-hot gathers are replaced by sorted-edge segment reductions.
    emb_p, v_p = pl.pallas_call(
        _fused_forward_kernel,
        out_shape=(jax.ShapeDtypeStruct((n_pad, EMB_DIM), jnp.float32),
                   jax.ShapeDtypeStruct((n_pad, VDIM), jnp.float32)),
        in_specs=[pl.BlockSpec(memory_space=_VMEM)] * 3,
        out_specs=(pl.BlockSpec(memory_space=_VMEM),
                   pl.BlockSpec(memory_space=_VMEM)),
        compiler_params=pltpu.CompilerParams(vmem_limit_bytes=32 * 1024 * 1024),
    )(nodes, edges, wslab)

    emb = emb_p[:n]
    v_global = v_p[:n].reshape(n, NUM_MODES, 3)
    return emb, v_global


# ---------------- deterministic parameter init ----------------
def init_params(key):
    keys = jax.random.split(key, 1 + NUM_LAYERS)

    def lin(k, fan_in, fan_out):
        bound = 1.0 / np.sqrt(fan_in)
        kw, kb = jax.random.split(k)
        w = jax.random.uniform(kw, (fan_in, fan_out), jnp.float32, -bound, bound)
        b = jax.random.uniform(kb, (1, fan_out), jnp.float32, -bound, bound)
        return w, b

    in_w, in_b = lin(keys[0], INPUT_DIM, EMB_DIM)
    params = {
        "in_gamma": jnp.ones((1, INPUT_DIM), jnp.float32),
        "in_beta": jnp.zeros((1, INPUT_DIM), jnp.float32),
        "in_w": in_w, "in_b": in_b,
        "layers": [],
    }
    for li in range(NUM_LAYERS):
        k1, k2, k3, k4 = jax.random.split(keys[1 + li], 4)
        w1, b1 = lin(k1, MSG_IN_DIM, EMB_DIM)
        w2, b2 = lin(k2, EMB_DIM, EMB_DIM)
        w3, b3 = lin(k3, EMB_DIM, EMB_DIM)
        wv, _ = lin(k4, EMB_DIM + VDIM, VDIM)        # vect_mlp has bias=False
        params["layers"].append({
            "w1": w1, "b1": b1, "w2": w2, "b2": b2, "w3": w3, "b3": b3,
            "ln_gamma": jnp.ones((1, EMB_DIM), jnp.float32),
            "ln_beta": jnp.zeros((1, EMB_DIM), jnp.float32),
            "wv_x": wv[:EMB_DIM], "wv_v": wv[EMB_DIM:],
        })
    return params


if __name__ == "__main__":
    key = jax.random.PRNGKey(0)
    k_params, k_x, k_bb = jax.random.split(key, 3)

    N = 16
    params = init_params(k_params)
    wslab = pack_params(params)                      # host-side packing, done once

    x = jax.random.normal(k_x, (N, INPUT_DIM), jnp.float32)
    # synthetic backbone: roughly a chain along +x with noise, 3 atoms (N, CA, C) per residue
    base = jnp.arange(N, dtype=jnp.float32)[:, None] * jnp.array([3.8, 0.0, 0.0])
    bb = base[:, None, :] + jax.random.normal(k_bb, (N, 3, 3), jnp.float32)

    # edges: every node connects to neighbors with sequence distance 1 or 2 (both directions)
    ri_, ci_ = np.meshgrid(np.arange(N), np.arange(N), indexing="ij")
    m = (np.abs(ri_ - ci_) >= 1) & (np.abs(ri_ - ci_) <= 2)
    row = jnp.asarray(ri_[m], dtype=jnp.int32)
    col = jnp.asarray(ci_[m], dtype=jnp.int32)

    fwd = jax.jit(protein_motion_mpnn_forward)
    emb, v_global = fwd(wslab, x, bb, row, col)
    jax.block_until_ready((emb, v_global))

    assert emb.shape == (N, EMB_DIM)
    assert v_global.shape == (N, NUM_MODES, 3)
    assert bool(jnp.isfinite(emb).all()) and bool(jnp.isfinite(v_global).all())
    print("KERNEL_OK")
</pallas_src>

<mosaic_0001>
module attributes {stable_mosaic.version = 11 : i64} {
  func.func @_fused_forward_kernel(%arg0: memref<16x33xf32, #tpu.memory_space<vmem>>, %arg1: memref<64x2xi32, #tpu.memory_space<vmem>>, %arg2: memref<608x64xf32, #tpu.memory_space<vmem>>, %arg3: memref<16x32xf32, #tpu.memory_space<vmem>>, %arg4: memref<16x6xf32, #tpu.memory_space<vmem>>) attributes {dimension_semantics = [], scalar_prefetch = 0 : i64, scratch_operands = 0 : i64, tpu.core_type = #tpu.core_type<tc>} {
    %c0 = arith.constant 0 : index
    %c0_0 = arith.constant 0 : index
    %0 = vector.load %arg2[%c0, %c0_0] : memref<608x64xf32, #tpu.memory_space<vmem>>, vector<6x18xf32>
    %c8 = arith.constant 8 : index
    %c0_1 = arith.constant 0 : index
    %1 = vector.load %arg2[%c8, %c0_1] : memref<608x64xf32, #tpu.memory_space<vmem>>, vector<9x18xf32>
    %c24 = arith.constant 24 : index
    %c0_2 = arith.constant 0 : index
    %2 = vector.load %arg2[%c24, %c0_2] : memref<608x64xf32, #tpu.memory_space<vmem>>, vector<18x6xf32>
    %c48 = arith.constant 48 : index
    %c0_3 = arith.constant 0 : index
    %3 = vector.load %arg2[%c48, %c0_3] : memref<608x64xf32, #tpu.memory_space<vmem>>, vector<9x27xf32>
    %c64 = arith.constant 64 : index
    %c0_4 = arith.constant 0 : index
    %4 = vector.load %arg2[%c64, %c0_4] : memref<608x64xf32, #tpu.memory_space<vmem>>, vector<9x27xf32>
    %c80 = arith.constant 80 : index
    %c0_5 = arith.constant 0 : index
    %5 = vector.load %arg2[%c80, %c0_5] : memref<608x64xf32, #tpu.memory_space<vmem>>, vector<27x9xf32>
    %c112 = arith.constant 112 : index
    %c0_6 = arith.constant 0 : index
    %6 = vector.load %arg2[%c112, %c0_6] : memref<608x64xf32, #tpu.memory_space<vmem>>, vector<3x9xf32>
    %c120 = arith.constant 120 : index
    %c0_7 = arith.constant 0 : index
    %7 = vector.load %arg2[%c120, %c0_7] : memref<608x64xf32, #tpu.memory_space<vmem>>, vector<9x3xf32>
    %c0_8 = arith.constant 0 : index
    %c0_9 = arith.constant 0 : index
    %8 = vector.load %arg0[%c0_8, %c0_9] : memref<16x33xf32, #tpu.memory_space<vmem>>, vector<16x24xf32>
    %c0_10 = arith.constant 0 : index
    %c24_11 = arith.constant 24 : index
    %9 = vector.load %arg0[%c0_10, %c24_11] : memref<16x33xf32, #tpu.memory_space<vmem>>, vector<16x9xf32>
    %c136 = arith.constant 136 : index
    %c0_12 = arith.constant 0 : index
    %10 = vector.load %arg2[%c136, %c0_12] : memref<608x64xf32, #tpu.memory_space<vmem>>, vector<1x24xf32>
    %c144 = arith.constant 144 : index
    %c0_13 = arith.constant 0 : index
    %11 = vector.load %arg2[%c144, %c0_13] : memref<608x64xf32, #tpu.memory_space<vmem>>, vector<1x24xf32>
    %cst = arith.constant dense<0.000000e+00> : vector<16xf32>
    %12 = vector.multi_reduction <add>, %8, %cst [1] : vector<16x24xf32> to vector<16xf32>
    %13 = vector.shape_cast %12 : vector<16xf32> to vector<16x1xf32>
    %cst_14 = arith.constant 2.400000e+01 : f32
    %14 = vector.broadcast %cst_14 : f32 to vector<16x1xf32>
    %15 = arith.divf %13, %14 : vector<16x1xf32>
    %16 = vector.broadcast %15 : vector<16x1xf32> to vector<16x24xf32>
    %17 = arith.subf %8, %16 : vector<16x24xf32>
    %18 = arith.mulf %17, %17 : vector<16x24xf32>
    %cst_15 = arith.constant dense<0.000000e+00> : vector<16xf32>
    %19 = vector.multi_reduction <add>, %18, %cst_15 [1] : vector<16x24xf32> to vector<16xf32>
    %20 = vector.shape_cast %19 : vector<16xf32> to vector<16x1xf32>
    %cst_16 = arith.constant 2.400000e+01 : f32
    %21 = vector.broadcast %cst_16 : f32 to vector<16x1xf32>
    %22 = arith.divf %20, %21 : vector<16x1xf32>
    %23 = vector.broadcast %15 : vector<16x1xf32> to vector<16x24xf32>
    %24 = arith.subf %8, %23 : vector<16x24xf32>
    %cst_17 = arith.constant 9.99999974E-6 : f32
    %25 = vector.broadcast %cst_17 : f32 to vector<16x1xf32>
    %26 = arith.addf %22, %25 : vector<16x1xf32>
    %27 = math.rsqrt %26 : vector<16x1xf32>
    %28 = vector.broadcast %27 : vector<16x1xf32> to vector<16x24xf32>
    %29 = arith.mulf %24, %28 : vector<16x24xf32>
    %30 = vector.broadcast %10 : vector<1x24xf32> to vector<16x24xf32>
    %31 = arith.mulf %29, %30 : vector<16x24xf32>
    %32 = vector.broadcast %11 : vector<1x24xf32> to vector<16x24xf32>
    %33 = arith.addf %31, %32 : vector<16x24xf32>
    %c152 = arith.constant 152 : index
    %c0_18 = arith.constant 0 : index
    %34 = vector.load %arg2[%c152, %c0_18] : memref<608x64xf32, #tpu.memory_space<vmem>>, vector<24x32xf32>
    %cst_19 = arith.constant dense<0.000000e+00> : vector<16x32xf32>
    %35 = tpu.matmul %33, %34, %cst_19 {dimension_numbers = #tpu.dot_dimension_numbers<[1], [0], [0], [1], [0, 0, 1, 1], [], []>} : vector<16x24xf32>, vector<24x32xf32>, vector<16x32xf32> -> vector<16x32xf32>
    %c176 = arith.constant 176 : index
    %c0_20 = arith.constant 0 : index
    %36 = vector.load %arg2[%c176, %c0_20] : memref<608x64xf32, #tpu.memory_space<vmem>>, vector<1x32xf32>
    %37 = vector.broadcast %36 : vector<1x32xf32> to vector<16x32xf32>
    %38 = arith.addf %35, %37 : vector<16x32xf32>
    %c0_21 = arith.constant 0 : index
    %c0_22 = arith.constant 0 : index
    %39 = vector.load %arg1[%c0_21, %c0_22] : memref<64x2xi32, #tpu.memory_space<vmem>>, vector<64x1xi32>
    %c0_23 = arith.constant 0 : index
    %c1 = arith.constant 1 : index
    %40 = vector.load %arg1[%c0_23, %c1] : memref<64x2xi32, #tpu.memory_space<vmem>>, vector<64x1xi32>
    %41 = tpu.iota {dimensions = array<i32: 1>} : vector<64x32xi32>
    %c16_i32 = arith.constant 16 : i32
    %42 = vector.broadcast %c16_i32 : i32 to vector<64x32xi32>
    %43 = arith.cmpi slt, %41, %42 : vector<64x32xi32>
    %c16_i32_24 = arith.constant 16 : i32
    %44 = vector.broadcast %c16_i32_24 : i32 to vector<64x1xi32>
    %45 = arith.addi %40, %44 : vector<64x1xi32>
    %46 = vector.shape_cast %39 : vector<64x1xi32> to vector<64x1xi32>
    %47 = vector.broadcast %46 : vector<64x1xi32> to vector<64x32xi32>
    %48 = vector.shape_cast %45 : vector<64x1xi32> to vector<64x1xi32>
    %49 = vector.broadcast %48 : vector<64x1xi32> to vector<64x32xi32>
    %50 = arith.select %43, %47, %49 : vector<64x32xi1>, vector<64x32xi32>
    %51 = arith.cmpi eq, %41, %50 : vector<64x32xi32>
    %52 = arith.extui %51 : vector<64x32xi1> to vector<64x32xi32>
    %53 = arith.sitofp %52 : vector<64x32xi32> to vector<64x32xf32>
    %54 = vector.extract_strided_slice %53 {offsets = [0, 0], sizes = [64, 16], strides = [1, 1]} : vector<64x32xf32> to vector<64x16xf32>
    %55 = vector.extract_strided_slice %53 {offsets = [0, 16], sizes = [64, 16], strides = [1, 1]} : vector<64x32xf32> to vector<64x16xf32>
    %cst_25 = arith.constant dense<0.000000e+00> : vector<16xf32>
    %56 = vector.multi_reduction <add>, %54, %cst_25 [0] : vector<64x16xf32> to vector<16xf32>
    %57 = vector.shape_cast %56 : vector<16xf32> to vector<1x16xf32>
    %cst_26 = arith.constant 1.000000e+00 : f32
    %58 = vector.broadcast %cst_26 : f32 to vector<1x16xf32>
    %59 = arith.maximumf %57, %58 : vector<1x16xf32>
    %cst_27 = arith.constant 1.000000e+00 : f32
    %60 = vector.broadcast %cst_27 : f32 to vector<1x16xf32>
    %61 = arith.divf %60, %59 : vector<1x16xf32>
    %62 = vector.broadcast %61 : vector<1x16xf32> to vector<64x16xf32>
    %63 = arith.mulf %54, %62 : vector<64x16xf32>
    %64 = vector.extract_strided_slice %9 {offsets = [0, 0], sizes = [16, 3], strides = [1, 1]} : vector<16x9xf32> to vector<16x3xf32>
    %65 = vector.extract_strided_slice %9 {offsets = [0, 3], sizes = [16, 3], strides = [1, 1]} : vector<16x9xf32> to vector<16x3xf32>
    %66 = vector.extract_strided_slice %9 {offsets = [0, 6], sizes = [16, 3], strides = [1, 1]} : vector<16x9xf32> to vector<16x3xf32>
    %67 = arith.subf %66, %65 : vector<16x3xf32>
    %68 = arith.mulf %67, %67 : vector<16x3xf32>
    %cst_28 = arith.constant dense<0.000000e+00> : vector<16xf32>
    %69 = vector.multi_reduction <add>, %68, %cst_28 [1] : vector<16x3xf32> to vector<16xf32>
    %70 = vector.shape_cast %69 : vector<16xf32> to vector<16x1xf32>
    %cst_29 = arith.constant 9.99999968E-21 : f32
    %71 = vector.broadcast %cst_29 : f32 to vector<16x1xf32>
    %72 = arith.addf %70, %71 : vector<16x1xf32>
    %73 = math.rsqrt %72 : vector<16x1xf32>
    %74 = vector.broadcast %73 : vector<16x1xf32> to vector<16x3xf32>
    %75 = arith.mulf %67, %74 : vector<16x3xf32>
    %76 = arith.subf %64, %65 : vector<16x3xf32>
    %77 = arith.mulf %76, %75 : vector<16x3xf32>
    %cst_30 = arith.constant dense<0.000000e+00> : vector<16xf32>
    %78 = vector.multi_reduction <add>, %77, %cst_30 [1] : vector<16x3xf32> to vector<16xf32>
    %79 = vector.shape_cast %78 : vector<16xf32> to vector<16x1xf32>
    %80 = vector.broadcast %79 : vector<16x1xf32> to vector<16x3xf32>
    %81 = arith.mulf %80, %75 : vector<16x3xf32>
    %82 = arith.subf %76, %81 : vector<16x3xf32>
    %83 = arith.mulf %82, %82 : vector<16x3xf32>
    %cst_31 = arith.constant dense<0.000000e+00> : vector<16xf32>
    %84 = vector.multi_reduction <add>, %83, %cst_31 [1] : vector<16x3xf32> to vector<16xf32>
    %85 = vector.shape_cast %84 : vector<16xf32> to vector<16x1xf32>
    %cst_32 = arith.constant 9.99999968E-21 : f32
    %86 = vector.broadcast %cst_32 : f32 to vector<16x1xf32>
    %87 = arith.addf %85, %86 : vector<16x1xf32>
    %88 = math.rsqrt %87 : vector<16x1xf32>
    %89 = vector.broadcast %88 : vector<16x1xf32> to vector<16x3xf32>
    %90 = arith.mulf %82, %89 : vector<16x3xf32>
    %91 = vector.extract_strided_slice %75 {offsets = [0, 0], sizes = [16, 1], strides = [1, 1]} : vector<16x3xf32> to vector<16x1xf32>
    %92 = vector.extract_strided_slice %75 {offsets = [0, 1], sizes = [16, 1], strides = [1, 1]} : vector<16x3xf32> to vector<16x1xf32>
    %93 = vector.extract_strided_slice %75 {offsets = [0, 2], sizes = [16, 1], strides = [1, 1]} : vector<16x3xf32> to vector<16x1xf32>
    %94 = vector.extract_strided_slice %90 {offsets = [0, 0], sizes = [16, 1], strides = [1, 1]} : vector<16x3xf32> to vector<16x1xf32>
    %95 = vector.extract_strided_slice %90 {offsets = [0, 1], sizes = [16, 1], strides = [1, 1]} : vector<16x3xf32> to vector<16x1xf32>
    %96 = vector.extract_strided_slice %90 {offsets = [0, 2], sizes = [16, 1], strides = [1, 1]} : vector<16x3xf32> to vector<16x1xf32>
    %97 = arith.mulf %92, %96 : vector<16x1xf32>
    %98 = arith.mulf %93, %95 : vector<16x1xf32>
    %99 = arith.subf %97, %98 : vector<16x1xf32>
    %100 = arith.mulf %93, %94 : vector<16x1xf32>
    %101 = arith.mulf %91, %96 : vector<16x1xf32>
    %102 = arith.subf %100, %101 : vector<16x1xf32>
    %103 = arith.mulf %91, %95 : vector<16x1xf32>
    %104 = arith.mulf %92, %94 : vector<16x1xf32>
    %105 = arith.subf %103, %104 : vector<16x1xf32>
    %106 = tpu.concatenate %91, %94, %99, %92, %95, %102, %93, %96, %105 in 1 : vector<16x1xf32>, vector<16x1xf32>, vector<16x1xf32>, vector<16x1xf32>, vector<16x1xf32>, vector<16x1xf32>, vector<16x1xf32>, vector<16x1xf32>, vector<16x1xf32> -> vector<16x9xf32>
    %cst_33 = arith.constant dense<0.000000e+00> : vector<16x18xf32>
    %107 = tpu.matmul %106, %1, %cst_33 {dimension_numbers = #tpu.dot_dimension_numbers<[1], [0], [0], [1], [0, 0, 1, 1], [], []>} : vector<16x9xf32>, vector<9x18xf32>, vector<16x18xf32> -> vector<16x18xf32>
    %108 = tpu.concatenate %106, %9 in 1 : vector<16x9xf32>, vector<16x9xf32> -> vector<16x18xf32>
    %cst_34 = arith.constant dense<0.000000e+00> : vector<64x18xf32>
    %109 = tpu.matmul %54, %108, %cst_34 {dimension_numbers = #tpu.dot_dimension_numbers<[1], [0], [0], [1], [0, 0, 1, 1], [], []>} : vector<64x16xf32>, vector<16x18xf32>, vector<64x18xf32> -> vector<64x18xf32>
    %cst_35 = arith.constant dense<0.000000e+00> : vector<64x18xf32>
    %110 = tpu.matmul %55, %108, %cst_35 {dimension_numbers = #tpu.dot_dimension_numbers<[1], [0], [0], [1], [0, 0, 1, 1], [], []>} : vector<64x16xf32>, vector<16x18xf32>, vector<64x18xf32> -> vector<64x18xf32>
    %111 = vector.extract_strided_slice %109 {offsets = [0, 0], sizes = [64, 9], strides = [1, 1]} : vector<64x18xf32> to vector<64x9xf32>
    %112 = vector.extract_strided_slice %110 {offsets = [0, 0], sizes = [64, 9], strides = [1, 1]} : vector<64x18xf32> to vector<64x9xf32>
    %113 = vector.extract_strided_slice %109 {offsets = [0, 9], sizes = [64, 9], strides = [1, 1]} : vector<64x18xf32> to vector<64x9xf32>
    %114 = vector.extract_strided_slice %110 {offsets = [0, 9], sizes = [64, 9], strides = [1, 1]} : vector<64x18xf32> to vector<64x9xf32>
    %115 = vector.extract_strided_slice %109 {offsets = [0, 12], sizes = [64, 3], strides = [1, 1]} : vector<64x18xf32> to vector<64x3xf32>
    %116 = vector.extract_strided_slice %110 {offsets = [0, 12], sizes = [64, 3], strides = [1, 1]} : vector<64x18xf32> to vector<64x3xf32>
    %cst_36 = arith.constant dense<0.000000e+00> : vector<64x27xf32>
    %117 = tpu.matmul %111, %3, %cst_36 {dimension_numbers = #tpu.dot_dimension_numbers<[1], [0], [0], [1], [0, 0, 1, 1], [], []>} : vector<64x9xf32>, vector<9x27xf32>, vector<64x27xf32> -> vector<64x27xf32>
    %cst_37 = arith.constant dense<0.000000e+00> : vector<64x27xf32>
    %118 = tpu.matmul %112, %4, %cst_37 {dimension_numbers = #tpu.dot_dimension_numbers<[1], [0], [0], [1], [0, 0, 1, 1], [], []>} : vector<64x9xf32>, vector<9x27xf32>, vector<64x27xf32> -> vector<64x27xf32>
    %119 = arith.mulf %117, %118 : vector<64x27xf32>
    %cst_38 = arith.constant dense<0.000000e+00> : vector<64x9xf32>
    %120 = tpu.matmul %119, %5, %cst_38 {dimension_numbers = #tpu.dot_dimension_numbers<[1], [0], [0], [1], [0, 0, 1, 1], [], []>} : vector<64x27xf32>, vector<27x9xf32>, vector<64x9xf32> -> vector<64x9xf32>
    %cst_39 = arith.constant dense<0.000000e+00> : vector<64x18xf32>
    %121 = tpu.matmul %120, %1, %cst_39 {dimension_numbers = #tpu.dot_dimension_numbers<[1], [0], [0], [1], [0, 0, 1, 1], [], []>} : vector<64x9xf32>, vector<9x18xf32>, vector<64x18xf32> -> vector<64x18xf32>
    %122 = vector.extract_strided_slice %120 {offsets = [0, 0], sizes = [64, 1], strides = [1, 1]} : vector<64x9xf32> to vector<64x1xf32>
    %123 = vector.extract_strided_slice %120 {offsets = [0, 1], sizes = [64, 1], strides = [1, 1]} : vector<64x9xf32> to vector<64x1xf32>
    %124 = vector.extract_strided_slice %120 {offsets = [0, 2], sizes = [64, 1], strides = [1, 1]} : vector<64x9xf32> to vector<64x1xf32>
    %125 = vector.extract_strided_slice %120 {offsets = [0, 3], sizes = [64, 1], strides = [1, 1]} : vector<64x9xf32> to vector<64x1xf32>
    %126 = vector.extract_strided_slice %120 {offsets = [0, 4], sizes = [64, 1], strides = [1, 1]} : vector<64x9xf32> to vector<64x1xf32>
    %127 = vector.extract_strided_slice %120 {offsets = [0, 5], sizes = [64, 1], strides = [1, 1]} : vector<64x9xf32> to vector<64x1xf32>
    %128 = vector.extract_strided_slice %120 {offsets = [0, 6], sizes = [64, 1], strides = [1, 1]} : vector<64x9xf32> to vector<64x1xf32>
    %129 = vector.extract_strided_slice %120 {offsets = [0, 7], sizes = [64, 1], strides = [1, 1]} : vector<64x9xf32> to vector<64x1xf32>
    %130 = vector.extract_strided_slice %120 {offsets = [0, 8], sizes = [64, 1], strides = [1, 1]} : vector<64x9xf32> to vector<64x1xf32>
    %cst_40 = arith.constant 1.000000e+00 : f32
    %131 = vector.broadcast %cst_40 : f32 to vector<64x1xf32>
    %132 = arith.addf %131, %122 : vector<64x1xf32>
    %133 = arith.addf %132, %126 : vector<64x1xf32>
    %134 = arith.addf %133, %130 : vector<64x1xf32>
    %cst_41 = arith.constant 1.000000e+00 : f32
    %135 = vector.broadcast %cst_41 : f32 to vector<64x1xf32>
    %136 = arith.addf %135, %122 : vector<64x1xf32>
    %137 = arith.subf %136, %126 : vector<64x1xf32>
    %138 = arith.subf %137, %130 : vector<64x1xf32>
    %cst_42 = arith.constant 1.000000e+00 : f32
    %139 = vector.broadcast %cst_42 : f32 to vector<64x1xf32>
    %140 = arith.addf %139, %126 : vector<64x1xf32>
    %141 = arith.subf %140, %122 : vector<64x1xf32>
    %142 = arith.subf %141, %130 : vector<64x1xf32>
    %cst_43 = arith.constant 1.000000e+00 : f32
    %143 = vector.broadcast %cst_43 : f32 to vector<64x1xf32>
    %144 = arith.addf %143, %130 : vector<64x1xf32>
    %145 = arith.subf %144, %122 : vector<64x1xf32>
    %146 = arith.subf %145, %126 : vector<64x1xf32>
    %147 = arith.subf %129, %127 : vector<64x1xf32>
    %148 = arith.subf %124, %128 : vector<64x1xf32>
    %149 = arith.subf %125, %123 : vector<64x1xf32>
    %150 = tpu.concatenate %134, %147, %148, %149 in 1 : vector<64x1xf32>, vector<64x1xf32>, vector<64x1xf32>, vector<64x1xf32> -> vector<64x4xf32>
    %151 = arith.subf %129, %127 : vector<64x1xf32>
    %152 = arith.addf %123, %125 : vector<64x1xf32>
    %153 = arith.addf %124, %128 : vector<64x1xf32>
    %154 = tpu.concatenate %151, %138, %152, %153 in 1 : vector<64x1xf32>, vector<64x1xf32>, vector<64x1xf32>, vector<64x1xf32> -> vector<64x4xf32>
    %155 = arith.subf %124, %128 : vector<64x1xf32>
    %156 = arith.addf %123, %125 : vector<64x1xf32>
    %157 = arith.addf %127, %129 : vector<64x1xf32>
    %158 = tpu.concatenate %155, %156, %142, %157 in 1 : vector<64x1xf32>, vector<64x1xf32>, vector<64x1xf32>, vector<64x1xf32> -> vector<64x4xf32>
    %159 = arith.subf %125, %123 : vector<64x1xf32>
    %160 = arith.addf %124, %128 : vector<64x1xf32>
    %161 = arith.addf %127, %129 : vector<64x1xf32>
    %162 = tpu.concatenate %159, %160, %161, %146 in 1 : vector<64x1xf32>, vector<64x1xf32>, vector<64x1xf32>, vector<64x1xf32> -> vector<64x4xf32>
    %163 = arith.maximumf %134, %138 : vector<64x1xf32>
    %164 = arith.maximumf %142, %146 : vector<64x1xf32>
    %165 = arith.maximumf %163, %164 : vector<64x1xf32>
    %166 = arith.cmpf oge, %134, %165 : vector<64x1xf32>
    %167 = arith.cmpf oge, %138, %165 : vector<64x1xf32>
    %168 = arith.cmpf oge, %142, %165 : vector<64x1xf32>
    %169 = vector.shape_cast %168 : vector<64x1xi1> to vector<64x1xi1>
    %170 = vector.broadcast %169 : vector<64x1xi1> to vector<64x4xi1>
    %171 = arith.select %170, %158, %162 : vector<64x4xi1>, vector<64x4xf32>
    %172 = vector.shape_cast %167 : vector<64x1xi1> to vector<64x1xi1>
    %173 = vector.broadcast %172 : vector<64x1xi1> to vector<64x4xi1>
    %174 = arith.select %173, %154, %171 : vector<64x4xi1>, vector<64x4xf32>
    %175 = vector.shape_cast %166 : vector<64x1xi1> to vector<64x1xi1>
    %176 = vector.broadcast %175 : vector<64x1xi1> to vector<64x4xi1>
    %177 = arith.select %176, %150, %174 : vector<64x4xi1>, vector<64x4xf32>
    %178 = arith.mulf %177, %177 : vector<64x4xf32>
    %cst_44 = arith.constant dense<0.000000e+00> : vector<64xf32>
    %179 = vector.multi_reduction <add>, %178, %cst_44 [1] : vector<64x4xf32> to vector<64xf32>
    %180 = vector.shape_cast %179 : vector<64xf32> to vector<64x1xf32>
    %cst_45 = arith.constant 9.99999968E-21 : f32
    %181 = vector.broadcast %cst_45 : f32 to vector<64x1xf32>
    %182 = arith.addf %180, %181 : vector<64x1xf32>
    %183 = math.rsqrt %182 : vector<64x1xf32>
    %184 = vector.broadcast %183 : vector<64x1xf32> to vector<64x4xf32>
    %185 = arith.mulf %177, %184 : vector<64x4xf32>
    %186 = arith.subf %116, %115 : vector<64x3xf32>
    %cst_46 = arith.constant dense<0.000000e+00> : vector<64x9xf32>
    %187 = tpu.matmul %186, %6, %cst_46 {dimension_numbers = #tpu.dot_dimension_numbers<[1], [0], [0], [1], [0, 0, 1, 1], [], []>} : vector<64x3xf32>, vector<3x9xf32>, vector<64x9xf32> -> vector<64x9xf32>
    %188 = arith.mulf %187, %111 : vector<64x9xf32>
    %cst_47 = arith.constant dense<0.000000e+00> : vector<64x3xf32>
    %189 = tpu.matmul %188, %7, %cst_47 {dimension_numbers = #tpu.dot_dimension_numbers<[1], [0], [0], [1], [0, 0, 1, 1], [], []>} : vector<64x9xf32>, vector<9x3xf32>, vector<64x3xf32> -> vector<64x3xf32>
    %190 = arith.mulf %189, %189 : vector<64x3xf32>
    %cst_48 = arith.constant dense<0.000000e+00> : vector<64xf32>
    %191 = vector.multi_reduction <add>, %190, %cst_48 [1] : vector<64x3xf32> to vector<64xf32>
    %192 = vector.shape_cast %191 : vector<64xf32> to vector<64x1xf32>
    %193 = math.sqrt %192 : vector<64x1xf32>
    %cst_49 = arith.constant 9.99999993E-9 : f32
    %194 = vector.broadcast %cst_49 : f32 to vector<64x1xf32>
    %195 = arith.addf %193, %194 : vector<64x1xf32>
    %196 = math.log %195 : vector<64x1xf32>
    %197 = arith.subi %39, %40 : vector<64x1xi32>
    %198 = arith.sitofp %197 : vector<64x1xi32> to vector<64x1xf32>
    %199 = math.absf %198 : vector<64x1xf32>
    %cst_50 = arith.constant 1.000000e+00 : f32
    %200 = vector.broadcast %cst_50 : f32 to vector<64x1xf32>
    %201 = arith.addf %199, %200 : vector<64x1xf32>
    %202 = math.log %201 : vector<64x1xf32>
    %203 = tpu.iota {dimensions = array<i32: 1>} : vector<1x4xi32>
    %204 = arith.sitofp %203 : vector<1x4xi32> to vector<1x4xf32>
    %cst_51 = arith.constant 6.66666651 : f32
    %205 = vector.broadcast %cst_51 : f32 to vector<1x4xf32>
    %206 = arith.mulf %204, %205 : vector<1x4xf32>
    %207 = vector.extract_strided_slice %113 {offsets = [0, 0], sizes = [64, 3], strides = [1, 1]} : vector<64x9xf32> to vector<64x3xf32>
    %208 = vector.extract_strided_slice %114 {offsets = [0, 0], sizes = [64, 3], strides = [1, 1]} : vector<64x9xf32> to vector<64x3xf32>
    %209 = arith.subf %207, %208 : vector<64x3xf32>
    %210 = arith.mulf %209, %209 : vector<64x3xf32>
    %cst_52 = arith.constant dense<0.000000e+00> : vector<64xf32>
    %211 = vector.multi_reduction <add>, %210, %cst_52 [1] : vector<64x3xf32> to vector<64xf32>
    %212 = vector.shape_cast %211 : vector<64xf32> to vector<64x1xf32>
    %213 = math.sqrt %212 : vector<64x1xf32>
    %214 = vector.broadcast %213 : vector<64x1xf32> to vector<64x4xf32>
    %215 = vector.broadcast %206 : vector<1x4xf32> to vector<64x4xf32>
    %216 = arith.subf %214, %215 : vector<64x4xf32>
    %217 = arith.mulf %216, %216 : vector<64x4xf32>
    %cst_53 = arith.constant 0.000000e+00 : f32
    %218 = vector.broadcast %cst_53 : f32 to vector<64x4xf32>
    %219 = arith.subf %218, %217 : vector<64x4xf32>
    %cst_54 = arith.constant 5.000000e-01 : f32
    %220 = vector.broadcast %cst_54 : f32 to vector<64x4xf32>
    %221 = arith.mulf %219, %220 : vector<64x4xf32>
    %222 = math.exp %221 : vector<64x4xf32>
    %223 = vector.extract_strided_slice %113 {offsets = [0, 0], sizes = [64, 3], strides = [1, 1]} : vector<64x9xf32> to vector<64x3xf32>
    %224 = vector.extract_strided_slice %114 {offsets = [0, 3], sizes = [64, 3], strides = [1, 1]} : vector<64x9xf32> to vector<64x3xf32>
    %225 = arith.subf %223, %224 : vector<64x3xf32>
    %226 = arith.mulf %225, %225 : vector<64x3xf32>
    %cst_55 = arith.constant dense<0.000000e+00> : vector<64xf32>
    %227 = vector.multi_reduction <add>, %226, %cst_55 [1] : vector<64x3xf32> to vector<64xf32>
    %228 = vector.shape_cast %227 : vector<64xf32> to vector<64x1xf32>
    %229 = math.sqrt %228 : vector<64x1xf32>
    %230 = vector.broadcast %229 : vector<64x1xf32> to vector<64x4xf32>
    %231 = vector.broadcast %206 : vector<1x4xf32> to vector<64x4xf32>
    %232 = arith.subf %230, %231 : vector<64x4xf32>
    %233 = arith.mulf %232, %232 : vector<64x4xf32>
    %cst_56 = arith.constant 0.000000e+00 : f32
    %234 = vector.broadcast %cst_56 : f32 to vector<64x4xf32>
    %235 = arith.subf %234, %233 : vector<64x4xf32>
    %cst_57 = arith.constant 5.000000e-01 : f32
    %236 = vector.broadcast %cst_57 : f32 to vector<64x4xf32>
    %237 = arith.mulf %235, %236 : vector<64x4xf32>
    %238 = math.exp %237 : vector<64x4xf32>
    %239 = vector.extract_strided_slice %113 {offsets = [0, 0], sizes = [64, 3], strides = [1, 1]} : vector<64x9xf32> to vector<64x3xf32>
    %240 = vector.extract_strided_slice %114 {offsets = [0, 6], sizes = [64, 3], strides = [1, 1]} : vector<64x9xf32> to vector<64x3xf32>
    %241 = arith.subf %239, %240 : vector<64x3xf32>
    %242 = arith.mulf %241, %241 : vector<64x3xf32>
    %cst_58 = arith.constant dense<0.000000e+00> : vector<64xf32>
    %243 = vector.multi_reduction <add>, %242, %cst_58 [1] : vector<64x3xf32> to vector<64xf32>
    %244 = vector.shape_cast %243 : vector<64xf32> to vector<64x1xf32>
    %245 = math.sqrt %244 : vector<64x1xf32>
    %246 = vector.broadcast %245 : vector<64x1xf32> to vector<64x4xf32>
    %247 = vector.broadcast %206 : vector<1x4xf32> to vector<64x4xf32>
    %248 = arith.subf %246, %247 : vector<64x4xf32>
    %249 = arith.mulf %248, %248 : vector<64x4xf32>
    %cst_59 = arith.constant 0.000000e+00 : f32
    %250 = vector.broadcast %cst_59 : f32 to vector<64x4xf32>
    %251 = arith.subf %250, %249 : vector<64x4xf32>
    %cst_60 = arith.constant 5.000000e-01 : f32
    %252 = vector.broadcast %cst_60 : f32 to vector<64x4xf32>
    %253 = arith.mulf %251, %252 : vector<64x4xf32>
    %254 = math.exp %253 : vector<64x4xf32>
    %255 = vector.extract_strided_slice %113 {offsets = [0, 3], sizes = [64, 3], strides = [1, 1]} : vector<64x9xf32> to vector<64x3xf32>
    %256 = vector.extract_strided_slice %114 {offsets = [0, 0], sizes = [64, 3], strides = [1, 1]} : vector<64x9xf32> to vector<64x3xf32>
    %257 = arith.subf %255, %256 : vector<64x3xf32>
    %258 = arith.mulf %257, %257 : vector<64x3xf32>
    %cst_61 = arith.constant dense<0.000000e+00> : vector<64xf32>
    %259 = vector.multi_reduction <add>, %258, %cst_61 [1] : vector<64x3xf32> to vector<64xf32>
    %260 = vector.shape_cast %259 : vector<64xf32> to vector<64x1xf32>
    %261 = math.sqrt %260 : vector<64x1xf32>
    %262 = vector.broadcast %261 : vector<64x1xf32> to vector<64x4xf32>
    %263 = vector.broadcast %206 : vector<1x4xf32> to vector<64x4xf32>
    %264 = arith.subf %262, %263 : vector<64x4xf32>
    %265 = arith.mulf %264, %264 : vector<64x4xf32>
    %cst_62 = arith.constant 0.000000e+00 : f32
    %266 = vector.broadcast %cst_62 : f32 to vector<64x4xf32>
    %267 = arith.subf %266, %265 : vector<64x4xf32>
    %cst_63 = arith.constant 5.000000e-01 : f32
    %268 = vector.broadcast %cst_63 : f32 to vector<64x4xf32>
    %269 = arith.mulf %267, %268 : vector<64x4xf32>
    %270 = math.exp %269 : vector<64x4xf32>
    %271 = vector.extract_strided_slice %113 {offsets = [0, 3], sizes = [64, 3], strides = [1, 1]} : vector<64x9xf32> to vector<64x3xf32>
    %272 = vector.extract_strided_slice %114 {offsets = [0, 3], sizes = [64, 3], strides = [1, 1]} : vector<64x9xf32> to vector<64x3xf32>
    %273 = arith.subf %271, %272 : vector<64x3xf32>
    %274 = arith.mulf %273, %273 : vector<64x3xf32>
    %cst_64 = arith.constant dense<0.000000e+00> : vector<64xf32>
    %275 = vector.multi_reduction <add>, %274, %cst_64 [1] : vector<64x3xf32> to vector<64xf32>
    %276 = vector.shape_cast %275 : vector<64xf32> to vector<64x1xf32>
    %277 = math.sqrt %276 : vector<64x1xf32>
    %278 = vector.broadcast %277 : vector<64x1xf32> to vector<64x4xf32>
    %279 = vector.broadcast %206 : vector<1x4xf32> to vector<64x4xf32>
    %280 = arith.subf %278, %279 : vector<64x4xf32>
    %281 = arith.mulf %280, %280 : vector<64x4xf32>
    %cst_65 = arith.constant 0.000000e+00 : f32
    %282 = vector.broadcast %cst_65 : f32 to vector<64x4xf32>
    %283 = arith.subf %282, %281 : vector<64x4xf32>
    %cst_66 = arith.constant 5.000000e-01 : f32
    %284 = vector.broadcast %cst_66 : f32 to vector<64x4xf32>
    %285 = arith.mulf %283, %284 : vector<64x4xf32>
    %286 = math.exp %285 : vector<64x4xf32>
    %287 = vector.extract_strided_slice %113 {offsets = [0, 3], sizes = [64, 3], strides = [1, 1]} : vector<64x9xf32> to vector<64x3xf32>
    %288 = vector.extract_strided_slice %114 {offsets = [0, 6], sizes = [64, 3], strides = [1, 1]} : vector<64x9xf32> to vector<64x3xf32>
    %289 = arith.subf %287, %288 : vector<64x3xf32>
    %290 = arith.mulf %289, %289 : vector<64x3xf32>
    %cst_67 = arith.constant dense<0.000000e+00> : vector<64xf32>
    %291 = vector.multi_reduction <add>, %290, %cst_67 [1] : vector<64x3xf32> to vector<64xf32>
    %292 = vector.shape_cast %291 : vector<64xf32> to vector<64x1xf32>
    %293 = math.sqrt %292 : vector<64x1xf32>
    %294 = vector.broadcast %293 : vector<64x1xf32> to vector<64x4xf32>
    %295 = vector.broadcast %206 : vector<1x4xf32> to vector<64x4xf32>
    %296 = arith.subf %294, %295 : vector<64x4xf32>
    %297 = arith.mulf %296, %296 : vector<64x4xf32>
    %cst_68 = arith.constant 0.000000e+00 : f32
    %298 = vector.broadcast %cst_68 : f32 to vector<64x4xf32>
    %299 = arith.subf %298, %297 : vector<64x4xf32>
    %cst_69 = arith.constant 5.000000e-01 : f32
    %300 = vector.broadcast %cst_69 : f32 to vector<64x4xf32>
    %301 = arith.mulf %299, %300 : vector<64x4xf32>
    %302 = math.exp %301 : vector<64x4xf32>
    %303 = vector.extract_strided_slice %113 {offsets = [0, 6], sizes = [64, 3], strides = [1, 1]} : vector<64x9xf32> to vector<64x3xf32>
    %304 = vector.extract_strided_slice %114 {offsets = [0, 0], sizes = [64, 3], strides = [1, 1]} : vector<64x9xf32> to vector<64x3xf32>
    %305 = arith.subf %303, %304 : vector<64x3xf32>
    %306 = arith.mulf %305, %305 : vector<64x3xf32>
    %cst_70 = arith.constant dense<0.000000e+00> : vector<64xf32>
    %307 = vector.multi_reduction <add>, %306, %cst_70 [1] : vector<64x3xf32> to vector<64xf32>
    %308 = vector.shape_cast %307 : vector<64xf32> to vector<64x1xf32>
    %309 = math.sqrt %308 : vector<64x1xf32>
    %310 = vector.broadcast %309 : vector<64x1xf32> to vector<64x4xf32>
    %311 = vector.broadcast %206 : vector<1x4xf32> to vector<64x4xf32>
    %312 = arith.subf %310, %311 : vector<64x4xf32>
    %313 = arith.mulf %312, %312 : vector<64x4xf32>
    %cst_71 = arith.constant 0.000000e+00 : f32
    %314 = vector.broadcast %cst_71 : f32 to vector<64x4xf32>
    %315 = arith.subf %314, %313 : vector<64x4xf32>
    %cst_72 = arith.constant 5.000000e-01 : f32
    %316 = vector.broadcast %cst_72 : f32 to vector<64x4xf32>
    %317 = arith.mulf %315, %316 : vector<64x4xf32>
    %318 = math.exp %317 : vector<64x4xf32>
    %319 = vector.extract_strided_slice %113 {offsets = [0, 6], sizes = [64, 3], strides = [1, 1]} : vector<64x9xf32> to vector<64x3xf32>
    %320 = vector.extract_strided_slice %114 {offsets = [0, 3], sizes = [64, 3], strides = [1, 1]} : vector<64x9xf32> to vector<64x3xf32>
    %321 = arith.subf %319, %320 : vector<64x3xf32>
    %322 = arith.mulf %321, %321 : vector<64x3xf32>
    %cst_73 = arith.constant dense<0.000000e+00> : vector<64xf32>
    %323 = vector.multi_reduction <add>, %322, %cst_73 [1] : vector<64x3xf32> to vector<64xf32>
    %324 = vector.shape_cast %323 : vector<64xf32> to vector<64x1xf32>
    %325 = math.sqrt %324 : vector<64x1xf32>
    %326 = vector.broadcast %325 : vector<64x1xf32> to vector<64x4xf32>
    %327 = vector.broadcast %206 : vector<1x4xf32> to vector<64x4xf32>
    %328 = arith.subf %326, %327 : vector<64x4xf32>
    %329 = arith.mulf %328, %328 : vector<64x4xf32>
    %cst_74 = arith.constant 0.000000e+00 : f32
    %330 = vector.broadcast %cst_74 : f32 to vector<64x4xf32>
    %331 = arith.subf %330, %329 : vector<64x4xf32>
    %cst_75 = arith.constant 5.000000e-01 : f32
    %332 = vector.broadcast %cst_75 : f32 to vector<64x4xf32>
    %333 = arith.mulf %331, %332 : vector<64x4xf32>
    %334 = math.exp %333 : vector<64x4xf32>
    %335 = vector.extract_strided_slice %113 {offsets = [0, 6], sizes = [64, 3], strides = [1, 1]} : vector<64x9xf32> to vector<64x3xf32>
    %336 = vector.extract_strided_slice %114 {offsets = [0, 6], sizes = [64, 3], strides = [1, 1]} : vector<64x9xf32> to vector<64x3xf32>
    %337 = arith.subf %335, %336 : vector<64x3xf32>
    %338 = arith.mulf %337, %337 : vector<64x3xf32>
    %cst_76 = arith.constant dense<0.000000e+00> : vector<64xf32>
    %339 = vector.multi_reduction <add>, %338, %cst_76 [1] : vector<64x3xf32> to vector<64xf32>
    %340 = vector.shape_cast %339 : vector<64xf32> to vector<64x1xf32>
    %341 = math.sqrt %340 : vector<64x1xf32>
    %342 = vector.broadcast %341 : vector<64x1xf32> to vector<64x4xf32>
    %343 = vector.broadcast %206 : vector<1x4xf32> to vector<64x4xf32>
    %344 = arith.subf %342, %343 : vector<64x4xf32>
    %345 = arith.mulf %344, %344 : vector<64x4xf32>
    %cst_77 = arith.constant 0.000000e+00 : f32
    %346 = vector.broadcast %cst_77 : f32 to vector<64x4xf32>
    %347 = arith.subf %346, %345 : vector<64x4xf32>
    %cst_78 = arith.constant 5.000000e-01 : f32
    %348 = vector.broadcast %cst_78 : f32 to vector<64x4xf32>
    %349 = arith.mulf %347, %348 : vector<64x4xf32>
    %350 = math.exp %349 : vector<64x4xf32>
    %351 = tpu.concatenate %185, %189, %202, %196, %222, %238, %254, %270, %286, %302, %318, %334, %350 in 1 : vector<64x4xf32>, vector<64x3xf32>, vector<64x1xf32>, vector<64x1xf32>, vector<64x4xf32>, vector<64x4xf32>, vector<64x4xf32>, vector<64x4xf32>, vector<64x4xf32>, vector<64x4xf32>, vector<64x4xf32>, vector<64x4xf32>, vector<64x4xf32> -> vector<64x45xf32>
    %c184 = arith.constant 184 : index
    %c0_79 = arith.constant 0 : index
    %352 = vector.load %arg2[%c184, %c0_79] : memref<608x64xf32, #tpu.memory_space<vmem>>, vector<45x64xf32>
    %cst_80 = arith.constant dense<0.000000e+00> : vector<64x64xf32>
    %353 = tpu.matmul %351, %352, %cst_80 {dimension_numbers = #tpu.dot_dimension_numbers<[1], [0], [0], [1], [0, 0, 1, 1], [], []>} : vector<64x45xf32>, vector<45x64xf32>, vector<64x64xf32> -> vector<64x64xf32>
    %c232 = arith.constant 232 : index
    %c0_81 = arith.constant 0 : index
    %354 = vector.load %arg2[%c232, %c0_81] : memref<608x64xf32, #tpu.memory_space<vmem>>, vector<1x64xf32>
    %355 = vector.broadcast %354 : vector<1x64xf32> to vector<64x64xf32>
    %356 = arith.addf %353, %355 : vector<64x64xf32>
    %c240 = arith.constant 240 : index
    %c0_82 = arith.constant 0 : index
    %357 = vector.load %arg2[%c240, %c0_82] : memref<608x64xf32, #tpu.memory_space<vmem>>, vector<32x64xf32>
    %cst_83 = arith.constant dense<0.000000e+00> : vector<16x64xf32>
    %358 = tpu.matmul %38, %357, %cst_83 {dimension_numbers = #tpu.dot_dimension_numbers<[1], [0], [0], [1], [0, 0, 1, 1], [], []>} : vector<16x32xf32>, vector<32x64xf32>, vector<16x64xf32> -> vector<16x64xf32>
    %359 = vector.extract_strided_slice %358 {offsets = [0, 0], sizes = [16, 32], strides = [1, 1]} : vector<16x64xf32> to vector<16x32xf32>
    %360 = vector.extract_strided_slice %358 {offsets = [0, 32], sizes = [16, 32], strides = [1, 1]} : vector<16x64xf32> to vector<16x32xf32>
    %361 = tpu.concatenate %359, %360 in 0 : vector<16x32xf32>, vector<16x32xf32> -> vector<32x32xf32>
    %cst_84 = arith.constant dense<0.000000e+00> : vector<64x32xf32>
    %362 = tpu.matmul %53, %361, %cst_84 {dimension_numbers = #tpu.dot_dimension_numbers<[1], [0], [0], [1], [0, 0, 1, 1], [], []>} : vector<64x32xf32>, vector<32x32xf32>, vector<64x32xf32> -> vector<64x32xf32>
    %363 = vector.extract_strided_slice %356 {offsets = [0, 0], sizes = [64, 32], strides = [1, 1]} : vector<64x64xf32> to vector<64x32xf32>
    %364 = arith.addf %362, %363 : vector<64x32xf32>
    %cst_85 = arith.constant 5.000000e-01 : f32
    %365 = vector.broadcast %cst_85 : f32 to vector<64x32xf32>
    %366 = arith.mulf %365, %364 : vector<64x32xf32>
    %cst_86 = arith.constant 0.707106769 : f32
    %367 = vector.broadcast %cst_86 : f32 to vector<64x32xf32>
    %368 = arith.mulf %364, %367 : vector<64x32xf32>
    %cst_87 = arith.constant 0.000000e+00 : f32
    %369 = vector.broadcast %cst_87 : f32 to vector<64x32xf32>
    %370 = arith.cmpf oge, %368, %369 : vector<64x32xf32>
    %cst_88 = arith.constant 1.000000e+00 : f32
    %cst_89 = arith.constant -1.000000e+00 : f32
    %371 = vector.broadcast %cst_88 : f32 to vector<64x32xf32>
    %372 = vector.broadcast %cst_89 : f32 to vector<64x32xf32>
    %373 = arith.select %370, %371, %372 : vector<64x32xi1>, vector<64x32xf32>
    %374 = math.absf %368 : vector<64x32xf32>
    %cst_90 = arith.constant 0.327591091 : f32
    %375 = vector.broadcast %cst_90 : f32 to vector<64x32xf32>
    %376 = arith.mulf %375, %374 : vector<64x32xf32>
    %cst_91 = arith.constant 1.000000e+00 : f32
    %377 = vector.broadcast %cst_91 : f32 to vector<64x32xf32>
    %378 = arith.addf %377, %376 : vector<64x32xf32>
    %379 = tpu.reciprocal %378 {approx = true} : vector<64x32xf32> -> vector<64x32xf32>
    %cst_92 = arith.constant 1.06140542 : f32
    %380 = vector.broadcast %cst_92 : f32 to vector<64x32xf32>
    %381 = arith.mulf %380, %379 : vector<64x32xf32>
    %cst_93 = arith.constant -1.45315206 : f32
    %382 = vector.broadcast %cst_93 : f32 to vector<64x32xf32>
    %383 = arith.addf %381, %382 : vector<64x32xf32>
    %384 = arith.mulf %383, %379 : vector<64x32xf32>
    %cst_94 = arith.constant 1.42141378 : f32
    %385 = vector.broadcast %cst_94 : f32 to vector<64x32xf32>
    %386 = arith.addf %384, %385 : vector<64x32xf32>
    %387 = arith.mulf %386, %379 : vector<64x32xf32>
    %cst_95 = arith.constant -0.284496725 : f32
    %388 = vector.broadcast %cst_95 : f32 to vector<64x32xf32>
    %389 = arith.addf %387, %388 : vector<64x32xf32>
    %390 = arith.mulf %389, %379 : vector<64x32xf32>
    %cst_96 = arith.constant 0.254829586 : f32
    %391 = vector.broadcast %cst_96 : f32 to vector<64x32xf32>
    %392 = arith.addf %390, %391 : vector<64x32xf32>
    %393 = arith.mulf %392, %379 : vector<64x32xf32>
    %cst_97 = arith.constant 0.000000e+00 : f32
    %394 = vector.broadcast %cst_97 : f32 to vector<64x32xf32>
    %395 = arith.subf %394, %374 : vector<64x32xf32>
    %396 = arith.mulf %395, %374 : vector<64x32xf32>
    %397 = math.exp %396 : vector<64x32xf32>
    %398 = arith.mulf %393, %397 : vector<64x32xf32>
    %cst_98 = arith.constant 1.000000e+00 : f32
    %399 = vector.broadcast %cst_98 : f32 to vector<64x32xf32>
    %400 = arith.subf %399, %398 : vector<64x32xf32>
    %401 = arith.mulf %373, %400 : vector<64x32xf32>
    %cst_99 = arith.constant 1.000000e+00 : f32
    %402 = vector.broadcast %cst_99 : f32 to vector<64x32xf32>
    %403 = arith.addf %402, %401 : vector<64x32xf32>
    %404 = arith.mulf %366, %403 : vector<64x32xf32>
    %c288 = arith.constant 288 : index
    %c0_100 = arith.constant 0 : index
    %405 = vector.load %arg2[%c288, %c0_100] : memref<608x64xf32, #tpu.memory_space<vmem>>, vector<32x32xf32>
    %cst_101 = arith.constant dense<0.000000e+00> : vector<64x32xf32>
    %406 = tpu.matmul %404, %405, %cst_101 {dimension_numbers = #tpu.dot_dimension_numbers<[1], [0], [0], [1], [0, 0, 1, 1], [], []>} : vector<64x32xf32>, vector<32x32xf32>, vector<64x32xf32> -> vector<64x32xf32>
    %c352 = arith.constant 352 : index
    %c0_102 = arith.constant 0 : index
    %407 = vector.load %arg2[%c352, %c0_102] : memref<608x64xf32, #tpu.memory_space<vmem>>, vector<1x32xf32>
    %408 = vector.broadcast %407 : vector<1x32xf32> to vector<64x32xf32>
    %409 = arith.addf %406, %408 : vector<64x32xf32>
    %cst_103 = arith.constant 5.000000e-01 : f32
    %410 = vector.broadcast %cst_103 : f32 to vector<64x32xf32>
    %411 = arith.mulf %410, %409 : vector<64x32xf32>
    %cst_104 = arith.constant 0.707106769 : f32
    %412 = vector.broadcast %cst_104 : f32 to vector<64x32xf32>
    %413 = arith.mulf %409, %412 : vector<64x32xf32>
    %cst_105 = arith.constant 0.000000e+00 : f32
    %414 = vector.broadcast %cst_105 : f32 to vector<64x32xf32>
    %415 = arith.cmpf oge, %413, %414 : vector<64x32xf32>
    %cst_106 = arith.constant 1.000000e+00 : f32
    %cst_107 = arith.constant -1.000000e+00 : f32
    %416 = vector.broadcast %cst_106 : f32 to vector<64x32xf32>
    %417 = vector.broadcast %cst_107 : f32 to vector<64x32xf32>
    %418 = arith.select %415, %416, %417 : vector<64x32xi1>, vector<64x32xf32>
    %419 = math.absf %413 : vector<64x32xf32>
    %cst_108 = arith.constant 0.327591091 : f32
    %420 = vector.broadcast %cst_108 : f32 to vector<64x32xf32>
    %421 = arith.mulf %420, %419 : vector<64x32xf32>
    %cst_109 = arith.constant 1.000000e+00 : f32
    %422 = vector.broadcast %cst_109 : f32 to vector<64x32xf32>
    %423 = arith.addf %422, %421 : vector<64x32xf32>
    %424 = tpu.reciprocal %423 {approx = true} : vector<64x32xf32> -> vector<64x32xf32>
    %cst_110 = arith.constant 1.06140542 : f32
    %425 = vector.broadcast %cst_110 : f32 to vector<64x32xf32>
    %426 = arith.mulf %425, %424 : vector<64x32xf32>
    %cst_111 = arith.constant -1.45315206 : f32
    %427 = vector.broadcast %cst_111 : f32 to vector<64x32xf32>
    %428 = arith.addf %426, %427 : vector<64x32xf32>
    %429 = arith.mulf %428, %424 : vector<64x32xf32>
    %cst_112 = arith.constant 1.42141378 : f32
    %430 = vector.broadcast %cst_112 : f32 to vector<64x32xf32>
    %431 = arith.addf %429, %430 : vector<64x32xf32>
    %432 = arith.mulf %431, %424 : vector<64x32xf32>
    %cst_113 = arith.constant -0.284496725 : f32
    %433 = vector.broadcast %cst_113 : f32 to vector<64x32xf32>
    %434 = arith.addf %432, %433 : vector<64x32xf32>
    %435 = arith.mulf %434, %424 : vector<64x32xf32>
    %cst_114 = arith.constant 0.254829586 : f32
    %436 = vector.broadcast %cst_114 : f32 to vector<64x32xf32>
    %437 = arith.addf %435, %436 : vector<64x32xf32>
    %438 = arith.mulf %437, %424 : vector<64x32xf32>
    %cst_115 = arith.constant 0.000000e+00 : f32
    %439 = vector.broadcast %cst_115 : f32 to vector<64x32xf32>
    %440 = arith.subf %439, %419 : vector<64x32xf32>
    %441 = arith.mulf %440, %419 : vector<64x32xf32>
    %442 = math.exp %441 : vector<64x32xf32>
    %443 = arith.mulf %438, %442 : vector<64x32xf32>
    %cst_116 = arith.constant 1.000000e+00 : f32
    %444 = vector.broadcast %cst_116 : f32 to vector<64x32xf32>
    %445 = arith.subf %444, %443 : vector<64x32xf32>
    %446 = arith.mulf %418, %445 : vector<64x32xf32>
    %cst_117 = arith.constant 1.000000e+00 : f32
    %447 = vector.broadcast %cst_117 : f32 to vector<64x32xf32>
    %448 = arith.addf %447, %446 : vector<64x32xf32>
    %449 = arith.mulf %411, %448 : vector<64x32xf32>
    %c320 = arith.constant 320 : index
    %c0_118 = arith.constant 0 : index
    %450 = vector.load %arg2[%c320, %c0_118] : memref<608x64xf32, #tpu.memory_space<vmem>>, vector<32x32xf32>
    %cst_119 = arith.constant dense<0.000000e+00> : vector<64x32xf32>
    %451 = tpu.matmul %449, %450, %cst_119 {dimension_numbers = #tpu.dot_dimension_numbers<[1], [0], [0], [1], [0, 0, 1, 1], [], []>} : vector<64x32xf32>, vector<32x32xf32>, vector<64x32xf32> -> vector<64x32xf32>
    %c360 = arith.constant 360 : index
    %c0_120 = arith.constant 0 : index
    %452 = vector.load %arg2[%c360, %c0_120] : memref<608x64xf32, #tpu.memory_space<vmem>>, vector<1x32xf32>
    %453 = vector.broadcast %452 : vector<1x32xf32> to vector<64x32xf32>
    %454 = arith.addf %451, %453 : vector<64x32xf32>
    %cst_121 = arith.constant dense<0.000000e+00> : vector<16x32xf32>
    %455 = tpu.matmul %63, %454, %cst_121 {dimension_numbers = #tpu.dot_dimension_numbers<[0], [0], [1], [1], [0, 1, 1, 1], [], []>} : vector<64x16xf32>, vector<64x32xf32>, vector<16x32xf32> -> vector<16x32xf32>
    %456 = arith.addf %38, %455 : vector<16x32xf32>
    %c368 = arith.constant 368 : index
    %c0_122 = arith.constant 0 : index
    %457 = vector.load %arg2[%c368, %c0_122] : memref<608x64xf32, #tpu.memory_space<vmem>>, vector<1x32xf32>
    %c376 = arith.constant 376 : index
    %c0_123 = arith.constant 0 : index
    %458 = vector.load %arg2[%c376, %c0_123] : memref<608x64xf32, #tpu.memory_space<vmem>>, vector<1x32xf32>
    %cst_124 = arith.constant dense<0.000000e+00> : vector<16xf32>
    %459 = vector.multi_reduction <add>, %456, %cst_124 [1] : vector<16x32xf32> to vector<16xf32>
    %460 = vector.shape_cast %459 : vector<16xf32> to vector<16x1xf32>
    %cst_125 = arith.constant 3.200000e+01 : f32
    %461 = vector.broadcast %cst_125 : f32 to vector<16x1xf32>
    %462 = arith.divf %460, %461 : vector<16x1xf32>
    %463 = vector.broadcast %462 : vector<16x1xf32> to vector<16x32xf32>
    %464 = arith.subf %456, %463 : vector<16x32xf32>
    %465 = arith.mulf %464, %464 : vector<16x32xf32>
    %cst_126 = arith.constant dense<0.000000e+00> : vector<16xf32>
    %466 = vector.multi_reduction <add>, %465, %cst_126 [1] : vector<16x32xf32> to vector<16xf32>
    %467 = vector.shape_cast %466 : vector<16xf32> to vector<16x1xf32>
    %cst_127 = arith.constant 3.200000e+01 : f32
    %468 = vector.broadcast %cst_127 : f32 to vector<16x1xf32>
    %469 = arith.divf %467, %468 : vector<16x1xf32>
    %470 = vector.broadcast %462 : vector<16x1xf32> to vector<16x32xf32>
    %471 = arith.subf %456, %470 : vector<16x32xf32>
    %cst_128 = arith.constant 9.99999974E-6 : f32
    %472 = vector.broadcast %cst_128 : f32 to vector<16x1xf32>
    %473 = arith.addf %469, %472 : vector<16x1xf32>
    %474 = math.rsqrt %473 : vector<16x1xf32>
    %475 = vector.broadcast %474 : vector<16x1xf32> to vector<16x32xf32>
    %476 = arith.mulf %471, %475 : vector<16x32xf32>
    %477 = vector.broadcast %457 : vector<1x32xf32> to vector<16x32xf32>
    %478 = arith.mulf %476, %477 : vector<16x32xf32>
    %479 = vector.broadcast %458 : vector<1x32xf32> to vector<16x32xf32>
    %480 = arith.addf %478, %479 : vector<16x32xf32>
    %c384 = arith.constant 384 : index
    %c0_129 = arith.constant 0 : index
    %481 = vector.load %arg2[%c384, %c0_129] : memref<608x64xf32, #tpu.memory_space<vmem>>, vector<32x6xf32>
    %cst_130 = arith.constant dense<0.000000e+00> : vector<16x6xf32>
    %482 = tpu.matmul %480, %481, %cst_130 {dimension_numbers = #tpu.dot_dimension_numbers<[1], [0], [0], [1], [0, 0, 1, 1], [], []>} : vector<16x32xf32>, vector<32x6xf32>, vector<16x6xf32> -> vector<16x6xf32>
    %c424 = arith.constant 424 : index
    %c0_131 = arith.constant 0 : index
    %483 = vector.load %arg2[%c424, %c0_131] : memref<608x64xf32, #tpu.memory_space<vmem>>, vector<32x64xf32>
    %cst_132 = arith.constant dense<0.000000e+00> : vector<16x64xf32>
    %484 = tpu.matmul %480, %483, %cst_132 {dimension_numbers = #tpu.dot_dimension_numbers<[1], [0], [0], [1], [0, 0, 1, 1], [], []>} : vector<16x32xf32>, vector<32x64xf32>, vector<16x64xf32> -> vector<16x64xf32>
    %485 = vector.extract_strided_slice %484 {offsets = [0, 0], sizes = [16, 32], strides = [1, 1]} : vector<16x64xf32> to vector<16x32xf32>
    %486 = vector.extract_strided_slice %484 {offsets = [0, 32], sizes = [16, 32], strides = [1, 1]} : vector<16x64xf32> to vector<16x32xf32>
    %c456 = arith.constant 456 : index
    %c0_133 = arith.constant 0 : index
    %487 = vector.load %arg2[%c456, %c0_133] : memref<608x64xf32, #tpu.memory_space<vmem>>, vector<6x32xf32>
    %cst_134 = arith.constant dense<0.000000e+00> : vector<16x32xf32>
    %488 = tpu.matmul %482, %487, %cst_134 {dimension_numbers = #tpu.dot_dimension_numbers<[1], [0], [0], [1], [0, 0, 1, 1], [], []>} : vector<16x6xf32>, vector<6x32xf32>, vector<16x32xf32> -> vector<16x32xf32>
    %489 = arith.addf %485, %488 : vector<16x32xf32>
    %490 = tpu.concatenate %489, %486 in 0 : vector<16x32xf32>, vector<16x32xf32> -> vector<32x32xf32>
    %cst_135 = arith.constant dense<0.000000e+00> : vector<64x32xf32>
    %491 = tpu.matmul %53, %490, %cst_135 {dimension_numbers = #tpu.dot_dimension_numbers<[1], [0], [0], [1], [0, 0, 1, 1], [], []>} : vector<64x32xf32>, vector<32x32xf32>, vector<64x32xf32> -> vector<64x32xf32>
    %492 = vector.extract_strided_slice %356 {offsets = [0, 32], sizes = [64, 32], strides = [1, 1]} : vector<64x64xf32> to vector<64x32xf32>
    %493 = arith.addf %491, %492 : vector<64x32xf32>
    %cst_136 = arith.constant dense<0.000000e+00> : vector<64x6xf32>
    %494 = tpu.matmul %55, %482, %cst_136 {dimension_numbers = #tpu.dot_dimension_numbers<[1], [0], [0], [1], [0, 0, 1, 1], [], []>} : vector<64x16xf32>, vector<16x6xf32>, vector<64x6xf32> -> vector<64x6xf32>
    %cst_137 = arith.constant dense<0.000000e+00> : vector<64x18xf32>
    %495 = tpu.matmul %494, %0, %cst_137 {dimension_numbers = #tpu.dot_dimension_numbers<[1], [0], [0], [1], [0, 0, 1, 1], [], []>} : vector<64x6xf32>, vector<6x18xf32>, vector<64x18xf32> -> vector<64x18xf32>
    %496 = arith.mulf %495, %121 : vector<64x18xf32>
    %cst_138 = arith.constant dense<0.000000e+00> : vector<64x6xf32>
    %497 = tpu.matmul %496, %2, %cst_138 {dimension_numbers = #tpu.dot_dimension_numbers<[1], [0], [0], [1], [0, 0, 1, 1], [], []>} : vector<64x18xf32>, vector<18x6xf32>, vector<64x6xf32> -> vector<64x6xf32>
    %c464 = arith.constant 464 : index
    %c0_139 = arith.constant 0 : index
    %498 = vector.load %arg2[%c464, %c0_139] : memref<608x64xf32, #tpu.memory_space<vmem>>, vector<6x32xf32>
    %cst_140 = arith.constant dense<0.000000e+00> : vector<64x32xf32>
    %499 = tpu.matmul %497, %498, %cst_140 {dimension_numbers = #tpu.dot_dimension_numbers<[1], [0], [0], [1], [0, 0, 1, 1], [], []>} : vector<64x6xf32>, vector<6x32xf32>, vector<64x32xf32> -> vector<64x32xf32>
    %500 = arith.addf %493, %499 : vector<64x32xf32>
    %cst_141 = arith.constant 5.000000e-01 : f32
    %501 = vector.broadcast %cst_141 : f32 to vector<64x32xf32>
    %502 = arith.mulf %501, %500 : vector<64x32xf32>
    %cst_142 = arith.constant 0.707106769 : f32
    %503 = vector.broadcast %cst_142 : f32 to vector<64x32xf32>
    %504 = arith.mulf %500, %503 : vector<64x32xf32>
    %cst_143 = arith.constant 0.000000e+00 : f32
    %505 = vector.broadcast %cst_143 : f32 to vector<64x32xf32>
    %506 = arith.cmpf oge, %504, %505 : vector<64x32xf32>
    %cst_144 = arith.constant 1.000000e+00 : f32
    %cst_145 = arith.constant -1.000000e+00 : f32
    %507 = vector.broadcast %cst_144 : f32 to vector<64x32xf32>
    %508 = vector.broadcast %cst_145 : f32 to vector<64x32xf32>
    %509 = arith.select %506, %507, %508 : vector<64x32xi1>, vector<64x32xf32>
    %510 = math.absf %504 : vector<64x32xf32>
    %cst_146 = arith.constant 0.327591091 : f32
    %511 = vector.broadcast %cst_146 : f32 to vector<64x32xf32>
    %512 = arith.mulf %511, %510 : vector<64x32xf32>
    %cst_147 = arith.constant 1.000000e+00 : f32
    %513 = vector.broadcast %cst_147 : f32 to vector<64x32xf32>
    %514 = arith.addf %513, %512 : vector<64x32xf32>
    %515 = tpu.reciprocal %514 {approx = true} : vector<64x32xf32> -> vector<64x32xf32>
    %cst_148 = arith.constant 1.06140542 : f32
    %516 = vector.broadcast %cst_148 : f32 to vector<64x32xf32>
    %517 = arith.mulf %516, %515 : vector<64x32xf32>
    %cst_149 = arith.constant -1.45315206 : f32
    %518 = vector.broadcast %cst_149 : f32 to vector<64x32xf32>
    %519 = arith.addf %517, %518 : vector<64x32xf32>
    %520 = arith.mulf %519, %515 : vector<64x32xf32>
    %cst_150 = arith.constant 1.42141378 : f32
    %521 = vector.broadcast %cst_150 : f32 to vector<64x32xf32>
    %522 = arith.addf %520, %521 : vector<64x32xf32>
    %523 = arith.mulf %522, %515 : vector<64x32xf32>
    %cst_151 = arith.constant -0.284496725 : f32
    %524 = vector.broadcast %cst_151 : f32 to vector<64x32xf32>
    %525 = arith.addf %523, %524 : vector<64x32xf32>
    %526 = arith.mulf %525, %515 : vector<64x32xf32>
    %cst_152 = arith.constant 0.254829586 : f32
    %527 = vector.broadcast %cst_152 : f32 to vector<64x32xf32>
    %528 = arith.addf %526, %527 : vector<64x32xf32>
    %529 = arith.mulf %528, %515 : vector<64x32xf32>
    %cst_153 = arith.constant 0.000000e+00 : f32
    %530 = vector.broadcast %cst_153 : f32 to vector<64x32xf32>
    %531 = arith.subf %530, %510 : vector<64x32xf32>
    %532 = arith.mulf %531, %510 : vector<64x32xf32>
    %533 = math.exp %532 : vector<64x32xf32>
    %534 = arith.mulf %529, %533 : vector<64x32xf32>
    %cst_154 = arith.constant 1.000000e+00 : f32
    %535 = vector.broadcast %cst_154 : f32 to vector<64x32xf32>
    %536 = arith.subf %535, %534 : vector<64x32xf32>
    %537 = arith.mulf %509, %536 : vector<64x32xf32>
    %cst_155 = arith.constant 1.000000e+00 : f32
    %538 = vector.broadcast %cst_155 : f32 to vector<64x32xf32>
    %539 = arith.addf %538, %537 : vector<64x32xf32>
    %540 = arith.mulf %502, %539 : vector<64x32xf32>
    %c472 = arith.constant 472 : index
    %c0_156 = arith.constant 0 : index
    %541 = vector.load %arg2[%c472, %c0_156] : memref<608x64xf32, #tpu.memory_space<vmem>>, vector<32x32xf32>
    %cst_157 = arith.constant dense<0.000000e+00> : vector<64x32xf32>
    %542 = tpu.matmul %540, %541, %cst_157 {dimension_numbers = #tpu.dot_dimension_numbers<[1], [0], [0], [1], [0, 0, 1, 1], [], []>} : vector<64x32xf32>, vector<32x32xf32>, vector<64x32xf32> -> vector<64x32xf32>
    %c536 = arith.constant 536 : index
    %c0_158 = arith.constant 0 : index
    %543 = vector.load %arg2[%c536, %c0_158] : memref<608x64xf32, #tpu.memory_space<vmem>>, vector<1x32xf32>
    %544 = vector.broadcast %543 : vector<1x32xf32> to vector<64x32xf32>
    %545 = arith.addf %542, %544 : vector<64x32xf32>
    %cst_159 = arith.constant 5.000000e-01 : f32
    %546 = vector.broadcast %cst_159 : f32 to vector<64x32xf32>
    %547 = arith.mulf %546, %545 : vector<64x32xf32>
    %cst_160 = arith.constant 0.707106769 : f32
    %548 = vector.broadcast %cst_160 : f32 to vector<64x32xf32>
    %549 = arith.mulf %545, %548 : vector<64x32xf32>
    %cst_161 = arith.constant 0.000000e+00 : f32
    %550 = vector.broadcast %cst_161 : f32 to vector<64x32xf32>
    %551 = arith.cmpf oge, %549, %550 : vector<64x32xf32>
    %cst_162 = arith.constant 1.000000e+00 : f32
    %cst_163 = arith.constant -1.000000e+00 : f32
    %552 = vector.broadcast %cst_162 : f32 to vector<64x32xf32>
    %553 = vector.broadcast %cst_163 : f32 to vector<64x32xf32>
    %554 = arith.select %551, %552, %553 : vector<64x32xi1>, vector<64x32xf32>
    %555 = math.absf %549 : vector<64x32xf32>
    %cst_164 = arith.constant 0.327591091 : f32
    %556 = vector.broadcast %cst_164 : f32 to vector<64x32xf32>
    %557 = arith.mulf %556, %555 : vector<64x32xf32>
    %cst_165 = arith.constant 1.000000e+00 : f32
    %558 = vector.broadcast %cst_165 : f32 to vector<64x32xf32>
    %559 = arith.addf %558, %557 : vector<64x32xf32>
    %560 = tpu.reciprocal %559 {approx = true} : vector<64x32xf32> -> vector<64x32xf32>
    %cst_166 = arith.constant 1.06140542 : f32
    %561 = vector.broadcast %cst_166 : f32 to vector<64x32xf32>
    %562 = arith.mulf %561, %560 : vector<64x32xf32>
    %cst_167 = arith.constant -1.45315206 : f32
    %563 = vector.broadcast %cst_167 : f32 to vector<64x32xf32>
    %564 = arith.addf %562, %563 : vector<64x32xf32>
    %565 = arith.mulf %564, %560 : vector<64x32xf32>
    %cst_168 = arith.constant 1.42141378 : f32
    %566 = vector.broadcast %cst_168 : f32 to vector<64x32xf32>
    %567 = arith.addf %565, %566 : vector<64x32xf32>
    %568 = arith.mulf %567, %560 : vector<64x32xf32>
    %cst_169 = arith.constant -0.284496725 : f32
    %569 = vector.broadcast %cst_169 : f32 to vector<64x32xf32>
    %570 = arith.addf %568, %569 : vector<64x32xf32>
    %571 = arith.mulf %570, %560 : vector<64x32xf32>
    %cst_170 = arith.constant 0.254829586 : f32
    %572 = vector.broadcast %cst_170 : f32 to vector<64x32xf32>
    %573 = arith.addf %571, %572 : vector<64x32xf32>
    %574 = arith.mulf %573, %560 : vector<64x32xf32>
    %cst_171 = arith.constant 0.000000e+00 : f32
    %575 = vector.broadcast %cst_171 : f32 to vector<64x32xf32>
    %576 = arith.subf %575, %555 : vector<64x32xf32>
    %577 = arith.mulf %576, %555 : vector<64x32xf32>
    %578 = math.exp %577 : vector<64x32xf32>
    %579 = arith.mulf %574, %578 : vector<64x32xf32>
    %cst_172 = arith.constant 1.000000e+00 : f32
    %580 = vector.broadcast %cst_172 : f32 to vector<64x32xf32>
    %581 = arith.subf %580, %579 : vector<64x32xf32>
    %582 = arith.mulf %554, %581 : vector<64x32xf32>
    %cst_173 = arith.constant 1.000000e+00 : f32
    %583 = vector.broadcast %cst_173 : f32 to vector<64x32xf32>
    %584 = arith.addf %583, %582 : vector<64x32xf32>
    %585 = arith.mulf %547, %584 : vector<64x32xf32>
    %c504 = arith.constant 504 : index
    %c0_174 = arith.constant 0 : index
    %586 = vector.load %arg2[%c504, %c0_174] : memref<608x64xf32, #tpu.memory_space<vmem>>, vector<32x32xf32>
    %cst_175 = arith.constant dense<0.000000e+00> : vector<64x32xf32>
    %587 = tpu.matmul %585, %586, %cst_175 {dimension_numbers = #tpu.dot_dimension_numbers<[1], [0], [0], [1], [0, 0, 1, 1], [], []>} : vector<64x32xf32>, vector<32x32xf32>, vector<64x32xf32> -> vector<64x32xf32>
    %c544 = arith.constant 544 : index
    %c0_176 = arith.constant 0 : index
    %588 = vector.load %arg2[%c544, %c0_176] : memref<608x64xf32, #tpu.memory_space<vmem>>, vector<1x32xf32>
    %589 = vector.broadcast %588 : vector<1x32xf32> to vector<64x32xf32>
    %590 = arith.addf %587, %589 : vector<64x32xf32>
    %cst_177 = arith.constant dense<0.000000e+00> : vector<16x32xf32>
    %591 = tpu.matmul %63, %590, %cst_177 {dimension_numbers = #tpu.dot_dimension_numbers<[0], [0], [1], [1], [0, 1, 1, 1], [], []>} : vector<64x16xf32>, vector<64x32xf32>, vector<16x32xf32> -> vector<16x32xf32>
    %592 = arith.addf %480, %591 : vector<16x32xf32>
    %c552 = arith.constant 552 : index
    %c0_178 = arith.constant 0 : index
    %593 = vector.load %arg2[%c552, %c0_178] : memref<608x64xf32, #tpu.memory_space<vmem>>, vector<1x32xf32>
    %c560 = arith.constant 560 : index
    %c0_179 = arith.constant 0 : index
    %594 = vector.load %arg2[%c560, %c0_179] : memref<608x64xf32, #tpu.memory_space<vmem>>, vector<1x32xf32>
    %cst_180 = arith.constant dense<0.000000e+00> : vector<16xf32>
    %595 = vector.multi_reduction <add>, %592, %cst_180 [1] : vector<16x32xf32> to vector<16xf32>
    %596 = vector.shape_cast %595 : vector<16xf32> to vector<16x1xf32>
    %cst_181 = arith.constant 3.200000e+01 : f32
    %597 = vector.broadcast %cst_181 : f32 to vector<16x1xf32>
    %598 = arith.divf %596, %597 : vector<16x1xf32>
    %599 = vector.broadcast %598 : vector<16x1xf32> to vector<16x32xf32>
    %600 = arith.subf %592, %599 : vector<16x32xf32>
    %601 = arith.mulf %600, %600 : vector<16x32xf32>
    %cst_182 = arith.constant dense<0.000000e+00> : vector<16xf32>
    %602 = vector.multi_reduction <add>, %601, %cst_182 [1] : vector<16x32xf32> to vector<16xf32>
    %603 = vector.shape_cast %602 : vector<16xf32> to vector<16x1xf32>
    %cst_183 = arith.constant 3.200000e+01 : f32
    %604 = vector.broadcast %cst_183 : f32 to vector<16x1xf32>
    %605 = arith.divf %603, %604 : vector<16x1xf32>
    %606 = vector.broadcast %598 : vector<16x1xf32> to vector<16x32xf32>
    %607 = arith.subf %592, %606 : vector<16x32xf32>
    %cst_184 = arith.constant 9.99999974E-6 : f32
    %608 = vector.broadcast %cst_184 : f32 to vector<16x1xf32>
    %609 = arith.addf %605, %608 : vector<16x1xf32>
    %610 = math.rsqrt %609 : vector<16x1xf32>
    %611 = vector.broadcast %610 : vector<16x1xf32> to vector<16x32xf32>
    %612 = arith.mulf %607, %611 : vector<16x32xf32>
    %613 = vector.broadcast %593 : vector<1x32xf32> to vector<16x32xf32>
    %614 = arith.mulf %612, %613 : vector<16x32xf32>
    %615 = vector.broadcast %594 : vector<1x32xf32> to vector<16x32xf32>
    %616 = arith.addf %614, %615 : vector<16x32xf32>
    %c568 = arith.constant 568 : index
    %c0_185 = arith.constant 0 : index
    %617 = vector.load %arg2[%c568, %c0_185] : memref<608x64xf32, #tpu.memory_space<vmem>>, vector<32x6xf32>
    %cst_186 = arith.constant dense<0.000000e+00> : vector<16x6xf32>
    %618 = tpu.matmul %616, %617, %cst_186 {dimension_numbers = #tpu.dot_dimension_numbers<[1], [0], [0], [1], [0, 0, 1, 1], [], []>} : vector<16x32xf32>, vector<32x6xf32>, vector<16x6xf32> -> vector<16x6xf32>
    %c600 = arith.constant 600 : index
    %c0_187 = arith.constant 0 : index
    %619 = vector.load %arg2[%c600, %c0_187] : memref<608x64xf32, #tpu.memory_space<vmem>>, vector<6x6xf32>
    %cst_188 = arith.constant dense<0.000000e+00> : vector<16x6xf32>
    %620 = tpu.matmul %482, %619, %cst_188 {dimension_numbers = #tpu.dot_dimension_numbers<[1], [0], [0], [1], [0, 0, 1, 1], [], []>} : vector<16x6xf32>, vector<6x6xf32>, vector<16x6xf32> -> vector<16x6xf32>
    %621 = arith.addf %618, %620 : vector<16x6xf32>
    %622 = arith.addf %482, %621 : vector<16x6xf32>
    %cst_189 = arith.constant dense<0.000000e+00> : vector<16x18xf32>
    %623 = tpu.matmul %622, %0, %cst_189 {dimension_numbers = #tpu.dot_dimension_numbers<[1], [0], [0], [1], [0, 0, 1, 1], [], []>} : vector<16x6xf32>, vector<6x18xf32>, vector<16x18xf32> -> vector<16x18xf32>
    %624 = arith.mulf %623, %107 : vector<16x18xf32>
    %cst_190 = arith.constant dense<0.000000e+00> : vector<16x6xf32>
    %625 = tpu.matmul %624, %2, %cst_190 {dimension_numbers = #tpu.dot_dimension_numbers<[1], [0], [0], [1], [0, 0, 1, 1], [], []>} : vector<16x18xf32>, vector<18x6xf32>, vector<16x6xf32> -> vector<16x6xf32>
    %c0_191 = arith.constant 0 : index
    %c0_192 = arith.constant 0 : index
    %626 = vector.load %arg3[%c0_191, %c0_192] : memref<16x32xf32, #tpu.memory_space<vmem>>, vector<16x32xf32>
    tpu.vector_store %arg3[%c0_191, %c0_192], %616 {strides = array<i32>} : memref<16x32xf32, #tpu.memory_space<vmem>>, vector<16x32xf32>,
    %c0_193 = arith.constant 0 : index
    %c0_194 = arith.constant 0 : index
    %627 = vector.load %arg4[%c0_193, %c0_194] : memref<16x6xf32, #tpu.memory_space<vmem>>, vector<16x6xf32>
    tpu.vector_store %arg4[%c0_193, %c0_194], %625 {strides = array<i32>} : memref<16x6xf32, #tpu.memory_space<vmem>>, vector<16x6xf32>,
    return
  }
}

</mosaic_0001>

<llo_original>
// kernel: protein_motion_mpnn_forward.1
$region0: #{protein_motion_mpnn_forward.1}
  #allocation0 [shape = 'u32[]', space=smem, size = 0x4, offset = 0x4, fixed_abs, tag = 'smem constant byte address 0x4 - core index']
  #allocation1 [shape = 'u32[144,128]{1,0:T(1,128)}', space=vmem, size = 0x12000, scoped, tag = 'internal scratch']
  %s0 = inlined_call_operand.vmem [shape: f32[16,33], index: 0, kind: input, shape index: {}]
  %s1 = inlined_call_operand.vmem [shape: s32[64,2], index: 1, kind: input, shape index: {}]
  %s2 = inlined_call_operand.vmem [shape: f32[608,64], index: 2, kind: input, shape index: {}]
  %s3 = inlined_call_operand.hbm [shape: f32[16,32], index: 3, kind: output, shape index: {0}]
  %s4 = inlined_call_operand.vmem [shape: f32[16,6], index: 4, kind: output, shape index: {1}]
  %5 = xla_tuple %s3, %s4
  %s6 = sld [smem:[#allocation0]]
  $region30: #{protein_motion_mpnn_forward.1} parent=0
    _
  %s8 = ssub.s32 1, %s6
  %s9 = scalar_select 0, %s8, %s6
  $region1: #{protein_motion_mpnn_forward.1} parent=0
    #allocation2 [shape = 'u8[8192]{0}', space=vmem, size = 0x2000, scoped, tag = 'output window, operand 0, single buffered']
    #allocation3 [shape = 's32[1]{0}', space=sflag, size = 0x4, scoped, tag = 'scoped memory for protein_motion_mpnn_forward.1']
    %10 = vsyncpa [#allocation3], 0
    // Predicated region
    $region2: #{protein_motion_mpnn_forward.1} parent=1 // pred_check
      _
    $region3: #{protein_motion_mpnn_forward.1} parent=1 // pred_check_branch
      %12 = sbr.rel (0) target = $region5
    $region4: #{protein_motion_mpnn_forward.1} parent=1 // pred_region
      _
    $region5: #{protein_motion_mpnn_forward.1} parent=1 // pred_fallthru
      _
    // Predicated region
    $region6: #{protein_motion_mpnn_forward.1} parent=1 // pred_check
      _
    $region7: #{protein_motion_mpnn_forward.1} parent=1 // pred_check_branch
      %14 = sbr.rel (0) target = $region9
    $region8: #{protein_motion_mpnn_forward.1} parent=1 // pred_region
      _
    $region9: #{protein_motion_mpnn_forward.1} parent=1 // pred_fallthru
      _
    // Predicated region
    $region10: #{protein_motion_mpnn_forward.1} parent=1 // pred_check
      _
    $region11: #{protein_motion_mpnn_forward.1} parent=1 // pred_check_branch
      %16 = sbr.rel (0) target = $region13
    $region12: #{protein_motion_mpnn_forward.1} parent=1 // pred_region
      _
    $region13: #{protein_motion_mpnn_forward.1} parent=1 // pred_fallthru
      _
    %v17 = vld [vmem:[%s2] sm:$0x3f]
    %v18 = vld [vmem:[%s2 + $0x8] sm:$0xff]
    %v19 = vld [vmem:[%s2 + $0x10] sm:$0x1]
    %v20 = vld [vmem:[%s2 + $0x18] sm:$0xff]
    %v21 = vld [vmem:[%s2 + $0x20] sm:$0xff]
    %v22 = vld [vmem:[%s2 + $0x28] sm:$0x3]
    %v23 = vld [vmem:[%s2 + $0x30] sm:$0xff]
    %v24 = vld [vmem:[%s2 + $0x38] sm:$0x1]
    %v25 = vld [vmem:[%s2 + $0x40] sm:$0xff]
    %v26 = vld [vmem:[%s2 + $0x48] sm:$0x1]
    %v27 = vld [vmem:[%s2 + $0x50] sm:$0xff]
    %v28 = vld [vmem:[%s2 + $0x58] sm:$0xff]
    %v29 = vld [vmem:[%s2 + $0x60] sm:$0xff]
    %v30 = vld [vmem:[%s2 + $0x68] sm:$0x7]
    %v31 = vld [vmem:[%s2 + $0x70] sm:$0x7]
    %v32 = vld [vmem:[%s2 + $0x78] sm:$0xff]
    %v33 = vld [vmem:[%s2 + $0x80] sm:$0x1]
    %v34 = vld [vmem:[%s0] sm:$0xff]
    %v35 = vld [vmem:[%s0 + $0x8] sm:$0xff]
    %v36 = vld [vmem:[%s2 + $0x88] sm:$0x1]
    %v37 = vld [vmem:[%s2 + $0x90] sm:$0x1]
    %vm38 = vcmask 195584
    %v39 = vsel %vm38, %v34, 0.0
    %40 = vadd.xlane.f32.xlu0 %v39
    %v41 = vpop.xlane.xlu0 %40
    %v42 = vsel %vm38, %v35, 0.0
    %43 = vadd.xlane.f32.xlu0 %v42
    %v44 = vpop.xlane.xlu0 %43
    %v45 = vrcp.pop 24.0
    %v46 = vmul.f32 %v41, %v45
    %v47 = vmul.f32 %v44, %v45
    %v48 = vsub.f32 %v34, %v46
    %v49 = vsub.f32 %v35, %v47
    %v50 = vmul.f32 %v48, %v48
    %v51 = vmul.f32 %v49, %v49
    %v52 = vsel %vm38, %v50, 0.0
    %53 = vadd.xlane.f32.xlu0 %v52
    %v54 = vpop.xlane.xlu0 %53
    %v55 = vsel %vm38, %v51, 0.0
    %56 = vadd.xlane.f32.xlu0 %v55
    %v57 = vpop.xlane.xlu0 %56
    %v58 = vmul.f32 %v54, %v45
    %v59 = vmul.f32 %v57, %v45
    %v60 = vadd.f32 %v58, 1e-05
    %v61 = vadd.f32 %v59, 1e-05
    %v62 = vrsqrt.pop %v60
    %v63 = vrsqrt.pop %v61
    %v64 = vmul.f32 %v48, %v62
    %v65 = vmul.f32 %v49, %v63
    %v66 = vlaneseq
    %v67 = vshrl.u32 %v66, 7
    %v68 = vsub.s32 0, %v67
    %v69 = vrot.slane %v36, %v68
    %v70 = vmul.f32 %v64, %v69
    %v71 = vmul.f32 %v65, %v69
    %v72 = vlaneseq
    %v73 = vshrl.u32 %v72, 7
    %v74 = vsub.s32 0, %v73
    %v75 = vrot.slane %v37, %v74
    %v76 = vadd.f32 %v70, %v75
    %v77 = vadd.f32 %v71, %v75
    %v78 = vld [vmem:[%s2 + $0x98] sm:$0xff]
    %v79 = vld [vmem:[%s2 + $0xa0] sm:$0xff]
    %v80 = vld [vmem:[%s2 + $0xa8] sm:$0xff]
    %v81 = vld [vmem:[%s2 + $0xb0] sm:$0x1]
    %v82 = vlaneseq
    %v83 = vshrl.u32 %v82, 7
    %v84 = vsub.s32 0, %v83
    %v85 = vrot.slane %v81, %v84
    %v87 = vsel %vm38, %v76, 0
    %v90 = vsel %vm38, %v77, 0
    %92 = vmatprep.subr.mxu0 0.0
    %93 = vmatpush1.msra.mxu0 0.0
    %94 = vmatprep.subr.mxu0 0.0
    %95 = vmatpush1.msra.mxu0 0.0
    %96 = vmatprep.subr.mxu0 0.0
    %97 = vmatpush1.msra.mxu0 0.0
    %98 = vmatprep.subr.mxu0 0.0
    %99 = vmatpush1.msra.mxu0 0.0
    %100 = vmatprep.subr.mxu0 0.0
    %101 = vmatpush1.msra.mxu0 0.0
    %102 = vmatprep.subr.mxu0 0.0
    %103 = vmatpush1.msra.mxu0 0.0
    %104 = vmatprep.subr.mxu0 0.0
    %105 = vmatpush1.msra.mxu0 0.0
    %106 = vmatprep.subr.mxu0 0.0
    %107 = vmatpush1.msra.mxu0 0.0
    %108 = vmatprep.subr.mxu0 0.0
    %109 = vmatpush1.msra.mxu0 0.0
    %110 = vmatprep.subr.mxu0 0.0
    %111 = vmatpush1.msra.mxu0 0.0
    %112 = vmatprep.subr.mxu0 0.0
    %113 = vmatpush1.msra.mxu0 0.0
    %114 = vmatprep.subr.mxu0 0.0
    %115 = vmatpush1.msra.mxu0 0.0
    %116 = vmatprep.subr.mxu0 0.0
    %117 = vmatpush1.msra.mxu0 0.0
    %118 = vmatprep.subr.mxu0 0.0
    %119 = vmatpush1.msra.mxu0 %v80
    %120 = vmatprep.subr.mxu0 0.0
    %121 = vmatpush1.msra.mxu0 %v79
    %122 = vmatprep.subr.mxu0 0.0
    %123 = vmatpush1.msra.mxu0 %v78
    %124 = vmatprep.subr.mxu0 0.0
    %125 = vmatpush2.msra.mxu0 0.0
    %126 = vmatprep.subr.mxu0 0.0
    %127 = vmatpush2.msra.mxu0 0.0
    %128 = vmatprep.subr.mxu0 0.0
    %129 = vmatpush2.msra.mxu0 0.0
    %130 = vmatprep.subr.mxu0 0.0
    %131 = vmatpush2.msra.mxu0 0.0
    %132 = vmatprep.subr.mxu0 0.0
    %133 = vmatpush2.msra.mxu0 0.0
    %134 = vmatprep.subr.mxu0 0.0
    %135 = vmatpush2.msra.mxu0 0.0
    %136 = vmatprep.subr.mxu0 0.0
    %137 = vmatpush2.msra.mxu0 0.0
    %138 = vmatprep.subr.mxu0 0.0
    %139 = vmatpush2.msra.mxu0 0.0
    %140 = vmatprep.subr.mxu0 0.0
    %141 = vmatpush2.msra.mxu0 0.0
    %142 = vmatprep.subr.mxu0 0.0
    %143 = vmatpush2.msra.mxu0 0.0
    %144 = vmatprep.subr.mxu0 0.0
    %145 = vmatpush2.msra.mxu0 0.0
    %146 = vmatprep.subr.mxu0 0.0
    %147 = vmatpush2.msra.mxu0 0.0
    %148 = vmatprep.subr.mxu0 0.0
    %149 = vmatpush2.msra.mxu0 0.0
    %150 = vmatprep.subr.mxu0 0.0
    %151 = vmatpush2.msra.mxu0 0.0
    %152 = vmatprep.subr.mxu0 0.0
    %153 = vmatpush2.msra.mxu0 0.0
    %154 = vmatprep.subr.mxu0 0.0
    %155 = vmatpush2.msra.mxu0 0.0
    %156 = vmatprep.mubr.f32.mxu0 0.0
    %157 = vmatmul.mubr.f32.gmra.mxu0 %v87
    %v158 = vpop.f32.mrf.mxu0
    %v159 = vadd.f32 %v85, %v158
    %v160 = vpop.f32.mrf.mxu0
    %161 = vmatprep.mubr.f32.mxu0 0.0
    %162 = vmatmul.mubr.f32.gmra.mxu0 %v90
    %v163 = vpop.f32.mrf.mxu0
    %v164 = vadd.f32 %v85, %v163
    %v165 = vpop.f32.mrf.mxu0
    %166 = vdwg.mxu0
    %v167 = vld [vmem:[%s1] sm:$0xff]
    %v168 = vld [vmem:[%s1 + $0x8] sm:$0xff]
    %v169 = vld [vmem:[%s1 + $0x10] sm:$0xff]
    %v170 = vld [vmem:[%s1 + $0x18] sm:$0xff]
    %v171 = vld [vmem:[%s1 + $0x20] sm:$0xff]
    %v172 = vld [vmem:[%s1 + $0x28] sm:$0xff]
    %v173 = vld [vmem:[%s1 + $0x30] sm:$0xff]
    %v174 = vld [vmem:[%s1 + $0x38] sm:$0xff]
    %v175 = vlaneseq
    %v176 = vand.u32 %v175, 127
    %vm177 = vcmp.lt.s32.totalorder %v176, 16
    %v178 = vadd.s32 %v167, 16
    %v179 = vadd.s32 %v168, 16
    %v180 = vadd.s32 %v169, 16
    %v181 = vadd.s32 %v170, 16
    %v182 = vadd.s32 %v171, 16
    %v183 = vadd.s32 %v172, 16
    %v184 = vadd.s32 %v173, 16
    %v185 = vadd.s32 %v174, 16
    %186 = vset.pattern.permute.xlu0 0
    %187 = vperm.xlu0 %186, %v167
    %v188 = vpop.permute.xlu0 %187
    %189 = vset.pattern.permute.xlu0 0
    %190 = vperm.xlu0 %189, %v168
    %v191 = vpop.permute.xlu0 %190
    %192 = vset.pattern.permute.xlu0 0
    %193 = vperm.xlu0 %192, %v169
    %v194 = vpop.permute.xlu0 %193
    %195 = vset.pattern.permute.xlu0 0
    %196 = vperm.xlu0 %195, %v170
    %v197 = vpop.permute.xlu0 %196
    %198 = vset.pattern.permute.xlu0 0
    %199 = vperm.xlu0 %198, %v171
    %v200 = vpop.permute.xlu0 %199
    %201 = vset.pattern.permute.xlu0 0
    %202 = vperm.xlu0 %201, %v172
    %v203 = vpop.permute.xlu0 %202
    %204 = vset.pattern.permute.xlu0 0
    %205 = vperm.xlu0 %204, %v173
    %v206 = vpop.permute.xlu0 %205
    %207 = vset.pattern.permute.xlu0 0
    %208 = vperm.xlu0 %207, %v174
    %v209 = vpop.permute.xlu0 %208
    %210 = vset.pattern.permute.xlu0 1
    %211 = vperm.xlu0 %210, %v178
    %v212 = vpop.permute.xlu0 %211
    %213 = vset.pattern.permute.xlu0 1
    %214 = vperm.xlu0 %213, %v179
    %v215 = vpop.permute.xlu0 %214
    %216 = vset.pattern.permute.xlu0 1
    %217 = vperm.xlu0 %216, %v180
    %v218 = vpop.permute.xlu0 %217
    %219 = vset.pattern.permute.xlu0 1
    %220 = vperm.xlu0 %219, %v181
    %v221 = vpop.permute.xlu0 %220
    %222 = vset.pattern.permute.xlu0 1
    %223 = vperm.xlu0 %222, %v182
    %v224 = vpop.permute.xlu0 %223
    %225 = vset.pattern.permute.xlu0 1
    %226 = vperm.xlu0 %225, %v183
    %v227 = vpop.permute.xlu0 %226
    %228 = vset.pattern.permute.xlu0 1
    %229 = vperm.xlu0 %228, %v184
    %v230 = vpop.permute.xlu0 %229
    %231 = vset.pattern.permute.xlu0 1
    %232 = vperm.xlu0 %231, %v185
    %v233 = vpop.permute.xlu0 %232
    %v234 = vsel %vm177, %v188, %v212
    %v235 = vsel %vm177, %v191, %v215
    %v236 = vsel %vm177, %v194, %v218
    %v237 = vsel %vm177, %v197, %v221
    %v238 = vsel %vm177, %v200, %v224
    %v239 = vsel %vm177, %v203, %v227
    %v240 = vsel %vm177, %v206, %v230
    %v241 = vsel %vm177, %v209, %v233
    %vm242 = vcmp.eq.s32.totalorder %v176, %v234
    %vm243 = vcmp.eq.s32.totalorder %v176, %v235
    %vm244 = vcmp.eq.s32.totalorder %v176, %v236
    %vm245 = vcmp.eq.s32.totalorder %v176, %v237
    %vm246 = vcmp.eq.s32.totalorder %v176, %v238
    %vm247 = vcmp.eq.s32.totalorder %v176, %v239
    %vm248 = vcmp.eq.s32.totalorder %v176, %v240
    %vm249 = vcmp.eq.s32.totalorder %v176, %v241
    %v250 = vsel %vm242, 1, 0
    %v251 = vsel %vm243, 1, 0
    %v252 = vsel %vm244, 1, 0
    %v253 = vsel %vm245, 1, 0
    %v254 = vsel %vm246, 1, 0
    %v255 = vsel %vm247, 1, 0
    %v256 = vsel %vm248, 1, 0
    %v257 = vsel %vm249, 1, 0
    %v258 = vcvt.s32.f32 %v250
    %v259 = vcvt.s32.f32 %v251
    %v260 = vcvt.s32.f32 %v252
    %v261 = vcvt.s32.f32 %v253
    %v262 = vcvt.s32.f32 %v254
    %v263 = vcvt.s32.f32 %v255
    %v264 = vcvt.s32.f32 %v256
    %v265 = vcvt.s32.f32 %v257
    %vm266 = vcmask 130048
    %v267 = vsel %vm266, %v258, 0.0
    %v268 = vsel %vm266, %v259, 0.0
    %v269 = vadd.f32 %v267, %v268
    %v270 = vsel %vm266, %v260, 0.0
    %v271 = vadd.f32 %v269, %v270
    %v272 = vsel %vm266, %v261, 0.0
    %v273 = vadd.f32 %v271, %v272
    %v274 = vsel %vm266, %v262, 0.0
    %v275 = vadd.f32 %v273, %v274
    %v276 = vsel %vm266, %v263, 0.0
    %v277 = vadd.f32 %v275, %v276
    %v278 = vsel %vm266, %v264, 0.0
    %v279 = vadd.f32 %v277, %v278
    %v280 = vsel %vm266, %v265, 0.0
    %v281 = vadd.f32 %v279, %v280
    %v282 = vrot.slane %v281, 4
    %v283 = vadd.f32 %v281, %v282
    %v284 = vrot.slane %v283, 2
    %v285 = vadd.f32 %v283, %v284
    %v286 = vrot.slane %v285, 1
    %v287 = vadd.f32 %v285, %v286
    %v288 = vmax.f32 %v287, 1.0
    %v289 = vrcp.pop %v288
    %v290 = vmul.f32 1.0, %v289
    %v291 = vmul.f32 %v258, %v290
    %v292 = vmul.f32 %v259, %v290
    %v293 = vmul.f32 %v260, %v290
    %v294 = vmul.f32 %v261, %v290
    %v295 = vmul.f32 %v262, %v290
    %v296 = vmul.f32 %v263, %v290
    %v297 = vmul.f32 %v264, %v290
    %v298 = vmul.f32 %v265, %v290
    %301 = vrot.lane.b32.xlu0 %v34, 3
    %v302 = vpop.permute.xlu0 %301
    %303 = vrot.lane.b32.xlu0 %v35, 3
    %v304 = vpop.permute.xlu0 %303
    %v307 = vsub.f32 %v34, %v302
    %v308 = vsub.f32 %v35, %v304
    %v309 = vmul.f32 %v307, %v307
    %v310 = vmul.f32 %v308, %v308
    %313 = vrot.lane.b32.xlu0 %v309, 98
    %v314 = vpop.permute.xlu0 %313
    %315 = vrot.lane.b32.xlu0 %v310, 98
    %v316 = vpop.permute.xlu0 %315
    %vm319 = vcmask 23552
    %v320 = vsel %vm319, %v314, 0.0
    %321 = vadd.xlane.f32.xlu0 %v320
    %v322 = vpop.xlane.xlu0 %321
    %v323 = vsel %vm319, %v316, 0.0
    %324 = vadd.xlane.f32.xlu0 %v323
    %v325 = vpop.xlane.xlu0 %324
    %v326 = vadd.f32 %v322, 1e-20
    %v327 = vadd.f32 %v325, 1e-20
    %v328 = vrsqrt.pop %v326
    %v329 = vrsqrt.pop %v327
    %v330 = vmul.f32 %v307, %v328
    %v331 = vmul.f32 %v308, %v329
    %332 = vrot.lane.b32.xlu0 %v34, 125
    %v333 = vpop.permute.xlu0 %332
    %334 = vrot.lane.b32.xlu0 %v35, 125
    %v335 = vpop.permute.xlu0 %334
    %v338 = vsub.f32 %v34, %v333
    %v339 = vsub.f32 %v35, %v335
    %342 = vrot.lane.b32.xlu0 %v330, 122
    %v343 = vpop.permute.xlu0 %342
    %344 = vrot.lane.b32.xlu0 %v331, 122
    %v345 = vpop.permute.xlu0 %344
    %v348 = vmul.f32 %v338, %v343
    %v349 = vmul.f32 %v339, %v345
    %352 = vrot.lane.b32.xlu0 %v348, 104
    %v353 = vpop.permute.xlu0 %352
    %354 = vrot.lane.b32.xlu0 %v349, 104
    %v355 = vpop.permute.xlu0 %354
    %v358 = vsel %vm319, %v353, 0.0
    %359 = vadd.xlane.f32.xlu0 %v358
    %v360 = vpop.xlane.xlu0 %359
    %v361 = vsel %vm319, %v355, 0.0
    %362 = vadd.xlane.f32.xlu0 %v361
    %v363 = vpop.xlane.xlu0 %362
    %v364 = vmul.f32 %v360, %v330
    %v365 = vmul.f32 %v363, %v331
    %368 = vrot.lane.b32.xlu0 %v364, 122
    %v369 = vpop.permute.xlu0 %368
    %370 = vrot.lane.b32.xlu0 %v365, 122
    %v371 = vpop.permute.xlu0 %370
    %v374 = vsub.f32 %v338, %v369
    %v375 = vsub.f32 %v339, %v371
    %v376 = vmul.f32 %v374, %v374
    %v377 = vmul.f32 %v375, %v375
    %380 = vrot.lane.b32.xlu0 %v376, 104
    %v381 = vpop.permute.xlu0 %380
    %382 = vrot.lane.b32.xlu0 %v377, 104
    %v383 = vpop.permute.xlu0 %382
    %v386 = vsel %vm319, %v381, 0.0
    %387 = vadd.xlane.f32.xlu0 %v386
    %v388 = vpop.xlane.xlu0 %387
    %v389 = vsel %vm319, %v383, 0.0
    %390 = vadd.xlane.f32.xlu0 %v389
    %v391 = vpop.xlane.xlu0 %390
    %v392 = vadd.f32 %v388, 1e-20
    %v393 = vadd.f32 %v391, 1e-20
    %v394 = vrsqrt.pop %v392
    %v395 = vrsqrt.pop %v393
    %v396 = vmul.f32 %v374, %v394
    %v397 = vmul.f32 %v375, %v395
    %400 = vrot.lane.b32.xlu0 %v396, 5
    %v401 = vpop.permute.xlu0 %400
    %402 = vrot.lane.b32.xlu0 %v397, 5
    %v403 = vpop.permute.xlu0 %402
    %v406 = vmul.f32 %v330, %v401
    %v407 = vmul.f32 %v331, %v403
    %408 = vrot.lane.b32.xlu0 %v396, 7
    %v409 = vpop.permute.xlu0 %408
    %410 = vrot.lane.b32.xlu0 %v397, 7
    %v411 = vpop.permute.xlu0 %410
    %v414 = vmul.f32 %v330, %v409
    %v415 = vmul.f32 %v331, %v411
    %418 = vrot.lane.b32.xlu0 %v414, 127
    %v419 = vpop.permute.xlu0 %418
    %420 = vrot.lane.b32.xlu0 %v415, 127
    %v421 = vpop.permute.xlu0 %420
    %v424 = vsub.f32 %v406, %v419
    %v425 = vsub.f32 %v407, %v421
    %426 = vrot.lane.b32.xlu0 %v396, 8
    %v427 = vpop.permute.xlu0 %426
    %428 = vrot.lane.b32.xlu0 %v397, 8
    %v429 = vpop.permute.xlu0 %428
    %v432 = vmul.f32 %v330, %v427
    %v433 = vmul.f32 %v331, %v429
    %434 = vrot.lane.b32.xlu0 %v396, 4
    %v435 = vpop.permute.xlu0 %434
    %436 = vrot.lane.b32.xlu0 %v397, 4
    %v437 = vpop.permute.xlu0 %436
    %v440 = vmul.f32 %v330, %v435
    %v441 = vmul.f32 %v331, %v437
    %444 = vrot.lane.b32.xlu0 %v440, 2
    %v445 = vpop.permute.xlu0 %444
    %446 = vrot.lane.b32.xlu0 %v441, 2
    %v447 = vpop.permute.xlu0 %446
    %v450 = vsub.f32 %v432, %v445
    %v451 = vsub.f32 %v433, %v447
    %452 = vrot.lane.b32.xlu0 %v330, 98
    %v453 = vpop.permute.xlu0 %452
    %454 = vrot.lane.b32.xlu0 %v331, 98
    %v455 = vpop.permute.xlu0 %454
    %458 = vrot.lane.b32.xlu0 %v396, 105
    %v459 = vpop.permute.xlu0 %458
    %460 = vrot.lane.b32.xlu0 %v397, 105
    %v461 = vpop.permute.xlu0 %460
    %466 = vrot.lane.b32.xlu0 %v424, 99
    %v467 = vpop.permute.xlu0 %466
    %468 = vrot.lane.b32.xlu0 %v425, 99
    %v469 = vpop.permute.xlu0 %468
    %472 = vrot.lane.b32.xlu0 %v330, 100
    %v473 = vpop.permute.xlu0 %472
    %474 = vrot.lane.b32.xlu0 %v331, 100
    %v475 = vpop.permute.xlu0 %474
    %478 = vrot.lane.b32.xlu0 %v396, 107
    %v479 = vpop.permute.xlu0 %478
    %480 = vrot.lane.b32.xlu0 %v397, 107
    %v481 = vpop.permute.xlu0 %480
    %486 = vrot.lane.b32.xlu0 %v450, 101
    %v487 = vpop.permute.xlu0 %486
    %488 = vrot.lane.b32.xlu0 %v451, 101
    %v489 = vpop.permute.xlu0 %488
    %492 = vrot.lane.b32.xlu0 %v330, 102
    %v493 = vpop.permute.xlu0 %492
    %494 = vrot.lane.b32.xlu0 %v331, 102
    %v495 = vpop.permute.xlu0 %494
    %498 = vrot.lane.b32.xlu0 %v396, 109
    %v499 = vpop.permute.xlu0 %498
    %500 = vrot.lane.b32.xlu0 %v397, 109
    %v501 = vpop.permute.xlu0 %500
    %504 = vrot.lane.b32.xlu0 %v424, 106
    %v505 = vpop.permute.xlu0 %504
    %506 = vrot.lane.b32.xlu0 %v425, 106
    %v507 = vpop.permute.xlu0 %506
    %vm510 = vcmask 7168
    %v511 = vsel %vm510, %v453, %v459
    %v512 = vsel %vm510, %v455, %v461
    %vm513 = vcmask 15360
    %v514 = vsel %vm513, %v511, %v467
    %v515 = vsel %vm513, %v512, %v469
    %v516 = vsel %vm319, %v514, %v473
    %v517 = vsel %vm319, %v515, %v475
    %vm518 = vcmask 31744
    %v519 = vsel %vm518, %v516, %v479
    %v520 = vsel %vm518, %v517, %v481
    %vm521 = vcmask 39936
    %v522 = vsel %vm521, %v519, %v487
    %v523 = vsel %vm521, %v520, %v489
    %vm524 = vcmask 48128
    %v525 = vsel %vm524, %v522, %v493
    %v526 = vsel %vm524, %v523, %v495
    %vm527 = vcmask 56320
    %v528 = vsel %vm527, %v525, %v499
    %v529 = vsel %vm527, %v526, %v501
    %vm530 = vcmask 64512
    %v531 = vsel %vm530, %v528, %v505
    %v532 = vsel %vm530, %v529, %v507
    %vm533 = vcmask 72704
    %v535 = vsel %vm533, %v531, 0
    %v538 = vsel %vm533, %v532, 0
    %vm540 = vcmask 1040384
    %v542 = vsel %vm540, %v19, 0
    %544 = vmatprep.subr.mxu0 0.0
    %545 = vmatpush1.msra.mxu0 0.0
    %546 = vmatprep.subr.mxu0 0.0
    %547 = vmatpush1.msra.mxu0 0.0
    %548 = vmatprep.subr.mxu0 0.0
    %549 = vmatpush1.msra.mxu0 0.0
    %550 = vmatprep.subr.mxu0 0.0
    %551 = vmatpush1.msra.mxu0 0.0
    %552 = vmatprep.subr.mxu0 0.0
    %553 = vmatpush1.msra.mxu0 0.0
    %554 = vmatprep.subr.mxu0 0.0
    %555 = vmatpush1.msra.mxu0 0.0
    %556 = vmatprep.subr.mxu0 0.0
    %557 = vmatpush1.msra.mxu0 0.0
    %558 = vmatprep.subr.mxu0 0.0
    %559 = vmatpush1.msra.mxu0 0.0
    %560 = vmatprep.subr.mxu0 0.0
    %561 = vmatpush1.msra.mxu0 0.0
    %562 = vmatprep.subr.mxu0 0.0
    %563 = vmatpush1.msra.mxu0 0.0
    %564 = vmatprep.subr.mxu0 0.0
    %565 = vmatpush1.msra.mxu0 0.0
    %566 = vmatprep.subr.mxu0 0.0
    %567 = vmatpush1.msra.mxu0 0.0
    %568 = vmatprep.subr.mxu0 0.0
    %569 = vmatpush1.msra.mxu0 0.0
    %570 = vmatprep.subr.mxu0 0.0
    %571 = vmatpush1.msra.mxu0 0.0
    %572 = vmatprep.subr.mxu0 0.0
    %573 = vmatpush1.msra.mxu0 %v542
    %574 = vmatprep.subr.mxu0 0.0
    %575 = vmatpush1.msra.mxu0 %v18
    %576 = vmatprep.subr.mxu0 0.0
    %577 = vmatpush2.msra.mxu0 0.0
    %578 = vmatprep.subr.mxu0 0.0
    %579 = vmatpush2.msra.mxu0 0.0
    %580 = vmatprep.subr.mxu0 0.0
    %581 = vmatpush2.msra.mxu0 0.0
    %582 = vmatprep.subr.mxu0 0.0
    %583 = vmatpush2.msra.mxu0 0.0
    %584 = vmatprep.subr.mxu0 0.0
    %585 = vmatpush2.msra.mxu0 0.0
    %586 = vmatprep.subr.mxu0 0.0
    %587 = vmatpush2.msra.mxu0 0.0
    %588 = vmatprep.subr.mxu0 0.0
    %589 = vmatpush2.msra.mxu0 0.0
    %590 = vmatprep.subr.mxu0 0.0
    %591 = vmatpush2.msra.mxu0 0.0
    %592 = vmatprep.subr.mxu0 0.0
    %593 = vmatpush2.msra.mxu0 0.0
    %594 = vmatprep.subr.mxu0 0.0
    %595 = vmatpush2.msra.mxu0 0.0
    %596 = vmatprep.subr.mxu0 0.0
    %597 = vmatpush2.msra.mxu0 0.0
    %598 = vmatprep.subr.mxu0 0.0
    %599 = vmatpush2.msra.mxu0 0.0
    %600 = vmatprep.subr.mxu0 0.0
    %601 = vmatpush2.msra.mxu0 0.0
    %602 = vmatprep.subr.mxu0 0.0
    %603 = vmatpush2.msra.mxu0 0.0
    %604 = vmatprep.subr.mxu0 0.0
    %605 = vmatpush2.msra.mxu0 0.0
    %606 = vmatprep.subr.mxu0 0.0
    %607 = vmatpush2.msra.mxu0 0.0
    %608 = vmatprep.mubr.f32.mxu0 0.0
    %609 = vmatmul.mubr.f32.gmra.mxu0 %v535
    %v610 = vpop.f32.mrf.mxu0
    %v611 = vadd.f32 0.0, %v610
    %v612 = vpop.f32.mrf.mxu0
    %613 = vmatprep.mubr.f32.mxu0 0.0
    %614 = vmatmul.mubr.f32.gmra.mxu0 %v538
    %v615 = vpop.f32.mrf.mxu0
    %v616 = vadd.f32 0.0, %v615
    %v617 = vpop.f32.mrf.mxu0
    %618 = vdwg.mxu0
    %619 = vrot.lane.b32.xlu0 %v34, 113
    %v620 = vpop.permute.xlu0 %619
    %621 = vrot.lane.b32.xlu0 %v35, 113
    %v622 = vpop.permute.xlu0 %621
    %v625 = vsel %vm533, %v531, %v620
    %v626 = vsel %vm533, %v532, %v622
    %v628 = vsel %vm266, %v258, 0
    %v631 = vsel %vm266, %v259, 0
    %v634 = vsel %vm266, %v260, 0
    %v637 = vsel %vm266, %v261, 0
    %v640 = vsel %vm266, %v262, 0
    %v643 = vsel %vm266, %v263, 0
    %v646 = vsel %vm266, %v264, 0
    %v649 = vsel %vm266, %v265, 0
    %651 = vmatprep.subr.mxu0 0.0
    %652 = vmatpush1.msra.mxu0 0.0
    %653 = vmatprep.subr.mxu0 0.0
    %654 = vmatpush1.msra.mxu0 0.0
    %655 = vmatprep.subr.mxu0 0.0
    %656 = vmatpush1.msra.mxu0 0.0
    %657 = vmatprep.subr.mxu0 0.0
    %658 = vmatpush1.msra.mxu0 0.0
    %659 = vmatprep.subr.mxu0 0.0
    %660 = vmatpush1.msra.mxu0 0.0
    %661 = vmatprep.subr.mxu0 0.0
    %662 = vmatpush1.msra.mxu0 0.0
    %663 = vmatprep.subr.mxu0 0.0
    %664 = vmatpush1.msra.mxu0 0.0
    %665 = vmatprep.subr.mxu0 0.0
    %666 = vmatpush1.msra.mxu0 0.0
    %667 = vmatprep.subr.mxu0 0.0
    %668 = vmatpush1.msra.mxu0 0.0
    %669 = vmatprep.subr.mxu0 0.0
    %670 = vmatpush1.msra.mxu0 0.0
    %671 = vmatprep.subr.mxu0 0.0
    %672 = vmatpush1.msra.mxu0 0.0
    %673 = vmatprep.subr.mxu0 0.0
    %674 = vmatpush1.msra.mxu0 0.0
    %675 = vmatprep.subr.mxu0 0.0
    %676 = vmatpush1.msra.mxu0 0.0
    %677 = vmatprep.subr.mxu0 0.0
    %678 = vmatpush1.msra.mxu0 0.0
    %679 = vmatprep.subr.mxu0 0.0
    %680 = vmatpush1.msra.mxu0 %v626
    %681 = vmatprep.subr.mxu0 0.0
    %682 = vmatpush1.msra.mxu0 %v625
    %683 = vmatprep.subr.mxu0 0.0
    %684 = vmatpush2.msra.mxu0 0.0
    %685 = vmatprep.subr.mxu0 0.0
    %686 = vmatpush2.msra.mxu0 0.0
    %687 = vmatprep.subr.mxu0 0.0
    %688 = vmatpush2.msra.mxu0 0.0
    %689 = vmatprep.subr.mxu0 0.0
    %690 = vmatpush2.msra.mxu0 0.0
    %691 = vmatprep.subr.mxu0 0.0
    %692 = vmatpush2.msra.mxu0 0.0
    %693 = vmatprep.subr.mxu0 0.0
    %694 = vmatpush2.msra.mxu0 0.0
    %695 = vmatprep.subr.mxu0 0.0
    %696 = vmatpush2.msra.mxu0 0.0
    %697 = vmatprep.subr.mxu0 0.0
    %698 = vmatpush2.msra.mxu0 0.0
    %699 = vmatprep.subr.mxu0 0.0
    %700 = vmatpush2.msra.mxu0 0.0
    %701 = vmatprep.subr.mxu0 0.0
    %702 = vmatpush2.msra.mxu0 0.0
    %703 = vmatprep.subr.mxu0 0.0
    %704 = vmatpush2.msra.mxu0 0.0
    %705 = vmatprep.subr.mxu0 0.0
    %706 = vmatpush2.msra.mxu0 0.0
    %707 = vmatprep.subr.mxu0 0.0
    %708 = vmatpush2.msra.mxu0 0.0
    %709 = vmatprep.subr.mxu0 0.0
    %710 = vmatpush2.msra.mxu0 0.0
    %711 = vmatprep.subr.mxu0 0.0
    %712 = vmatpush2.msra.mxu0 0.0
    %713 = vmatprep.subr.mxu0 0.0
    %714 = vmatpush2.msra.mxu0 0.0
    %715 = vmatprep.mubr.f32.mxu0 0.0
    %716 = vmatmul.mubr.f32.gmra.mxu0 %v628
    %v717 = vpop.f32.mrf.mxu0
    %v718 = vadd.f32 0.0, %v717
    %v719 = vpop.f32.mrf.mxu0
    %720 = vmatprep.mubr.f32.mxu0 0.0
    %721 = vmatmul.mubr.f32.gmra.mxu0 %v631
    %v722 = vpop.f32.mrf.mxu0
    %v723 = vadd.f32 0.0, %v722
    %v724 = vpop.f32.mrf.mxu0
    %725 = vmatprep.mubr.f32.mxu0 0.0
    %726 = vmatmul.mubr.f32.gmra.mxu0 %v634
    %v727 = vpop.f32.mrf.mxu0
    %v728 = vadd.f32 0.0, %v727
    %v729 = vpop.f32.mrf.mxu0
    %730 = vmatprep.mubr.f32.mxu0 0.0
    %731 = vmatmul.mubr.f32.gmra.mxu0 %v637
    %v732 = vpop.f32.mrf.mxu0
    %v733 = vadd.f32 0.0, %v732
    %v734 = vpop.f32.mrf.mxu0
    %735 = vmatprep.mubr.f32.mxu0 0.0
    %736 = vmatmul.mubr.f32.gmra.mxu0 %v640
    %v737 = vpop.f32.mrf.mxu0
    %v738 = vadd.f32 0.0, %v737
    %v739 = vpop.f32.mrf.mxu0
    %740 = vmatprep.mubr.f32.mxu0 0.0
    %741 = vmatmul.mubr.f32.gmra.mxu0 %v643
    %v742 = vpop.f32.mrf.mxu0
    %v743 = vadd.f32 0.0, %v742
    %v744 = vpop.f32.mrf.mxu0
    %745 = vmatprep.mubr.f32.mxu0 0.0
    %746 = vmatmul.mubr.f32.gmra.mxu0 %v646
    %v747 = vpop.f32.mrf.mxu0
    %v748 = vadd.f32 0.0, %v747
    %v749 = vpop.f32.mrf.mxu0
    %750 = vmatprep.mubr.f32.mxu0 0.0
    %751 = vmatmul.mubr.f32.gmra.mxu0 %v649
    %v752 = vpop.f32.mrf.mxu0
    %v753 = vadd.f32 0.0, %v752
    %v754 = vpop.f32.mrf.mxu0
    %755 = vdwg.mxu0
    %756 = vrot.lane.b32.xlu0 %v258, 112
    %v757 = vpop.permute.xlu0 %756
    %758 = vrot.lane.b32.xlu0 %v259, 112
    %v759 = vpop.permute.xlu0 %758
    %760 = vrot.lane.b32.xlu0 %v260, 112
    %v761 = vpop.permute.xlu0 %760
    %762 = vrot.lane.b32.xlu0 %v261, 112
    %v763 = vpop.permute.xlu0 %762
    %764 = vrot.lane.b32.xlu0 %v262, 112
    %v765 = vpop.permute.xlu0 %764
    %766 = vrot.lane.b32.xlu0 %v263, 112
    %v767 = vpop.permute.xlu0 %766
    %768 = vrot.lane.b32.xlu0 %v264, 112
    %v769 = vpop.permute.xlu0 %768
    %770 = vrot.lane.b32.xlu0 %v265, 112
    %v771 = vpop.permute.xlu0 %770
    %v772 = vsel %vm266, %v757, 0
    %v774 = vsel %vm266, %v759, 0
    %v776 = vsel %vm266, %v761, 0
    %v778 = vsel %vm266, %v763, 0
    %v780 = vsel %vm266, %v765, 0
    %v782 = vsel %vm266, %v767, 0
    %v784 = vsel %vm266, %v769, 0
    %v786 = vsel %vm266, %v771, 0
    %788 = vmatprep.subr.mxu0 0.0
    %789 = vmatpush1.msra.mxu0 0.0
    %790 = vmatprep.subr.mxu0 0.0
    %791 = vmatpush1.msra.mxu0 0.0
    %792 = vmatprep.subr.mxu0 0.0
    %793 = vmatpush1.msra.mxu0 0.0
    %794 = vmatprep.subr.mxu0 0.0
    %795 = vmatpush1.msra.mxu0 0.0
    %796 = vmatprep.subr.mxu0 0.0
    %797 = vmatpush1.msra.mxu0 0.0
    %798 = vmatprep.subr.mxu0 0.0
    %799 = vmatpush1.msra.mxu0 0.0
    %800 = vmatprep.subr.mxu0 0.0
    %801 = vmatpush1.msra.mxu0 0.0
    %802 = vmatprep.subr.mxu0 0.0
    %803 = vmatpush1.msra.mxu0 0.0
    %804 = vmatprep.subr.mxu0 0.0
    %805 = vmatpush1.msra.mxu0 0.0
    %806 = vmatprep.subr.mxu0 0.0
    %807 = vmatpush1.msra.mxu0 0.0
    %808 = vmatprep.subr.mxu0 0.0
    %809 = vmatpush1.msra.mxu0 0.0
    %810 = vmatprep.subr.mxu0 0.0
    %811 = vmatpush1.msra.mxu0 0.0
    %812 = vmatprep.subr.mxu0 0.0
    %813 = vmatpush1.msra.mxu0 0.0
    %814 = vmatprep.subr.mxu0 0.0
    %815 = vmatpush1.msra.mxu0 0.0
    %816 = vmatprep.subr.mxu0 0.0
    %817 = vmatpush1.msra.mxu0 %v626
    %818 = vmatprep.subr.mxu0 0.0
    %819 = vmatpush1.msra.mxu0 %v625
    %820 = vmatprep.subr.mxu0 0.0
    %821 = vmatpush2.msra.mxu0 0.0
    %822 = vmatprep.subr.mxu0 0.0
    %823 = vmatpush2.msra.mxu0 0.0
    %824 = vmatprep.subr.mxu0 0.0
    %825 = vmatpush2.msra.mxu0 0.0
    %826 = vmatprep.subr.mxu0 0.0
    %827 = vmatpush2.msra.mxu0 0.0
    %828 = vmatprep.subr.mxu0 0.0
    %829 = vmatpush2.msra.mxu0 0.0
    %830 = vmatprep.subr.mxu0 0.0
    %831 = vmatpush2.msra.mxu0 0.0
    %832 = vmatprep.subr.mxu0 0.0
    %833 = vmatpush2.msra.mxu0 0.0
    %834 = vmatprep.subr.mxu0 0.0
    %835 = vmatpush2.msra.mxu0 0.0
    %836 = vmatprep.subr.mxu0 0.0
    %837 = vmatpush2.msra.mxu0 0.0
    %838 = vmatprep.subr.mxu0 0.0
    %839 = vmatpush2.msra.mxu0 0.0
    %840 = vmatprep.subr.mxu0 0.0
    %841 = vmatpush2.msra.mxu0 0.0
    %842 = vmatprep.subr.mxu0 0.0
    %843 = vmatpush2.msra.mxu0 0.0
    %844 = vmatprep.subr.mxu0 0.0
    %845 = vmatpush2.msra.mxu0 0.0
    %846 = vmatprep.subr.mxu0 0.0
    %847 = vmatpush2.msra.mxu0 0.0
    %848 = vmatprep.subr.mxu0 0.0
    %849 = vmatpush2.msra.mxu0 0.0
    %850 = vmatprep.subr.mxu0 0.0
    %851 = vmatpush2.msra.mxu0 0.0
    %852 = vmatprep.mubr.f32.mxu0 0.0
    %853 = vmatmul.mubr.f32.gmra.mxu0 %v772
    %v854 = vpop.f32.mrf.mxu0
    %v855 = vadd.f32 0.0, %v854
    %v856 = vpop.f32.mrf.mxu0
    %857 = vmatprep.mubr.f32.mxu0 0.0
    %858 = vmatmul.mubr.f32.gmra.mxu0 %v774
    %v859 = vpop.f32.mrf.mxu0
    %v860 = vadd.f32 0.0, %v859
    %v861 = vpop.f32.mrf.mxu0
    %862 = vmatprep.mubr.f32.mxu0 0.0
    %863 = vmatmul.mubr.f32.gmra.mxu0 %v776
    %v864 = vpop.f32.mrf.mxu0
    %v865 = vadd.f32 0.0, %v864
    %v866 = vpop.f32.mrf.mxu0
    %867 = vmatprep.mubr.f32.mxu0 0.0
    %868 = vmatmul.mubr.f32.gmra.mxu0 %v778
    %v869 = vpop.f32.mrf.mxu0
    %v870 = vadd.f32 0.0, %v869
    %v871 = vpop.f32.mrf.mxu0
    %872 = vmatprep.mubr.f32.mxu0 0.0
    %873 = vmatmul.mubr.f32.gmra.mxu0 %v780
    %v874 = vpop.f32.mrf.mxu0
    %v875 = vadd.f32 0.0, %v874
    %v876 = vpop.f32.mrf.mxu0
    %877 = vmatprep.mubr.f32.mxu0 0.0
    %878 = vmatmul.mubr.f32.gmra.mxu0 %v782
    %v879 = vpop.f32.mrf.mxu0
    %v880 = vadd.f32 0.0, %v879
    %v881 = vpop.f32.mrf.mxu0
    %882 = vmatprep.mubr.f32.mxu0 0.0
    %883 = vmatmul.mubr.f32.gmra.mxu0 %v784
    %v884 = vpop.f32.mrf.mxu0
    %v885 = vadd.f32 0.0, %v884
    %v886 = vpop.f32.mrf.mxu0
    %887 = vmatprep.mubr.f32.mxu0 0.0
    %888 = vmatmul.mubr.f32.gmra.mxu0 %v786
    %v889 = vpop.f32.mrf.mxu0
    %v890 = vadd.f32 0.0, %v889
    %v891 = vpop.f32.mrf.mxu0
    %892 = vdwg.mxu0
    %v894 = vsel %vm533, %v718, 0
    %v897 = vsel %vm533, %v723, 0
    %v900 = vsel %vm533, %v728, 0
    %v903 = vsel %vm533, %v733, 0
    %v906 = vsel %vm533, %v738, 0
    %v909 = vsel %vm533, %v743, 0
    %v912 = vsel %vm533, %v748, 0
    %v915 = vsel %vm533, %v753, 0
    %v918 = vsel %vm540, %v24, 0
    %920 = vmatprep.subr.mxu0 0.0
    %921 = vmatpush1.msra.mxu0 0.0
    %922 = vmatprep.subr.mxu0 0.0
    %923 = vmatpush1.msra.mxu0 0.0
    %924 = vmatprep.subr.mxu0 0.0
    %925 = vmatpush1.msra.mxu0 0.0
    %926 = vmatprep.subr.mxu0 0.0
    %927 = vmatpush1.msra.mxu0 0.0
    %928 = vmatprep.subr.mxu0 0.0
    %929 = vmatpush1.msra.mxu0 0.0
    %930 = vmatprep.subr.mxu0 0.0
    %931 = vmatpush1.msra.mxu0 0.0
    %932 = vmatprep.subr.mxu0 0.0
    %933 = vmatpush1.msra.mxu0 0.0
    %934 = vmatprep.subr.mxu0 0.0
    %935 = vmatpush1.msra.mxu0 0.0
    %936 = vmatprep.subr.mxu0 0.0
    %937 = vmatpush1.msra.mxu0 0.0
    %938 = vmatprep.subr.mxu0 0.0
    %939 = vmatpush1.msra.mxu0 0.0
    %940 = vmatprep.subr.mxu0 0.0
    %941 = vmatpush1.msra.mxu0 0.0
    %942 = vmatprep.subr.mxu0 0.0
    %943 = vmatpush1.msra.mxu0 0.0
    %944 = vmatprep.subr.mxu0 0.0
    %945 = vmatpush1.msra.mxu0 0.0
    %946 = vmatprep.subr.mxu0 0.0
    %947 = vmatpush1.msra.mxu0 0.0
    %948 = vmatprep.subr.mxu0 0.0
    %949 = vmatpush1.msra.mxu0 %v918
    %950 = vmatprep.subr.mxu0 0.0
    %951 = vmatpush1.msra.mxu0 %v23
    %952 = vmatprep.subr.mxu0 0.0
    %953 = vmatpush2.msra.mxu0 0.0
    %954 = vmatprep.subr.mxu0 0.0
    %955 = vmatpush2.msra.mxu0 0.0
    %956 = vmatprep.subr.mxu0 0.0
    %957 = vmatpush2.msra.mxu0 0.0
    %958 = vmatprep.subr.mxu0 0.0
    %959 = vmatpush2.msra.mxu0 0.0
    %960 = vmatprep.subr.mxu0 0.0
    %961 = vmatpush2.msra.mxu0 0.0
    %962 = vmatprep.subr.mxu0 0.0
    %963 = vmatpush2.msra.mxu0 0.0
    %964 = vmatprep.subr.mxu0 0.0
    %965 = vmatpush2.msra.mxu0 0.0
    %966 = vmatprep.subr.mxu0 0.0
    %967 = vmatpush2.msra.mxu0 0.0
    %968 = vmatprep.subr.mxu0 0.0
    %969 = vmatpush2.msra.mxu0 0.0
    %970 = vmatprep.subr.mxu0 0.0
    %971 = vmatpush2.msra.mxu0 0.0
    %972 = vmatprep.subr.mxu0 0.0
    %973 = vmatpush2.msra.mxu0 0.0
    %974 = vmatprep.subr.mxu0 0.0
    %975 = vmatpush2.msra.mxu0 0.0
    %976 = vmatprep.subr.mxu0 0.0
    %977 = vmatpush2.msra.mxu0 0.0
    %978 = vmatprep.subr.mxu0 0.0
    %979 = vmatpush2.msra.mxu0 0.0
    %980 = vmatprep.subr.mxu0 0.0
    %981 = vmatpush2.msra.mxu0 0.0
    %982 = vmatprep.subr.mxu0 0.0
    %983 = vmatpush2.msra.mxu0 0.0
    %984 = vmatprep.mubr.f32.mxu0 0.0
    %985 = vmatmul.mubr.f32.gmra.mxu0 %v894
    %v986 = vpop.f32.mrf.mxu0
    %v987 = vadd.f32 0.0, %v986
    %v988 = vpop.f32.mrf.mxu0
    %989 = vmatprep.mubr.f32.mxu0 0.0
    %990 = vmatmul.mubr.f32.gmra.mxu0 %v897
    %v991 = vpop.f32.mrf.mxu0
    %v992 = vadd.f32 0.0, %v991
    %v993 = vpop.f32.mrf.mxu0
    %994 = vmatprep.mubr.f32.mxu0 0.0
    %995 = vmatmul.mubr.f32.gmra.mxu0 %v900
    %v996 = vpop.f32.mrf.mxu0
    %v997 = vadd.f32 0.0, %v996
    %v998 = vpop.f32.mrf.mxu0
    %999 = vmatprep.mubr.f32.mxu0 0.0
    %1000 = vmatmul.mubr.f32.gmra.mxu0 %v903
    %v1001 = vpop.f32.mrf.mxu0
    %v1002 = vadd.f32 0.0, %v1001
    %v1003 = vpop.f32.mrf.mxu0
    %1004 = vmatprep.mubr.f32.mxu0 0.0
    %1005 = vmatmul.mubr.f32.gmra.mxu0 %v906
    %v1006 = vpop.f32.mrf.mxu0
    %v1007 = vadd.f32 0.0, %v1006
    %v1008 = vpop.f32.mrf.mxu0
    %1009 = vmatprep.mubr.f32.mxu0 0.0
    %1010 = vmatmul.mubr.f32.gmra.mxu0 %v909
    %v1011 = vpop.f32.mrf.mxu0
    %v1012 = vadd.f32 0.0, %v1011
    %v1013 = vpop.f32.mrf.mxu0
    %1014 = vmatprep.mubr.f32.mxu0 0.0
    %1015 = vmatmul.mubr.f32.gmra.mxu0 %v912
    %v1016 = vpop.f32.mrf.mxu0
    %v1017 = vadd.f32 0.0, %v1016
    %v1018 = vpop.f32.mrf.mxu0
    %1019 = vmatprep.mubr.f32.mxu0 0.0
    %1020 = vmatmul.mubr.f32.gmra.mxu0 %v915
    %v1021 = vpop.f32.mrf.mxu0
    %v1022 = vadd.f32 0.0, %v1021
    %v1023 = vpop.f32.mrf.mxu0
    %1024 = vdwg.mxu0
    %v1026 = vsel %vm533, %v855, 0
    %v1029 = vsel %vm533, %v860, 0
    %v1032 = vsel %vm533, %v865, 0
    %v1035 = vsel %vm533, %v870, 0
    %v1038 = vsel %vm533, %v875, 0
    %v1041 = vsel %vm533, %v880, 0
    %v1044 = vsel %vm533, %v885, 0
    %v1047 = vsel %vm533, %v890, 0
    %v1050 = vsel %vm540, %v26, 0
    %1052 = vmatprep.subr.mxu0 0.0
    %1053 = vmatpush1.msra.mxu0 0.0
    %1054 = vmatprep.subr.mxu0 0.0
    %1055 = vmatpush1.msra.mxu0 0.0
    %1056 = vmatprep.subr.mxu0 0.0
    %1057 = vmatpush1.msra.mxu0 0.0
    %1058 = vmatprep.subr.mxu0 0.0
    %1059 = vmatpush1.msra.mxu0 0.0
    %1060 = vmatprep.subr.mxu0 0.0
    %1061 = vmatpush1.msra.mxu0 0.0
    %1062 = vmatprep.subr.mxu0 0.0
    %1063 = vmatpush1.msra.mxu0 0.0
    %1064 = vmatprep.subr.mxu0 0.0
    %1065 = vmatpush1.msra.mxu0 0.0
    %1066 = vmatprep.subr.mxu0 0.0
    %1067 = vmatpush1.msra.mxu0 0.0
    %1068 = vmatprep.subr.mxu0 0.0
    %1069 = vmatpush1.msra.mxu0 0.0
    %1070 = vmatprep.subr.mxu0 0.0
    %1071 = vmatpush1.msra.mxu0 0.0
    %1072 = vmatprep.subr.mxu0 0.0
    %1073 = vmatpush1.msra.mxu0 0.0
    %1074 = vmatprep.subr.mxu0 0.0
    %1075 = vmatpush1.msra.mxu0 0.0
    %1076 = vmatprep.subr.mxu0 0.0
    %1077 = vmatpush1.msra.mxu0 0.0
    %1078 = vmatprep.subr.mxu0 0.0
    %1079 = vmatpush1.msra.mxu0 0.0
    %1080 = vmatprep.subr.mxu0 0.0
    %1081 = vmatpush1.msra.mxu0 %v1050
    %1082 = vmatprep.subr.mxu0 0.0
    %1083 = vmatpush1.msra.mxu0 %v25
    %1084 = vmatprep.subr.mxu0 0.0
    %1085 = vmatpush2.msra.mxu0 0.0
    %1086 = vmatprep.subr.mxu0 0.0
    %1087 = vmatpush2.msra.mxu0 0.0
    %1088 = vmatprep.subr.mxu0 0.0
    %1089 = vmatpush2.msra.mxu0 0.0
    %1090 = vmatprep.subr.mxu0 0.0
    %1091 = vmatpush2.msra.mxu0 0.0
    %1092 = vmatprep.subr.mxu0 0.0
    %1093 = vmatpush2.msra.mxu0 0.0
    %1094 = vmatprep.subr.mxu0 0.0
    %1095 = vmatpush2.msra.mxu0 0.0
    %1096 = vmatprep.subr.mxu0 0.0
    %1097 = vmatpush2.msra.mxu0 0.0
    %1098 = vmatprep.subr.mxu0 0.0
    %1099 = vmatpush2.msra.mxu0 0.0
    %1100 = vmatprep.subr.mxu0 0.0
    %1101 = vmatpush2.msra.mxu0 0.0
    %1102 = vmatprep.subr.mxu0 0.0
    %1103 = vmatpush2.msra.mxu0 0.0
    %1104 = vmatprep.subr.mxu0 0.0
    %1105 = vmatpush2.msra.mxu0 0.0
    %1106 = vmatprep.subr.mxu0 0.0
    %1107 = vmatpush2.msra.mxu0 0.0
    %1108 = vmatprep.subr.mxu0 0.0
    %1109 = vmatpush2.msra.mxu0 0.0
    %1110 = vmatprep.subr.mxu0 0.0
    %1111 = vmatpush2.msra.mxu0 0.0
    %1112 = vmatprep.subr.mxu0 0.0
    %1113 = vmatpush2.msra.mxu0 0.0
    %1114 = vmatprep.subr.mxu0 0.0
    %1115 = vmatpush2.msra.mxu0 0.0
    %1116 = vmatprep.mubr.f32.mxu0 0.0
    %1117 = vmatmul.mubr.f32.gmra.mxu0 %v1026
    %v1118 = vpop.f32.mrf.mxu0
    %v1119 = vadd.f32 0.0, %v1118
    %v1120 = vpop.f32.mrf.mxu0
    %1121 = vmatprep.mubr.f32.mxu0 0.0
    %1122 = vmatmul.mubr.f32.gmra.mxu0 %v1029
    %v1123 = vpop.f32.mrf.mxu0
    %v1124 = vadd.f32 0.0, %v1123
    %v1125 = vpop.f32.mrf.mxu0
    %1126 = vmatprep.mubr.f32.mxu0 0.0
    %1127 = vmatmul.mubr.f32.gmra.mxu0 %v1032
    %v1128 = vpop.f32.mrf.mxu0
    %v1129 = vadd.f32 0.0, %v1128
    %v1130 = vpop.f32.mrf.mxu0
    %1131 = vmatprep.mubr.f32.mxu0 0.0
    %1132 = vmatmul.mubr.f32.gmra.mxu0 %v1035
    %v1133 = vpop.f32.mrf.mxu0
    %v1134 = vadd.f32 0.0, %v1133
    %v1135 = vpop.f32.mrf.mxu0
    %1136 = vmatprep.mubr.f32.mxu0 0.0
    %1137 = vmatmul.mubr.f32.gmra.mxu0 %v1038
    %v1138 = vpop.f32.mrf.mxu0
    %v1139 = vadd.f32 0.0, %v1138
    %v1140 = vpop.f32.mrf.mxu0
    %1141 = vmatprep.mubr.f32.mxu0 0.0
    %1142 = vmatmul.mubr.f32.gmra.mxu0 %v1041
    %v1143 = vpop.f32.mrf.mxu0
    %v1144 = vadd.f32 0.0, %v1143
    %v1145 = vpop.f32.mrf.mxu0
    %1146 = vmatprep.mubr.f32.mxu0 0.0
    %1147 = vmatmul.mubr.f32.gmra.mxu0 %v1044
    %v1148 = vpop.f32.mrf.mxu0
    %v1149 = vadd.f32 0.0, %v1148
    %v1150 = vpop.f32.mrf.mxu0
    %1151 = vmatprep.mubr.f32.mxu0 0.0
    %1152 = vmatmul.mubr.f32.gmra.mxu0 %v1047
    %v1153 = vpop.f32.mrf.mxu0
    %v1154 = vadd.f32 0.0, %v1153
    %v1155 = vpop.f32.mrf.mxu0
    %1156 = vdwg.mxu0
    %v1157 = vmul.f32 %v987, %v1119
    %v1158 = vmul.f32 %v992, %v1124
    %v1159 = vmul.f32 %v997, %v1129
    %v1160 = vmul.f32 %v1002, %v1134
    %v1161 = vmul.f32 %v1007, %v1139
    %v1162 = vmul.f32 %v1012, %v1144
    %v1163 = vmul.f32 %v1017, %v1149
    %v1164 = vmul.f32 %v1022, %v1154
    %vm1165 = vcmask 220160
    %v1167 = vsel %vm1165, %v1157, 0
    %v1170 = vsel %vm1165, %v1158, 0
    %v1173 = vsel %vm1165, %v1159, 0
    %v1176 = vsel %vm1165, %v1160, 0
    %v1179 = vsel %vm1165, %v1161, 0
    %v1182 = vsel %vm1165, %v1162, 0
    %v1185 = vsel %vm1165, %v1163, 0
    %v1188 = vsel %vm1165, %v1164, 0
    %vm1190 = vcmask 1042432
    %v1192 = vsel %vm1190, %v30, 0
    %1194 = vmatprep.subr.mxu0 0.0
    %1195 = vmatpush1.msra.mxu0 0.0
    %1196 = vmatprep.subr.mxu0 0.0
    %1197 = vmatpush1.msra.mxu0 0.0
    %1198 = vmatprep.subr.mxu0 0.0
    %1199 = vmatpush1.msra.mxu0 0.0
    %1200 = vmatprep.subr.mxu0 0.0
    %1201 = vmatpush1.msra.mxu0 0.0
    %1202 = vmatprep.subr.mxu0 0.0
    %1203 = vmatpush1.msra.mxu0 0.0
    %1204 = vmatprep.subr.mxu0 0.0
    %1205 = vmatpush1.msra.mxu0 0.0
    %1206 = vmatprep.subr.mxu0 0.0
    %1207 = vmatpush1.msra.mxu0 0.0
    %1208 = vmatprep.subr.mxu0 0.0
    %1209 = vmatpush1.msra.mxu0 0.0
    %1210 = vmatprep.subr.mxu0 0.0
    %1211 = vmatpush1.msra.mxu0 0.0
    %1212 = vmatprep.subr.mxu0 0.0
    %1213 = vmatpush1.msra.mxu0 0.0
    %1214 = vmatprep.subr.mxu0 0.0
    %1215 = vmatpush1.msra.mxu0 0.0
    %1216 = vmatprep.subr.mxu0 0.0
    %1217 = vmatpush1.msra.mxu0 0.0
    %1218 = vmatprep.subr.mxu0 0.0
    %1219 = vmatpush1.msra.mxu0 %v1192
    %1220 = vmatprep.subr.mxu0 0.0
    %1221 = vmatpush1.msra.mxu0 %v29
    %1222 = vmatprep.subr.mxu0 0.0
    %1223 = vmatpush1.msra.mxu0 %v28
    %1224 = vmatprep.subr.mxu0 0.0
    %1225 = vmatpush1.msra.mxu0 %v27
    %1226 = vmatprep.subr.mxu0 0.0
    %1227 = vmatpush2.msra.mxu0 0.0
    %1228 = vmatprep.subr.mxu0 0.0
    %1229 = vmatpush2.msra.mxu0 0.0
    %1230 = vmatprep.subr.mxu0 0.0
    %1231 = vmatpush2.msra.mxu0 0.0
    %1232 = vmatprep.subr.mxu0 0.0
    %1233 = vmatpush2.msra.mxu0 0.0
    %1234 = vmatprep.subr.mxu0 0.0
    %1235 = vmatpush2.msra.mxu0 0.0
    %1236 = vmatprep.subr.mxu0 0.0
    %1237 = vmatpush2.msra.mxu0 0.0
    %1238 = vmatprep.subr.mxu0 0.0
    %1239 = vmatpush2.msra.mxu0 0.0
    %1240 = vmatprep.subr.mxu0 0.0
    %1241 = vmatpush2.msra.mxu0 0.0
    %1242 = vmatprep.subr.mxu0 0.0
    %1243 = vmatpush2.msra.mxu0 0.0
    %1244 = vmatprep.subr.mxu0 0.0
    %1245 = vmatpush2.msra.mxu0 0.0
    %1246 = vmatprep.subr.mxu0 0.0
    %1247 = vmatpush2.msra.mxu0 0.0
    %1248 = vmatprep.subr.mxu0 0.0
    %1249 = vmatpush2.msra.mxu0 0.0
    %1250 = vmatprep.subr.mxu0 0.0
    %1251 = vmatpush2.msra.mxu0 0.0
    %1252 = vmatprep.subr.mxu0 0.0
    %1253 = vmatpush2.msra.mxu0 0.0
    %1254 = vmatprep.subr.mxu0 0.0
    %1255 = vmatpush2.msra.mxu0 0.0
    %1256 = vmatprep.subr.mxu0 0.0
    %1257 = vmatpush2.msra.mxu0 0.0
    %1258 = vmatprep.mubr.f32.mxu0 0.0
    %1259 = vmatmul.mubr.f32.gmra.mxu0 %v1167
    %v1260 = vpop.f32.mrf.mxu0
    %v1261 = vadd.f32 0.0, %v1260
    %v1262 = vpop.f32.mrf.mxu0
    %1263 = vmatprep.mubr.f32.mxu0 0.0
    %1264 = vmatmul.mubr.f32.gmra.mxu0 %v1170
    %v1265 = vpop.f32.mrf.mxu0
    %v1266 = vadd.f32 0.0, %v1265
    %v1267 = vpop.f32.mrf.mxu0
    %1268 = vmatprep.mubr.f32.mxu0 0.0
    %1269 = vmatmul.mubr.f32.gmra.mxu0 %v1173
    %v1270 = vpop.f32.mrf.mxu0
    %v1271 = vadd.f32 0.0, %v1270
    %v1272 = vpop.f32.mrf.mxu0
    %1273 = vmatprep.mubr.f32.mxu0 0.0
    %1274 = vmatmul.mubr.f32.gmra.mxu0 %v1176
    %v1275 = vpop.f32.mrf.mxu0
    %v1276 = vadd.f32 0.0, %v1275
    %v1277 = vpop.f32.mrf.mxu0
    %1278 = vmatprep.mubr.f32.mxu0 0.0
    %1279 = vmatmul.mubr.f32.gmra.mxu0 %v1179
    %v1280 = vpop.f32.mrf.mxu0
    %v1281 = vadd.f32 0.0, %v1280
    %v1282 = vpop.f32.mrf.mxu0
    %1283 = vmatprep.mubr.f32.mxu0 0.0
    %1284 = vmatmul.mubr.f32.gmra.mxu0 %v1182
    %v1285 = vpop.f32.mrf.mxu0
    %v1286 = vadd.f32 0.0, %v1285
    %v1287 = vpop.f32.mrf.mxu0
    %1288 = vmatprep.mubr.f32.mxu0 0.0
    %1289 = vmatmul.mubr.f32.gmra.mxu0 %v1185
    %v1290 = vpop.f32.mrf.mxu0
    %v1291 = vadd.f32 0.0, %v1290
    %v1292 = vpop.f32.mrf.mxu0
    %1293 = vmatprep.mubr.f32.mxu0 0.0
    %1294 = vmatmul.mubr.f32.gmra.mxu0 %v1188
    %v1295 = vpop.f32.mrf.mxu0
    %v1296 = vadd.f32 0.0, %v1295
    %v1297 = vpop.f32.mrf.mxu0
    %1298 = vdwg.mxu0
    %v1300 = vsel %vm533, %v1261, 0
    %v1303 = vsel %vm533, %v1266, 0
    %v1306 = vsel %vm533, %v1271, 0
    %v1309 = vsel %vm533, %v1276, 0
    %v1312 = vsel %vm533, %v1281, 0
    %v1315 = vsel %vm533, %v1286, 0
    %v1318 = vsel %vm533, %v1291, 0
    %v1321 = vsel %vm533, %v1296, 0
    %1323 = vmatprep.subr.mxu0 0.0
    %1324 = vmatpush1.msra.mxu0 0.0
    %1325 = vmatprep.subr.mxu0 0.0
    %1326 = vmatpush1.msra.mxu0 0.0
    %1327 = vmatprep.subr.mxu0 0.0
    %1328 = vmatpush1.msra.mxu0 0.0
    %1329 = vmatprep.subr.mxu0 0.0
    %1330 = vmatpush1.msra.mxu0 0.0
    %1331 = vmatprep.subr.mxu0 0.0
    %1332 = vmatpush1.msra.mxu0 0.0
    %1333 = vmatprep.subr.mxu0 0.0
    %1334 = vmatpush1.msra.mxu0 0.0
    %1335 = vmatprep.subr.mxu0 0.0
    %1336 = vmatpush1.msra.mxu0 0.0
    %1337 = vmatprep.subr.mxu0 0.0
    %1338 = vmatpush1.msra.mxu0 0.0
    %1339 = vmatprep.subr.mxu0 0.0
    %1340 = vmatpush1.msra.mxu0 0.0
    %1341 = vmatprep.subr.mxu0 0.0
    %1342 = vmatpush1.msra.mxu0 0.0
    %1343 = vmatprep.subr.mxu0 0.0
    %1344 = vmatpush1.msra.mxu0 0.0
    %1345 = vmatprep.subr.mxu0 0.0
    %1346 = vmatpush1.msra.mxu0 0.0
    %1347 = vmatprep.subr.mxu0 0.0
    %1348 = vmatpush1.msra.mxu0 0.0
    %1349 = vmatprep.subr.mxu0 0.0
    %1350 = vmatpush1.msra.mxu0 0.0
    %1351 = vmatprep.subr.mxu0 0.0
    %1352 = vmatpush1.msra.mxu0 %v542
    %1353 = vmatprep.subr.mxu0 0.0
    %1354 = vmatpush1.msra.mxu0 %v18
    %1355 = vmatprep.subr.mxu0 0.0
    %1356 = vmatpush2.msra.mxu0 0.0
    %1357 = vmatprep.subr.mxu0 0.0
    %1358 = vmatpush2.msra.mxu0 0.0
    %1359 = vmatprep.subr.mxu0 0.0
    %1360 = vmatpush2.msra.mxu0 0.0
    %1361 = vmatprep.subr.mxu0 0.0
    %1362 = vmatpush2.msra.mxu0 0.0
    %1363 = vmatprep.subr.mxu0 0.0
    %1364 = vmatpush2.msra.mxu0 0.0
    %1365 = vmatprep.subr.mxu0 0.0
    %1366 = vmatpush2.msra.mxu0 0.0
    %1367 = vmatprep.subr.mxu0 0.0
    %1368 = vmatpush2.msra.mxu0 0.0
    %1369 = vmatprep.subr.mxu0 0.0
    %1370 = vmatpush2.msra.mxu0 0.0
    %1371 = vmatprep.subr.mxu0 0.0
    %1372 = vmatpush2.msra.mxu0 0.0
    %1373 = vmatprep.subr.mxu0 0.0
    %1374 = vmatpush2.msra.mxu0 0.0
    %1375 = vmatprep.subr.mxu0 0.0
    %1376 = vmatpush2.msra.mxu0 0.0
    %1377 = vmatprep.subr.mxu0 0.0
    %1378 = vmatpush2.msra.mxu0 0.0
    %1379 = vmatprep.subr.mxu0 0.0
    %1380 = vmatpush2.msra.mxu0 0.0
    %1381 = vmatprep.subr.mxu0 0.0
    %1382 = vmatpush2.msra.mxu0 0.0
    %1383 = vmatprep.subr.mxu0 0.0
    %1384 = vmatpush2.msra.mxu0 0.0
    %1385 = vmatprep.subr.mxu0 0.0
    %1386 = vmatpush2.msra.mxu0 0.0
    %1387 = vmatprep.mubr.f32.mxu0 0.0
    %1388 = vmatmul.mubr.f32.gmra.mxu0 %v1300
    %v1389 = vpop.f32.mrf.mxu0
    %v1390 = vadd.f32 0.0, %v1389
    %v1391 = vpop.f32.mrf.mxu0
    %1392 = vmatprep.mubr.f32.mxu0 0.0
    %1393 = vmatmul.mubr.f32.gmra.mxu0 %v1303
    %v1394 = vpop.f32.mrf.mxu0
    %v1395 = vadd.f32 0.0, %v1394
    %v1396 = vpop.f32.mrf.mxu0
    %1397 = vmatprep.mubr.f32.mxu0 0.0
    %1398 = vmatmul.mubr.f32.gmra.mxu0 %v1306
    %v1399 = vpop.f32.mrf.mxu0
    %v1400 = vadd.f32 0.0, %v1399
    %v1401 = vpop.f32.mrf.mxu0
    %1402 = vmatprep.mubr.f32.mxu0 0.0
    %1403 = vmatmul.mubr.f32.gmra.mxu0 %v1309
    %v1404 = vpop.f32.mrf.mxu0
    %v1405 = vadd.f32 0.0, %v1404
    %v1406 = vpop.f32.mrf.mxu0
    %1407 = vmatprep.mubr.f32.mxu0 0.0
    %1408 = vmatmul.mubr.f32.gmra.mxu0 %v1312
    %v1409 = vpop.f32.mrf.mxu0
    %v1410 = vadd.f32 0.0, %v1409
    %v1411 = vpop.f32.mrf.mxu0
    %1412 = vmatprep.mubr.f32.mxu0 0.0
    %1413 = vmatmul.mubr.f32.gmra.mxu0 %v1315
    %v1414 = vpop.f32.mrf.mxu0
    %v1415 = vadd.f32 0.0, %v1414
    %v1416 = vpop.f32.mrf.mxu0
    %1417 = vmatprep.mubr.f32.mxu0 0.0
    %1418 = vmatmul.mubr.f32.gmra.mxu0 %v1318
    %v1419 = vpop.f32.mrf.mxu0
    %v1420 = vadd.f32 0.0, %v1419
    %v1421 = vpop.f32.mrf.mxu0
    %1422 = vmatprep.mubr.f32.mxu0 0.0
    %1423 = vmatmul.mubr.f32.gmra.mxu0 %v1321
    %v1424 = vpop.f32.mrf.mxu0
    %v1425 = vadd.f32 0.0, %v1424
    %v1426 = vpop.f32.mrf.mxu0
    %1427 = vdwg.mxu0
    %v1428 = vadd.f32 %v1261, 1.0
    %v1429 = vadd.f32 %v1266, 1.0
    %v1430 = vadd.f32 %v1271, 1.0
    %v1431 = vadd.f32 %v1276, 1.0
    %v1432 = vadd.f32 %v1281, 1.0
    %v1433 = vadd.f32 %v1286, 1.0
    %v1434 = vadd.f32 %v1291, 1.0
    %v1435 = vadd.f32 %v1296, 1.0
    %1436 = vrot.lane.b32.xlu0 %v1261, 124
    %v1437 = vpop.permute.xlu0 %1436
    %1438 = vrot.lane.b32.xlu0 %v1266, 124
    %v1439 = vpop.permute.xlu0 %1438
    %1440 = vrot.lane.b32.xlu0 %v1271, 124
    %v1441 = vpop.permute.xlu0 %1440
    %1442 = vrot.lane.b32.xlu0 %v1276, 124
    %v1443 = vpop.permute.xlu0 %1442
    %1444 = vrot.lane.b32.xlu0 %v1281, 124
    %v1445 = vpop.permute.xlu0 %1444
    %1446 = vrot.lane.b32.xlu0 %v1286, 124
    %v1447 = vpop.permute.xlu0 %1446
    %1448 = vrot.lane.b32.xlu0 %v1291, 124
    %v1449 = vpop.permute.xlu0 %1448
    %1450 = vrot.lane.b32.xlu0 %v1296, 124
    %v1451 = vpop.permute.xlu0 %1450
    %v1460 = vadd.f32 %v1428, %v1437
    %v1461 = vadd.f32 %v1429, %v1439
    %v1462 = vadd.f32 %v1430, %v1441
    %v1463 = vadd.f32 %v1431, %v1443
    %v1464 = vadd.f32 %v1432, %v1445
    %v1465 = vadd.f32 %v1433, %v1447
    %v1466 = vadd.f32 %v1434, %v1449
    %v1467 = vadd.f32 %v1435, %v1451
    %1468 = vrot.lane.b32.xlu0 %v1261, 120
    %v1469 = vpop.permute.xlu0 %1468
    %1470 = vrot.lane.b32.xlu0 %v1266, 120
    %v1471 = vpop.permute.xlu0 %1470
    %1472 = vrot.lane.b32.xlu0 %v1271, 120
    %v1473 = vpop.permute.xlu0 %1472
    %1474 = vrot.lane.b32.xlu0 %v1276, 120
    %v1475 = vpop.permute.xlu0 %1474
    %1476 = vrot.lane.b32.xlu0 %v1281, 120
    %v1477 = vpop.permute.xlu0 %1476
    %1478 = vrot.lane.b32.xlu0 %v1286, 120
    %v1479 = vpop.permute.xlu0 %1478
    %1480 = vrot.lane.b32.xlu0 %v1291, 120
    %v1481 = vpop.permute.xlu0 %1480
    %1482 = vrot.lane.b32.xlu0 %v1296, 120
    %v1483 = vpop.permute.xlu0 %1482
    %v1492 = vadd.f32 %v1460, %v1469
    %v1493 = vadd.f32 %v1461, %v1471
    %v1494 = vadd.f32 %v1462, %v1473
    %v1495 = vadd.f32 %v1463, %v1475
    %v1496 = vadd.f32 %v1464, %v1477
    %v1497 = vadd.f32 %v1465, %v1479
    %v1498 = vadd.f32 %v1466, %v1481
    %v1499 = vadd.f32 %v1467, %v1483
    %v1500 = vsub.f32 %v1428, %v1437
    %v1501 = vsub.f32 %v1429, %v1439
    %v1502 = vsub.f32 %v1430, %v1441
    %v1503 = vsub.f32 %v1431, %v1443
    %v1504 = vsub.f32 %v1432, %v1445
    %v1505 = vsub.f32 %v1433, %v1447
    %v1506 = vsub.f32 %v1434, %v1449
    %v1507 = vsub.f32 %v1435, %v1451
    %v1508 = vsub.f32 %v1500, %v1469
    %v1509 = vsub.f32 %v1501, %v1471
    %v1510 = vsub.f32 %v1502, %v1473
    %v1511 = vsub.f32 %v1503, %v1475
    %v1512 = vsub.f32 %v1504, %v1477
    %v1513 = vsub.f32 %v1505, %v1479
    %v1514 = vsub.f32 %v1506, %v1481
    %v1515 = vsub.f32 %v1507, %v1483
    %1516 = vrot.lane.b32.xlu0 %v1261, 4
    %v1517 = vpop.permute.xlu0 %1516
    %1518 = vrot.lane.b32.xlu0 %v1266, 4
    %v1519 = vpop.permute.xlu0 %1518
    %1520 = vrot.lane.b32.xlu0 %v1271, 4
    %v1521 = vpop.permute.xlu0 %1520
    %1522 = vrot.lane.b32.xlu0 %v1276, 4
    %v1523 = vpop.permute.xlu0 %1522
    %1524 = vrot.lane.b32.xlu0 %v1281, 4
    %v1525 = vpop.permute.xlu0 %1524
    %1526 = vrot.lane.b32.xlu0 %v1286, 4
    %v1527 = vpop.permute.xlu0 %1526
    %1528 = vrot.lane.b32.xlu0 %v1291, 4
    %v1529 = vpop.permute.xlu0 %1528
    %1530 = vrot.lane.b32.xlu0 %v1296, 4
    %v1531 = vpop.permute.xlu0 %1530
    %v1540 = vsub.f32 %v1428, %v1517
    %v1541 = vsub.f32 %v1429, %v1519
    %v1542 = vsub.f32 %v1430, %v1521
    %v1543 = vsub.f32 %v1431, %v1523
    %v1544 = vsub.f32 %v1432, %v1525
    %v1545 = vsub.f32 %v1433, %v1527
    %v1546 = vsub.f32 %v1434, %v1529
    %v1547 = vsub.f32 %v1435, %v1531
    %v1548 = vsub.f32 %v1540, %v1437
    %v1549 = vsub.f32 %v1541, %v1439
    %v1550 = vsub.f32 %v1542, %v1441
    %v1551 = vsub.f32 %v1543, %v1443
    %v1552 = vsub.f32 %v1544, %v1445
    %v1553 = vsub.f32 %v1545, %v1447
    %v1554 = vsub.f32 %v1546, %v1449
    %v1555 = vsub.f32 %v1547, %v1451
    %1556 = vrot.lane.b32.xlu0 %v1261, 8
    %v1557 = vpop.permute.xlu0 %1556
    %1558 = vrot.lane.b32.xlu0 %v1266, 8
    %v1559 = vpop.permute.xlu0 %1558
    %1560 = vrot.lane.b32.xlu0 %v1271, 8
    %v1561 = vpop.permute.xlu0 %1560
    %1562 = vrot.lane.b32.xlu0 %v1276, 8
    %v1563 = vpop.permute.xlu0 %1562
    %1564 = vrot.lane.b32.xlu0 %v1281, 8
    %v1565 = vpop.permute.xlu0 %1564
    %1566 = vrot.lane.b32.xlu0 %v1286, 8
    %v1567 = vpop.permute.xlu0 %1566
    %1568 = vrot.lane.b32.xlu0 %v1291, 8
    %v1569 = vpop.permute.xlu0 %1568
    %1570 = vrot.lane.b32.xlu0 %v1296, 8
    %v1571 = vpop.permute.xlu0 %1570
    %v1580 = vsub.f32 %v1428, %v1557
    %v1581 = vsub.f32 %v1429, %v1559
    %v1582 = vsub.f32 %v1430, %v1561
    %v1583 = vsub.f32 %v1431, %v1563
    %v1584 = vsub.f32 %v1432, %v1565
    %v1585 = vsub.f32 %v1433, %v1567
    %v1586 = vsub.f32 %v1434, %v1569
    %v1587 = vsub.f32 %v1435, %v1571
    %v1588 = vsub.f32 %v1580, %v1517
    %v1589 = vsub.f32 %v1581, %v1519
    %v1590 = vsub.f32 %v1582, %v1521
    %v1591 = vsub.f32 %v1583, %v1523
    %v1592 = vsub.f32 %v1584, %v1525
    %v1593 = vsub.f32 %v1585, %v1527
    %v1594 = vsub.f32 %v1586, %v1529
    %v1595 = vsub.f32 %v1587, %v1531
    %1596 = vrot.lane.b32.xlu0 %v1261, 2
    %v1597 = vpop.permute.xlu0 %1596
    %1598 = vrot.lane.b32.xlu0 %v1266, 2
    %v1599 = vpop.permute.xlu0 %1598
    %1600 = vrot.lane.b32.xlu0 %v1271, 2
    %v1601 = vpop.permute.xlu0 %1600
    %1602 = vrot.lane.b32.xlu0 %v1276, 2
    %v1603 = vpop.permute.xlu0 %1602
    %1604 = vrot.lane.b32.xlu0 %v1281, 2
    %v1605 = vpop.permute.xlu0 %1604
    %1606 = vrot.lane.b32.xlu0 %v1286, 2
    %v1607 = vpop.permute.xlu0 %1606
    %1608 = vrot.lane.b32.xlu0 %v1291, 2
    %v1609 = vpop.permute.xlu0 %1608
    %1610 = vrot.lane.b32.xlu0 %v1296, 2
    %v1611 = vpop.permute.xlu0 %1610
    %v1620 = vsub.f32 %v1261, %v1597
    %v1621 = vsub.f32 %v1266, %v1599
    %v1622 = vsub.f32 %v1271, %v1601
    %v1623 = vsub.f32 %v1276, %v1603
    %v1624 = vsub.f32 %v1281, %v1605
    %v1625 = vsub.f32 %v1286, %v1607
    %v1626 = vsub.f32 %v1291, %v1609
    %v1627 = vsub.f32 %v1296, %v1611
    %v1628 = vsub.f32 %v1261, %v1437
    %v1629 = vsub.f32 %v1266, %v1439
    %v1630 = vsub.f32 %v1271, %v1441
    %v1631 = vsub.f32 %v1276, %v1443
    %v1632 = vsub.f32 %v1281, %v1445
    %v1633 = vsub.f32 %v1286, %v1447
    %v1634 = vsub.f32 %v1291, %v1449
    %v1635 = vsub.f32 %v1296, %v1451
    %1644 = vrot.lane.b32.xlu0 %v1620, 122
    %v1645 = vpop.permute.xlu0 %1644
    %1646 = vrot.lane.b32.xlu0 %v1621, 122
    %v1647 = vpop.permute.xlu0 %1646
    %1648 = vrot.lane.b32.xlu0 %v1622, 122
    %v1649 = vpop.permute.xlu0 %1648
    %1650 = vrot.lane.b32.xlu0 %v1623, 122
    %v1651 = vpop.permute.xlu0 %1650
    %1652 = vrot.lane.b32.xlu0 %v1624, 122
    %v1653 = vpop.permute.xlu0 %1652
    %1654 = vrot.lane.b32.xlu0 %v1625, 122
    %v1655 = vpop.permute.xlu0 %1654
    %1656 = vrot.lane.b32.xlu0 %v1626, 122
    %v1657 = vpop.permute.xlu0 %1656
    %1658 = vrot.lane.b32.xlu0 %v1627, 122
    %v1659 = vpop.permute.xlu0 %1658
    %v1668 = vsel %vm510, %v1492, %v1645
    %v1669 = vsel %vm510, %v1493, %v1647
    %v1670 = vsel %vm510, %v1494, %v1649
    %v1671 = vsel %vm510, %v1495, %v1651
    %v1672 = vsel %vm510, %v1496, %v1653
    %v1673 = vsel %vm510, %v1497, %v1655
    %v1674 = vsel %vm510, %v1498, %v1657
    %v1675 = vsel %vm510, %v1499, %v1659
    %v1676 = vsel %vm513, %v1668, %v1628
    %v1677 = vsel %vm513, %v1669, %v1629
    %v1678 = vsel %vm513, %v1670, %v1630
    %v1679 = vsel %vm513, %v1671, %v1631
    %v1680 = vsel %vm513, %v1672, %v1632
    %v1681 = vsel %vm513, %v1673, %v1633
    %v1682 = vsel %vm513, %v1674, %v1634
    %v1683 = vsel %vm513, %v1675, %v1635
    %v1684 = vsel %vm319, %v1676, %v1620
    %v1685 = vsel %vm319, %v1677, %v1621
    %v1686 = vsel %vm319, %v1678, %v1622
    %v1687 = vsel %vm319, %v1679, %v1623
    %v1688 = vsel %vm319, %v1680, %v1624
    %v1689 = vsel %vm319, %v1681, %v1625
    %v1690 = vsel %vm319, %v1682, %v1626
    %v1691 = vsel %vm319, %v1683, %v1627
    %1692 = vrot.lane.b32.xlu0 %v1261, 126
    %v1693 = vpop.permute.xlu0 %1692
    %1694 = vrot.lane.b32.xlu0 %v1266, 126
    %v1695 = vpop.permute.xlu0 %1694
    %1696 = vrot.lane.b32.xlu0 %v1271, 126
    %v1697 = vpop.permute.xlu0 %1696
    %1698 = vrot.lane.b32.xlu0 %v1276, 126
    %v1699 = vpop.permute.xlu0 %1698
    %1700 = vrot.lane.b32.xlu0 %v1281, 126
    %v1701 = vpop.permute.xlu0 %1700
    %1702 = vrot.lane.b32.xlu0 %v1286, 126
    %v1703 = vpop.permute.xlu0 %1702
    %1704 = vrot.lane.b32.xlu0 %v1291, 126
    %v1705 = vpop.permute.xlu0 %1704
    %1706 = vrot.lane.b32.xlu0 %v1296, 126
    %v1707 = vpop.permute.xlu0 %1706
    %v1716 = vadd.f32 %v1261, %v1693
    %v1717 = vadd.f32 %v1266, %v1695
    %v1718 = vadd.f32 %v1271, %v1697
    %v1719 = vadd.f32 %v1276, %v1699
    %v1720 = vadd.f32 %v1281, %v1701
    %v1721 = vadd.f32 %v1286, %v1703
    %v1722 = vadd.f32 %v1291, %v1705
    %v1723 = vadd.f32 %v1296, %v1707
    %v1724 = vadd.f32 %v1261, %v1437
    %v1725 = vadd.f32 %v1266, %v1439
    %v1726 = vadd.f32 %v1271, %v1441
    %v1727 = vadd.f32 %v1276, %v1443
    %v1728 = vadd.f32 %v1281, %v1445
    %v1729 = vadd.f32 %v1286, %v1447
    %v1730 = vadd.f32 %v1291, %v1449
    %v1731 = vadd.f32 %v1296, %v1451
    %1732 = vrot.lane.b32.xlu0 %v1620, 121
    %v1733 = vpop.permute.xlu0 %1732
    %1734 = vrot.lane.b32.xlu0 %v1621, 121
    %v1735 = vpop.permute.xlu0 %1734
    %1736 = vrot.lane.b32.xlu0 %v1622, 121
    %v1737 = vpop.permute.xlu0 %1736
    %1738 = vrot.lane.b32.xlu0 %v1623, 121
    %v1739 = vpop.permute.xlu0 %1738
    %1740 = vrot.lane.b32.xlu0 %v1624, 121
    %v1741 = vpop.permute.xlu0 %1740
    %1742 = vrot.lane.b32.xlu0 %v1625, 121
    %v1743 = vpop.permute.xlu0 %1742
    %1744 = vrot.lane.b32.xlu0 %v1626, 121
    %v1745 = vpop.permute.xlu0 %1744
    %1746 = vrot.lane.b32.xlu0 %v1627, 121
    %v1747 = vpop.permute.xlu0 %1746
    %1764 = vrot.lane.b32.xlu0 %v1508, 1
    %v1765 = vpop.permute.xlu0 %1764
    %1766 = vrot.lane.b32.xlu0 %v1509, 1
    %v1767 = vpop.permute.xlu0 %1766
    %1768 = vrot.lane.b32.xlu0 %v1510, 1
    %v1769 = vpop.permute.xlu0 %1768
    %1770 = vrot.lane.b32.xlu0 %v1511, 1
    %v1771 = vpop.permute.xlu0 %1770
    %1772 = vrot.lane.b32.xlu0 %v1512, 1
    %v1773 = vpop.permute.xlu0 %1772
    %1774 = vrot.lane.b32.xlu0 %v1513, 1
    %v1775 = vpop.permute.xlu0 %1774
    %1776 = vrot.lane.b32.xlu0 %v1514, 1
    %v1777 = vpop.permute.xlu0 %1776
    %1778 = vrot.lane.b32.xlu0 %v1515, 1
    %v1779 = vpop.permute.xlu0 %1778
    %1796 = vrot.lane.b32.xlu0 %v1716, 1
    %v1797 = vpop.permute.xlu0 %1796
    %1798 = vrot.lane.b32.xlu0 %v1717, 1
    %v1799 = vpop.permute.xlu0 %1798
    %1800 = vrot.lane.b32.xlu0 %v1718, 1
    %v1801 = vpop.permute.xlu0 %1800
    %1802 = vrot.lane.b32.xlu0 %v1719, 1
    %v1803 = vpop.permute.xlu0 %1802
    %1804 = vrot.lane.b32.xlu0 %v1720, 1
    %v1805 = vpop.permute.xlu0 %1804
    %1806 = vrot.lane.b32.xlu0 %v1721, 1
    %v1807 = vpop.permute.xlu0 %1806
    %1808 = vrot.lane.b32.xlu0 %v1722, 1
    %v1809 = vpop.permute.xlu0 %1808
    %1810 = vrot.lane.b32.xlu0 %v1723, 1
    %v1811 = vpop.permute.xlu0 %1810
    %1828 = vrot.lane.b32.xlu0 %v1724, 1
    %v1829 = vpop.permute.xlu0 %1828
    %1830 = vrot.lane.b32.xlu0 %v1725, 1
    %v1831 = vpop.permute.xlu0 %1830
    %1832 = vrot.lane.b32.xlu0 %v1726, 1
    %v1833 = vpop.permute.xlu0 %1832
    %1834 = vrot.lane.b32.xlu0 %v1727, 1
    %v1835 = vpop.permute.xlu0 %1834
    %1836 = vrot.lane.b32.xlu0 %v1728, 1
    %v1837 = vpop.permute.xlu0 %1836
    %1838 = vrot.lane.b32.xlu0 %v1729, 1
    %v1839 = vpop.permute.xlu0 %1838
    %1840 = vrot.lane.b32.xlu0 %v1730, 1
    %v1841 = vpop.permute.xlu0 %1840
    %1842 = vrot.lane.b32.xlu0 %v1731, 1
    %v1843 = vpop.permute.xlu0 %1842
    %v1852 = vsel %vm510, %v1733, %v1765
    %v1853 = vsel %vm510, %v1735, %v1767
    %v1854 = vsel %vm510, %v1737, %v1769
    %v1855 = vsel %vm510, %v1739, %v1771
    %v1856 = vsel %vm510, %v1741, %v1773
    %v1857 = vsel %vm510, %v1743, %v1775
    %v1858 = vsel %vm510, %v1745, %v1777
    %v1859 = vsel %vm510, %v1747, %v1779
    %v1860 = vsel %vm513, %v1852, %v1797
    %v1861 = vsel %vm513, %v1853, %v1799
    %v1862 = vsel %vm513, %v1854, %v1801
    %v1863 = vsel %vm513, %v1855, %v1803
    %v1864 = vsel %vm513, %v1856, %v1805
    %v1865 = vsel %vm513, %v1857, %v1807
    %v1866 = vsel %vm513, %v1858, %v1809
    %v1867 = vsel %vm513, %v1859, %v1811
    %v1868 = vsel %vm319, %v1860, %v1829
    %v1869 = vsel %vm319, %v1861, %v1831
    %v1870 = vsel %vm319, %v1862, %v1833
    %v1871 = vsel %vm319, %v1863, %v1835
    %v1872 = vsel %vm319, %v1864, %v1837
    %v1873 = vsel %vm319, %v1865, %v1839
    %v1874 = vsel %vm319, %v1866, %v1841
    %v1875 = vsel %vm319, %v1867, %v1843
    %1884 = vrot.lane.b32.xlu0 %v1628, 126
    %v1885 = vpop.permute.xlu0 %1884
    %1886 = vrot.lane.b32.xlu0 %v1629, 126
    %v1887 = vpop.permute.xlu0 %1886
    %1888 = vrot.lane.b32.xlu0 %v1630, 126
    %v1889 = vpop.permute.xlu0 %1888
    %1890 = vrot.lane.b32.xlu0 %v1631, 126
    %v1891 = vpop.permute.xlu0 %1890
    %1892 = vrot.lane.b32.xlu0 %v1632, 126
    %v1893 = vpop.permute.xlu0 %1892
    %1894 = vrot.lane.b32.xlu0 %v1633, 126
    %v1895 = vpop.permute.xlu0 %1894
    %1896 = vrot.lane.b32.xlu0 %v1634, 126
    %v1897 = vpop.permute.xlu0 %1896
    %1898 = vrot.lane.b32.xlu0 %v1635, 126
    %v1899 = vpop.permute.xlu0 %1898
    %1916 = vrot.lane.b32.xlu0 %v1548, 126
    %v1917 = vpop.permute.xlu0 %1916
    %1918 = vrot.lane.b32.xlu0 %v1549, 126
    %v1919 = vpop.permute.xlu0 %1918
    %1920 = vrot.lane.b32.xlu0 %v1550, 126
    %v1921 = vpop.permute.xlu0 %1920
    %1922 = vrot.lane.b32.xlu0 %v1551, 126
    %v1923 = vpop.permute.xlu0 %1922
    %1924 = vrot.lane.b32.xlu0 %v1552, 126
    %v1925 = vpop.permute.xlu0 %1924
    %1926 = vrot.lane.b32.xlu0 %v1553, 126
    %v1927 = vpop.permute.xlu0 %1926
    %1928 = vrot.lane.b32.xlu0 %v1554, 126
    %v1929 = vpop.permute.xlu0 %1928
    %1930 = vrot.lane.b32.xlu0 %v1555, 126
    %v1931 = vpop.permute.xlu0 %1930
    %1940 = vrot.lane.b32.xlu0 %v1716, 126
    %v1941 = vpop.permute.xlu0 %1940
    %1942 = vrot.lane.b32.xlu0 %v1717, 126
    %v1943 = vpop.permute.xlu0 %1942
    %1944 = vrot.lane.b32.xlu0 %v1718, 126
    %v1945 = vpop.permute.xlu0 %1944
    %1946 = vrot.lane.b32.xlu0 %v1719, 126
    %v1947 = vpop.permute.xlu0 %1946
    %1948 = vrot.lane.b32.xlu0 %v1720, 126
    %v1949 = vpop.permute.xlu0 %1948
    %1950 = vrot.lane.b32.xlu0 %v1721, 126
    %v1951 = vpop.permute.xlu0 %1950
    %1952 = vrot.lane.b32.xlu0 %v1722, 126
    %v1953 = vpop.permute.xlu0 %1952
    %1954 = vrot.lane.b32.xlu0 %v1723, 126
    %v1955 = vpop.permute.xlu0 %1954
    %v1964 = vsel %vm510, %v1885, %v1716
    %v1965 = vsel %vm510, %v1887, %v1717
    %v1966 = vsel %vm510, %v1889, %v1718
    %v1967 = vsel %vm510, %v1891, %v1719
    %v1968 = vsel %vm510, %v1893, %v1720
    %v1969 = vsel %vm510, %v1895, %v1721
    %v1970 = vsel %vm510, %v1897, %v1722
    %v1971 = vsel %vm510, %v1899, %v1723
    %v1972 = vsel %vm513, %v1964, %v1917
    %v1973 = vsel %vm513, %v1965, %v1919
    %v1974 = vsel %vm513, %v1966, %v1921
    %v1975 = vsel %vm513, %v1967, %v1923
    %v1976 = vsel %vm513, %v1968, %v1925
    %v1977 = vsel %vm513, %v1969, %v1927
    %v1978 = vsel %vm513, %v1970, %v1929
    %v1979 = vsel %vm513, %v1971, %v1931
    %v1980 = vsel %vm319, %v1972, %v1941
    %v1981 = vsel %vm319, %v1973, %v1943
    %v1982 = vsel %vm319, %v1974, %v1945
    %v1983 = vsel %vm319, %v1975, %v1947
    %v1984 = vsel %vm319, %v1976, %v1949
    %v1985 = vsel %vm319, %v1977, %v1951
    %v1986 = vsel %vm319, %v1978, %v1953
    %v1987 = vsel %vm319, %v1979, %v1955
    %1988 = vrot.lane.b32.xlu0 %v1620, 125
    %v1989 = vpop.permute.xlu0 %1988
    %1990 = vrot.lane.b32.xlu0 %v1621, 125
    %v1991 = vpop.permute.xlu0 %1990
    %1992 = vrot.lane.b32.xlu0 %v1622, 125
    %v1993 = vpop.permute.xlu0 %1992
    %1994 = vrot.lane.b32.xlu0 %v1623, 125
    %v1995 = vpop.permute.xlu0 %1994
    %1996 = vrot.lane.b32.xlu0 %v1624, 125
    %v1997 = vpop.permute.xlu0 %1996
    %1998 = vrot.lane.b32.xlu0 %v1625, 125
    %v1999 = vpop.permute.xlu0 %1998
    %2000 = vrot.lane.b32.xlu0 %v1626, 125
    %v2001 = vpop.permute.xlu0 %2000
    %2002 = vrot.lane.b32.xlu0 %v1627, 125
    %v2003 = vpop.permute.xlu0 %2002
    %2012 = vrot.lane.b32.xlu0 %v1724, 127
    %v2013 = vpop.permute.xlu0 %2012
    %2014 = vrot.lane.b32.xlu0 %v1725, 127
    %v2015 = vpop.permute.xlu0 %2014
    %2016 = vrot.lane.b32.xlu0 %v1726, 127
    %v2017 = vpop.permute.xlu0 %2016
    %2018 = vrot.lane.b32.xlu0 %v1727, 127
    %v2019 = vpop.permute.xlu0 %2018
    %2020 = vrot.lane.b32.xlu0 %v1728, 127
    %v2021 = vpop.permute.xlu0 %2020
    %2022 = vrot.lane.b32.xlu0 %v1729, 127
    %v2023 = vpop.permute.xlu0 %2022
    %2024 = vrot.lane.b32.xlu0 %v1730, 127
    %v2025 = vpop.permute.xlu0 %2024
    %2026 = vrot.lane.b32.xlu0 %v1731, 127
    %v2027 = vpop.permute.xlu0 %2026
    %2036 = vrot.lane.b32.xlu0 %v1716, 125
    %v2037 = vpop.permute.xlu0 %2036
    %2038 = vrot.lane.b32.xlu0 %v1717, 125
    %v2039 = vpop.permute.xlu0 %2038
    %2040 = vrot.lane.b32.xlu0 %v1718, 125
    %v2041 = vpop.permute.xlu0 %2040
    %2042 = vrot.lane.b32.xlu0 %v1719, 125
    %v2043 = vpop.permute.xlu0 %2042
    %2044 = vrot.lane.b32.xlu0 %v1720, 125
    %v2045 = vpop.permute.xlu0 %2044
    %2046 = vrot.lane.b32.xlu0 %v1721, 125
    %v2047 = vpop.permute.xlu0 %2046
    %2048 = vrot.lane.b32.xlu0 %v1722, 125
    %v2049 = vpop.permute.xlu0 %2048
    %2050 = vrot.lane.b32.xlu0 %v1723, 125
    %v2051 = vpop.permute.xlu0 %2050
    %2068 = vrot.lane.b32.xlu0 %v1588, 123
    %v2069 = vpop.permute.xlu0 %2068
    %2070 = vrot.lane.b32.xlu0 %v1589, 123
    %v2071 = vpop.permute.xlu0 %2070
    %2072 = vrot.lane.b32.xlu0 %v1590, 123
    %v2073 = vpop.permute.xlu0 %2072
    %2074 = vrot.lane.b32.xlu0 %v1591, 123
    %v2075 = vpop.permute.xlu0 %2074
    %2076 = vrot.lane.b32.xlu0 %v1592, 123
    %v2077 = vpop.permute.xlu0 %2076
    %2078 = vrot.lane.b32.xlu0 %v1593, 123
    %v2079 = vpop.permute.xlu0 %2078
    %2080 = vrot.lane.b32.xlu0 %v1594, 123
    %v2081 = vpop.permute.xlu0 %2080
    %2082 = vrot.lane.b32.xlu0 %v1595, 123
    %v2083 = vpop.permute.xlu0 %2082
    %v2092 = vsel %vm510, %v1989, %v2013
    %v2093 = vsel %vm510, %v1991, %v2015
    %v2094 = vsel %vm510, %v1993, %v2017
    %v2095 = vsel %vm510, %v1995, %v2019
    %v2096 = vsel %vm510, %v1997, %v2021
    %v2097 = vsel %vm510, %v1999, %v2023
    %v2098 = vsel %vm510, %v2001, %v2025
    %v2099 = vsel %vm510, %v2003, %v2027
    %v2100 = vsel %vm513, %v2092, %v2037
    %v2101 = vsel %vm513, %v2093, %v2039
    %v2102 = vsel %vm513, %v2094, %v2041
    %v2103 = vsel %vm513, %v2095, %v2043
    %v2104 = vsel %vm513, %v2096, %v2045
    %v2105 = vsel %vm513, %v2097, %v2047
    %v2106 = vsel %vm513, %v2098, %v2049
    %v2107 = vsel %vm513, %v2099, %v2051
    %v2108 = vsel %vm319, %v2100, %v2069
    %v2109 = vsel %vm319, %v2101, %v2071
    %v2110 = vsel %vm319, %v2102, %v2073
    %v2111 = vsel %vm319, %v2103, %v2075
    %v2112 = vsel %vm319, %v2104, %v2077
    %v2113 = vsel %vm319, %v2105, %v2079
    %v2114 = vsel %vm319, %v2106, %v2081
    %v2115 = vsel %vm319, %v2107, %v2083
    %v2116 = vmax.f32 %v1492, %v1508
    %v2117 = vmax.f32 %v1493, %v1509
    %v2118 = vmax.f32 %v1494, %v1510
    %v2119 = vmax.f32 %v1495, %v1511
    %v2120 = vmax.f32 %v1496, %v1512
    %v2121 = vmax.f32 %v1497, %v1513
    %v2122 = vmax.f32 %v1498, %v1514
    %v2123 = vmax.f32 %v1499, %v1515
    %2124 = vrot.lane.b32.xlu0 %v1588, 124
    %v2125 = vpop.permute.xlu0 %2124
    %2126 = vrot.lane.b32.xlu0 %v1589, 124
    %v2127 = vpop.permute.xlu0 %2126
    %2128 = vrot.lane.b32.xlu0 %v1590, 124
    %v2129 = vpop.permute.xlu0 %2128
    %2130 = vrot.lane.b32.xlu0 %v1591, 124
    %v2131 = vpop.permute.xlu0 %2130
    %2132 = vrot.lane.b32.xlu0 %v1592, 124
    %v2133 = vpop.permute.xlu0 %2132
    %2134 = vrot.lane.b32.xlu0 %v1593, 124
    %v2135 = vpop.permute.xlu0 %2134
    %2136 = vrot.lane.b32.xlu0 %v1594, 124
    %v2137 = vpop.permute.xlu0 %2136
    %2138 = vrot.lane.b32.xlu0 %v1595, 124
    %v2139 = vpop.permute.xlu0 %2138
    %v2148 = vmax.f32 %v1548, %v2125
    %v2149 = vmax.f32 %v1549, %v2127
    %v2150 = vmax.f32 %v1550, %v2129
    %v2151 = vmax.f32 %v1551, %v2131
    %v2152 = vmax.f32 %v1552, %v2133
    %v2153 = vmax.f32 %v1553, %v2135
    %v2154 = vmax.f32 %v1554, %v2137
    %v2155 = vmax.f32 %v1555, %v2139
    %2164 = vrot.lane.b32.xlu0 %v2148, 124
    %v2165 = vpop.permute.xlu0 %2164
    %2166 = vrot.lane.b32.xlu0 %v2149, 124
    %v2167 = vpop.permute.xlu0 %2166
    %2168 = vrot.lane.b32.xlu0 %v2150, 124
    %v2169 = vpop.permute.xlu0 %2168
    %2170 = vrot.lane.b32.xlu0 %v2151, 124
    %v2171 = vpop.permute.xlu0 %2170
    %2172 = vrot.lane.b32.xlu0 %v2152, 124
    %v2173 = vpop.permute.xlu0 %2172
    %2174 = vrot.lane.b32.xlu0 %v2153, 124
    %v2175 = vpop.permute.xlu0 %2174
    %2176 = vrot.lane.b32.xlu0 %v2154, 124
    %v2177 = vpop.permute.xlu0 %2176
    %2178 = vrot.lane.b32.xlu0 %v2155, 124
    %v2179 = vpop.permute.xlu0 %2178
    %v2188 = vmax.f32 %v2116, %v2165
    %v2189 = vmax.f32 %v2117, %v2167
    %v2190 = vmax.f32 %v2118, %v2169
    %v2191 = vmax.f32 %v2119, %v2171
    %v2192 = vmax.f32 %v2120, %v2173
    %v2193 = vmax.f32 %v2121, %v2175
    %v2194 = vmax.f32 %v2122, %v2177
    %v2195 = vmax.f32 %v2123, %v2179
    %vm2196 = vcmp.ge.f32.partialorder %v1492, %v2188
    %vm2197 = vcmp.ge.f32.partialorder %v1493, %v2189
    %vm2198 = vcmp.ge.f32.partialorder %v1494, %v2190
    %vm2199 = vcmp.ge.f32.partialorder %v1495, %v2191
    %vm2200 = vcmp.ge.f32.partialorder %v1496, %v2192
    %vm2201 = vcmp.ge.f32.partialorder %v1497, %v2193
    %vm2202 = vcmp.ge.f32.partialorder %v1498, %v2194
    %vm2203 = vcmp.ge.f32.partialorder %v1499, %v2195
    %vm2204 = vcmp.ge.f32.partialorder %v1508, %v2188
    %vm2205 = vcmp.ge.f32.partialorder %v1509, %v2189
    %vm2206 = vcmp.ge.f32.partialorder %v1510, %v2190
    %vm2207 = vcmp.ge.f32.partialorder %v1511, %v2191
    %vm2208 = vcmp.ge.f32.partialorder %v1512, %v2192
    %vm2209 = vcmp.ge.f32.partialorder %v1513, %v2193
    %vm2210 = vcmp.ge.f32.partialorder %v1514, %v2194
    %vm2211 = vcmp.ge.f32.partialorder %v1515, %v2195
    %2220 = vrot.lane.b32.xlu0 %v2188, 4
    %v2221 = vpop.permute.xlu0 %2220
    %2222 = vrot.lane.b32.xlu0 %v2189, 4
    %v2223 = vpop.permute.xlu0 %2222
    %2224 = vrot.lane.b32.xlu0 %v2190, 4
    %v2225 = vpop.permute.xlu0 %2224
    %2226 = vrot.lane.b32.xlu0 %v2191, 4
    %v2227 = vpop.permute.xlu0 %2226
    %2228 = vrot.lane.b32.xlu0 %v2192, 4
    %v2229 = vpop.permute.xlu0 %2228
    %2230 = vrot.lane.b32.xlu0 %v2193, 4
    %v2231 = vpop.permute.xlu0 %2230
    %2232 = vrot.lane.b32.xlu0 %v2194, 4
    %v2233 = vpop.permute.xlu0 %2232
    %2234 = vrot.lane.b32.xlu0 %v2195, 4
    %v2235 = vpop.permute.xlu0 %2234
    %vm2244 = vcmp.ge.f32.partialorder %v1548, %v2221
    %vm2245 = vcmp.ge.f32.partialorder %v1549, %v2223
    %vm2246 = vcmp.ge.f32.partialorder %v1550, %v2225
    %vm2247 = vcmp.ge.f32.partialorder %v1551, %v2227
    %vm2248 = vcmp.ge.f32.partialorder %v1552, %v2229
    %vm2249 = vcmp.ge.f32.partialorder %v1553, %v2231
    %vm2250 = vcmp.ge.f32.partialorder %v1554, %v2233
    %vm2251 = vcmp.ge.f32.partialorder %v1555, %v2235
    %v2252 = vsel %vm2244, 1, 0
    %v2253 = vsel %vm2245, 1, 0
    %v2254 = vsel %vm2246, 1, 0
    %v2255 = vsel %vm2247, 1, 0
    %v2256 = vsel %vm2248, 1, 0
    %v2257 = vsel %vm2249, 1, 0
    %v2258 = vsel %vm2250, 1, 0
    %v2259 = vsel %vm2251, 1, 0
    %2260 = vset.pattern.permute.xlu0 4
    %2261 = vperm.xlu0 %2260, %v2252
    %v2262 = vpop.permute.xlu0 %2261
    %2263 = vset.pattern.permute.xlu0 4
    %2264 = vperm.xlu0 %2263, %v2253
    %v2265 = vpop.permute.xlu0 %2264
    %2266 = vset.pattern.permute.xlu0 4
    %2267 = vperm.xlu0 %2266, %v2254
    %v2268 = vpop.permute.xlu0 %2267
    %2269 = vset.pattern.permute.xlu0 4
    %2270 = vperm.xlu0 %2269, %v2255
    %v2271 = vpop.permute.xlu0 %2270
    %2272 = vset.pattern.permute.xlu0 4
    %2273 = vperm.xlu0 %2272, %v2256
    %v2274 = vpop.permute.xlu0 %2273
    %2275 = vset.pattern.permute.xlu0 4
    %2276 = vperm.xlu0 %2275, %v2257
    %v2277 = vpop.permute.xlu0 %2276
    %2278 = vset.pattern.permute.xlu0 4
    %2279 = vperm.xlu0 %2278, %v2258
    %v2280 = vpop.permute.xlu0 %2279
    %2281 = vset.pattern.permute.xlu0 4
    %2282 = vperm.xlu0 %2281, %v2259
    %v2283 = vpop.permute.xlu0 %2282
    %vm2284 = vcmp.eq.s32.totalorder %v2262, 1
    %vm2285 = vcmp.eq.s32.totalorder %v2265, 1
    %vm2286 = vcmp.eq.s32.totalorder %v2268, 1
    %vm2287 = vcmp.eq.s32.totalorder %v2271, 1
    %vm2288 = vcmp.eq.s32.totalorder %v2274, 1
    %vm2289 = vcmp.eq.s32.totalorder %v2277, 1
    %vm2290 = vcmp.eq.s32.totalorder %v2280, 1
    %vm2291 = vcmp.eq.s32.totalorder %v2283, 1
    %v2292 = vsel %vm2284, %v1980, %v2108
    %v2293 = vsel %vm2285, %v1981, %v2109
    %v2294 = vsel %vm2286, %v1982, %v2110
    %v2295 = vsel %vm2287, %v1983, %v2111
    %v2296 = vsel %vm2288, %v1984, %v2112
    %v2297 = vsel %vm2289, %v1985, %v2113
    %v2298 = vsel %vm2290, %v1986, %v2114
    %v2299 = vsel %vm2291, %v1987, %v2115
    %v2300 = vsel %vm2204, 1, 0
    %v2301 = vsel %vm2205, 1, 0
    %v2302 = vsel %vm2206, 1, 0
    %v2303 = vsel %vm2207, 1, 0
    %v2304 = vsel %vm2208, 1, 0
    %v2305 = vsel %vm2209, 1, 0
    %v2306 = vsel %vm2210, 1, 0
    %v2307 = vsel %vm2211, 1, 0
    %2308 = vset.pattern.permute.xlu0 0
    %2309 = vperm.xlu0 %2308, %v2300
    %v2310 = vpop.permute.xlu0 %2309
    %2311 = vset.pattern.permute.xlu0 0
    %2312 = vperm.xlu0 %2311, %v2301
    %v2313 = vpop.permute.xlu0 %2312
    %2314 = vset.pattern.permute.xlu0 0
    %2315 = vperm.xlu0 %2314, %v2302
    %v2316 = vpop.permute.xlu0 %2315
    %2317 = vset.pattern.permute.xlu0 0
    %2318 = vperm.xlu0 %2317, %v2303
    %v2319 = vpop.permute.xlu0 %2318
    %2320 = vset.pattern.permute.xlu0 0
    %2321 = vperm.xlu0 %2320, %v2304
    %v2322 = vpop.permute.xlu0 %2321
    %2323 = vset.pattern.permute.xlu0 0
    %2324 = vperm.xlu0 %2323, %v2305
    %v2325 = vpop.permute.xlu0 %2324
    %2326 = vset.pattern.permute.xlu0 0
    %2327 = vperm.xlu0 %2326, %v2306
    %v2328 = vpop.permute.xlu0 %2327
    %2329 = vset.pattern.permute.xlu0 0
    %2330 = vperm.xlu0 %2329, %v2307
    %v2331 = vpop.permute.xlu0 %2330
    %vm2332 = vcmp.eq.s32.totalorder %v2310, 1
    %vm2333 = vcmp.eq.s32.totalorder %v2313, 1
    %vm2334 = vcmp.eq.s32.totalorder %v2316, 1
    %vm2335 = vcmp.eq.s32.totalorder %v2319, 1
    %vm2336 = vcmp.eq.s32.totalorder %v2322, 1
    %vm2337 = vcmp.eq.s32.totalorder %v2325, 1
    %vm2338 = vcmp.eq.s32.totalorder %v2328, 1
    %vm2339 = vcmp.eq.s32.totalorder %v2331, 1
    %v2340 = vsel %vm2332, %v1868, %v2292
    %v2341 = vsel %vm2333, %v1869, %v2293
    %v2342 = vsel %vm2334, %v1870, %v2294
    %v2343 = vsel %vm2335, %v1871, %v2295
    %v2344 = vsel %vm2336, %v1872, %v2296
    %v2345 = vsel %vm2337, %v1873, %v2297
    %v2346 = vsel %vm2338, %v1874, %v2298
    %v2347 = vsel %vm2339, %v1875, %v2299
    %v2348 = vsel %vm2196, 1, 0
    %v2349 = vsel %vm2197, 1, 0
    %v2350 = vsel %vm2198, 1, 0
    %v2351 = vsel %vm2199, 1, 0
    %v2352 = vsel %vm2200, 1, 0
    %v2353 = vsel %vm2201, 1, 0
    %v2354 = vsel %vm2202, 1, 0
    %v2355 = vsel %vm2203, 1, 0
    %2356 = vset.pattern.permute.xlu0 0
    %2357 = vperm.xlu0 %2356, %v2348
    %v2358 = vpop.permute.xlu0 %2357
    %2359 = vset.pattern.permute.xlu0 0
    %2360 = vperm.xlu0 %2359, %v2349
    %v2361 = vpop.permute.xlu0 %2360
    %2362 = vset.pattern.permute.xlu0 0
    %2363 = vperm.xlu0 %2362, %v2350
    %v2364 = vpop.permute.xlu0 %2363
    %2365 = vset.pattern.permute.xlu0 0
    %2366 = vperm.xlu0 %2365, %v2351
    %v2367 = vpop.permute.xlu0 %2366
    %2368 = vset.pattern.permute.xlu0 0
    %2369 = vperm.xlu0 %2368, %v2352
    %v2370 = vpop.permute.xlu0 %2369
    %2371 = vset.pattern.permute.xlu0 0
    %2372 = vperm.xlu0 %2371, %v2353
    %v2373 = vpop.permute.xlu0 %2372
    %2374 = vset.pattern.permute.xlu0 0
    %2375 = vperm.xlu0 %2374, %v2354
    %v2376 = vpop.permute.xlu0 %2375
    %2377 = vset.pattern.permute.xlu0 0
    %2378 = vperm.xlu0 %2377, %v2355
    %v2379 = vpop.permute.xlu0 %2378
    %vm2380 = vcmp.eq.s32.totalorder %v2358, 1
    %vm2381 = vcmp.eq.s32.totalorder %v2361, 1
    %vm2382 = vcmp.eq.s32.totalorder %v2364, 1
    %vm2383 = vcmp.eq.s32.totalorder %v2367, 1
    %vm2384 = vcmp.eq.s32.totalorder %v2370, 1
    %vm2385 = vcmp.eq.s32.totalorder %v2373, 1
    %vm2386 = vcmp.eq.s32.totalorder %v2376, 1
    %vm2387 = vcmp.eq.s32.totalorder %v2379, 1
    %v2388 = vsel %vm2380, %v1684, %v2340
    %v2389 = vsel %vm2381, %v1685, %v2341
    %v2390 = vsel %vm2382, %v1686, %v2342
    %v2391 = vsel %vm2383, %v1687, %v2343
    %v2392 = vsel %vm2384, %v1688, %v2344
    %v2393 = vsel %vm2385, %v1689, %v2345
    %v2394 = vsel %vm2386, %v1690, %v2346
    %v2395 = vsel %vm2387, %v1691, %v2347
    %v2396 = vmul.f32 %v2388, %v2388
    %v2397 = vmul.f32 %v2389, %v2389
    %v2398 = vmul.f32 %v2390, %v2390
    %v2399 = vmul.f32 %v2391, %v2391
    %v2400 = vmul.f32 %v2392, %v2392
    %v2401 = vmul.f32 %v2393, %v2393
    %v2402 = vmul.f32 %v2394, %v2394
    %v2403 = vmul.f32 %v2395, %v2395
    %v2404 = vsel %vm518, %v2396, 0.0
    %2405 = vadd.xlane.f32.xlu0 %v2404
    %v2406 = vpop.xlane.xlu0 %2405
    %v2407 = vsel %vm518, %v2397, 0.0
    %2408 = vadd.xlane.f32.xlu0 %v2407
    %v2409 = vpop.xlane.xlu0 %2408
    %v2410 = vsel %vm518, %v2398, 0.0
    %2411 = vadd.xlane.f32.xlu0 %v2410
    %v2412 = vpop.xlane.xlu0 %2411
    %v2413 = vsel %vm518, %v2399, 0.0
    %2414 = vadd.xlane.f32.xlu0 %v2413
    %v2415 = vpop.xlane.xlu0 %2414
    %v2416 = vsel %vm518, %v2400, 0.0
    %2417 = vadd.xlane.f32.xlu0 %v2416
    %v2418 = vpop.xlane.xlu0 %2417
    %v2419 = vsel %vm518, %v2401, 0.0
    %2420 = vadd.xlane.f32.xlu0 %v2419
    %v2421 = vpop.xlane.xlu0 %2420
    %v2422 = vsel %vm518, %v2402, 0.0
    %2423 = vadd.xlane.f32.xlu0 %v2422
    %v2424 = vpop.xlane.xlu0 %2423
    %v2425 = vsel %vm518, %v2403, 0.0
    %2426 = vadd.xlane.f32.xlu0 %v2425
    %v2427 = vpop.xlane.xlu0 %2426
    %v2428 = vadd.f32 %v2406, 1e-20
    %v2429 = vadd.f32 %v2409, 1e-20
    %v2430 = vadd.f32 %v2412, 1e-20
    %v2431 = vadd.f32 %v2415, 1e-20
    %v2432 = vadd.f32 %v2418, 1e-20
    %v2433 = vadd.f32 %v2421, 1e-20
    %v2434 = vadd.f32 %v2424, 1e-20
    %v2435 = vadd.f32 %v2427, 1e-20
    %v2436 = vrsqrt.pop %v2428
    %v2437 = vrsqrt.pop %v2429
    %v2438 = vrsqrt.pop %v2430
    %v2439 = vrsqrt.pop %v2431
    %v2440 = vrsqrt.pop %v2432
    %v2441 = vrsqrt.pop %v2433
    %v2442 = vrsqrt.pop %v2434
    %v2443 = vrsqrt.pop %v2435
    %v2444 = vmul.f32 %v2388, %v2436
    %v2445 = vmul.f32 %v2389, %v2437
    %v2446 = vmul.f32 %v2390, %v2438
    %v2447 = vmul.f32 %v2391, %v2439
    %v2448 = vmul.f32 %v2392, %v2440
    %v2449 = vmul.f32 %v2393, %v2441
    %v2450 = vmul.f32 %v2394, %v2442
    %v2451 = vmul.f32 %v2395, %v2443
    %v2452 = vsub.f32 %v855, %v718
    %v2453 = vsub.f32 %v860, %v723
    %v2454 = vsub.f32 %v865, %v728
    %v2455 = vsub.f32 %v870, %v733
    %v2456 = vsub.f32 %v875, %v738
    %v2457 = vsub.f32 %v880, %v743
    %v2458 = vsub.f32 %v885, %v748
    %v2459 = vsub.f32 %v890, %v753
    %2468 = vrot.lane.b32.xlu0 %v2452, 116
    %v2469 = vpop.permute.xlu0 %2468
    %2470 = vrot.lane.b32.xlu0 %v2453, 116
    %v2471 = vpop.permute.xlu0 %2470
    %2472 = vrot.lane.b32.xlu0 %v2454, 116
    %v2473 = vpop.permute.xlu0 %2472
    %2474 = vrot.lane.b32.xlu0 %v2455, 116
    %v2475 = vpop.permute.xlu0 %2474
    %2476 = vrot.lane.b32.xlu0 %v2456, 116
    %v2477 = vpop.permute.xlu0 %2476
    %2478 = vrot.lane.b32.xlu0 %v2457, 116
    %v2479 = vpop.permute.xlu0 %2478
    %2480 = vrot.lane.b32.xlu0 %v2458, 116
    %v2481 = vpop.permute.xlu0 %2480
    %2482 = vrot.lane.b32.xlu0 %v2459, 116
    %v2483 = vpop.permute.xlu0 %2482
    %v2484 = vsel %vm319, %v2469, 0
    %v2486 = vsel %vm319, %v2471, 0
    %v2488 = vsel %vm319, %v2473, 0
    %v2490 = vsel %vm319, %v2475, 0
    %v2492 = vsel %vm319, %v2477, 0
    %v2494 = vsel %vm319, %v2479, 0
    %v2496 = vsel %vm319, %v2481, 0
    %v2498 = vsel %vm319, %v2483, 0
    %v2501 = vsel %vm1190, %v31, 0
    %2503 = vmatprep.subr.mxu0 0.0
    %2504 = vmatpush1.msra.mxu0 0.0
    %2505 = vmatprep.subr.mxu0 0.0
    %2506 = vmatpush1.msra.mxu0 0.0
    %2507 = vmatprep.subr.mxu0 0.0
    %2508 = vmatpush1.msra.mxu0 0.0
    %2509 = vmatprep.subr.mxu0 0.0
    %2510 = vmatpush1.msra.mxu0 0.0
    %2511 = vmatprep.subr.mxu0 0.0
    %2512 = vmatpush1.msra.mxu0 0.0
    %2513 = vmatprep.subr.mxu0 0.0
    %2514 = vmatpush1.msra.mxu0 0.0
    %2515 = vmatprep.subr.mxu0 0.0
    %2516 = vmatpush1.msra.mxu0 0.0
    %2517 = vmatprep.subr.mxu0 0.0
    %2518 = vmatpush1.msra.mxu0 0.0
    %2519 = vmatprep.subr.mxu0 0.0
    %2520 = vmatpush1.msra.mxu0 0.0
    %2521 = vmatprep.subr.mxu0 0.0
    %2522 = vmatpush1.msra.mxu0 0.0
    %2523 = vmatprep.subr.mxu0 0.0
    %2524 = vmatpush1.msra.mxu0 0.0
    %2525 = vmatprep.subr.mxu0 0.0
    %2526 = vmatpush1.msra.mxu0 0.0
    %2527 = vmatprep.subr.mxu0 0.0
    %2528 = vmatpush1.msra.mxu0 0.0
    %2529 = vmatprep.subr.mxu0 0.0
    %2530 = vmatpush1.msra.mxu0 0.0
    %2531 = vmatprep.subr.mxu0 0.0
    %2532 = vmatpush1.msra.mxu0 0.0
    %2533 = vmatprep.subr.mxu0 0.0
    %2534 = vmatpush1.msra.mxu0 %v2501
    %2535 = vmatprep.subr.mxu0 0.0
    %2536 = vmatpush2.msra.mxu0 0.0
    %2537 = vmatprep.subr.mxu0 0.0
    %2538 = vmatpush2.msra.mxu0 0.0
    %2539 = vmatprep.subr.mxu0 0.0
    %2540 = vmatpush2.msra.mxu0 0.0
    %2541 = vmatprep.subr.mxu0 0.0
    %2542 = vmatpush2.msra.mxu0 0.0
    %2543 = vmatprep.subr.mxu0 0.0
    %2544 = vmatpush2.msra.mxu0 0.0
    %2545 = vmatprep.subr.mxu0 0.0
    %2546 = vmatpush2.msra.mxu0 0.0
    %2547 = vmatprep.subr.mxu0 0.0
    %2548 = vmatpush2.msra.mxu0 0.0
    %2549 = vmatprep.subr.mxu0 0.0
    %2550 = vmatpush2.msra.mxu0 0.0
    %2551 = vmatprep.subr.mxu0 0.0
    %2552 = vmatpush2.msra.mxu0 0.0
    %2553 = vmatprep.subr.mxu0 0.0
    %2554 = vmatpush2.msra.mxu0 0.0
    %2555 = vmatprep.subr.mxu0 0.0
    %2556 = vmatpush2.msra.mxu0 0.0
    %2557 = vmatprep.subr.mxu0 0.0
    %2558 = vmatpush2.msra.mxu0 0.0
    %2559 = vmatprep.subr.mxu0 0.0
    %2560 = vmatpush2.msra.mxu0 0.0
    %2561 = vmatprep.subr.mxu0 0.0
    %2562 = vmatpush2.msra.mxu0 0.0
    %2563 = vmatprep.subr.mxu0 0.0
    %2564 = vmatpush2.msra.mxu0 0.0
    %2565 = vmatprep.subr.mxu0 0.0
    %2566 = vmatpush2.msra.mxu0 0.0
    %2567 = vmatprep.mubr.f32.mxu0 0.0
    %2568 = vmatmul.mubr.f32.gmra.mxu0 %v2484
    %v2569 = vpop.f32.mrf.mxu0
    %v2570 = vadd.f32 0.0, %v2569
    %v2571 = vpop.f32.mrf.mxu0
    %2572 = vmatprep.mubr.f32.mxu0 0.0
    %2573 = vmatmul.mubr.f32.gmra.mxu0 %v2486
    %v2574 = vpop.f32.mrf.mxu0
    %v2575 = vadd.f32 0.0, %v2574
    %v2576 = vpop.f32.mrf.mxu0
    %2577 = vmatprep.mubr.f32.mxu0 0.0
    %2578 = vmatmul.mubr.f32.gmra.mxu0 %v2488
    %v2579 = vpop.f32.mrf.mxu0
    %v2580 = vadd.f32 0.0, %v2579
    %v2581 = vpop.f32.mrf.mxu0
    %2582 = vmatprep.mubr.f32.mxu0 0.0
    %2583 = vmatmul.mubr.f32.gmra.mxu0 %v2490
    %v2584 = vpop.f32.mrf.mxu0
    %v2585 = vadd.f32 0.0, %v2584
    %v2586 = vpop.f32.mrf.mxu0
    %2587 = vmatprep.mubr.f32.mxu0 0.0
    %2588 = vmatmul.mubr.f32.gmra.mxu0 %v2492
    %v2589 = vpop.f32.mrf.mxu0
    %v2590 = vadd.f32 0.0, %v2589
    %v2591 = vpop.f32.mrf.mxu0
    %2592 = vmatprep.mubr.f32.mxu0 0.0
    %2593 = vmatmul.mubr.f32.gmra.mxu0 %v2494
    %v2594 = vpop.f32.mrf.mxu0
    %v2595 = vadd.f32 0.0, %v2594
    %v2596 = vpop.f32.mrf.mxu0
    %2597 = vmatprep.mubr.f32.mxu0 0.0
    %2598 = vmatmul.mubr.f32.gmra.mxu0 %v2496
    %v2599 = vpop.f32.mrf.mxu0
    %v2600 = vadd.f32 0.0, %v2599
    %v2601 = vpop.f32.mrf.mxu0
    %2602 = vmatprep.mubr.f32.mxu0 0.0
    %2603 = vmatmul.mubr.f32.gmra.mxu0 %v2498
    %v2604 = vpop.f32.mrf.mxu0
    %v2605 = vadd.f32 0.0, %v2604
    %v2606 = vpop.f32.mrf.mxu0
    %2607 = vdwg.mxu0
    %v2608 = vmul.f32 %v2570, %v718
    %v2609 = vmul.f32 %v2575, %v723
    %v2610 = vmul.f32 %v2580, %v728
    %v2611 = vmul.f32 %v2585, %v733
    %v2612 = vmul.f32 %v2590, %v738
    %v2613 = vmul.f32 %v2595, %v743
    %v2614 = vmul.f32 %v2600, %v748
    %v2615 = vmul.f32 %v2605, %v753
    %v2617 = vsel %vm533, %v2608, 0
    %v2620 = vsel %vm533, %v2609, 0
    %v2623 = vsel %vm533, %v2610, 0
    %v2626 = vsel %vm533, %v2611, 0
    %v2629 = vsel %vm533, %v2612, 0
    %v2632 = vsel %vm533, %v2613, 0
    %v2635 = vsel %vm533, %v2614, 0
    %v2638 = vsel %vm533, %v2615, 0
    %v2641 = vsel %vm540, %v33, 0
    %2643 = vmatprep.subr.mxu0 0.0
    %2644 = vmatpush1.msra.mxu0 0.0
    %2645 = vmatprep.subr.mxu0 0.0
    %2646 = vmatpush1.msra.mxu0 0.0
    %2647 = vmatprep.subr.mxu0 0.0
    %2648 = vmatpush1.msra.mxu0 0.0
    %2649 = vmatprep.subr.mxu0 0.0
    %2650 = vmatpush1.msra.mxu0 0.0
    %2651 = vmatprep.subr.mxu0 0.0
    %2652 = vmatpush1.msra.mxu0 0.0
    %2653 = vmatprep.subr.mxu0 0.0
    %2654 = vmatpush1.msra.mxu0 0.0
    %2655 = vmatprep.subr.mxu0 0.0
    %2656 = vmatpush1.msra.mxu0 0.0
    %2657 = vmatprep.subr.mxu0 0.0
    %2658 = vmatpush1.msra.mxu0 0.0
    %2659 = vmatprep.subr.mxu0 0.0
    %2660 = vmatpush1.msra.mxu0 0.0
    %2661 = vmatprep.subr.mxu0 0.0
    %2662 = vmatpush1.msra.mxu0 0.0
    %2663 = vmatprep.subr.mxu0 0.0
    %2664 = vmatpush1.msra.mxu0 0.0
    %2665 = vmatprep.subr.mxu0 0.0
    %2666 = vmatpush1.msra.mxu0 0.0
    %2667 = vmatprep.subr.mxu0 0.0
    %2668 = vmatpush1.msra.mxu0 0.0
    %2669 = vmatprep.subr.mxu0 0.0
    %2670 = vmatpush1.msra.mxu0 0.0
    %2671 = vmatprep.subr.mxu0 0.0
    %2672 = vmatpush1.msra.mxu0 %v2641
    %2673 = vmatprep.subr.mxu0 0.0
    %2674 = vmatpush1.msra.mxu0 %v32
    %2675 = vmatprep.subr.mxu0 0.0
    %2676 = vmatpush2.msra.mxu0 0.0
    %2677 = vmatprep.subr.mxu0 0.0
    %2678 = vmatpush2.msra.mxu0 0.0
    %2679 = vmatprep.subr.mxu0 0.0
    %2680 = vmatpush2.msra.mxu0 0.0
    %2681 = vmatprep.subr.mxu0 0.0
    %2682 = vmatpush2.msra.mxu0 0.0
    %2683 = vmatprep.subr.mxu0 0.0
    %2684 = vmatpush2.msra.mxu0 0.0
    %2685 = vmatprep.subr.mxu0 0.0
    %2686 = vmatpush2.msra.mxu0 0.0
    %2687 = vmatprep.subr.mxu0 0.0
    %2688 = vmatpush2.msra.mxu0 0.0
    %2689 = vmatprep.subr.mxu0 0.0
    %2690 = vmatpush2.msra.mxu0 0.0
    %2691 = vmatprep.subr.mxu0 0.0
    %2692 = vmatpush2.msra.mxu0 0.0
    %2693 = vmatprep.subr.mxu0 0.0
    %2694 = vmatpush2.msra.mxu0 0.0
    %2695 = vmatprep.subr.mxu0 0.0
    %2696 = vmatpush2.msra.mxu0 0.0
    %2697 = vmatprep.subr.mxu0 0.0
    %2698 = vmatpush2.msra.mxu0 0.0
    %2699 = vmatprep.subr.mxu0 0.0
    %2700 = vmatpush2.msra.mxu0 0.0
    %2701 = vmatprep.subr.mxu0 0.0
    %2702 = vmatpush2.msra.mxu0 0.0
    %2703 = vmatprep.subr.mxu0 0.0
    %2704 = vmatpush2.msra.mxu0 0.0
    %2705 = vmatprep.subr.mxu0 0.0
    %2706 = vmatpush2.msra.mxu0 0.0
    %2707 = vmatprep.mubr.f32.mxu0 0.0
    %2708 = vmatmul.mubr.f32.gmra.mxu0 %v2617
    %v2709 = vpop.f32.mrf.mxu0
    %v2710 = vadd.f32 0.0, %v2709
    %v2711 = vpop.f32.mrf.mxu0
    %2712 = vmatprep.mubr.f32.mxu0 0.0
    %2713 = vmatmul.mubr.f32.gmra.mxu0 %v2620
    %v2714 = vpop.f32.mrf.mxu0
    %v2715 = vadd.f32 0.0, %v2714
    %v2716 = vpop.f32.mrf.mxu0
    %2717 = vmatprep.mubr.f32.mxu0 0.0
    %2718 = vmatmul.mubr.f32.gmra.mxu0 %v2623
    %v2719 = vpop.f32.mrf.mxu0
    %v2720 = vadd.f32 0.0, %v2719
    %v2721 = vpop.f32.mrf.mxu0
    %2722 = vmatprep.mubr.f32.mxu0 0.0
    %2723 = vmatmul.mubr.f32.gmra.mxu0 %v2626
    %v2724 = vpop.f32.mrf.mxu0
    %v2725 = vadd.f32 0.0, %v2724
    %v2726 = vpop.f32.mrf.mxu0
    %2727 = vmatprep.mubr.f32.mxu0 0.0
    %2728 = vmatmul.mubr.f32.gmra.mxu0 %v2629
    %v2729 = vpop.f32.mrf.mxu0
    %v2730 = vadd.f32 0.0, %v2729
    %v2731 = vpop.f32.mrf.mxu0
    %2732 = vmatprep.mubr.f32.mxu0 0.0
    %2733 = vmatmul.mubr.f32.gmra.mxu0 %v2632
    %v2734 = vpop.f32.mrf.mxu0
    %v2735 = vadd.f32 0.0, %v2734
    %v2736 = vpop.f32.mrf.mxu0
    %2737 = vmatprep.mubr.f32.mxu0 0.0
    %2738 = vmatmul.mubr.f32.gmra.mxu0 %v2635
    %v2739 = vpop.f32.mrf.mxu0
    %v2740 = vadd.f32 0.0, %v2739
    %v2741 = vpop.f32.mrf.mxu0
    %2742 = vmatprep.mubr.f32.mxu0 0.0
    %2743 = vmatmul.mubr.f32.gmra.mxu0 %v2638
    %v2744 = vpop.f32.mrf.mxu0
    %v2745 = vadd.f32 0.0, %v2744
    %v2746 = vpop.f32.mrf.mxu0
    %2747 = vdwg.mxu0
    %v2748 = vmul.f32 %v2710, %v2710
    %v2749 = vmul.f32 %v2715, %v2715
    %v2750 = vmul.f32 %v2720, %v2720
    %v2751 = vmul.f32 %v2725, %v2725
    %v2752 = vmul.f32 %v2730, %v2730
    %v2753 = vmul.f32 %v2735, %v2735
    %v2754 = vmul.f32 %v2740, %v2740
    %v2755 = vmul.f32 %v2745, %v2745
    %v2756 = vsel %vm319, %v2748, 0.0
    %2757 = vadd.xlane.f32.xlu0 %v2756
    %v2758 = vpop.xlane.xlu0 %2757
    %v2759 = vsel %vm319, %v2749, 0.0
    %2760 = vadd.xlane.f32.xlu0 %v2759
    %v2761 = vpop.xlane.xlu0 %2760
    %v2762 = vsel %vm319, %v2750, 0.0
    %2763 = vadd.xlane.f32.xlu0 %v2762
    %v2764 = vpop.xlane.xlu0 %2763
    %v2765 = vsel %vm319, %v2751, 0.0
    %2766 = vadd.xlane.f32.xlu0 %v2765
    %v2767 = vpop.xlane.xlu0 %2766
    %v2768 = vsel %vm319, %v2752, 0.0
    %2769 = vadd.xlane.f32.xlu0 %v2768
    %v2770 = vpop.xlane.xlu0 %2769
    %v2771 = vsel %vm319, %v2753, 0.0
    %2772 = vadd.xlane.f32.xlu0 %v2771
    %v2773 = vpop.xlane.xlu0 %2772
    %v2774 = vsel %vm319, %v2754, 0.0
    %2775 = vadd.xlane.f32.xlu0 %v2774
    %v2776 = vpop.xlane.xlu0 %2775
    %v2777 = vsel %vm319, %v2755, 0.0
    %2778 = vadd.xlane.f32.xlu0 %v2777
    %v2779 = vpop.xlane.xlu0 %2778
    %v2780 = vrsqrt.pop %v2758
    %v2781 = vmul.f32 %v2758, %v2780
    %vm2782 = vcmp.eq.f32.partialorder %v2758, inf
    %v2783 = vsel %vm2782, %v2758, %v2781
    %vm2784 = vcmp.eq.f32.partialorder %v2758, 0.0
    %v2785 = vand.u32 %v2758, 2147483648
    %v2786 = vsel %vm2784, %v2785, %v2783
    %v2787 = vrsqrt.pop %v2761
    %v2788 = vmul.f32 %v2761, %v2787
    %vm2789 = vcmp.eq.f32.partialorder %v2761, inf
    %v2790 = vsel %vm2789, %v2761, %v2788
    %vm2791 = vcmp.eq.f32.partialorder %v2761, 0.0
    %v2792 = vand.u32 %v2761, 2147483648
    %v2793 = vsel %vm2791, %v2792, %v2790
    %v2794 = vrsqrt.pop %v2764
    %v2795 = vmul.f32 %v2764, %v2794
    %vm2796 = vcmp.eq.f32.partialorder %v2764, inf
    %v2797 = vsel %vm2796, %v2764, %v2795
    %vm2798 = vcmp.eq.f32.partialorder %v2764, 0.0
    %v2799 = vand.u32 %v2764, 2147483648
    %v2800 = vsel %vm2798, %v2799, %v2797
    %v2801 = vrsqrt.pop %v2767
    %v2802 = vmul.f32 %v2767, %v2801
    %vm2803 = vcmp.eq.f32.partialorder %v2767, inf
    %v2804 = vsel %vm2803, %v2767, %v2802
    %vm2805 = vcmp.eq.f32.partialorder %v2767, 0.0
    %v2806 = vand.u32 %v2767, 2147483648
    %v2807 = vsel %vm2805, %v2806, %v2804
    %v2808 = vrsqrt.pop %v2770
    %v2809 = vmul.f32 %v2770, %v2808
    %vm2810 = vcmp.eq.f32.partialorder %v2770, inf
    %v2811 = vsel %vm2810, %v2770, %v2809
    %vm2812 = vcmp.eq.f32.partialorder %v2770, 0.0
    %v2813 = vand.u32 %v2770, 2147483648
    %v2814 = vsel %vm2812, %v2813, %v2811
    %v2815 = vrsqrt.pop %v2773
    %v2816 = vmul.f32 %v2773, %v2815
    %vm2817 = vcmp.eq.f32.partialorder %v2773, inf
    %v2818 = vsel %vm2817, %v2773, %v2816
    %vm2819 = vcmp.eq.f32.partialorder %v2773, 0.0
    %v2820 = vand.u32 %v2773, 2147483648
    %v2821 = vsel %vm2819, %v2820, %v2818
    %v2822 = vrsqrt.pop %v2776
    %v2823 = vmul.f32 %v2776, %v2822
    %vm2824 = vcmp.eq.f32.partialorder %v2776, inf
    %v2825 = vsel %vm2824, %v2776, %v2823
    %vm2826 = vcmp.eq.f32.partialorder %v2776, 0.0
    %v2827 = vand.u32 %v2776, 2147483648
    %v2828 = vsel %vm2826, %v2827, %v2825
    %v2829 = vrsqrt.pop %v2779
    %v2830 = vmul.f32 %v2779, %v2829
    %vm2831 = vcmp.eq.f32.partialorder %v2779, inf
    %v2832 = vsel %vm2831, %v2779, %v2830
    %vm2833 = vcmp.eq.f32.partialorder %v2779, 0.0
    %v2834 = vand.u32 %v2779, 2147483648
    %v2835 = vsel %vm2833, %v2834, %v2832
    %v2836 = vadd.f32 %v2786, 1e-08
    %v2837 = vadd.f32 %v2793, 1e-08
    %v2838 = vadd.f32 %v2800, 1e-08
    %v2839 = vadd.f32 %v2807, 1e-08
    %v2840 = vadd.f32 %v2814, 1e-08
    %v2841 = vadd.f32 %v2821, 1e-08
    %v2842 = vadd.f32 %v2828, 1e-08
    %v2843 = vadd.f32 %v2835, 1e-08
    %v2844 = vlog2.pop %v2836
    %v2845 = vmul.f32 %v2844, 0.6931472
    %v2846 = vlog2.pop %v2837
    %v2847 = vmul.f32 %v2846, 0.6931472
    %v2848 = vlog2.pop %v2838
    %v2849 = vmul.f32 %v2848, 0.6931472
    %v2850 = vlog2.pop %v2839
    %v2851 = vmul.f32 %v2850, 0.6931472
    %v2852 = vlog2.pop %v2840
    %v2853 = vmul.f32 %v2852, 0.6931472
    %v2854 = vlog2.pop %v2841
    %v2855 = vmul.f32 %v2854, 0.6931472
    %v2856 = vlog2.pop %v2842
    %v2857 = vmul.f32 %v2856, 0.6931472
    %v2858 = vlog2.pop %v2843
    %v2859 = vmul.f32 %v2858, 0.6931472
    %2860 = vrot.lane.b32.xlu0 %v167, 127
    %v2861 = vpop.permute.xlu0 %2860
    %2862 = vrot.lane.b32.xlu0 %v168, 127
    %v2863 = vpop.permute.xlu0 %2862
    %2864 = vrot.lane.b32.xlu0 %v169, 127
    %v2865 = vpop.permute.xlu0 %2864
    %2866 = vrot.lane.b32.xlu0 %v170, 127
    %v2867 = vpop.permute.xlu0 %2866
    %2868 = vrot.lane.b32.xlu0 %v171, 127
    %v2869 = vpop.permute.xlu0 %2868
    %2870 = vrot.lane.b32.xlu0 %v172, 127
    %v2871 = vpop.permute.xlu0 %2870
    %2872 = vrot.lane.b32.xlu0 %v173, 127
    %v2873 = vpop.permute.xlu0 %2872
    %2874 = vrot.lane.b32.xlu0 %v174, 127
    %v2875 = vpop.permute.xlu0 %2874
    %v2876 = vsub.s32 %v167, %v2861
    %v2877 = vsub.s32 %v168, %v2863
    %v2878 = vsub.s32 %v169, %v2865
    %v2879 = vsub.s32 %v170, %v2867
    %v2880 = vsub.s32 %v171, %v2869
    %v2881 = vsub.s32 %v172, %v2871
    %v2882 = vsub.s32 %v173, %v2873
    %v2883 = vsub.s32 %v174, %v2875
    %v2884 = vcvt.s32.f32 %v2876
    %v2885 = vcvt.s32.f32 %v2877
    %v2886 = vcvt.s32.f32 %v2878
    %v2887 = vcvt.s32.f32 %v2879
    %v2888 = vcvt.s32.f32 %v2880
    %v2889 = vcvt.s32.f32 %v2881
    %v2890 = vcvt.s32.f32 %v2882
    %v2891 = vcvt.s32.f32 %v2883
    %v2892 = vand.u32 2147483647, %v2884
    %v2893 = vand.u32 2147483647, %v2885
    %v2894 = vand.u32 2147483647, %v2886
    %v2895 = vand.u32 2147483647, %v2887
    %v2896 = vand.u32 2147483647, %v2888
    %v2897 = vand.u32 2147483647, %v2889
    %v2898 = vand.u32 2147483647, %v2890
    %v2899 = vand.u32 2147483647, %v2891
    %v2900 = vadd.f32 %v2892, 1.0
    %v2901 = vadd.f32 %v2893, 1.0
    %v2902 = vadd.f32 %v2894, 1.0
    %v2903 = vadd.f32 %v2895, 1.0
    %v2904 = vadd.f32 %v2896, 1.0
    %v2905 = vadd.f32 %v2897, 1.0
    %v2906 = vadd.f32 %v2898, 1.0
    %v2907 = vadd.f32 %v2899, 1.0
    %v2908 = vlog2.pop %v2900
    %v2909 = vmul.f32 %v2908, 0.6931472
    %v2910 = vlog2.pop %v2901
    %v2911 = vmul.f32 %v2910, 0.6931472
    %v2912 = vlog2.pop %v2902
    %v2913 = vmul.f32 %v2912, 0.6931472
    %v2914 = vlog2.pop %v2903
    %v2915 = vmul.f32 %v2914, 0.6931472
    %v2916 = vlog2.pop %v2904
    %v2917 = vmul.f32 %v2916, 0.6931472
    %v2918 = vlog2.pop %v2905
    %v2919 = vmul.f32 %v2918, 0.6931472
    %v2920 = vlog2.pop %v2906
    %v2921 = vmul.f32 %v2920, 0.6931472
    %v2922 = vlog2.pop %v2907
    %v2923 = vmul.f32 %v2922, 0.6931472
    %v2924 = vcvt.s32.f32 %v176
    %v2925 = vmul.f32 %v2924, 6.6666665
    %v2926 = vsub.f32 %v718, %v855
    %v2927 = vsub.f32 %v723, %v860
    %v2928 = vsub.f32 %v728, %v865
    %v2929 = vsub.f32 %v733, %v870
    %v2930 = vsub.f32 %v738, %v875
    %v2931 = vsub.f32 %v743, %v880
    %v2932 = vsub.f32 %v748, %v885
    %v2933 = vsub.f32 %v753, %v890
    %v2934 = vmul.f32 %v2926, %v2926
    %v2935 = vmul.f32 %v2927, %v2927
    %v2936 = vmul.f32 %v2928, %v2928
    %v2937 = vmul.f32 %v2929, %v2929
    %v2938 = vmul.f32 %v2930, %v2930
    %v2939 = vmul.f32 %v2931, %v2931
    %v2940 = vmul.f32 %v2932, %v2932
    %v2941 = vmul.f32 %v2933, %v2933
    %2950 = vrot.lane.b32.xlu0 %v2934, 119
    %v2951 = vpop.permute.xlu0 %2950
    %2952 = vrot.lane.b32.xlu0 %v2935, 119
    %v2953 = vpop.permute.xlu0 %2952
    %2954 = vrot.lane.b32.xlu0 %v2936, 119
    %v2955 = vpop.permute.xlu0 %2954
    %2956 = vrot.lane.b32.xlu0 %v2937, 119
    %v2957 = vpop.permute.xlu0 %2956
    %2958 = vrot.lane.b32.xlu0 %v2938, 119
    %v2959 = vpop.permute.xlu0 %2958
    %2960 = vrot.lane.b32.xlu0 %v2939, 119
    %v2961 = vpop.permute.xlu0 %2960
    %2962 = vrot.lane.b32.xlu0 %v2940, 119
    %v2963 = vpop.permute.xlu0 %2962
    %2964 = vrot.lane.b32.xlu0 %v2941, 119
    %v2965 = vpop.permute.xlu0 %2964
    %v2974 = vsel %vm319, %v2951, 0.0
    %2975 = vadd.xlane.f32.xlu0 %v2974
    %v2976 = vpop.xlane.xlu0 %2975
    %v2977 = vsel %vm319, %v2953, 0.0
    %2978 = vadd.xlane.f32.xlu0 %v2977
    %v2979 = vpop.xlane.xlu0 %2978
    %v2980 = vsel %vm319, %v2955, 0.0
    %2981 = vadd.xlane.f32.xlu0 %v2980
    %v2982 = vpop.xlane.xlu0 %2981
    %v2983 = vsel %vm319, %v2957, 0.0
    %2984 = vadd.xlane.f32.xlu0 %v2983
    %v2985 = vpop.xlane.xlu0 %2984
    %v2986 = vsel %vm319, %v2959, 0.0
    %2987 = vadd.xlane.f32.xlu0 %v2986
    %v2988 = vpop.xlane.xlu0 %2987
    %v2989 = vsel %vm319, %v2961, 0.0
    %2990 = vadd.xlane.f32.xlu0 %v2989
    %v2991 = vpop.xlane.xlu0 %2990
    %v2992 = vsel %vm319, %v2963, 0.0
    %2993 = vadd.xlane.f32.xlu0 %v2992
    %v2994 = vpop.xlane.xlu0 %2993
    %v2995 = vsel %vm319, %v2965, 0.0
    %2996 = vadd.xlane.f32.xlu0 %v2995
    %v2997 = vpop.xlane.xlu0 %2996
    %v2998 = vrsqrt.pop %v2976
    %v2999 = vmul.f32 %v2976, %v2998
    %vm3000 = vcmp.eq.f32.partialorder %v2976, inf
    %v3001 = vsel %vm3000, %v2976, %v2999
    %vm3002 = vcmp.eq.f32.partialorder %v2976, 0.0
    %v3003 = vand.u32 %v2976, 2147483648
    %v3004 = vsel %vm3002, %v3003, %v3001
    %v3005 = vrsqrt.pop %v2979
    %v3006 = vmul.f32 %v2979, %v3005
    %vm3007 = vcmp.eq.f32.partialorder %v2979, inf
    %v3008 = vsel %vm3007, %v2979, %v3006
    %vm3009 = vcmp.eq.f32.partialorder %v2979, 0.0
    %v3010 = vand.u32 %v2979, 2147483648
    %v3011 = vsel %vm3009, %v3010, %v3008
    %v3012 = vrsqrt.pop %v2982
    %v3013 = vmul.f32 %v2982, %v3012
    %vm3014 = vcmp.eq.f32.partialorder %v2982, inf
    %v3015 = vsel %vm3014, %v2982, %v3013
    %vm3016 = vcmp.eq.f32.partialorder %v2982, 0.0
    %v3017 = vand.u32 %v2982, 2147483648
    %v3018 = vsel %vm3016, %v3017, %v3015
    %v3019 = vrsqrt.pop %v2985
    %v3020 = vmul.f32 %v2985, %v3019
    %vm3021 = vcmp.eq.f32.partialorder %v2985, inf
    %v3022 = vsel %vm3021, %v2985, %v3020
    %vm3023 = vcmp.eq.f32.partialorder %v2985, 0.0
    %v3024 = vand.u32 %v2985, 2147483648
    %v3025 = vsel %vm3023, %v3024, %v3022
    %v3026 = vrsqrt.pop %v2988
    %v3027 = vmul.f32 %v2988, %v3026
    %vm3028 = vcmp.eq.f32.partialorder %v2988, inf
    %v3029 = vsel %vm3028, %v2988, %v3027
    %vm3030 = vcmp.eq.f32.partialorder %v2988, 0.0
    %v3031 = vand.u32 %v2988, 2147483648
    %v3032 = vsel %vm3030, %v3031, %v3029
    %v3033 = vrsqrt.pop %v2991
    %v3034 = vmul.f32 %v2991, %v3033
    %vm3035 = vcmp.eq.f32.partialorder %v2991, inf
    %v3036 = vsel %vm3035, %v2991, %v3034
    %vm3037 = vcmp.eq.f32.partialorder %v2991, 0.0
    %v3038 = vand.u32 %v2991, 2147483648
    %v3039 = vsel %vm3037, %v3038, %v3036
    %v3040 = vrsqrt.pop %v2994
    %v3041 = vmul.f32 %v2994, %v3040
    %vm3042 = vcmp.eq.f32.partialorder %v2994, inf
    %v3043 = vsel %vm3042, %v2994, %v3041
    %vm3044 = vcmp.eq.f32.partialorder %v2994, 0.0
    %v3045 = vand.u32 %v2994, 2147483648
    %v3046 = vsel %vm3044, %v3045, %v3043
    %v3047 = vrsqrt.pop %v2997
    %v3048 = vmul.f32 %v2997, %v3047
    %vm3049 = vcmp.eq.f32.partialorder %v2997, inf
    %v3050 = vsel %vm3049, %v2997, %v3048
    %vm3051 = vcmp.eq.f32.partialorder %v2997, 0.0
    %v3052 = vand.u32 %v2997, 2147483648
    %v3053 = vsel %vm3051, %v3052, %v3050
    %v3054 = vsub.f32 %v3004, %v2925
    %v3055 = vsub.f32 %v3011, %v2925
    %v3056 = vsub.f32 %v3018, %v2925
    %v3057 = vsub.f32 %v3025, %v2925
    %v3058 = vsub.f32 %v3032, %v2925
    %v3059 = vsub.f32 %v3039, %v2925
    %v3060 = vsub.f32 %v3046, %v2925
    %v3061 = vsub.f32 %v3053, %v2925
    %v3062 = vmul.f32 %v3054, %v3054
    %v3063 = vmul.f32 %v3055, %v3055
    %v3064 = vmul.f32 %v3056, %v3056
    %v3065 = vmul.f32 %v3057, %v3057
    %v3066 = vmul.f32 %v3058, %v3058
    %v3067 = vmul.f32 %v3059, %v3059
    %v3068 = vmul.f32 %v3060, %v3060
    %v3069 = vmul.f32 %v3061, %v3061
    %v3070 = vsub.f32 0.0, %v3062
    %v3071 = vsub.f32 0.0, %v3063
    %v3072 = vsub.f32 0.0, %v3064
    %v3073 = vsub.f32 0.0, %v3065
    %v3074 = vsub.f32 0.0, %v3066
    %v3075 = vsub.f32 0.0, %v3067
    %v3076 = vsub.f32 0.0, %v3068
    %v3077 = vsub.f32 0.0, %v3069
    %v3078 = vmul.f32 %v3070, 0.5
    %v3079 = vmul.f32 %v3071, 0.5
    %v3080 = vmul.f32 %v3072, 0.5
    %v3081 = vmul.f32 %v3073, 0.5
    %v3082 = vmul.f32 %v3074, 0.5
    %v3083 = vmul.f32 %v3075, 0.5
    %v3084 = vmul.f32 %v3076, 0.5
    %v3085 = vmul.f32 %v3077, 0.5
    %v3086 = vmul.f32 %v3078, 1.442695
    %v3087 = vpow.pop %v3086
    %v3088 = vmul.f32 %v3079, 1.442695
    %v3089 = vpow.pop %v3088
    %v3090 = vmul.f32 %v3080, 1.442695
    %v3091 = vpow.pop %v3090
    %v3092 = vmul.f32 %v3081, 1.442695
    %v3093 = vpow.pop %v3092
    %v3094 = vmul.f32 %v3082, 1.442695
    %v3095 = vpow.pop %v3094
    %v3096 = vmul.f32 %v3083, 1.442695
    %v3097 = vpow.pop %v3096
    %v3098 = vmul.f32 %v3084, 1.442695
    %v3099 = vpow.pop %v3098
    %v3100 = vmul.f32 %v3085, 1.442695
    %v3101 = vpow.pop %v3100
    %3102 = vrot.lane.b32.xlu0 %v855, 125
    %v3103 = vpop.permute.xlu0 %3102
    %3104 = vrot.lane.b32.xlu0 %v860, 125
    %v3105 = vpop.permute.xlu0 %3104
    %3106 = vrot.lane.b32.xlu0 %v865, 125
    %v3107 = vpop.permute.xlu0 %3106
    %3108 = vrot.lane.b32.xlu0 %v870, 125
    %v3109 = vpop.permute.xlu0 %3108
    %3110 = vrot.lane.b32.xlu0 %v875, 125
    %v3111 = vpop.permute.xlu0 %3110
    %3112 = vrot.lane.b32.xlu0 %v880, 125
    %v3113 = vpop.permute.xlu0 %3112
    %3114 = vrot.lane.b32.xlu0 %v885, 125
    %v3115 = vpop.permute.xlu0 %3114
    %3116 = vrot.lane.b32.xlu0 %v890, 125
    %v3117 = vpop.permute.xlu0 %3116
    %v3126 = vsub.f32 %v718, %v3103
    %v3127 = vsub.f32 %v723, %v3105
    %v3128 = vsub.f32 %v728, %v3107
    %v3129 = vsub.f32 %v733, %v3109
    %v3130 = vsub.f32 %v738, %v3111
    %v3131 = vsub.f32 %v743, %v3113
    %v3132 = vsub.f32 %v748, %v3115
    %v3133 = vsub.f32 %v753, %v3117
    %v3134 = vmul.f32 %v3126, %v3126
    %v3135 = vmul.f32 %v3127, %v3127
    %v3136 = vmul.f32 %v3128, %v3128
    %v3137 = vmul.f32 %v3129, %v3129
    %v3138 = vmul.f32 %v3130, %v3130
    %v3139 = vmul.f32 %v3131, %v3131
    %v3140 = vmul.f32 %v3132, %v3132
    %v3141 = vmul.f32 %v3133, %v3133
    %3150 = vrot.lane.b32.xlu0 %v3134, 119
    %v3151 = vpop.permute.xlu0 %3150
    %3152 = vrot.lane.b32.xlu0 %v3135, 119
    %v3153 = vpop.permute.xlu0 %3152
    %3154 = vrot.lane.b32.xlu0 %v3136, 119
    %v3155 = vpop.permute.xlu0 %3154
    %3156 = vrot.lane.b32.xlu0 %v3137, 119
    %v3157 = vpop.permute.xlu0 %3156
    %3158 = vrot.lane.b32.xlu0 %v3138, 119
    %v3159 = vpop.permute.xlu0 %3158
    %3160 = vrot.lane.b32.xlu0 %v3139, 119
    %v3161 = vpop.permute.xlu0 %3160
    %3162 = vrot.lane.b32.xlu0 %v3140, 119
    %v3163 = vpop.permute.xlu0 %3162
    %3164 = vrot.lane.b32.xlu0 %v3141, 119
    %v3165 = vpop.permute.xlu0 %3164
    %v3174 = vsel %vm319, %v3151, 0.0
    %3175 = vadd.xlane.f32.xlu0 %v3174
    %v3176 = vpop.xlane.xlu0 %3175
    %v3177 = vsel %vm319, %v3153, 0.0
    %3178 = vadd.xlane.f32.xlu0 %v3177
    %v3179 = vpop.xlane.xlu0 %3178
    %v3180 = vsel %vm319, %v3155, 0.0
    %3181 = vadd.xlane.f32.xlu0 %v3180
    %v3182 = vpop.xlane.xlu0 %3181
    %v3183 = vsel %vm319, %v3157, 0.0
    %3184 = vadd.xlane.f32.xlu0 %v3183
    %v3185 = vpop.xlane.xlu0 %3184
    %v3186 = vsel %vm319, %v3159, 0.0
    %3187 = vadd.xlane.f32.xlu0 %v3186
    %v3188 = vpop.xlane.xlu0 %3187
    %v3189 = vsel %vm319, %v3161, 0.0
    %3190 = vadd.xlane.f32.xlu0 %v3189
    %v3191 = vpop.xlane.xlu0 %3190
    %v3192 = vsel %vm319, %v3163, 0.0
    %3193 = vadd.xlane.f32.xlu0 %v3192
    %v3194 = vpop.xlane.xlu0 %3193
    %v3195 = vsel %vm319, %v3165, 0.0
    %3196 = vadd.xlane.f32.xlu0 %v3195
    %v3197 = vpop.xlane.xlu0 %3196
    %v3198 = vrsqrt.pop %v3176
    %v3199 = vmul.f32 %v3176, %v3198
    %vm3200 = vcmp.eq.f32.partialorder %v3176, inf
    %v3201 = vsel %vm3200, %v3176, %v3199
    %vm3202 = vcmp.eq.f32.partialorder %v3176, 0.0
    %v3203 = vand.u32 %v3176, 2147483648
    %v3204 = vsel %vm3202, %v3203, %v3201
    %v3205 = vrsqrt.pop %v3179
    %v3206 = vmul.f32 %v3179, %v3205
    %vm3207 = vcmp.eq.f32.partialorder %v3179, inf
    %v3208 = vsel %vm3207, %v3179, %v3206
    %vm3209 = vcmp.eq.f32.partialorder %v3179, 0.0
    %v3210 = vand.u32 %v3179, 2147483648
    %v3211 = vsel %vm3209, %v3210, %v3208
    %v3212 = vrsqrt.pop %v3182
    %v3213 = vmul.f32 %v3182, %v3212
    %vm3214 = vcmp.eq.f32.partialorder %v3182, inf
    %v3215 = vsel %vm3214, %v3182, %v3213
    %vm3216 = vcmp.eq.f32.partialorder %v3182, 0.0
    %v3217 = vand.u32 %v3182, 2147483648
    %v3218 = vsel %vm3216, %v3217, %v3215
    %v3219 = vrsqrt.pop %v3185
    %v3220 = vmul.f32 %v3185, %v3219
    %vm3221 = vcmp.eq.f32.partialorder %v3185, inf
    %v3222 = vsel %vm3221, %v3185, %v3220
    %vm3223 = vcmp.eq.f32.partialorder %v3185, 0.0
    %v3224 = vand.u32 %v3185, 2147483648
    %v3225 = vsel %vm3223, %v3224, %v3222
    %v3226 = vrsqrt.pop %v3188
    %v3227 = vmul.f32 %v3188, %v3226
    %vm3228 = vcmp.eq.f32.partialorder %v3188, inf
    %v3229 = vsel %vm3228, %v3188, %v3227
    %vm3230 = vcmp.eq.f32.partialorder %v3188, 0.0
    %v3231 = vand.u32 %v3188, 2147483648
    %v3232 = vsel %vm3230, %v3231, %v3229
    %v3233 = vrsqrt.pop %v3191
    %v3234 = vmul.f32 %v3191, %v3233
    %vm3235 = vcmp.eq.f32.partialorder %v3191, inf
    %v3236 = vsel %vm3235, %v3191, %v3234
    %vm3237 = vcmp.eq.f32.partialorder %v3191, 0.0
    %v3238 = vand.u32 %v3191, 2147483648
    %v3239 = vsel %vm3237, %v3238, %v3236
    %v3240 = vrsqrt.pop %v3194
    %v3241 = vmul.f32 %v3194, %v3240
    %vm3242 = vcmp.eq.f32.partialorder %v3194, inf
    %v3243 = vsel %vm3242, %v3194, %v3241
    %vm3244 = vcmp.eq.f32.partialorder %v3194, 0.0
    %v3245 = vand.u32 %v3194, 2147483648
    %v3246 = vsel %vm3244, %v3245, %v3243
    %v3247 = vrsqrt.pop %v3197
    %v3248 = vmul.f32 %v3197, %v3247
    %vm3249 = vcmp.eq.f32.partialorder %v3197, inf
    %v3250 = vsel %vm3249, %v3197, %v3248
    %vm3251 = vcmp.eq.f32.partialorder %v3197, 0.0
    %v3252 = vand.u32 %v3197, 2147483648
    %v3253 = vsel %vm3251, %v3252, %v3250
    %v3254 = vsub.f32 %v3204, %v2925
    %v3255 = vsub.f32 %v3211, %v2925
    %v3256 = vsub.f32 %v3218, %v2925
    %v3257 = vsub.f32 %v3225, %v2925
    %v3258 = vsub.f32 %v3232, %v2925
    %v3259 = vsub.f32 %v3239, %v2925
    %v3260 = vsub.f32 %v3246, %v2925
    %v3261 = vsub.f32 %v3253, %v2925
    %v3262 = vmul.f32 %v3254, %v3254
    %v3263 = vmul.f32 %v3255, %v3255
    %v3264 = vmul.f32 %v3256, %v3256
    %v3265 = vmul.f32 %v3257, %v3257
    %v3266 = vmul.f32 %v3258, %v3258
    %v3267 = vmul.f32 %v3259, %v3259
    %v3268 = vmul.f32 %v3260, %v3260
    %v3269 = vmul.f32 %v3261, %v3261
    %v3270 = vsub.f32 0.0, %v3262
    %v3271 = vsub.f32 0.0, %v3263
    %v3272 = vsub.f32 0.0, %v3264
    %v3273 = vsub.f32 0.0, %v3265
    %v3274 = vsub.f32 0.0, %v3266
    %v3275 = vsub.f32 0.0, %v3267
    %v3276 = vsub.f32 0.0, %v3268
    %v3277 = vsub.f32 0.0, %v3269
    %v3278 = vmul.f32 %v3270, 0.5
    %v3279 = vmul.f32 %v3271, 0.5
    %v3280 = vmul.f32 %v3272, 0.5
    %v3281 = vmul.f32 %v3273, 0.5
    %v3282 = vmul.f32 %v3274, 0.5
    %v3283 = vmul.f32 %v3275, 0.5
    %v3284 = vmul.f32 %v3276, 0.5
    %v3285 = vmul.f32 %v3277, 0.5
    %v3286 = vmul.f32 %v3278, 1.442695
    %v3287 = vpow.pop %v3286
    %v3288 = vmul.f32 %v3279, 1.442695
    %v3289 = vpow.pop %v3288
    %v3290 = vmul.f32 %v3280, 1.442695
    %v3291 = vpow.pop %v3290
    %v3292 = vmul.f32 %v3281, 1.442695
    %v3293 = vpow.pop %v3292
    %v3294 = vmul.f32 %v3282, 1.442695
    %v3295 = vpow.pop %v3294
    %v3296 = vmul.f32 %v3283, 1.442695
    %v3297 = vpow.pop %v3296
    %v3298 = vmul.f32 %v3284, 1.442695
    %v3299 = vpow.pop %v3298
    %v3300 = vmul.f32 %v3285, 1.442695
    %v3301 = vpow.pop %v3300
    %3302 = vrot.lane.b32.xlu0 %v855, 122
    %v3303 = vpop.permute.xlu0 %3302
    %3304 = vrot.lane.b32.xlu0 %v860, 122
    %v3305 = vpop.permute.xlu0 %3304
    %3306 = vrot.lane.b32.xlu0 %v865, 122
    %v3307 = vpop.permute.xlu0 %3306
    %3308 = vrot.lane.b32.xlu0 %v870, 122
    %v3309 = vpop.permute.xlu0 %3308
    %3310 = vrot.lane.b32.xlu0 %v875, 122
    %v3311 = vpop.permute.xlu0 %3310
    %3312 = vrot.lane.b32.xlu0 %v880, 122
    %v3313 = vpop.permute.xlu0 %3312
    %3314 = vrot.lane.b32.xlu0 %v885, 122
    %v3315 = vpop.permute.xlu0 %3314
    %3316 = vrot.lane.b32.xlu0 %v890, 122
    %v3317 = vpop.permute.xlu0 %3316
    %v3326 = vsub.f32 %v718, %v3303
    %v3327 = vsub.f32 %v723, %v3305
    %v3328 = vsub.f32 %v728, %v3307
    %v3329 = vsub.f32 %v733, %v3309
    %v3330 = vsub.f32 %v738, %v3311
    %v3331 = vsub.f32 %v743, %v3313
    %v3332 = vsub.f32 %v748, %v3315
    %v3333 = vsub.f32 %v753, %v3317
    %v3334 = vmul.f32 %v3326, %v3326
    %v3335 = vmul.f32 %v3327, %v3327
    %v3336 = vmul.f32 %v3328, %v3328
    %v3337 = vmul.f32 %v3329, %v3329
    %v3338 = vmul.f32 %v3330, %v3330
    %v3339 = vmul.f32 %v3331, %v3331
    %v3340 = vmul.f32 %v3332, %v3332
    %v3341 = vmul.f32 %v3333, %v3333
    %3350 = vrot.lane.b32.xlu0 %v3334, 119
    %v3351 = vpop.permute.xlu0 %3350
    %3352 = vrot.lane.b32.xlu0 %v3335, 119
    %v3353 = vpop.permute.xlu0 %3352
    %3354 = vrot.lane.b32.xlu0 %v3336, 119
    %v3355 = vpop.permute.xlu0 %3354
    %3356 = vrot.lane.b32.xlu0 %v3337, 119
    %v3357 = vpop.permute.xlu0 %3356
    %3358 = vrot.lane.b32.xlu0 %v3338, 119
    %v3359 = vpop.permute.xlu0 %3358
    %3360 = vrot.lane.b32.xlu0 %v3339, 119
    %v3361 = vpop.permute.xlu0 %3360
    %3362 = vrot.lane.b32.xlu0 %v3340, 119
    %v3363 = vpop.permute.xlu0 %3362
    %3364 = vrot.lane.b32.xlu0 %v3341, 119
    %v3365 = vpop.permute.xlu0 %3364
    %v3374 = vsel %vm319, %v3351, 0.0
    %3375 = vadd.xlane.f32.xlu0 %v3374
    %v3376 = vpop.xlane.xlu0 %3375
    %v3377 = vsel %vm319, %v3353, 0.0
    %3378 = vadd.xlane.f32.xlu0 %v3377
    %v3379 = vpop.xlane.xlu0 %3378
    %v3380 = vsel %vm319, %v3355, 0.0
    %3381 = vadd.xlane.f32.xlu0 %v3380
    %v3382 = vpop.xlane.xlu0 %3381
    %v3383 = vsel %vm319, %v3357, 0.0
    %3384 = vadd.xlane.f32.xlu0 %v3383
    %v3385 = vpop.xlane.xlu0 %3384
    %v3386 = vsel %vm319, %v3359, 0.0
    %3387 = vadd.xlane.f32.xlu0 %v3386
    %v3388 = vpop.xlane.xlu0 %3387
    %v3389 = vsel %vm319, %v3361, 0.0
    %3390 = vadd.xlane.f32.xlu0 %v3389
    %v3391 = vpop.xlane.xlu0 %3390
    %v3392 = vsel %vm319, %v3363, 0.0
    %3393 = vadd.xlane.f32.xlu0 %v3392
    %v3394 = vpop.xlane.xlu0 %3393
    %v3395 = vsel %vm319, %v3365, 0.0
    %3396 = vadd.xlane.f32.xlu0 %v3395
    %v3397 = vpop.xlane.xlu0 %3396
    %v3398 = vrsqrt.pop %v3376
    %v3399 = vmul.f32 %v3376, %v3398
    %vm3400 = vcmp.eq.f32.partialorder %v3376, inf
    %v3401 = vsel %vm3400, %v3376, %v3399
    %vm3402 = vcmp.eq.f32.partialorder %v3376, 0.0
    %v3403 = vand.u32 %v3376, 2147483648
    %v3404 = vsel %vm3402, %v3403, %v3401
    %v3405 = vrsqrt.pop %v3379
    %v3406 = vmul.f32 %v3379, %v3405
    %vm3407 = vcmp.eq.f32.partialorder %v3379, inf
    %v3408 = vsel %vm3407, %v3379, %v3406
    %vm3409 = vcmp.eq.f32.partialorder %v3379, 0.0
    %v3410 = vand.u32 %v3379, 2147483648
    %v3411 = vsel %vm3409, %v3410, %v3408
    %v3412 = vrsqrt.pop %v3382
    %v3413 = vmul.f32 %v3382, %v3412
    %vm3414 = vcmp.eq.f32.partialorder %v3382, inf
    %v3415 = vsel %vm3414, %v3382, %v3413
    %vm3416 = vcmp.eq.f32.partialorder %v3382, 0.0
    %v3417 = vand.u32 %v3382, 2147483648
    %v3418 = vsel %vm3416, %v3417, %v3415
    %v3419 = vrsqrt.pop %v3385
    %v3420 = vmul.f32 %v3385, %v3419
    %vm3421 = vcmp.eq.f32.partialorder %v3385, inf
    %v3422 = vsel %vm3421, %v3385, %v3420
    %vm3423 = vcmp.eq.f32.partialorder %v3385, 0.0
    %v3424 = vand.u32 %v3385, 2147483648
    %v3425 = vsel %vm3423, %v3424, %v3422
    %v3426 = vrsqrt.pop %v3388
    %v3427 = vmul.f32 %v3388, %v3426
    %vm3428 = vcmp.eq.f32.partialorder %v3388, inf
    %v3429 = vsel %vm3428, %v3388, %v3427
    %vm3430 = vcmp.eq.f32.partialorder %v3388, 0.0
    %v3431 = vand.u32 %v3388, 2147483648
    %v3432 = vsel %vm3430, %v3431, %v3429
    %v3433 = vrsqrt.pop %v3391
    %v3434 = vmul.f32 %v3391, %v3433
    %vm3435 = vcmp.eq.f32.partialorder %v3391, inf
    %v3436 = vsel %vm3435, %v3391, %v3434
    %vm3437 = vcmp.eq.f32.partialorder %v3391, 0.0
    %v3438 = vand.u32 %v3391, 2147483648
    %v3439 = vsel %vm3437, %v3438, %v3436
    %v3440 = vrsqrt.pop %v3394
    %v3441 = vmul.f32 %v3394, %v3440
    %vm3442 = vcmp.eq.f32.partialorder %v3394, inf
    %v3443 = vsel %vm3442, %v3394, %v3441
    %vm3444 = vcmp.eq.f32.partialorder %v3394, 0.0
    %v3445 = vand.u32 %v3394, 2147483648
    %v3446 = vsel %vm3444, %v3445, %v3443
    %v3447 = vrsqrt.pop %v3397
    %v3448 = vmul.f32 %v3397, %v3447
    %vm3449 = vcmp.eq.f32.partialorder %v3397, inf
    %v3450 = vsel %vm3449, %v3397, %v3448
    %vm3451 = vcmp.eq.f32.partialorder %v3397, 0.0
    %v3452 = vand.u32 %v3397, 2147483648
    %v3453 = vsel %vm3451, %v3452, %v3450
    %v3454 = vsub.f32 %v3404, %v2925
    %v3455 = vsub.f32 %v3411, %v2925
    %v3456 = vsub.f32 %v3418, %v2925
    %v3457 = vsub.f32 %v3425, %v2925
    %v3458 = vsub.f32 %v3432, %v2925
    %v3459 = vsub.f32 %v3439, %v2925
    %v3460 = vsub.f32 %v3446, %v2925
    %v3461 = vsub.f32 %v3453, %v2925
    %v3462 = vmul.f32 %v3454, %v3454
    %v3463 = vmul.f32 %v3455, %v3455
    %v3464 = vmul.f32 %v3456, %v3456
    %v3465 = vmul.f32 %v3457, %v3457
    %v3466 = vmul.f32 %v3458, %v3458
    %v3467 = vmul.f32 %v3459, %v3459
    %v3468 = vmul.f32 %v3460, %v3460
    %v3469 = vmul.f32 %v3461, %v3461
    %v3470 = vsub.f32 0.0, %v3462
    %v3471 = vsub.f32 0.0, %v3463
    %v3472 = vsub.f32 0.0, %v3464
    %v3473 = vsub.f32 0.0, %v3465
    %v3474 = vsub.f32 0.0, %v3466
    %v3475 = vsub.f32 0.0, %v3467
    %v3476 = vsub.f32 0.0, %v3468
    %v3477 = vsub.f32 0.0, %v3469
    %v3478 = vmul.f32 %v3470, 0.5
    %v3479 = vmul.f32 %v3471, 0.5
    %v3480 = vmul.f32 %v3472, 0.5
    %v3481 = vmul.f32 %v3473, 0.5
    %v3482 = vmul.f32 %v3474, 0.5
    %v3483 = vmul.f32 %v3475, 0.5
    %v3484 = vmul.f32 %v3476, 0.5
    %v3485 = vmul.f32 %v3477, 0.5
    %v3486 = vmul.f32 %v3478, 1.442695
    %v3487 = vpow.pop %v3486
    %v3488 = vmul.f32 %v3479, 1.442695
    %v3489 = vpow.pop %v3488
    %v3490 = vmul.f32 %v3480, 1.442695
    %v3491 = vpow.pop %v3490
    %v3492 = vmul.f32 %v3481, 1.442695
    %v3493 = vpow.pop %v3492
    %v3494 = vmul.f32 %v3482, 1.442695
    %v3495 = vpow.pop %v3494
    %v3496 = vmul.f32 %v3483, 1.442695
    %v3497 = vpow.pop %v3496
    %v3498 = vmul.f32 %v3484, 1.442695
    %v3499 = vpow.pop %v3498
    %v3500 = vmul.f32 %v3485, 1.442695
    %v3501 = vpow.pop %v3500
    %3502 = vrot.lane.b32.xlu0 %v855, 3
    %v3503 = vpop.permute.xlu0 %3502
    %3504 = vrot.lane.b32.xlu0 %v860, 3
    %v3505 = vpop.permute.xlu0 %3504
    %3506 = vrot.lane.b32.xlu0 %v865, 3
    %v3507 = vpop.permute.xlu0 %3506
    %3508 = vrot.lane.b32.xlu0 %v870, 3
    %v3509 = vpop.permute.xlu0 %3508
    %3510 = vrot.lane.b32.xlu0 %v875, 3
    %v3511 = vpop.permute.xlu0 %3510
    %3512 = vrot.lane.b32.xlu0 %v880, 3
    %v3513 = vpop.permute.xlu0 %3512
    %3514 = vrot.lane.b32.xlu0 %v885, 3
    %v3515 = vpop.permute.xlu0 %3514
    %3516 = vrot.lane.b32.xlu0 %v890, 3
    %v3517 = vpop.permute.xlu0 %3516
    %v3526 = vsub.f32 %v718, %v3503
    %v3527 = vsub.f32 %v723, %v3505
    %v3528 = vsub.f32 %v728, %v3507
    %v3529 = vsub.f32 %v733, %v3509
    %v3530 = vsub.f32 %v738, %v3511
    %v3531 = vsub.f32 %v743, %v3513
    %v3532 = vsub.f32 %v748, %v3515
    %v3533 = vsub.f32 %v753, %v3517
    %v3534 = vmul.f32 %v3526, %v3526
    %v3535 = vmul.f32 %v3527, %v3527
    %v3536 = vmul.f32 %v3528, %v3528
    %v3537 = vmul.f32 %v3529, %v3529
    %v3538 = vmul.f32 %v3530, %v3530
    %v3539 = vmul.f32 %v3531, %v3531
    %v3540 = vmul.f32 %v3532, %v3532
    %v3541 = vmul.f32 %v3533, %v3533
    %3550 = vrot.lane.b32.xlu0 %v3534, 116
    %v3551 = vpop.permute.xlu0 %3550
    %3552 = vrot.lane.b32.xlu0 %v3535, 116
    %v3553 = vpop.permute.xlu0 %3552
    %3554 = vrot.lane.b32.xlu0 %v3536, 116
    %v3555 = vpop.permute.xlu0 %3554
    %3556 = vrot.lane.b32.xlu0 %v3537, 116
    %v3557 = vpop.permute.xlu0 %3556
    %3558 = vrot.lane.b32.xlu0 %v3538, 116
    %v3559 = vpop.permute.xlu0 %3558
    %3560 = vrot.lane.b32.xlu0 %v3539, 116
    %v3561 = vpop.permute.xlu0 %3560
    %3562 = vrot.lane.b32.xlu0 %v3540, 116
    %v3563 = vpop.permute.xlu0 %3562
    %3564 = vrot.lane.b32.xlu0 %v3541, 116
    %v3565 = vpop.permute.xlu0 %3564
    %v3574 = vsel %vm319, %v3551, 0.0
    %3575 = vadd.xlane.f32.xlu0 %v3574
    %v3576 = vpop.xlane.xlu0 %3575
    %v3577 = vsel %vm319, %v3553, 0.0
    %3578 = vadd.xlane.f32.xlu0 %v3577
    %v3579 = vpop.xlane.xlu0 %3578
    %v3580 = vsel %vm319, %v3555, 0.0
    %3581 = vadd.xlane.f32.xlu0 %v3580
    %v3582 = vpop.xlane.xlu0 %3581
    %v3583 = vsel %vm319, %v3557, 0.0
    %3584 = vadd.xlane.f32.xlu0 %v3583
    %v3585 = vpop.xlane.xlu0 %3584
    %v3586 = vsel %vm319, %v3559, 0.0
    %3587 = vadd.xlane.f32.xlu0 %v3586
    %v3588 = vpop.xlane.xlu0 %3587
    %v3589 = vsel %vm319, %v3561, 0.0
    %3590 = vadd.xlane.f32.xlu0 %v3589
    %v3591 = vpop.xlane.xlu0 %3590
    %v3592 = vsel %vm319, %v3563, 0.0
    %3593 = vadd.xlane.f32.xlu0 %v3592
    %v3594 = vpop.xlane.xlu0 %3593
    %v3595 = vsel %vm319, %v3565, 0.0
    %3596 = vadd.xlane.f32.xlu0 %v3595
    %v3597 = vpop.xlane.xlu0 %3596
    %v3598 = vrsqrt.pop %v3576
    %v3599 = vmul.f32 %v3576, %v3598
    %vm3600 = vcmp.eq.f32.partialorder %v3576, inf
    %v3601 = vsel %vm3600, %v3576, %v3599
    %vm3602 = vcmp.eq.f32.partialorder %v3576, 0.0
    %v3603 = vand.u32 %v3576, 2147483648
    %v3604 = vsel %vm3602, %v3603, %v3601
    %v3605 = vrsqrt.pop %v3579
    %v3606 = vmul.f32 %v3579, %v3605
    %vm3607 = vcmp.eq.f32.partialorder %v3579, inf
    %v3608 = vsel %vm3607, %v3579, %v3606
    %vm3609 = vcmp.eq.f32.partialorder %v3579, 0.0
    %v3610 = vand.u32 %v3579, 2147483648
    %v3611 = vsel %vm3609, %v3610, %v3608
    %v3612 = vrsqrt.pop %v3582
    %v3613 = vmul.f32 %v3582, %v3612
    %vm3614 = vcmp.eq.f32.partialorder %v3582, inf
    %v3615 = vsel %vm3614, %v3582, %v3613
    %vm3616 = vcmp.eq.f32.partialorder %v3582, 0.0
    %v3617 = vand.u32 %v3582, 2147483648
    %v3618 = vsel %vm3616, %v3617, %v3615
    %v3619 = vrsqrt.pop %v3585
    %v3620 = vmul.f32 %v3585, %v3619
    %vm3621 = vcmp.eq.f32.partialorder %v3585, inf
    %v3622 = vsel %vm3621, %v3585, %v3620
    %vm3623 = vcmp.eq.f32.partialorder %v3585, 0.0
    %v3624 = vand.u32 %v3585, 2147483648
    %v3625 = vsel %vm3623, %v3624, %v3622
    %v3626 = vrsqrt.pop %v3588
    %v3627 = vmul.f32 %v3588, %v3626
    %vm3628 = vcmp.eq.f32.partialorder %v3588, inf
    %v3629 = vsel %vm3628, %v3588, %v3627
    %vm3630 = vcmp.eq.f32.partialorder %v3588, 0.0
    %v3631 = vand.u32 %v3588, 2147483648
    %v3632 = vsel %vm3630, %v3631, %v3629
    %v3633 = vrsqrt.pop %v3591
    %v3634 = vmul.f32 %v3591, %v3633
    %vm3635 = vcmp.eq.f32.partialorder %v3591, inf
    %v3636 = vsel %vm3635, %v3591, %v3634
    %vm3637 = vcmp.eq.f32.partialorder %v3591, 0.0
    %v3638 = vand.u32 %v3591, 2147483648
    %v3639 = vsel %vm3637, %v3638, %v3636
    %v3640 = vrsqrt.pop %v3594
    %v3641 = vmul.f32 %v3594, %v3640
    %vm3642 = vcmp.eq.f32.partialorder %v3594, inf
    %v3643 = vsel %vm3642, %v3594, %v3641
    %vm3644 = vcmp.eq.f32.partialorder %v3594, 0.0
    %v3645 = vand.u32 %v3594, 2147483648
    %v3646 = vsel %vm3644, %v3645, %v3643
    %v3647 = vrsqrt.pop %v3597
    %v3648 = vmul.f32 %v3597, %v3647
    %vm3649 = vcmp.eq.f32.partialorder %v3597, inf
    %v3650 = vsel %vm3649, %v3597, %v3648
    %vm3651 = vcmp.eq.f32.partialorder %v3597, 0.0
    %v3652 = vand.u32 %v3597, 2147483648
    %v3653 = vsel %vm3651, %v3652, %v3650
    %v3654 = vsub.f32 %v3604, %v2925
    %v3655 = vsub.f32 %v3611, %v2925
    %v3656 = vsub.f32 %v3618, %v2925
    %v3657 = vsub.f32 %v3625, %v2925
    %v3658 = vsub.f32 %v3632, %v2925
    %v3659 = vsub.f32 %v3639, %v2925
    %v3660 = vsub.f32 %v3646, %v2925
    %v3661 = vsub.f32 %v3653, %v2925
    %v3662 = vmul.f32 %v3654, %v3654
    %v3663 = vmul.f32 %v3655, %v3655
    %v3664 = vmul.f32 %v3656, %v3656
    %v3665 = vmul.f32 %v3657, %v3657
    %v3666 = vmul.f32 %v3658, %v3658
    %v3667 = vmul.f32 %v3659, %v3659
    %v3668 = vmul.f32 %v3660, %v3660
    %v3669 = vmul.f32 %v3661, %v3661
    %v3670 = vsub.f32 0.0, %v3662
    %v3671 = vsub.f32 0.0, %v3663
    %v3672 = vsub.f32 0.0, %v3664
    %v3673 = vsub.f32 0.0, %v3665
    %v3674 = vsub.f32 0.0, %v3666
    %v3675 = vsub.f32 0.0, %v3667
    %v3676 = vsub.f32 0.0, %v3668
    %v3677 = vsub.f32 0.0, %v3669
    %v3678 = vmul.f32 %v3670, 0.5
    %v3679 = vmul.f32 %v3671, 0.5
    %v3680 = vmul.f32 %v3672, 0.5
    %v3681 = vmul.f32 %v3673, 0.5
    %v3682 = vmul.f32 %v3674, 0.5
    %v3683 = vmul.f32 %v3675, 0.5
    %v3684 = vmul.f32 %v3676, 0.5
    %v3685 = vmul.f32 %v3677, 0.5
    %v3686 = vmul.f32 %v3678, 1.442695
    %v3687 = vpow.pop %v3686
    %v3688 = vmul.f32 %v3679, 1.442695
    %v3689 = vpow.pop %v3688
    %v3690 = vmul.f32 %v3680, 1.442695
    %v3691 = vpow.pop %v3690
    %v3692 = vmul.f32 %v3681, 1.442695
    %v3693 = vpow.pop %v3692
    %v3694 = vmul.f32 %v3682, 1.442695
    %v3695 = vpow.pop %v3694
    %v3696 = vmul.f32 %v3683, 1.442695
    %v3697 = vpow.pop %v3696
    %v3698 = vmul.f32 %v3684, 1.442695
    %v3699 = vpow.pop %v3698
    %v3700 = vmul.f32 %v3685, 1.442695
    %v3701 = vpow.pop %v3700
    %3702 = vrot.lane.b32.xlu0 %v2934, 116
    %v3703 = vpop.permute.xlu0 %3702
    %3704 = vrot.lane.b32.xlu0 %v2935, 116
    %v3705 = vpop.permute.xlu0 %3704
    %3706 = vrot.lane.b32.xlu0 %v2936, 116
    %v3707 = vpop.permute.xlu0 %3706
    %3708 = vrot.lane.b32.xlu0 %v2937, 116
    %v3709 = vpop.permute.xlu0 %3708
    %3710 = vrot.lane.b32.xlu0 %v2938, 116
    %v3711 = vpop.permute.xlu0 %3710
    %3712 = vrot.lane.b32.xlu0 %v2939, 116
    %v3713 = vpop.permute.xlu0 %3712
    %3714 = vrot.lane.b32.xlu0 %v2940, 116
    %v3715 = vpop.permute.xlu0 %3714
    %3716 = vrot.lane.b32.xlu0 %v2941, 116
    %v3717 = vpop.permute.xlu0 %3716
    %v3726 = vsel %vm319, %v3703, 0.0
    %3727 = vadd.xlane.f32.xlu0 %v3726
    %v3728 = vpop.xlane.xlu0 %3727
    %v3729 = vsel %vm319, %v3705, 0.0
    %3730 = vadd.xlane.f32.xlu0 %v3729
    %v3731 = vpop.xlane.xlu0 %3730
    %v3732 = vsel %vm319, %v3707, 0.0
    %3733 = vadd.xlane.f32.xlu0 %v3732
    %v3734 = vpop.xlane.xlu0 %3733
    %v3735 = vsel %vm319, %v3709, 0.0
    %3736 = vadd.xlane.f32.xlu0 %v3735
    %v3737 = vpop.xlane.xlu0 %3736
    %v3738 = vsel %vm319, %v3711, 0.0
    %3739 = vadd.xlane.f32.xlu0 %v3738
    %v3740 = vpop.xlane.xlu0 %3739
    %v3741 = vsel %vm319, %v3713, 0.0
    %3742 = vadd.xlane.f32.xlu0 %v3741
    %v3743 = vpop.xlane.xlu0 %3742
    %v3744 = vsel %vm319, %v3715, 0.0
    %3745 = vadd.xlane.f32.xlu0 %v3744
    %v3746 = vpop.xlane.xlu0 %3745
    %v3747 = vsel %vm319, %v3717, 0.0
    %3748 = vadd.xlane.f32.xlu0 %v3747
    %v3749 = vpop.xlane.xlu0 %3748
    %v3750 = vrsqrt.pop %v3728
    %v3751 = vmul.f32 %v3728, %v3750
    %vm3752 = vcmp.eq.f32.partialorder %v3728, inf
    %v3753 = vsel %vm3752, %v3728, %v3751
    %vm3754 = vcmp.eq.f32.partialorder %v3728, 0.0
    %v3755 = vand.u32 %v3728, 2147483648
    %v3756 = vsel %vm3754, %v3755, %v3753
    %v3757 = vrsqrt.pop %v3731
    %v3758 = vmul.f32 %v3731, %v3757
    %vm3759 = vcmp.eq.f32.partialorder %v3731, inf
    %v3760 = vsel %vm3759, %v3731, %v3758
    %vm3761 = vcmp.eq.f32.partialorder %v3731, 0.0
    %v3762 = vand.u32 %v3731, 2147483648
    %v3763 = vsel %vm3761, %v3762, %v3760
    %v3764 = vrsqrt.pop %v3734
    %v3765 = vmul.f32 %v3734, %v3764
    %vm3766 = vcmp.eq.f32.partialorder %v3734, inf
    %v3767 = vsel %vm3766, %v3734, %v3765
    %vm3768 = vcmp.eq.f32.partialorder %v3734, 0.0
    %v3769 = vand.u32 %v3734, 2147483648
    %v3770 = vsel %vm3768, %v3769, %v3767
    %v3771 = vrsqrt.pop %v3737
    %v3772 = vmul.f32 %v3737, %v3771
    %vm3773 = vcmp.eq.f32.partialorder %v3737, inf
    %v3774 = vsel %vm3773, %v3737, %v3772
    %vm3775 = vcmp.eq.f32.partialorder %v3737, 0.0
    %v3776 = vand.u32 %v3737, 2147483648
    %v3777 = vsel %vm3775, %v3776, %v3774
    %v3778 = vrsqrt.pop %v3740
    %v3779 = vmul.f32 %v3740, %v3778
    %vm3780 = vcmp.eq.f32.partialorder %v3740, inf
    %v3781 = vsel %vm3780, %v3740, %v3779
    %vm3782 = vcmp.eq.f32.partialorder %v3740, 0.0
    %v3783 = vand.u32 %v3740, 2147483648
    %v3784 = vsel %vm3782, %v3783, %v3781
    %v3785 = vrsqrt.pop %v3743
    %v3786 = vmul.f32 %v3743, %v3785
    %vm3787 = vcmp.eq.f32.partialorder %v3743, inf
    %v3788 = vsel %vm3787, %v3743, %v3786
    %vm3789 = vcmp.eq.f32.partialorder %v3743, 0.0
    %v3790 = vand.u32 %v3743, 2147483648
    %v3791 = vsel %vm3789, %v3790, %v3788
    %v3792 = vrsqrt.pop %v3746
    %v3793 = vmul.f32 %v3746, %v3792
    %vm3794 = vcmp.eq.f32.partialorder %v3746, inf
    %v3795 = vsel %vm3794, %v3746, %v3793
    %vm3796 = vcmp.eq.f32.partialorder %v3746, 0.0
    %v3797 = vand.u32 %v3746, 2147483648
    %v3798 = vsel %vm3796, %v3797, %v3795
    %v3799 = vrsqrt.pop %v3749
    %v3800 = vmul.f32 %v3749, %v3799
    %vm3801 = vcmp.eq.f32.partialorder %v3749, inf
    %v3802 = vsel %vm3801, %v3749, %v3800
    %vm3803 = vcmp.eq.f32.partialorder %v3749, 0.0
    %v3804 = vand.u32 %v3749, 2147483648
    %v3805 = vsel %vm3803, %v3804, %v3802
    %v3806 = vsub.f32 %v3756, %v2925
    %v3807 = vsub.f32 %v3763, %v2925
    %v3808 = vsub.f32 %v3770, %v2925
    %v3809 = vsub.f32 %v3777, %v2925
    %v3810 = vsub.f32 %v3784, %v2925
    %v3811 = vsub.f32 %v3791, %v2925
    %v3812 = vsub.f32 %v3798, %v2925
    %v3813 = vsub.f32 %v3805, %v2925
    %v3814 = vmul.f32 %v3806, %v3806
    %v3815 = vmul.f32 %v3807, %v3807
    %v3816 = vmul.f32 %v3808, %v3808
    %v3817 = vmul.f32 %v3809, %v3809
    %v3818 = vmul.f32 %v3810, %v3810
    %v3819 = vmul.f32 %v3811, %v3811
    %v3820 = vmul.f32 %v3812, %v3812
    %v3821 = vmul.f32 %v3813, %v3813
    %v3822 = vsub.f32 0.0, %v3814
    %v3823 = vsub.f32 0.0, %v3815
    %v3824 = vsub.f32 0.0, %v3816
    %v3825 = vsub.f32 0.0, %v3817
    %v3826 = vsub.f32 0.0, %v3818
    %v3827 = vsub.f32 0.0, %v3819
    %v3828 = vsub.f32 0.0, %v3820
    %v3829 = vsub.f32 0.0, %v3821
    %v3830 = vmul.f32 %v3822, 0.5
    %v3831 = vmul.f32 %v3823, 0.5
    %v3832 = vmul.f32 %v3824, 0.5
    %v3833 = vmul.f32 %v3825, 0.5
    %v3834 = vmul.f32 %v3826, 0.5
    %v3835 = vmul.f32 %v3827, 0.5
    %v3836 = vmul.f32 %v3828, 0.5
    %v3837 = vmul.f32 %v3829, 0.5
    %v3838 = vmul.f32 %v3830, 1.442695
    %v3839 = vpow.pop %v3838
    %v3840 = vmul.f32 %v3831, 1.442695
    %v3841 = vpow.pop %v3840
    %v3842 = vmul.f32 %v3832, 1.442695
    %v3843 = vpow.pop %v3842
    %v3844 = vmul.f32 %v3833, 1.442695
    %v3845 = vpow.pop %v3844
    %v3846 = vmul.f32 %v3834, 1.442695
    %v3847 = vpow.pop %v3846
    %v3848 = vmul.f32 %v3835, 1.442695
    %v3849 = vpow.pop %v3848
    %v3850 = vmul.f32 %v3836, 1.442695
    %v3851 = vpow.pop %v3850
    %v3852 = vmul.f32 %v3837, 1.442695
    %v3853 = vpow.pop %v3852
    %3854 = vrot.lane.b32.xlu0 %v3134, 116
    %v3855 = vpop.permute.xlu0 %3854
    %3856 = vrot.lane.b32.xlu0 %v3135, 116
    %v3857 = vpop.permute.xlu0 %3856
    %3858 = vrot.lane.b32.xlu0 %v3136, 116
    %v3859 = vpop.permute.xlu0 %3858
    %3860 = vrot.lane.b32.xlu0 %v3137, 116
    %v3861 = vpop.permute.xlu0 %3860
    %3862 = vrot.lane.b32.xlu0 %v3138, 116
    %v3863 = vpop.permute.xlu0 %3862
    %3864 = vrot.lane.b32.xlu0 %v3139, 116
    %v3865 = vpop.permute.xlu0 %3864
    %3866 = vrot.lane.b32.xlu0 %v3140, 116
    %v3867 = vpop.permute.xlu0 %3866
    %3868 = vrot.lane.b32.xlu0 %v3141, 116
    %v3869 = vpop.permute.xlu0 %3868
    %v3878 = vsel %vm319, %v3855, 0.0
    %3879 = vadd.xlane.f32.xlu0 %v3878
    %v3880 = vpop.xlane.xlu0 %3879
    %v3881 = vsel %vm319, %v3857, 0.0
    %3882 = vadd.xlane.f32.xlu0 %v3881
    %v3883 = vpop.xlane.xlu0 %3882
    %v3884 = vsel %vm319, %v3859, 0.0
    %3885 = vadd.xlane.f32.xlu0 %v3884
    %v3886 = vpop.xlane.xlu0 %3885
    %v3887 = vsel %vm319, %v3861, 0.0
    %3888 = vadd.xlane.f32.xlu0 %v3887
    %v3889 = vpop.xlane.xlu0 %3888
    %v3890 = vsel %vm319, %v3863, 0.0
    %3891 = vadd.xlane.f32.xlu0 %v3890
    %v3892 = vpop.xlane.xlu0 %3891
    %v3893 = vsel %vm319, %v3865, 0.0
    %3894 = vadd.xlane.f32.xlu0 %v3893
    %v3895 = vpop.xlane.xlu0 %3894
    %v3896 = vsel %vm319, %v3867, 0.0
    %3897 = vadd.xlane.f32.xlu0 %v3896
    %v3898 = vpop.xlane.xlu0 %3897
    %v3899 = vsel %vm319, %v3869, 0.0
    %3900 = vadd.xlane.f32.xlu0 %v3899
    %v3901 = vpop.xlane.xlu0 %3900
    %v3902 = vrsqrt.pop %v3880
    %v3903 = vmul.f32 %v3880, %v3902
    %vm3904 = vcmp.eq.f32.partialorder %v3880, inf
    %v3905 = vsel %vm3904, %v3880, %v3903
    %vm3906 = vcmp.eq.f32.partialorder %v3880, 0.0
    %v3907 = vand.u32 %v3880, 2147483648
    %v3908 = vsel %vm3906, %v3907, %v3905
    %v3909 = vrsqrt.pop %v3883
    %v3910 = vmul.f32 %v3883, %v3909
    %vm3911 = vcmp.eq.f32.partialorder %v3883, inf
    %v3912 = vsel %vm3911, %v3883, %v3910
    %vm3913 = vcmp.eq.f32.partialorder %v3883, 0.0
    %v3914 = vand.u32 %v3883, 2147483648
    %v3915 = vsel %vm3913, %v3914, %v3912
    %v3916 = vrsqrt.pop %v3886
    %v3917 = vmul.f32 %v3886, %v3916
    %vm3918 = vcmp.eq.f32.partialorder %v3886, inf
    %v3919 = vsel %vm3918, %v3886, %v3917
    %vm3920 = vcmp.eq.f32.partialorder %v3886, 0.0
    %v3921 = vand.u32 %v3886, 2147483648
    %v3922 = vsel %vm3920, %v3921, %v3919
    %v3923 = vrsqrt.pop %v3889
    %v3924 = vmul.f32 %v3889, %v3923
    %vm3925 = vcmp.eq.f32.partialorder %v3889, inf
    %v3926 = vsel %vm3925, %v3889, %v3924
    %vm3927 = vcmp.eq.f32.partialorder %v3889, 0.0
    %v3928 = vand.u32 %v3889, 2147483648
    %v3929 = vsel %vm3927, %v3928, %v3926
    %v3930 = vrsqrt.pop %v3892
    %v3931 = vmul.f32 %v3892, %v3930
    %vm3932 = vcmp.eq.f32.partialorder %v3892, inf
    %v3933 = vsel %vm3932, %v3892, %v3931
    %vm3934 = vcmp.eq.f32.partialorder %v3892, 0.0
    %v3935 = vand.u32 %v3892, 2147483648
    %v3936 = vsel %vm3934, %v3935, %v3933
    %v3937 = vrsqrt.pop %v3895
    %v3938 = vmul.f32 %v3895, %v3937
    %vm3939 = vcmp.eq.f32.partialorder %v3895, inf
    %v3940 = vsel %vm3939, %v3895, %v3938
    %vm3941 = vcmp.eq.f32.partialorder %v3895, 0.0
    %v3942 = vand.u32 %v3895, 2147483648
    %v3943 = vsel %vm3941, %v3942, %v3940
    %v3944 = vrsqrt.pop %v3898
    %v3945 = vmul.f32 %v3898, %v3944
    %vm3946 = vcmp.eq.f32.partialorder %v3898, inf
    %v3947 = vsel %vm3946, %v3898, %v3945
    %vm3948 = vcmp.eq.f32.partialorder %v3898, 0.0
    %v3949 = vand.u32 %v3898, 2147483648
    %v3950 = vsel %vm3948, %v3949, %v3947
    %v3951 = vrsqrt.pop %v3901
    %v3952 = vmul.f32 %v3901, %v3951
    %vm3953 = vcmp.eq.f32.partialorder %v3901, inf
    %v3954 = vsel %vm3953, %v3901, %v3952
    %vm3955 = vcmp.eq.f32.partialorder %v3901, 0.0
    %v3956 = vand.u32 %v3901, 2147483648
    %v3957 = vsel %vm3955, %v3956, %v3954
    %v3958 = vsub.f32 %v3908, %v2925
    %v3959 = vsub.f32 %v3915, %v2925
    %v3960 = vsub.f32 %v3922, %v2925
    %v3961 = vsub.f32 %v3929, %v2925
    %v3962 = vsub.f32 %v3936, %v2925
    %v3963 = vsub.f32 %v3943, %v2925
    %v3964 = vsub.f32 %v3950, %v2925
    %v3965 = vsub.f32 %v3957, %v2925
    %v3966 = vmul.f32 %v3958, %v3958
    %v3967 = vmul.f32 %v3959, %v3959
    %v3968 = vmul.f32 %v3960, %v3960
    %v3969 = vmul.f32 %v3961, %v3961
    %v3970 = vmul.f32 %v3962, %v3962
    %v3971 = vmul.f32 %v3963, %v3963
    %v3972 = vmul.f32 %v3964, %v3964
    %v3973 = vmul.f32 %v3965, %v3965
    %v3974 = vsub.f32 0.0, %v3966
    %v3975 = vsub.f32 0.0, %v3967
    %v3976 = vsub.f32 0.0, %v3968
    %v3977 = vsub.f32 0.0, %v3969
    %v3978 = vsub.f32 0.0, %v3970
    %v3979 = vsub.f32 0.0, %v3971
    %v3980 = vsub.f32 0.0, %v3972
    %v3981 = vsub.f32 0.0, %v3973
    %v3982 = vmul.f32 %v3974, 0.5
    %v3983 = vmul.f32 %v3975, 0.5
    %v3984 = vmul.f32 %v3976, 0.5
    %v3985 = vmul.f32 %v3977, 0.5
    %v3986 = vmul.f32 %v3978, 0.5
    %v3987 = vmul.f32 %v3979, 0.5
    %v3988 = vmul.f32 %v3980, 0.5
    %v3989 = vmul.f32 %v3981, 0.5
    %v3990 = vmul.f32 %v3982, 1.442695
    %v3991 = vpow.pop %v3990
    %v3992 = vmul.f32 %v3983, 1.442695
    %v3993 = vpow.pop %v3992
    %v3994 = vmul.f32 %v3984, 1.442695
    %v3995 = vpow.pop %v3994
    %v3996 = vmul.f32 %v3985, 1.442695
    %v3997 = vpow.pop %v3996
    %v3998 = vmul.f32 %v3986, 1.442695
    %v3999 = vpow.pop %v3998
    %v4000 = vmul.f32 %v3987, 1.442695
    %v4001 = vpow.pop %v4000
    %v4002 = vmul.f32 %v3988, 1.442695
    %v4003 = vpow.pop %v4002
    %v4004 = vmul.f32 %v3989, 1.442695
    %v4005 = vpow.pop %v4004
    %4006 = vrot.lane.b32.xlu0 %v855, 6
    %v4007 = vpop.permute.xlu0 %4006
    %4008 = vrot.lane.b32.xlu0 %v860, 6
    %v4009 = vpop.permute.xlu0 %4008
    %4010 = vrot.lane.b32.xlu0 %v865, 6
    %v4011 = vpop.permute.xlu0 %4010
    %4012 = vrot.lane.b32.xlu0 %v870, 6
    %v4013 = vpop.permute.xlu0 %4012
    %4014 = vrot.lane.b32.xlu0 %v875, 6
    %v4015 = vpop.permute.xlu0 %4014
    %4016 = vrot.lane.b32.xlu0 %v880, 6
    %v4017 = vpop.permute.xlu0 %4016
    %4018 = vrot.lane.b32.xlu0 %v885, 6
    %v4019 = vpop.permute.xlu0 %4018
    %4020 = vrot.lane.b32.xlu0 %v890, 6
    %v4021 = vpop.permute.xlu0 %4020
    %v4030 = vsub.f32 %v718, %v4007
    %v4031 = vsub.f32 %v723, %v4009
    %v4032 = vsub.f32 %v728, %v4011
    %v4033 = vsub.f32 %v733, %v4013
    %v4034 = vsub.f32 %v738, %v4015
    %v4035 = vsub.f32 %v743, %v4017
    %v4036 = vsub.f32 %v748, %v4019
    %v4037 = vsub.f32 %v753, %v4021
    %v4038 = vmul.f32 %v4030, %v4030
    %v4039 = vmul.f32 %v4031, %v4031
    %v4040 = vmul.f32 %v4032, %v4032
    %v4041 = vmul.f32 %v4033, %v4033
    %v4042 = vmul.f32 %v4034, %v4034
    %v4043 = vmul.f32 %v4035, %v4035
    %v4044 = vmul.f32 %v4036, %v4036
    %v4045 = vmul.f32 %v4037, %v4037
    %4054 = vrot.lane.b32.xlu0 %v4038, 113
    %v4055 = vpop.permute.xlu0 %4054
    %4056 = vrot.lane.b32.xlu0 %v4039, 113
    %v4057 = vpop.permute.xlu0 %4056
    %4058 = vrot.lane.b32.xlu0 %v4040, 113
    %v4059 = vpop.permute.xlu0 %4058
    %4060 = vrot.lane.b32.xlu0 %v4041, 113
    %v4061 = vpop.permute.xlu0 %4060
    %4062 = vrot.lane.b32.xlu0 %v4042, 113
    %v4063 = vpop.permute.xlu0 %4062
    %4064 = vrot.lane.b32.xlu0 %v4043, 113
    %v4065 = vpop.permute.xlu0 %4064
    %4066 = vrot.lane.b32.xlu0 %v4044, 113
    %v4067 = vpop.permute.xlu0 %4066
    %4068 = vrot.lane.b32.xlu0 %v4045, 113
    %v4069 = vpop.permute.xlu0 %4068
    %v4078 = vsel %vm319, %v4055, 0.0
    %4079 = vadd.xlane.f32.xlu0 %v4078
    %v4080 = vpop.xlane.xlu0 %4079
    %v4081 = vsel %vm319, %v4057, 0.0
    %4082 = vadd.xlane.f32.xlu0 %v4081
    %v4083 = vpop.xlane.xlu0 %4082
    %v4084 = vsel %vm319, %v4059, 0.0
    %4085 = vadd.xlane.f32.xlu0 %v4084
    %v4086 = vpop.xlane.xlu0 %4085
    %v4087 = vsel %vm319, %v4061, 0.0
    %4088 = vadd.xlane.f32.xlu0 %v4087
    %v4089 = vpop.xlane.xlu0 %4088
    %v4090 = vsel %vm319, %v4063, 0.0
    %4091 = vadd.xlane.f32.xlu0 %v4090
    %v4092 = vpop.xlane.xlu0 %4091
    %v4093 = vsel %vm319, %v4065, 0.0
    %4094 = vadd.xlane.f32.xlu0 %v4093
    %v4095 = vpop.xlane.xlu0 %4094
    %v4096 = vsel %vm319, %v4067, 0.0
    %4097 = vadd.xlane.f32.xlu0 %v4096
    %v4098 = vpop.xlane.xlu0 %4097
    %v4099 = vsel %vm319, %v4069, 0.0
    %4100 = vadd.xlane.f32.xlu0 %v4099
    %v4101 = vpop.xlane.xlu0 %4100
    %v4102 = vrsqrt.pop %v4080
    %v4103 = vmul.f32 %v4080, %v4102
    %vm4104 = vcmp.eq.f32.partialorder %v4080, inf
    %v4105 = vsel %vm4104, %v4080, %v4103
    %vm4106 = vcmp.eq.f32.partialorder %v4080, 0.0
    %v4107 = vand.u32 %v4080, 2147483648
    %v4108 = vsel %vm4106, %v4107, %v4105
    %v4109 = vrsqrt.pop %v4083
    %v4110 = vmul.f32 %v4083, %v4109
    %vm4111 = vcmp.eq.f32.partialorder %v4083, inf
    %v4112 = vsel %vm4111, %v4083, %v4110
    %vm4113 = vcmp.eq.f32.partialorder %v4083, 0.0
    %v4114 = vand.u32 %v4083, 2147483648
    %v4115 = vsel %vm4113, %v4114, %v4112
    %v4116 = vrsqrt.pop %v4086
    %v4117 = vmul.f32 %v4086, %v4116
    %vm4118 = vcmp.eq.f32.partialorder %v4086, inf
    %v4119 = vsel %vm4118, %v4086, %v4117
    %vm4120 = vcmp.eq.f32.partialorder %v4086, 0.0
    %v4121 = vand.u32 %v4086, 2147483648
    %v4122 = vsel %vm4120, %v4121, %v4119
    %v4123 = vrsqrt.pop %v4089
    %v4124 = vmul.f32 %v4089, %v4123
    %vm4125 = vcmp.eq.f32.partialorder %v4089, inf
    %v4126 = vsel %vm4125, %v4089, %v4124
    %vm4127 = vcmp.eq.f32.partialorder %v4089, 0.0
    %v4128 = vand.u32 %v4089, 2147483648
    %v4129 = vsel %vm4127, %v4128, %v4126
    %v4130 = vrsqrt.pop %v4092
    %v4131 = vmul.f32 %v4092, %v4130
    %vm4132 = vcmp.eq.f32.partialorder %v4092, inf
    %v4133 = vsel %vm4132, %v4092, %v4131
    %vm4134 = vcmp.eq.f32.partialorder %v4092, 0.0
    %v4135 = vand.u32 %v4092, 2147483648
    %v4136 = vsel %vm4134, %v4135, %v4133
    %v4137 = vrsqrt.pop %v4095
    %v4138 = vmul.f32 %v4095, %v4137
    %vm4139 = vcmp.eq.f32.partialorder %v4095, inf
    %v4140 = vsel %vm4139, %v4095, %v4138
    %vm4141 = vcmp.eq.f32.partialorder %v4095, 0.0
    %v4142 = vand.u32 %v4095, 2147483648
    %v4143 = vsel %vm4141, %v4142, %v4140
    %v4144 = vrsqrt.pop %v4098
    %v4145 = vmul.f32 %v4098, %v4144
    %vm4146 = vcmp.eq.f32.partialorder %v4098, inf
    %v4147 = vsel %vm4146, %v4098, %v4145
    %vm4148 = vcmp.eq.f32.partialorder %v4098, 0.0
    %v4149 = vand.u32 %v4098, 2147483648
    %v4150 = vsel %vm4148, %v4149, %v4147
    %v4151 = vrsqrt.pop %v4101
    %v4152 = vmul.f32 %v4101, %v4151
    %vm4153 = vcmp.eq.f32.partialorder %v4101, inf
    %v4154 = vsel %vm4153, %v4101, %v4152
    %vm4155 = vcmp.eq.f32.partialorder %v4101, 0.0
    %v4156 = vand.u32 %v4101, 2147483648
    %v4157 = vsel %vm4155, %v4156, %v4154
    %v4158 = vsub.f32 %v4108, %v2925
    %v4159 = vsub.f32 %v4115, %v2925
    %v4160 = vsub.f32 %v4122, %v2925
    %v4161 = vsub.f32 %v4129, %v2925
    %v4162 = vsub.f32 %v4136, %v2925
    %v4163 = vsub.f32 %v4143, %v2925
    %v4164 = vsub.f32 %v4150, %v2925
    %v4165 = vsub.f32 %v4157, %v2925
    %v4166 = vmul.f32 %v4158, %v4158
    %v4167 = vmul.f32 %v4159, %v4159
    %v4168 = vmul.f32 %v4160, %v4160
    %v4169 = vmul.f32 %v4161, %v4161
    %v4170 = vmul.f32 %v4162, %v4162
    %v4171 = vmul.f32 %v4163, %v4163
    %v4172 = vmul.f32 %v4164, %v4164
    %v4173 = vmul.f32 %v4165, %v4165
    %v4174 = vsub.f32 0.0, %v4166
    %v4175 = vsub.f32 0.0, %v4167
    %v4176 = vsub.f32 0.0, %v4168
    %v4177 = vsub.f32 0.0, %v4169
    %v4178 = vsub.f32 0.0, %v4170
    %v4179 = vsub.f32 0.0, %v4171
    %v4180 = vsub.f32 0.0, %v4172
    %v4181 = vsub.f32 0.0, %v4173
    %v4182 = vmul.f32 %v4174, 0.5
    %v4183 = vmul.f32 %v4175, 0.5
    %v4184 = vmul.f32 %v4176, 0.5
    %v4185 = vmul.f32 %v4177, 0.5
    %v4186 = vmul.f32 %v4178, 0.5
    %v4187 = vmul.f32 %v4179, 0.5
    %v4188 = vmul.f32 %v4180, 0.5
    %v4189 = vmul.f32 %v4181, 0.5
    %v4190 = vmul.f32 %v4182, 1.442695
    %v4191 = vpow.pop %v4190
    %v4192 = vmul.f32 %v4183, 1.442695
    %v4193 = vpow.pop %v4192
    %v4194 = vmul.f32 %v4184, 1.442695
    %v4195 = vpow.pop %v4194
    %v4196 = vmul.f32 %v4185, 1.442695
    %v4197 = vpow.pop %v4196
    %v4198 = vmul.f32 %v4186, 1.442695
    %v4199 = vpow.pop %v4198
    %v4200 = vmul.f32 %v4187, 1.442695
    %v4201 = vpow.pop %v4200
    %v4202 = vmul.f32 %v4188, 1.442695
    %v4203 = vpow.pop %v4202
    %v4204 = vmul.f32 %v4189, 1.442695
    %v4205 = vpow.pop %v4204
    %4206 = vrot.lane.b32.xlu0 %v3534, 113
    %v4207 = vpop.permute.xlu0 %4206
    %4208 = vrot.lane.b32.xlu0 %v3535, 113
    %v4209 = vpop.permute.xlu0 %4208
    %4210 = vrot.lane.b32.xlu0 %v3536, 113
    %v4211 = vpop.permute.xlu0 %4210
    %4212 = vrot.lane.b32.xlu0 %v3537, 113
    %v4213 = vpop.permute.xlu0 %4212
    %4214 = vrot.lane.b32.xlu0 %v3538, 113
    %v4215 = vpop.permute.xlu0 %4214
    %4216 = vrot.lane.b32.xlu0 %v3539, 113
    %v4217 = vpop.permute.xlu0 %4216
    %4218 = vrot.lane.b32.xlu0 %v3540, 113
    %v4219 = vpop.permute.xlu0 %4218
    %4220 = vrot.lane.b32.xlu0 %v3541, 113
    %v4221 = vpop.permute.xlu0 %4220
    %v4230 = vsel %vm319, %v4207, 0.0
    %4231 = vadd.xlane.f32.xlu0 %v4230
    %v4232 = vpop.xlane.xlu0 %4231
    %v4233 = vsel %vm319, %v4209, 0.0
    %4234 = vadd.xlane.f32.xlu0 %v4233
    %v4235 = vpop.xlane.xlu0 %4234
    %v4236 = vsel %vm319, %v4211, 0.0
    %4237 = vadd.xlane.f32.xlu0 %v4236
    %v4238 = vpop.xlane.xlu0 %4237
    %v4239 = vsel %vm319, %v4213, 0.0
    %4240 = vadd.xlane.f32.xlu0 %v4239
    %v4241 = vpop.xlane.xlu0 %4240
    %v4242 = vsel %vm319, %v4215, 0.0
    %4243 = vadd.xlane.f32.xlu0 %v4242
    %v4244 = vpop.xlane.xlu0 %4243
    %v4245 = vsel %vm319, %v4217, 0.0
    %4246 = vadd.xlane.f32.xlu0 %v4245
    %v4247 = vpop.xlane.xlu0 %4246
    %v4248 = vsel %vm319, %v4219, 0.0
    %4249 = vadd.xlane.f32.xlu0 %v4248
    %v4250 = vpop.xlane.xlu0 %4249
    %v4251 = vsel %vm319, %v4221, 0.0
    %4252 = vadd.xlane.f32.xlu0 %v4251
    %v4253 = vpop.xlane.xlu0 %4252
    %v4254 = vrsqrt.pop %v4232
    %v4255 = vmul.f32 %v4232, %v4254
    %vm4256 = vcmp.eq.f32.partialorder %v4232, inf
    %v4257 = vsel %vm4256, %v4232, %v4255
    %vm4258 = vcmp.eq.f32.partialorder %v4232, 0.0
    %v4259 = vand.u32 %v4232, 2147483648
    %v4260 = vsel %vm4258, %v4259, %v4257
    %v4261 = vrsqrt.pop %v4235
    %v4262 = vmul.f32 %v4235, %v4261
    %vm4263 = vcmp.eq.f32.partialorder %v4235, inf
    %v4264 = vsel %vm4263, %v4235, %v4262
    %vm4265 = vcmp.eq.f32.partialorder %v4235, 0.0
    %v4266 = vand.u32 %v4235, 2147483648
    %v4267 = vsel %vm4265, %v4266, %v4264
    %v4268 = vrsqrt.pop %v4238
    %v4269 = vmul.f32 %v4238, %v4268
    %vm4270 = vcmp.eq.f32.partialorder %v4238, inf
    %v4271 = vsel %vm4270, %v4238, %v4269
    %vm4272 = vcmp.eq.f32.partialorder %v4238, 0.0
    %v4273 = vand.u32 %v4238, 2147483648
    %v4274 = vsel %vm4272, %v4273, %v4271
    %v4275 = vrsqrt.pop %v4241
    %v4276 = vmul.f32 %v4241, %v4275
    %vm4277 = vcmp.eq.f32.partialorder %v4241, inf
    %v4278 = vsel %vm4277, %v4241, %v4276
    %vm4279 = vcmp.eq.f32.partialorder %v4241, 0.0
    %v4280 = vand.u32 %v4241, 2147483648
    %v4281 = vsel %vm4279, %v4280, %v4278
    %v4282 = vrsqrt.pop %v4244
    %v4283 = vmul.f32 %v4244, %v4282
    %vm4284 = vcmp.eq.f32.partialorder %v4244, inf
    %v4285 = vsel %vm4284, %v4244, %v4283
    %vm4286 = vcmp.eq.f32.partialorder %v4244, 0.0
    %v4287 = vand.u32 %v4244, 2147483648
    %v4288 = vsel %vm4286, %v4287, %v4285
    %v4289 = vrsqrt.pop %v4247
    %v4290 = vmul.f32 %v4247, %v4289
    %vm4291 = vcmp.eq.f32.partialorder %v4247, inf
    %v4292 = vsel %vm4291, %v4247, %v4290
    %vm4293 = vcmp.eq.f32.partialorder %v4247, 0.0
    %v4294 = vand.u32 %v4247, 2147483648
    %v4295 = vsel %vm4293, %v4294, %v4292
    %v4296 = vrsqrt.pop %v4250
    %v4297 = vmul.f32 %v4250, %v4296
    %vm4298 = vcmp.eq.f32.partialorder %v4250, inf
    %v4299 = vsel %vm4298, %v4250, %v4297
    %vm4300 = vcmp.eq.f32.partialorder %v4250, 0.0
    %v4301 = vand.u32 %v4250, 2147483648
    %v4302 = vsel %vm4300, %v4301, %v4299
    %v4303 = vrsqrt.pop %v4253
    %v4304 = vmul.f32 %v4253, %v4303
    %vm4305 = vcmp.eq.f32.partialorder %v4253, inf
    %v4306 = vsel %vm4305, %v4253, %v4304
    %vm4307 = vcmp.eq.f32.partialorder %v4253, 0.0
    %v4308 = vand.u32 %v4253, 2147483648
    %v4309 = vsel %vm4307, %v4308, %v4306
    %v4310 = vsub.f32 %v4260, %v2925
    %v4311 = vsub.f32 %v4267, %v2925
    %v4312 = vsub.f32 %v4274, %v2925
    %v4313 = vsub.f32 %v4281, %v2925
    %v4314 = vsub.f32 %v4288, %v2925
    %v4315 = vsub.f32 %v4295, %v2925
    %v4316 = vsub.f32 %v4302, %v2925
    %v4317 = vsub.f32 %v4309, %v2925
    %v4318 = vmul.f32 %v4310, %v4310
    %v4319 = vmul.f32 %v4311, %v4311
    %v4320 = vmul.f32 %v4312, %v4312
    %v4321 = vmul.f32 %v4313, %v4313
    %v4322 = vmul.f32 %v4314, %v4314
    %v4323 = vmul.f32 %v4315, %v4315
    %v4324 = vmul.f32 %v4316, %v4316
    %v4325 = vmul.f32 %v4317, %v4317
    %v4326 = vsub.f32 0.0, %v4318
    %v4327 = vsub.f32 0.0, %v4319
    %v4328 = vsub.f32 0.0, %v4320
    %v4329 = vsub.f32 0.0, %v4321
    %v4330 = vsub.f32 0.0, %v4322
    %v4331 = vsub.f32 0.0, %v4323
    %v4332 = vsub.f32 0.0, %v4324
    %v4333 = vsub.f32 0.0, %v4325
    %v4334 = vmul.f32 %v4326, 0.5
    %v4335 = vmul.f32 %v4327, 0.5
    %v4336 = vmul.f32 %v4328, 0.5
    %v4337 = vmul.f32 %v4329, 0.5
    %v4338 = vmul.f32 %v4330, 0.5
    %v4339 = vmul.f32 %v4331, 0.5
    %v4340 = vmul.f32 %v4332, 0.5
    %v4341 = vmul.f32 %v4333, 0.5
    %v4342 = vmul.f32 %v4334, 1.442695
    %v4343 = vpow.pop %v4342
    %v4344 = vmul.f32 %v4335, 1.442695
    %v4345 = vpow.pop %v4344
    %v4346 = vmul.f32 %v4336, 1.442695
    %v4347 = vpow.pop %v4346
    %v4348 = vmul.f32 %v4337, 1.442695
    %v4349 = vpow.pop %v4348
    %v4350 = vmul.f32 %v4338, 1.442695
    %v4351 = vpow.pop %v4350
    %v4352 = vmul.f32 %v4339, 1.442695
    %v4353 = vpow.pop %v4352
    %v4354 = vmul.f32 %v4340, 1.442695
    %v4355 = vpow.pop %v4354
    %v4356 = vmul.f32 %v4341, 1.442695
    %v4357 = vpow.pop %v4356
    %4358 = vrot.lane.b32.xlu0 %v2934, 113
    %v4359 = vpop.permute.xlu0 %4358
    %4360 = vrot.lane.b32.xlu0 %v2935, 113
    %v4361 = vpop.permute.xlu0 %4360
    %4362 = vrot.lane.b32.xlu0 %v2936, 113
    %v4363 = vpop.permute.xlu0 %4362
    %4364 = vrot.lane.b32.xlu0 %v2937, 113
    %v4365 = vpop.permute.xlu0 %4364
    %4366 = vrot.lane.b32.xlu0 %v2938, 113
    %v4367 = vpop.permute.xlu0 %4366
    %4368 = vrot.lane.b32.xlu0 %v2939, 113
    %v4369 = vpop.permute.xlu0 %4368
    %4370 = vrot.lane.b32.xlu0 %v2940, 113
    %v4371 = vpop.permute.xlu0 %4370
    %4372 = vrot.lane.b32.xlu0 %v2941, 113
    %v4373 = vpop.permute.xlu0 %4372
    %v4382 = vsel %vm319, %v4359, 0.0
    %4383 = vadd.xlane.f32.xlu0 %v4382
    %v4384 = vpop.xlane.xlu0 %4383
    %v4385 = vsel %vm319, %v4361, 0.0
    %4386 = vadd.xlane.f32.xlu0 %v4385
    %v4387 = vpop.xlane.xlu0 %4386
    %v4388 = vsel %vm319, %v4363, 0.0
    %4389 = vadd.xlane.f32.xlu0 %v4388
    %v4390 = vpop.xlane.xlu0 %4389
    %v4391 = vsel %vm319, %v4365, 0.0
    %4392 = vadd.xlane.f32.xlu0 %v4391
    %v4393 = vpop.xlane.xlu0 %4392
    %v4394 = vsel %vm319, %v4367, 0.0
    %4395 = vadd.xlane.f32.xlu0 %v4394
    %v4396 = vpop.xlane.xlu0 %4395
    %v4397 = vsel %vm319, %v4369, 0.0
    %4398 = vadd.xlane.f32.xlu0 %v4397
    %v4399 = vpop.xlane.xlu0 %4398
    %v4400 = vsel %vm319, %v4371, 0.0
    %4401 = vadd.xlane.f32.xlu0 %v4400
    %v4402 = vpop.xlane.xlu0 %4401
    %v4403 = vsel %vm319, %v4373, 0.0
    %4404 = vadd.xlane.f32.xlu0 %v4403
    %v4405 = vpop.xlane.xlu0 %4404
    %v4406 = vrsqrt.pop %v4384
    %v4407 = vmul.f32 %v4384, %v4406
    %vm4408 = vcmp.eq.f32.partialorder %v4384, inf
    %v4409 = vsel %vm4408, %v4384, %v4407
    %vm4410 = vcmp.eq.f32.partialorder %v4384, 0.0
    %v4411 = vand.u32 %v4384, 2147483648
    %v4412 = vsel %vm4410, %v4411, %v4409
    %v4413 = vrsqrt.pop %v4387
    %v4414 = vmul.f32 %v4387, %v4413
    %vm4415 = vcmp.eq.f32.partialorder %v4387, inf
    %v4416 = vsel %vm4415, %v4387, %v4414
    %vm4417 = vcmp.eq.f32.partialorder %v4387, 0.0
    %v4418 = vand.u32 %v4387, 2147483648
    %v4419 = vsel %vm4417, %v4418, %v4416
    %v4420 = vrsqrt.pop %v4390
    %v4421 = vmul.f32 %v4390, %v4420
    %vm4422 = vcmp.eq.f32.partialorder %v4390, inf
    %v4423 = vsel %vm4422, %v4390, %v4421
    %vm4424 = vcmp.eq.f32.partialorder %v4390, 0.0
    %v4425 = vand.u32 %v4390, 2147483648
    %v4426 = vsel %vm4424, %v4425, %v4423
    %v4427 = vrsqrt.pop %v4393
    %v4428 = vmul.f32 %v4393, %v4427
    %vm4429 = vcmp.eq.f32.partialorder %v4393, inf
    %v4430 = vsel %vm4429, %v4393, %v4428
    %vm4431 = vcmp.eq.f32.partialorder %v4393, 0.0
    %v4432 = vand.u32 %v4393, 2147483648
    %v4433 = vsel %vm4431, %v4432, %v4430
    %v4434 = vrsqrt.pop %v4396
    %v4435 = vmul.f32 %v4396, %v4434
    %vm4436 = vcmp.eq.f32.partialorder %v4396, inf
    %v4437 = vsel %vm4436, %v4396, %v4435
    %vm4438 = vcmp.eq.f32.partialorder %v4396, 0.0
    %v4439 = vand.u32 %v4396, 2147483648
    %v4440 = vsel %vm4438, %v4439, %v4437
    %v4441 = vrsqrt.pop %v4399
    %v4442 = vmul.f32 %v4399, %v4441
    %vm4443 = vcmp.eq.f32.partialorder %v4399, inf
    %v4444 = vsel %vm4443, %v4399, %v4442
    %vm4445 = vcmp.eq.f32.partialorder %v4399, 0.0
    %v4446 = vand.u32 %v4399, 2147483648
    %v4447 = vsel %vm4445, %v4446, %v4444
    %v4448 = vrsqrt.pop %v4402
    %v4449 = vmul.f32 %v4402, %v4448
    %vm4450 = vcmp.eq.f32.partialorder %v4402, inf
    %v4451 = vsel %vm4450, %v4402, %v4449
    %vm4452 = vcmp.eq.f32.partialorder %v4402, 0.0
    %v4453 = vand.u32 %v4402, 2147483648
    %v4454 = vsel %vm4452, %v4453, %v4451
    %v4455 = vrsqrt.pop %v4405
    %v4456 = vmul.f32 %v4405, %v4455
    %vm4457 = vcmp.eq.f32.partialorder %v4405, inf
    %v4458 = vsel %vm4457, %v4405, %v4456
    %vm4459 = vcmp.eq.f32.partialorder %v4405, 0.0
    %v4460 = vand.u32 %v4405, 2147483648
    %v4461 = vsel %vm4459, %v4460, %v4458
    %v4462 = vsub.f32 %v4412, %v2925
    %v4463 = vsub.f32 %v4419, %v2925
    %v4464 = vsub.f32 %v4426, %v2925
    %v4465 = vsub.f32 %v4433, %v2925
    %v4466 = vsub.f32 %v4440, %v2925
    %v4467 = vsub.f32 %v4447, %v2925
    %v4468 = vsub.f32 %v4454, %v2925
    %v4469 = vsub.f32 %v4461, %v2925
    %v4470 = vmul.f32 %v4462, %v4462
    %v4471 = vmul.f32 %v4463, %v4463
    %v4472 = vmul.f32 %v4464, %v4464
    %v4473 = vmul.f32 %v4465, %v4465
    %v4474 = vmul.f32 %v4466, %v4466
    %v4475 = vmul.f32 %v4467, %v4467
    %v4476 = vmul.f32 %v4468, %v4468
    %v4477 = vmul.f32 %v4469, %v4469
    %v4478 = vsub.f32 0.0, %v4470
    %v4479 = vsub.f32 0.0, %v4471
    %v4480 = vsub.f32 0.0, %v4472
    %v4481 = vsub.f32 0.0, %v4473
    %v4482 = vsub.f32 0.0, %v4474
    %v4483 = vsub.f32 0.0, %v4475
    %v4484 = vsub.f32 0.0, %v4476
    %v4485 = vsub.f32 0.0, %v4477
    %v4486 = vmul.f32 %v4478, 0.5
    %v4487 = vmul.f32 %v4479, 0.5
    %v4488 = vmul.f32 %v4480, 0.5
    %v4489 = vmul.f32 %v4481, 0.5
    %v4490 = vmul.f32 %v4482, 0.5
    %v4491 = vmul.f32 %v4483, 0.5
    %v4492 = vmul.f32 %v4484, 0.5
    %v4493 = vmul.f32 %v4485, 0.5
    %v4494 = vmul.f32 %v4486, 1.442695
    %v4495 = vpow.pop %v4494
    %v4496 = vmul.f32 %v4487, 1.442695
    %v4497 = vpow.pop %v4496
    %v4498 = vmul.f32 %v4488, 1.442695
    %v4499 = vpow.pop %v4498
    %v4500 = vmul.f32 %v4489, 1.442695
    %v4501 = vpow.pop %v4500
    %v4502 = vmul.f32 %v4490, 1.442695
    %v4503 = vpow.pop %v4502
    %v4504 = vmul.f32 %v4491, 1.442695
    %v4505 = vpow.pop %v4504
    %v4506 = vmul.f32 %v4492, 1.442695
    %v4507 = vpow.pop %v4506
    %v4508 = vmul.f32 %v4493, 1.442695
    %v4509 = vpow.pop %v4508
    %4518 = vrot.lane.b32.xlu0 %v2710, 4
    %v4519 = vpop.permute.xlu0 %4518
    %4520 = vrot.lane.b32.xlu0 %v2715, 4
    %v4521 = vpop.permute.xlu0 %4520
    %4522 = vrot.lane.b32.xlu0 %v2720, 4
    %v4523 = vpop.permute.xlu0 %4522
    %4524 = vrot.lane.b32.xlu0 %v2725, 4
    %v4525 = vpop.permute.xlu0 %4524
    %4526 = vrot.lane.b32.xlu0 %v2730, 4
    %v4527 = vpop.permute.xlu0 %4526
    %4528 = vrot.lane.b32.xlu0 %v2735, 4
    %v4529 = vpop.permute.xlu0 %4528
    %4530 = vrot.lane.b32.xlu0 %v2740, 4
    %v4531 = vpop.permute.xlu0 %4530
    %4532 = vrot.lane.b32.xlu0 %v2745, 4
    %v4533 = vpop.permute.xlu0 %4532
    %4550 = vrot.lane.b32.xlu0 %v2909, 7
    %v4551 = vpop.permute.xlu0 %4550
    %4552 = vrot.lane.b32.xlu0 %v2911, 7
    %v4553 = vpop.permute.xlu0 %4552
    %4554 = vrot.lane.b32.xlu0 %v2913, 7
    %v4555 = vpop.permute.xlu0 %4554
    %4556 = vrot.lane.b32.xlu0 %v2915, 7
    %v4557 = vpop.permute.xlu0 %4556
    %4558 = vrot.lane.b32.xlu0 %v2917, 7
    %v4559 = vpop.permute.xlu0 %4558
    %4560 = vrot.lane.b32.xlu0 %v2919, 7
    %v4561 = vpop.permute.xlu0 %4560
    %4562 = vrot.lane.b32.xlu0 %v2921, 7
    %v4563 = vpop.permute.xlu0 %4562
    %4564 = vrot.lane.b32.xlu0 %v2923, 7
    %v4565 = vpop.permute.xlu0 %4564
    %4582 = vrot.lane.b32.xlu0 %v3087, 9
    %v4583 = vpop.permute.xlu0 %4582
    %4584 = vrot.lane.b32.xlu0 %v3089, 9
    %v4585 = vpop.permute.xlu0 %4584
    %4586 = vrot.lane.b32.xlu0 %v3091, 9
    %v4587 = vpop.permute.xlu0 %4586
    %4588 = vrot.lane.b32.xlu0 %v3093, 9
    %v4589 = vpop.permute.xlu0 %4588
    %4590 = vrot.lane.b32.xlu0 %v3095, 9
    %v4591 = vpop.permute.xlu0 %4590
    %4592 = vrot.lane.b32.xlu0 %v3097, 9
    %v4593 = vpop.permute.xlu0 %4592
    %4594 = vrot.lane.b32.xlu0 %v3099, 9
    %v4595 = vpop.permute.xlu0 %4594
    %4596 = vrot.lane.b32.xlu0 %v3101, 9
    %v4597 = vpop.permute.xlu0 %4596
    %4614 = vrot.lane.b32.xlu0 %v3287, 13
    %v4615 = vpop.permute.xlu0 %4614
    %4616 = vrot.lane.b32.xlu0 %v3289, 13
    %v4617 = vpop.permute.xlu0 %4616
    %4618 = vrot.lane.b32.xlu0 %v3291, 13
    %v4619 = vpop.permute.xlu0 %4618
    %4620 = vrot.lane.b32.xlu0 %v3293, 13
    %v4621 = vpop.permute.xlu0 %4620
    %4622 = vrot.lane.b32.xlu0 %v3295, 13
    %v4623 = vpop.permute.xlu0 %4622
    %4624 = vrot.lane.b32.xlu0 %v3297, 13
    %v4625 = vpop.permute.xlu0 %4624
    %4626 = vrot.lane.b32.xlu0 %v3299, 13
    %v4627 = vpop.permute.xlu0 %4626
    %4628 = vrot.lane.b32.xlu0 %v3301, 13
    %v4629 = vpop.permute.xlu0 %4628
    %4646 = vrot.lane.b32.xlu0 %v3487, 17
    %v4647 = vpop.permute.xlu0 %4646
    %4648 = vrot.lane.b32.xlu0 %v3489, 17
    %v4649 = vpop.permute.xlu0 %4648
    %4650 = vrot.lane.b32.xlu0 %v3491, 17
    %v4651 = vpop.permute.xlu0 %4650
    %4652 = vrot.lane.b32.xlu0 %v3493, 17
    %v4653 = vpop.permute.xlu0 %4652
    %4654 = vrot.lane.b32.xlu0 %v3495, 17
    %v4655 = vpop.permute.xlu0 %4654
    %4656 = vrot.lane.b32.xlu0 %v3497, 17
    %v4657 = vpop.permute.xlu0 %4656
    %4658 = vrot.lane.b32.xlu0 %v3499, 17
    %v4659 = vpop.permute.xlu0 %4658
    %4660 = vrot.lane.b32.xlu0 %v3501, 17
    %v4661 = vpop.permute.xlu0 %4660
    %4678 = vrot.lane.b32.xlu0 %v3687, 21
    %v4679 = vpop.permute.xlu0 %4678
    %4680 = vrot.lane.b32.xlu0 %v3689, 21
    %v4681 = vpop.permute.xlu0 %4680
    %4682 = vrot.lane.b32.xlu0 %v3691, 21
    %v4683 = vpop.permute.xlu0 %4682
    %4684 = vrot.lane.b32.xlu0 %v3693, 21
    %v4685 = vpop.permute.xlu0 %4684
    %4686 = vrot.lane.b32.xlu0 %v3695, 21
    %v4687 = vpop.permute.xlu0 %4686
    %4688 = vrot.lane.b32.xlu0 %v3697, 21
    %v4689 = vpop.permute.xlu0 %4688
    %4690 = vrot.lane.b32.xlu0 %v3699, 21
    %v4691 = vpop.permute.xlu0 %4690
    %4692 = vrot.lane.b32.xlu0 %v3701, 21
    %v4693 = vpop.permute.xlu0 %4692
    %4710 = vrot.lane.b32.xlu0 %v3839, 25
    %v4711 = vpop.permute.xlu0 %4710
    %4712 = vrot.lane.b32.xlu0 %v3841, 25
    %v4713 = vpop.permute.xlu0 %4712
    %4714 = vrot.lane.b32.xlu0 %v3843, 25
    %v4715 = vpop.permute.xlu0 %4714
    %4716 = vrot.lane.b32.xlu0 %v3845, 25
    %v4717 = vpop.permute.xlu0 %4716
    %4718 = vrot.lane.b32.xlu0 %v3847, 25
    %v4719 = vpop.permute.xlu0 %4718
    %4720 = vrot.lane.b32.xlu0 %v3849, 25
    %v4721 = vpop.permute.xlu0 %4720
    %4722 = vrot.lane.b32.xlu0 %v3851, 25
    %v4723 = vpop.permute.xlu0 %4722
    %4724 = vrot.lane.b32.xlu0 %v3853, 25
    %v4725 = vpop.permute.xlu0 %4724
    %4742 = vrot.lane.b32.xlu0 %v3991, 29
    %v4743 = vpop.permute.xlu0 %4742
    %4744 = vrot.lane.b32.xlu0 %v3993, 29
    %v4745 = vpop.permute.xlu0 %4744
    %4746 = vrot.lane.b32.xlu0 %v3995, 29
    %v4747 = vpop.permute.xlu0 %4746
    %4748 = vrot.lane.b32.xlu0 %v3997, 29
    %v4749 = vpop.permute.xlu0 %4748
    %4750 = vrot.lane.b32.xlu0 %v3999, 29
    %v4751 = vpop.permute.xlu0 %4750
    %4752 = vrot.lane.b32.xlu0 %v4001, 29
    %v4753 = vpop.permute.xlu0 %4752
    %4754 = vrot.lane.b32.xlu0 %v4003, 29
    %v4755 = vpop.permute.xlu0 %4754
    %4756 = vrot.lane.b32.xlu0 %v4005, 29
    %v4757 = vpop.permute.xlu0 %4756
    %4774 = vrot.lane.b32.xlu0 %v4191, 33
    %v4775 = vpop.permute.xlu0 %4774
    %4776 = vrot.lane.b32.xlu0 %v4193, 33
    %v4777 = vpop.permute.xlu0 %4776
    %4778 = vrot.lane.b32.xlu0 %v4195, 33
    %v4779 = vpop.permute.xlu0 %4778
    %4780 = vrot.lane.b32.xlu0 %v4197, 33
    %v4781 = vpop.permute.xlu0 %4780
    %4782 = vrot.lane.b32.xlu0 %v4199, 33
    %v4783 = vpop.permute.xlu0 %4782
    %4784 = vrot.lane.b32.xlu0 %v4201, 33
    %v4785 = vpop.permute.xlu0 %4784
    %4786 = vrot.lane.b32.xlu0 %v4203, 33
    %v4787 = vpop.permute.xlu0 %4786
    %4788 = vrot.lane.b32.xlu0 %v4205, 33
    %v4789 = vpop.permute.xlu0 %4788
    %4806 = vrot.lane.b32.xlu0 %v4343, 37
    %v4807 = vpop.permute.xlu0 %4806
    %4808 = vrot.lane.b32.xlu0 %v4345, 37
    %v4809 = vpop.permute.xlu0 %4808
    %4810 = vrot.lane.b32.xlu0 %v4347, 37
    %v4811 = vpop.permute.xlu0 %4810
    %4812 = vrot.lane.b32.xlu0 %v4349, 37
    %v4813 = vpop.permute.xlu0 %4812
    %4814 = vrot.lane.b32.xlu0 %v4351, 37
    %v4815 = vpop.permute.xlu0 %4814
    %4816 = vrot.lane.b32.xlu0 %v4353, 37
    %v4817 = vpop.permute.xlu0 %4816
    %4818 = vrot.lane.b32.xlu0 %v4355, 37
    %v4819 = vpop.permute.xlu0 %4818
    %4820 = vrot.lane.b32.xlu0 %v4357, 37
    %v4821 = vpop.permute.xlu0 %4820
    %4838 = vrot.lane.b32.xlu0 %v4495, 41
    %v4839 = vpop.permute.xlu0 %4838
    %4840 = vrot.lane.b32.xlu0 %v4497, 41
    %v4841 = vpop.permute.xlu0 %4840
    %4842 = vrot.lane.b32.xlu0 %v4499, 41
    %v4843 = vpop.permute.xlu0 %4842
    %4844 = vrot.lane.b32.xlu0 %v4501, 41
    %v4845 = vpop.permute.xlu0 %4844
    %4846 = vrot.lane.b32.xlu0 %v4503, 41
    %v4847 = vpop.permute.xlu0 %4846
    %4848 = vrot.lane.b32.xlu0 %v4505, 41
    %v4849 = vpop.permute.xlu0 %4848
    %4850 = vrot.lane.b32.xlu0 %v4507, 41
    %v4851 = vpop.permute.xlu0 %4850
    %4852 = vrot.lane.b32.xlu0 %v4509, 41
    %v4853 = vpop.permute.xlu0 %4852
    %v4862 = vsel %vm518, %v2444, %v4519
    %v4863 = vsel %vm518, %v2445, %v4521
    %v4864 = vsel %vm518, %v2446, %v4523
    %v4865 = vsel %vm518, %v2447, %v4525
    %v4866 = vsel %vm518, %v2448, %v4527
    %v4867 = vsel %vm518, %v2449, %v4529
    %v4868 = vsel %vm518, %v2450, %v4531
    %v4869 = vsel %vm518, %v2451, %v4533
    %v4870 = vsel %vm527, %v4862, %v4551
    %v4871 = vsel %vm527, %v4863, %v4553
    %v4872 = vsel %vm527, %v4864, %v4555
    %v4873 = vsel %vm527, %v4865, %v4557
    %v4874 = vsel %vm527, %v4866, %v4559
    %v4875 = vsel %vm527, %v4867, %v4561
    %v4876 = vsel %vm527, %v4868, %v4563
    %v4877 = vsel %vm527, %v4869, %v4565
    %v4878 = vsel %vm530, %v4870, %v2845
    %v4879 = vsel %vm530, %v4871, %v2847
    %v4880 = vsel %vm530, %v4872, %v2849
    %v4881 = vsel %vm530, %v4873, %v2851
    %v4882 = vsel %vm530, %v4874, %v2853
    %v4883 = vsel %vm530, %v4875, %v2855
    %v4884 = vsel %vm530, %v4876, %v2857
    %v4885 = vsel %vm530, %v4877, %v2859
    %v4886 = vsel %vm533, %v4878, %v4583
    %v4887 = vsel %vm533, %v4879, %v4585
    %v4888 = vsel %vm533, %v4880, %v4587
    %v4889 = vsel %vm533, %v4881, %v4589
    %v4890 = vsel %vm533, %v4882, %v4591
    %v4891 = vsel %vm533, %v4883, %v4593
    %v4892 = vsel %vm533, %v4884, %v4595
    %v4893 = vsel %vm533, %v4885, %v4597
    %vm4894 = vcmask 105472
    %v4895 = vsel %vm4894, %v4886, %v4615
    %v4896 = vsel %vm4894, %v4887, %v4617
    %v4897 = vsel %vm4894, %v4888, %v4619
    %v4898 = vsel %vm4894, %v4889, %v4621
    %v4899 = vsel %vm4894, %v4890, %v4623
    %v4900 = vsel %vm4894, %v4891, %v4625
    %v4901 = vsel %vm4894, %v4892, %v4627
    %v4902 = vsel %vm4894, %v4893, %v4629
    %vm4903 = vcmask 138240
    %v4904 = vsel %vm4903, %v4895, %v4647
    %v4905 = vsel %vm4903, %v4896, %v4649
    %v4906 = vsel %vm4903, %v4897, %v4651
    %v4907 = vsel %vm4903, %v4898, %v4653
    %v4908 = vsel %vm4903, %v4899, %v4655
    %v4909 = vsel %vm4903, %v4900, %v4657
    %v4910 = vsel %vm4903, %v4901, %v4659
    %v4911 = vsel %vm4903, %v4902, %v4661
    %vm4912 = vcmask 171008
    %v4913 = vsel %vm4912, %v4904, %v4679
    %v4914 = vsel %vm4912, %v4905, %v4681
    %v4915 = vsel %vm4912, %v4906, %v4683
    %v4916 = vsel %vm4912, %v4907, %v4685
    %v4917 = vsel %vm4912, %v4908, %v4687
    %v4918 = vsel %vm4912, %v4909, %v4689
    %v4919 = vsel %vm4912, %v4910, %v4691
    %v4920 = vsel %vm4912, %v4911, %v4693
    %vm4921 = vcmask 203776
    %v4922 = vsel %vm4921, %v4913, %v4711
    %v4923 = vsel %vm4921, %v4914, %v4713
    %v4924 = vsel %vm4921, %v4915, %v4715
    %v4925 = vsel %vm4921, %v4916, %v4717
    %v4926 = vsel %vm4921, %v4917, %v4719
    %v4927 = vsel %vm4921, %v4918, %v4721
    %v4928 = vsel %vm4921, %v4919, %v4723
    %v4929 = vsel %vm4921, %v4920, %v4725
    %vm4930 = vcmask 236544
    %v4931 = vsel %vm4930, %v4922, %v4743
    %v4932 = vsel %vm4930, %v4923, %v4745
    %v4933 = vsel %vm4930, %v4924, %v4747
    %v4934 = vsel %vm4930, %v4925, %v4749
    %v4935 = vsel %vm4930, %v4926, %v4751
    %v4936 = vsel %vm4930, %v4927, %v4753
    %v4937 = vsel %vm4930, %v4928, %v4755
    %v4938 = vsel %vm4930, %v4929, %v4757
    %vm4939 = vcmask 269312
    %v4940 = vsel %vm4939, %v4931, %v4775
    %v4941 = vsel %vm4939, %v4932, %v4777
    %v4942 = vsel %vm4939, %v4933, %v4779
    %v4943 = vsel %vm4939, %v4934, %v4781
    %v4944 = vsel %vm4939, %v4935, %v4783
    %v4945 = vsel %vm4939, %v4936, %v4785
    %v4946 = vsel %vm4939, %v4937, %v4787
    %v4947 = vsel %vm4939, %v4938, %v4789
    %vm4948 = vcmask 302080
    %v4949 = vsel %vm4948, %v4940, %v4807
    %v4950 = vsel %vm4948, %v4941, %v4809
    %v4951 = vsel %vm4948, %v4942, %v4811
    %v4952 = vsel %vm4948, %v4943, %v4813
    %v4953 = vsel %vm4948, %v4944, %v4815
    %v4954 = vsel %vm4948, %v4945, %v4817
    %v4955 = vsel %vm4948, %v4946, %v4819
    %v4956 = vsel %vm4948, %v4947, %v4821
    %vm4957 = vcmask 334848
    %v4958 = vsel %vm4957, %v4949, %v4839
    %v4959 = vsel %vm4957, %v4950, %v4841
    %v4960 = vsel %vm4957, %v4951, %v4843
    %v4961 = vsel %vm4957, %v4952, %v4845
    %v4962 = vsel %vm4957, %v4953, %v4847
    %v4963 = vsel %vm4957, %v4954, %v4849
    %v4964 = vsel %vm4957, %v4955, %v4851
    %v4965 = vsel %vm4957, %v4956, %v4853
    %v4966 = vld [vmem:[%s2 + $0xb8] sm:$0xff]
    %v4967 = vld [vmem:[%s2 + $0xc0] sm:$0xff]
    %v4968 = vld [vmem:[%s2 + $0xc8] sm:$0xff]
    %v4969 = vld [vmem:[%s2 + $0xd0] sm:$0xff]
    %v4970 = vld [vmem:[%s2 + $0xd8] sm:$0xff]
    %v4971 = vld [vmem:[%s2 + $0xe0] sm:$0x1f]
    %v4972 = vld [vmem:[%s2 + $0xe8] sm:$0x1]
    %v4973 = vlaneseq
    %v4974 = vshrl.u32 %v4973, 7
    %v4975 = vsub.s32 0, %v4974
    %v4976 = vrot.slane %v4972, %v4975
    %vm4977 = vcmask 367616
    %v4979 = vsel %vm4977, %v4958, 0
    %v4982 = vsel %vm4977, %v4959, 0
    %v4985 = vsel %vm4977, %v4960, 0
    %v4988 = vsel %vm4977, %v4961, 0
    %v4991 = vsel %vm4977, %v4962, 0
    %v4994 = vsel %vm4977, %v4963, 0
    %v4997 = vsel %vm4977, %v4964, 0
    %v5000 = vsel %vm4977, %v4965, 0
    %vm5002 = vcmask 1044480
    %v5004 = vsel %vm5002, %v4971, 0
    %5006 = vmatprep.subr.mxu0 0.0
    %5007 = vmatpush1.msra.mxu0 0.0
    %5008 = vmatprep.subr.mxu0 0.0
    %5009 = vmatpush1.msra.mxu0 0.0
    %5010 = vmatprep.subr.mxu0 0.0
    %5011 = vmatpush1.msra.mxu0 0.0
    %5012 = vmatprep.subr.mxu0 0.0
    %5013 = vmatpush1.msra.mxu0 0.0
    %5014 = vmatprep.subr.mxu0 0.0
    %5015 = vmatpush1.msra.mxu0 0.0
    %5016 = vmatprep.subr.mxu0 0.0
    %5017 = vmatpush1.msra.mxu0 0.0
    %5018 = vmatprep.subr.mxu0 0.0
    %5019 = vmatpush1.msra.mxu0 0.0
    %5020 = vmatprep.subr.mxu0 0.0
    %5021 = vmatpush1.msra.mxu0 0.0
    %5022 = vmatprep.subr.mxu0 0.0
    %5023 = vmatpush1.msra.mxu0 0.0
    %5024 = vmatprep.subr.mxu0 0.0
    %5025 = vmatpush1.msra.mxu0 0.0
    %5026 = vmatprep.subr.mxu0 0.0
    %5027 = vmatpush1.msra.mxu0 %v5004
    %5028 = vmatprep.subr.mxu0 0.0
    %5029 = vmatpush1.msra.mxu0 %v4970
    %5030 = vmatprep.subr.mxu0 0.0
    %5031 = vmatpush1.msra.mxu0 %v4969
    %5032 = vmatprep.subr.mxu0 0.0
    %5033 = vmatpush1.msra.mxu0 %v4968
    %5034 = vmatprep.subr.mxu0 0.0
    %5035 = vmatpush1.msra.mxu0 %v4967
    %5036 = vmatprep.subr.mxu0 0.0
    %5037 = vmatpush1.msra.mxu0 %v4966
    %5038 = vmatprep.subr.mxu0 0.0
    %5039 = vmatpush2.msra.mxu0 0.0
    %5040 = vmatprep.subr.mxu0 0.0
    %5041 = vmatpush2.msra.mxu0 0.0
    %5042 = vmatprep.subr.mxu0 0.0
    %5043 = vmatpush2.msra.mxu0 0.0
    %5044 = vmatprep.subr.mxu0 0.0
    %5045 = vmatpush2.msra.mxu0 0.0
    %5046 = vmatprep.subr.mxu0 0.0
    %5047 = vmatpush2.msra.mxu0 0.0
    %5048 = vmatprep.subr.mxu0 0.0
    %5049 = vmatpush2.msra.mxu0 0.0
    %5050 = vmatprep.subr.mxu0 0.0
    %5051 = vmatpush2.msra.mxu0 0.0
    %5052 = vmatprep.subr.mxu0 0.0
    %5053 = vmatpush2.msra.mxu0 0.0
    %5054 = vmatprep.subr.mxu0 0.0
    %5055 = vmatpush2.msra.mxu0 0.0
    %5056 = vmatprep.subr.mxu0 0.0
    %5057 = vmatpush2.msra.mxu0 0.0
    %5058 = vmatprep.subr.mxu0 0.0
    %5059 = vmatpush2.msra.mxu0 0.0
    %5060 = vmatprep.subr.mxu0 0.0
    %5061 = vmatpush2.msra.mxu0 0.0
    %5062 = vmatprep.subr.mxu0 0.0
    %5063 = vmatpush2.msra.mxu0 0.0
    %5064 = vmatprep.subr.mxu0 0.0
    %5065 = vmatpush2.msra.mxu0 0.0
    %5066 = vmatprep.subr.mxu0 0.0
    %5067 = vmatpush2.msra.mxu0 0.0
    %5068 = vmatprep.subr.mxu0 0.0
    %5069 = vmatpush2.msra.mxu0 0.0
    %5070 = vmatprep.mubr.f32.mxu0 0.0
    %5071 = vmatmul.mubr.f32.gmra.mxu0 %v4979
    %v5072 = vpop.f32.mrf.mxu0
    %v5073 = vadd.f32 %v4976, %v5072
    %v5074 = vpop.f32.mrf.mxu0
    %5075 = vmatprep.mubr.f32.mxu0 0.0
    %5076 = vmatmul.mubr.f32.gmra.mxu0 %v4982
    %v5077 = vpop.f32.mrf.mxu0
    %v5078 = vadd.f32 %v4976, %v5077
    %v5079 = vpop.f32.mrf.mxu0
    %5080 = vmatprep.mubr.f32.mxu0 0.0
    %5081 = vmatmul.mubr.f32.gmra.mxu0 %v4985
    %v5082 = vpop.f32.mrf.mxu0
    %v5083 = vadd.f32 %v4976, %v5082
    %v5084 = vpop.f32.mrf.mxu0
    %5085 = vmatprep.mubr.f32.mxu0 0.0
    %5086 = vmatmul.mubr.f32.gmra.mxu0 %v4988
    %v5087 = vpop.f32.mrf.mxu0
    %v5088 = vadd.f32 %v4976, %v5087
    %v5089 = vpop.f32.mrf.mxu0
    %5090 = vmatprep.mubr.f32.mxu0 0.0
    %5091 = vmatmul.mubr.f32.gmra.mxu0 %v4991
    %v5092 = vpop.f32.mrf.mxu0
    %v5093 = vadd.f32 %v4976, %v5092
    %v5094 = vpop.f32.mrf.mxu0
    %5095 = vmatprep.mubr.f32.mxu0 0.0
    %5096 = vmatmul.mubr.f32.gmra.mxu0 %v4994
    %v5097 = vpop.f32.mrf.mxu0
    %v5098 = vadd.f32 %v4976, %v5097
    %v5099 = vpop.f32.mrf.mxu0
    %5100 = vmatprep.mubr.f32.mxu0 0.0
    %5101 = vmatmul.mubr.f32.gmra.mxu0 %v4997
    %v5102 = vpop.f32.mrf.mxu0
    %v5103 = vadd.f32 %v4976, %v5102
    %v5104 = vpop.f32.mrf.mxu0
    %5105 = vmatprep.mubr.f32.mxu0 0.0
    %5106 = vmatmul.mubr.f32.gmra.mxu0 %v5000
    %v5107 = vpop.f32.mrf.mxu0
    %v5108 = vadd.f32 %v4976, %v5107
    %v5109 = vpop.f32.mrf.mxu0
    %5110 = vdwg.mxu0
    %v5111 = vld [vmem:[%s2 + $0xf0] sm:$0xff]
    %v5112 = vld [vmem:[%s2 + $0xf8] sm:$0xff]
    %v5113 = vld [vmem:[%s2 + $0x100] sm:$0xff]
    %v5114 = vld [vmem:[%s2 + $0x108] sm:$0xff]
    %vm5115 = vcmask 261120
    %v5117 = vsel %vm5115, %v159, 0
    %v5120 = vsel %vm5115, %v164, 0
    %5122 = vmatprep.subr.mxu0 0.0
    %5123 = vmatpush1.msra.mxu0 0.0
    %5124 = vmatprep.subr.mxu0 0.0
    %5125 = vmatpush1.msra.mxu0 0.0
    %5126 = vmatprep.subr.mxu0 0.0
    %5127 = vmatpush1.msra.mxu0 0.0
    %5128 = vmatprep.subr.mxu0 0.0
    %5129 = vmatpush1.msra.mxu0 0.0
    %5130 = vmatprep.subr.mxu0 0.0
    %5131 = vmatpush1.msra.mxu0 0.0
    %5132 = vmatprep.subr.mxu0 0.0
    %5133 = vmatpush1.msra.mxu0 0.0
    %5134 = vmatprep.subr.mxu0 0.0
    %5135 = vmatpush1.msra.mxu0 0.0
    %5136 = vmatprep.subr.mxu0 0.0
    %5137 = vmatpush1.msra.mxu0 0.0
    %5138 = vmatprep.subr.mxu0 0.0
    %5139 = vmatpush1.msra.mxu0 0.0
    %5140 = vmatprep.subr.mxu0 0.0
    %5141 = vmatpush1.msra.mxu0 0.0
    %5142 = vmatprep.subr.mxu0 0.0
    %5143 = vmatpush1.msra.mxu0 0.0
    %5144 = vmatprep.subr.mxu0 0.0
    %5145 = vmatpush1.msra.mxu0 0.0
    %5146 = vmatprep.subr.mxu0 0.0
    %5147 = vmatpush1.msra.mxu0 %v5114
    %5148 = vmatprep.subr.mxu0 0.0
    %5149 = vmatpush1.msra.mxu0 %v5113
    %5150 = vmatprep.subr.mxu0 0.0
    %5151 = vmatpush1.msra.mxu0 %v5112
    %5152 = vmatprep.subr.mxu0 0.0
    %5153 = vmatpush1.msra.mxu0 %v5111
    %5154 = vmatprep.subr.mxu0 0.0
    %5155 = vmatpush2.msra.mxu0 0.0
    %5156 = vmatprep.subr.mxu0 0.0
    %5157 = vmatpush2.msra.mxu0 0.0
    %5158 = vmatprep.subr.mxu0 0.0
    %5159 = vmatpush2.msra.mxu0 0.0
    %5160 = vmatprep.subr.mxu0 0.0
    %5161 = vmatpush2.msra.mxu0 0.0
    %5162 = vmatprep.subr.mxu0 0.0
    %5163 = vmatpush2.msra.mxu0 0.0
    %5164 = vmatprep.subr.mxu0 0.0
    %5165 = vmatpush2.msra.mxu0 0.0
    %5166 = vmatprep.subr.mxu0 0.0
    %5167 = vmatpush2.msra.mxu0 0.0
    %5168 = vmatprep.subr.mxu0 0.0
    %5169 = vmatpush2.msra.mxu0 0.0
    %5170 = vmatprep.subr.mxu0 0.0
    %5171 = vmatpush2.msra.mxu0 0.0
    %5172 = vmatprep.subr.mxu0 0.0
    %5173 = vmatpush2.msra.mxu0 0.0
    %5174 = vmatprep.subr.mxu0 0.0
    %5175 = vmatpush2.msra.mxu0 0.0
    %5176 = vmatprep.subr.mxu0 0.0
    %5177 = vmatpush2.msra.mxu0 0.0
    %5178 = vmatprep.subr.mxu0 0.0
    %5179 = vmatpush2.msra.mxu0 0.0
    %5180 = vmatprep.subr.mxu0 0.0
    %5181 = vmatpush2.msra.mxu0 0.0
    %5182 = vmatprep.subr.mxu0 0.0
    %5183 = vmatpush2.msra.mxu0 0.0
    %5184 = vmatprep.subr.mxu0 0.0
    %5185 = vmatpush2.msra.mxu0 0.0
    %5186 = vmatprep.mubr.f32.mxu0 0.0
    %5187 = vmatmul.mubr.f32.gmra.mxu0 %v5117
    %v5188 = vpop.f32.mrf.mxu0
    %v5189 = vadd.f32 0.0, %v5188
    %v5190 = vpop.f32.mrf.mxu0
    %5191 = vmatprep.mubr.f32.mxu0 0.0
    %5192 = vmatmul.mubr.f32.gmra.mxu0 %v5120
    %v5193 = vpop.f32.mrf.mxu0
    %v5194 = vadd.f32 0.0, %v5193
    %v5195 = vpop.f32.mrf.mxu0
    %5196 = vdwg.mxu0
    %5199 = vrot.lane.b32.xlu0 %v5189, 96
    %v5200 = vpop.permute.xlu0 %5199
    %5201 = vrot.lane.b32.xlu0 %v5194, 96
    %v5202 = vpop.permute.xlu0 %5201
    %v5205 = vsel %vm5115, %v258, 0
    %v5207 = vsel %vm5115, %v259, 0
    %v5209 = vsel %vm5115, %v260, 0
    %v5211 = vsel %vm5115, %v261, 0
    %v5213 = vsel %vm5115, %v262, 0
    %v5215 = vsel %vm5115, %v263, 0
    %v5217 = vsel %vm5115, %v264, 0
    %v5219 = vsel %vm5115, %v265, 0
    %5221 = vmatprep.subr.mxu0 0.0
    %5222 = vmatpush1.msra.mxu0 0.0
    %5223 = vmatprep.subr.mxu0 0.0
    %5224 = vmatpush1.msra.mxu0 0.0
    %5225 = vmatprep.subr.mxu0 0.0
    %5226 = vmatpush1.msra.mxu0 0.0
    %5227 = vmatprep.subr.mxu0 0.0
    %5228 = vmatpush1.msra.mxu0 0.0
    %5229 = vmatprep.subr.mxu0 0.0
    %5230 = vmatpush1.msra.mxu0 0.0
    %5231 = vmatprep.subr.mxu0 0.0
    %5232 = vmatpush1.msra.mxu0 0.0
    %5233 = vmatprep.subr.mxu0 0.0
    %5234 = vmatpush1.msra.mxu0 0.0
    %5235 = vmatprep.subr.mxu0 0.0
    %5236 = vmatpush1.msra.mxu0 0.0
    %5237 = vmatprep.subr.mxu0 0.0
    %5238 = vmatpush1.msra.mxu0 0.0
    %5239 = vmatprep.subr.mxu0 0.0
    %5240 = vmatpush1.msra.mxu0 0.0
    %5241 = vmatprep.subr.mxu0 0.0
    %5242 = vmatpush1.msra.mxu0 0.0
    %5243 = vmatprep.subr.mxu0 0.0
    %5244 = vmatpush1.msra.mxu0 0.0
    %5245 = vmatprep.subr.mxu0 0.0
    %5246 = vmatpush1.msra.mxu0 %v5202
    %5247 = vmatprep.subr.mxu0 0.0
    %5248 = vmatpush1.msra.mxu0 %v5200
    %5249 = vmatprep.subr.mxu0 0.0
    %5250 = vmatpush1.msra.mxu0 %v5194
    %5251 = vmatprep.subr.mxu0 0.0
    %5252 = vmatpush1.msra.mxu0 %v5189
    %5253 = vmatprep.subr.mxu0 0.0
    %5254 = vmatpush2.msra.mxu0 0.0
    %5255 = vmatprep.subr.mxu0 0.0
    %5256 = vmatpush2.msra.mxu0 0.0
    %5257 = vmatprep.subr.mxu0 0.0
    %5258 = vmatpush2.msra.mxu0 0.0
    %5259 = vmatprep.subr.mxu0 0.0
    %5260 = vmatpush2.msra.mxu0 0.0
    %5261 = vmatprep.subr.mxu0 0.0
    %5262 = vmatpush2.msra.mxu0 0.0
    %5263 = vmatprep.subr.mxu0 0.0
    %5264 = vmatpush2.msra.mxu0 0.0
    %5265 = vmatprep.subr.mxu0 0.0
    %5266 = vmatpush2.msra.mxu0 0.0
    %5267 = vmatprep.subr.mxu0 0.0
    %5268 = vmatpush2.msra.mxu0 0.0
    %5269 = vmatprep.subr.mxu0 0.0
    %5270 = vmatpush2.msra.mxu0 0.0
    %5271 = vmatprep.subr.mxu0 0.0
    %5272 = vmatpush2.msra.mxu0 0.0
    %5273 = vmatprep.subr.mxu0 0.0
    %5274 = vmatpush2.msra.mxu0 0.0
    %5275 = vmatprep.subr.mxu0 0.0
    %5276 = vmatpush2.msra.mxu0 0.0
    %5277 = vmatprep.subr.mxu0 0.0
    %5278 = vmatpush2.msra.mxu0 0.0
    %5279 = vmatprep.subr.mxu0 0.0
    %5280 = vmatpush2.msra.mxu0 0.0
    %5281 = vmatprep.subr.mxu0 0.0
    %5282 = vmatpush2.msra.mxu0 0.0
    %5283 = vmatprep.subr.mxu0 0.0
    %5284 = vmatpush2.msra.mxu0 0.0
    %5285 = vmatprep.mubr.f32.mxu0 0.0
    %5286 = vmatmul.mubr.f32.gmra.mxu0 %v5205
    %v5287 = vpop.f32.mrf.mxu0
    %v5288 = vadd.f32 %v5073, %v5287
    %v5289 = vpop.f32.mrf.mxu0
    %5290 = vmatprep.mubr.f32.mxu0 0.0
    %5291 = vmatmul.mubr.f32.gmra.mxu0 %v5207
    %v5292 = vpop.f32.mrf.mxu0
    %v5293 = vadd.f32 %v5078, %v5292
    %v5294 = vpop.f32.mrf.mxu0
    %5295 = vmatprep.mubr.f32.mxu0 0.0
    %5296 = vmatmul.mubr.f32.gmra.mxu0 %v5209
    %v5297 = vpop.f32.mrf.mxu0
    %v5298 = vadd.f32 %v5083, %v5297
    %v5299 = vpop.f32.mrf.mxu0
    %5300 = vmatprep.mubr.f32.mxu0 0.0
    %5301 = vmatmul.mubr.f32.gmra.mxu0 %v5211
    %v5302 = vpop.f32.mrf.mxu0
    %v5303 = vadd.f32 %v5088, %v5302
    %v5304 = vpop.f32.mrf.mxu0
    %5305 = vmatprep.mubr.f32.mxu0 0.0
    %5306 = vmatmul.mubr.f32.gmra.mxu0 %v5213
    %v5307 = vpop.f32.mrf.mxu0
    %v5308 = vadd.f32 %v5093, %v5307
    %v5309 = vpop.f32.mrf.mxu0
    %5310 = vmatprep.mubr.f32.mxu0 0.0
    %5311 = vmatmul.mubr.f32.gmra.mxu0 %v5215
    %v5312 = vpop.f32.mrf.mxu0
    %v5313 = vadd.f32 %v5098, %v5312
    %v5314 = vpop.f32.mrf.mxu0
    %5315 = vmatprep.mubr.f32.mxu0 0.0
    %5316 = vmatmul.mubr.f32.gmra.mxu0 %v5217
    %v5317 = vpop.f32.mrf.mxu0
    %v5318 = vadd.f32 %v5103, %v5317
    %v5319 = vpop.f32.mrf.mxu0
    %5320 = vmatprep.mubr.f32.mxu0 0.0
    %5321 = vmatmul.mubr.f32.gmra.mxu0 %v5219
    %v5322 = vpop.f32.mrf.mxu0
    %v5323 = vadd.f32 %v5108, %v5322
    %v5324 = vpop.f32.mrf.mxu0
    %5325 = vdwg.mxu0
    %v5326 = vmul.f32 %v5288, 0.5
    %v5327 = vmul.f32 %v5293, 0.5
    %v5328 = vmul.f32 %v5298, 0.5
    %v5329 = vmul.f32 %v5303, 0.5
    %v5330 = vmul.f32 %v5308, 0.5
    %v5331 = vmul.f32 %v5313, 0.5
    %v5332 = vmul.f32 %v5318, 0.5
    %v5333 = vmul.f32 %v5323, 0.5
    %v5334 = vmul.f32 %v5288, 0.70710677
    %v5335 = vmul.f32 %v5293, 0.70710677
    %v5336 = vmul.f32 %v5298, 0.70710677
    %v5337 = vmul.f32 %v5303, 0.70710677
    %v5338 = vmul.f32 %v5308, 0.70710677
    %v5339 = vmul.f32 %v5313, 0.70710677
    %v5340 = vmul.f32 %v5318, 0.70710677
    %v5341 = vmul.f32 %v5323, 0.70710677
    %vm5342 = vcmp.ge.f32.partialorder %v5334, 0.0
    %vm5343 = vcmp.ge.f32.partialorder %v5335, 0.0
    %vm5344 = vcmp.ge.f32.partialorder %v5336, 0.0
    %vm5345 = vcmp.ge.f32.partialorder %v5337, 0.0
    %vm5346 = vcmp.ge.f32.partialorder %v5338, 0.0
    %vm5347 = vcmp.ge.f32.partialorder %v5339, 0.0
    %vm5348 = vcmp.ge.f32.partialorder %v5340, 0.0
    %vm5349 = vcmp.ge.f32.partialorder %v5341, 0.0
    %v5350 = vsel %vm5342, 1.0, -1.0
    %v5351 = vsel %vm5343, 1.0, -1.0
    %v5352 = vsel %vm5344, 1.0, -1.0
    %v5353 = vsel %vm5345, 1.0, -1.0
    %v5354 = vsel %vm5346, 1.0, -1.0
    %v5355 = vsel %vm5347, 1.0, -1.0
    %v5356 = vsel %vm5348, 1.0, -1.0
    %v5357 = vsel %vm5349, 1.0, -1.0
    %v5358 = vand.u32 2147483647, %v5334
    %v5359 = vand.u32 2147483647, %v5335
    %v5360 = vand.u32 2147483647, %v5336
    %v5361 = vand.u32 2147483647, %v5337
    %v5362 = vand.u32 2147483647, %v5338
    %v5363 = vand.u32 2147483647, %v5339
    %v5364 = vand.u32 2147483647, %v5340
    %v5365 = vand.u32 2147483647, %v5341
    %v5366 = vmul.f32 %v5358, 0.3275911
    %v5367 = vmul.f32 %v5359, 0.3275911
    %v5368 = vmul.f32 %v5360, 0.3275911
    %v5369 = vmul.f32 %v5361, 0.3275911
    %v5370 = vmul.f32 %v5362, 0.3275911
    %v5371 = vmul.f32 %v5363, 0.3275911
    %v5372 = vmul.f32 %v5364, 0.3275911
    %v5373 = vmul.f32 %v5365, 0.3275911
    %v5374 = vadd.f32 %v5366, 1.0
    %v5375 = vadd.f32 %v5367, 1.0
    %v5376 = vadd.f32 %v5368, 1.0
    %v5377 = vadd.f32 %v5369, 1.0
    %v5378 = vadd.f32 %v5370, 1.0
    %v5379 = vadd.f32 %v5371, 1.0
    %v5380 = vadd.f32 %v5372, 1.0
    %v5381 = vadd.f32 %v5373, 1.0
    %v5382 = vrcp.pop %v5374
    %v5383 = vrcp.pop %v5375
    %v5384 = vrcp.pop %v5376
    %v5385 = vrcp.pop %v5377
    %v5386 = vrcp.pop %v5378
    %v5387 = vrcp.pop %v5379
    %v5388 = vrcp.pop %v5380
    %v5389 = vrcp.pop %v5381
    %v5390 = vmul.f32 %v5382, 1.0614054
    %v5391 = vmul.f32 %v5383, 1.0614054
    %v5392 = vmul.f32 %v5384, 1.0614054
    %v5393 = vmul.f32 %v5385, 1.0614054
    %v5394 = vmul.f32 %v5386, 1.0614054
    %v5395 = vmul.f32 %v5387, 1.0614054
    %v5396 = vmul.f32 %v5388, 1.0614054
    %v5397 = vmul.f32 %v5389, 1.0614054
    %v5398 = vadd.f32 %v5390, -1.4531521
    %v5399 = vadd.f32 %v5391, -1.4531521
    %v5400 = vadd.f32 %v5392, -1.4531521
    %v5401 = vadd.f32 %v5393, -1.4531521
    %v5402 = vadd.f32 %v5394, -1.4531521
    %v5403 = vadd.f32 %v5395, -1.4531521
    %v5404 = vadd.f32 %v5396, -1.4531521
    %v5405 = vadd.f32 %v5397, -1.4531521
    %v5406 = vmul.f32 %v5398, %v5382
    %v5407 = vmul.f32 %v5399, %v5383
    %v5408 = vmul.f32 %v5400, %v5384
    %v5409 = vmul.f32 %v5401, %v5385
    %v5410 = vmul.f32 %v5402, %v5386
    %v5411 = vmul.f32 %v5403, %v5387
    %v5412 = vmul.f32 %v5404, %v5388
    %v5413 = vmul.f32 %v5405, %v5389
    %v5414 = vadd.f32 %v5406, 1.4214138
    %v5415 = vadd.f32 %v5407, 1.4214138
    %v5416 = vadd.f32 %v5408, 1.4214138
    %v5417 = vadd.f32 %v5409, 1.4214138
    %v5418 = vadd.f32 %v5410, 1.4214138
    %v5419 = vadd.f32 %v5411, 1.4214138
    %v5420 = vadd.f32 %v5412, 1.4214138
    %v5421 = vadd.f32 %v5413, 1.4214138
    %v5422 = vmul.f32 %v5414, %v5382
    %v5423 = vmul.f32 %v5415, %v5383
    %v5424 = vmul.f32 %v5416, %v5384
    %v5425 = vmul.f32 %v5417, %v5385
    %v5426 = vmul.f32 %v5418, %v5386
    %v5427 = vmul.f32 %v5419, %v5387
    %v5428 = vmul.f32 %v5420, %v5388
    %v5429 = vmul.f32 %v5421, %v5389
    %v5430 = vadd.f32 %v5422, -0.28449672
    %v5431 = vadd.f32 %v5423, -0.28449672
    %v5432 = vadd.f32 %v5424, -0.28449672
    %v5433 = vadd.f32 %v5425, -0.28449672
    %v5434 = vadd.f32 %v5426, -0.28449672
    %v5435 = vadd.f32 %v5427, -0.28449672
    %v5436 = vadd.f32 %v5428, -0.28449672
    %v5437 = vadd.f32 %v5429, -0.28449672
    %v5438 = vmul.f32 %v5430, %v5382
    %v5439 = vmul.f32 %v5431, %v5383
    %v5440 = vmul.f32 %v5432, %v5384
    %v5441 = vmul.f32 %v5433, %v5385
    %v5442 = vmul.f32 %v5434, %v5386
    %v5443 = vmul.f32 %v5435, %v5387
    %v5444 = vmul.f32 %v5436, %v5388
    %v5445 = vmul.f32 %v5437, %v5389
    %v5446 = vadd.f32 %v5438, 0.2548296
    %v5447 = vadd.f32 %v5439, 0.2548296
    %v5448 = vadd.f32 %v5440, 0.2548296
    %v5449 = vadd.f32 %v5441, 0.2548296
    %v5450 = vadd.f32 %v5442, 0.2548296
    %v5451 = vadd.f32 %v5443, 0.2548296
    %v5452 = vadd.f32 %v5444, 0.2548296
    %v5453 = vadd.f32 %v5445, 0.2548296
    %v5454 = vmul.f32 %v5446, %v5382
    %v5455 = vmul.f32 %v5447, %v5383
    %v5456 = vmul.f32 %v5448, %v5384
    %v5457 = vmul.f32 %v5449, %v5385
    %v5458 = vmul.f32 %v5450, %v5386
    %v5459 = vmul.f32 %v5451, %v5387
    %v5460 = vmul.f32 %v5452, %v5388
    %v5461 = vmul.f32 %v5453, %v5389
    %v5462 = vsub.f32 0.0, %v5358
    %v5463 = vsub.f32 0.0, %v5359
    %v5464 = vsub.f32 0.0, %v5360
    %v5465 = vsub.f32 0.0, %v5361
    %v5466 = vsub.f32 0.0, %v5362
    %v5467 = vsub.f32 0.0, %v5363
    %v5468 = vsub.f32 0.0, %v5364
    %v5469 = vsub.f32 0.0, %v5365
    %v5470 = vmul.f32 %v5462, %v5358
    %v5471 = vmul.f32 %v5463, %v5359
    %v5472 = vmul.f32 %v5464, %v5360
    %v5473 = vmul.f32 %v5465, %v5361
    %v5474 = vmul.f32 %v5466, %v5362
    %v5475 = vmul.f32 %v5467, %v5363
    %v5476 = vmul.f32 %v5468, %v5364
    %v5477 = vmul.f32 %v5469, %v5365
    %v5478 = vmul.f32 %v5470, 1.442695
    %v5479 = vpow.pop %v5478
    %v5480 = vmul.f32 %v5471, 1.442695
    %v5481 = vpow.pop %v5480
    %v5482 = vmul.f32 %v5472, 1.442695
    %v5483 = vpow.pop %v5482
    %v5484 = vmul.f32 %v5473, 1.442695
    %v5485 = vpow.pop %v5484
    %v5486 = vmul.f32 %v5474, 1.442695
    %v5487 = vpow.pop %v5486
    %v5488 = vmul.f32 %v5475, 1.442695
    %v5489 = vpow.pop %v5488
    %v5490 = vmul.f32 %v5476, 1.442695
    %v5491 = vpow.pop %v5490
    %v5492 = vmul.f32 %v5477, 1.442695
    %v5493 = vpow.pop %v5492
    %v5494 = vmul.f32 %v5454, %v5479
    %v5495 = vmul.f32 %v5455, %v5481
    %v5496 = vmul.f32 %v5456, %v5483
    %v5497 = vmul.f32 %v5457, %v5485
    %v5498 = vmul.f32 %v5458, %v5487
    %v5499 = vmul.f32 %v5459, %v5489
    %v5500 = vmul.f32 %v5460, %v5491
    %v5501 = vmul.f32 %v5461, %v5493
    %v5502 = vsub.f32 1.0, %v5494
    %v5503 = vsub.f32 1.0, %v5495
    %v5504 = vsub.f32 1.0, %v5496
    %v5505 = vsub.f32 1.0, %v5497
    %v5506 = vsub.f32 1.0, %v5498
    %v5507 = vsub.f32 1.0, %v5499
    %v5508 = vsub.f32 1.0, %v5500
    %v5509 = vsub.f32 1.0, %v5501
    %v5510 = vmul.f32 %v5350, %v5502
    %v5511 = vmul.f32 %v5351, %v5503
    %v5512 = vmul.f32 %v5352, %v5504
    %v5513 = vmul.f32 %v5353, %v5505
    %v5514 = vmul.f32 %v5354, %v5506
    %v5515 = vmul.f32 %v5355, %v5507
    %v5516 = vmul.f32 %v5356, %v5508
    %v5517 = vmul.f32 %v5357, %v5509
    %v5518 = vadd.f32 %v5510, 1.0
    %v5519 = vadd.f32 %v5511, 1.0
    %v5520 = vadd.f32 %v5512, 1.0
    %v5521 = vadd.f32 %v5513, 1.0
    %v5522 = vadd.f32 %v5514, 1.0
    %v5523 = vadd.f32 %v5515, 1.0
    %v5524 = vadd.f32 %v5516, 1.0
    %v5525 = vadd.f32 %v5517, 1.0
    %v5526 = vmul.f32 %v5326, %v5518
    %v5527 = vmul.f32 %v5327, %v5519
    %v5528 = vmul.f32 %v5328, %v5520
    %v5529 = vmul.f32 %v5329, %v5521
    %v5530 = vmul.f32 %v5330, %v5522
    %v5531 = vmul.f32 %v5331, %v5523
    %v5532 = vmul.f32 %v5332, %v5524
    %v5533 = vmul.f32 %v5333, %v5525
    %v5534 = vld [vmem:[%s2 + $0x120] sm:$0xff]
    %v5535 = vld [vmem:[%s2 + $0x128] sm:$0xff]
    %v5536 = vld [vmem:[%s2 + $0x130] sm:$0xff]
    %v5537 = vld [vmem:[%s2 + $0x138] sm:$0xff]
    %v5538 = vld [vmem:[%s2 + $0x160] sm:$0x1]
    %v5539 = vlaneseq
    %v5540 = vshrl.u32 %v5539, 7
    %v5541 = vsub.s32 0, %v5540
    %v5542 = vrot.slane %v5538, %v5541
    %v5544 = vsel %vm5115, %v5526, 0
    %v5547 = vsel %vm5115, %v5527, 0
    %v5550 = vsel %vm5115, %v5528, 0
    %v5553 = vsel %vm5115, %v5529, 0
    %v5556 = vsel %vm5115, %v5530, 0
    %v5559 = vsel %vm5115, %v5531, 0
    %v5562 = vsel %vm5115, %v5532, 0
    %v5565 = vsel %vm5115, %v5533, 0
    %5567 = vmatprep.subr.mxu0 0.0
    %5568 = vmatpush1.msra.mxu0 0.0
    %5569 = vmatprep.subr.mxu0 0.0
    %5570 = vmatpush1.msra.mxu0 0.0
    %5571 = vmatprep.subr.mxu0 0.0
    %5572 = vmatpush1.msra.mxu0 0.0
    %5573 = vmatprep.subr.mxu0 0.0
    %5574 = vmatpush1.msra.mxu0 0.0
    %5575 = vmatprep.subr.mxu0 0.0
    %5576 = vmatpush1.msra.mxu0 0.0
    %5577 = vmatprep.subr.mxu0 0.0
    %5578 = vmatpush1.msra.mxu0 0.0
    %5579 = vmatprep.subr.mxu0 0.0
    %5580 = vmatpush1.msra.mxu0 0.0
    %5581 = vmatprep.subr.mxu0 0.0
    %5582 = vmatpush1.msra.mxu0 0.0
    %5583 = vmatprep.subr.mxu0 0.0
    %5584 = vmatpush1.msra.mxu0 0.0
    %5585 = vmatprep.subr.mxu0 0.0
    %5586 = vmatpush1.msra.mxu0 0.0
    %5587 = vmatprep.subr.mxu0 0.0
    %5588 = vmatpush1.msra.mxu0 0.0
    %5589 = vmatprep.subr.mxu0 0.0
    %5590 = vmatpush1.msra.mxu0 0.0
    %5591 = vmatprep.subr.mxu0 0.0
    %5592 = vmatpush1.msra.mxu0 %v5537
    %5593 = vmatprep.subr.mxu0 0.0
    %5594 = vmatpush1.msra.mxu0 %v5536
    %5595 = vmatprep.subr.mxu0 0.0
    %5596 = vmatpush1.msra.mxu0 %v5535
    %5597 = vmatprep.subr.mxu0 0.0
    %5598 = vmatpush1.msra.mxu0 %v5534
    %5599 = vmatprep.subr.mxu0 0.0
    %5600 = vmatpush2.msra.mxu0 0.0
    %5601 = vmatprep.subr.mxu0 0.0
    %5602 = vmatpush2.msra.mxu0 0.0
    %5603 = vmatprep.subr.mxu0 0.0
    %5604 = vmatpush2.msra.mxu0 0.0
    %5605 = vmatprep.subr.mxu0 0.0
    %5606 = vmatpush2.msra.mxu0 0.0
    %5607 = vmatprep.subr.mxu0 0.0
    %5608 = vmatpush2.msra.mxu0 0.0
    %5609 = vmatprep.subr.mxu0 0.0
    %5610 = vmatpush2.msra.mxu0 0.0
    %5611 = vmatprep.subr.mxu0 0.0
    %5612 = vmatpush2.msra.mxu0 0.0
    %5613 = vmatprep.subr.mxu0 0.0
    %5614 = vmatpush2.msra.mxu0 0.0
    %5615 = vmatprep.subr.mxu0 0.0
    %5616 = vmatpush2.msra.mxu0 0.0
    %5617 = vmatprep.subr.mxu0 0.0
    %5618 = vmatpush2.msra.mxu0 0.0
    %5619 = vmatprep.subr.mxu0 0.0
    %5620 = vmatpush2.msra.mxu0 0.0
    %5621 = vmatprep.subr.mxu0 0.0
    %5622 = vmatpush2.msra.mxu0 0.0
    %5623 = vmatprep.subr.mxu0 0.0
    %5624 = vmatpush2.msra.mxu0 0.0
    %5625 = vmatprep.subr.mxu0 0.0
    %5626 = vmatpush2.msra.mxu0 0.0
    %5627 = vmatprep.subr.mxu0 0.0
    %5628 = vmatpush2.msra.mxu0 0.0
    %5629 = vmatprep.subr.mxu0 0.0
    %5630 = vmatpush2.msra.mxu0 0.0
    %5631 = vmatprep.mubr.f32.mxu0 0.0
    %5632 = vmatmul.mubr.f32.gmra.mxu0 %v5544
    %v5633 = vpop.f32.mrf.mxu0
    %v5634 = vadd.f32 %v5542, %v5633
    %v5635 = vpop.f32.mrf.mxu0
    %5636 = vmatprep.mubr.f32.mxu0 0.0
    %5637 = vmatmul.mubr.f32.gmra.mxu0 %v5547
    %v5638 = vpop.f32.mrf.mxu0
    %v5639 = vadd.f32 %v5542, %v5638
    %v5640 = vpop.f32.mrf.mxu0
    %5641 = vmatprep.mubr.f32.mxu0 0.0
    %5642 = vmatmul.mubr.f32.gmra.mxu0 %v5550
    %v5643 = vpop.f32.mrf.mxu0
    %v5644 = vadd.f32 %v5542, %v5643
    %v5645 = vpop.f32.mrf.mxu0
    %5646 = vmatprep.mubr.f32.mxu0 0.0
    %5647 = vmatmul.mubr.f32.gmra.mxu0 %v5553
    %v5648 = vpop.f32.mrf.mxu0
    %v5649 = vadd.f32 %v5542, %v5648
    %v5650 = vpop.f32.mrf.mxu0
    %5651 = vmatprep.mubr.f32.mxu0 0.0
    %5652 = vmatmul.mubr.f32.gmra.mxu0 %v5556
    %v5653 = vpop.f32.mrf.mxu0
    %v5654 = vadd.f32 %v5542, %v5653
    %v5655 = vpop.f32.mrf.mxu0
    %5656 = vmatprep.mubr.f32.mxu0 0.0
    %5657 = vmatmul.mubr.f32.gmra.mxu0 %v5559
    %v5658 = vpop.f32.mrf.mxu0
    %v5659 = vadd.f32 %v5542, %v5658
    %v5660 = vpop.f32.mrf.mxu0
    %5661 = vmatprep.mubr.f32.mxu0 0.0
    %5662 = vmatmul.mubr.f32.gmra.mxu0 %v5562
    %v5663 = vpop.f32.mrf.mxu0
    %v5664 = vadd.f32 %v5542, %v5663
    %v5665 = vpop.f32.mrf.mxu0
    %5666 = vmatprep.mubr.f32.mxu0 0.0
    %5667 = vmatmul.mubr.f32.gmra.mxu0 %v5565
    %v5668 = vpop.f32.mrf.mxu0
    %v5669 = vadd.f32 %v5542, %v5668
    %v5670 = vpop.f32.mrf.mxu0
    %5671 = vdwg.mxu0
    %v5672 = vmul.f32 %v5634, 0.5
    %v5673 = vmul.f32 %v5639, 0.5
    %v5674 = vmul.f32 %v5644, 0.5
    %v5675 = vmul.f32 %v5649, 0.5
    %v5676 = vmul.f32 %v5654, 0.5
    %v5677 = vmul.f32 %v5659, 0.5
    %v5678 = vmul.f32 %v5664, 0.5
    %v5679 = vmul.f32 %v5669, 0.5
    %v5680 = vmul.f32 %v5634, 0.70710677
    %v5681 = vmul.f32 %v5639, 0.70710677
    %v5682 = vmul.f32 %v5644, 0.70710677
    %v5683 = vmul.f32 %v5649, 0.70710677
    %v5684 = vmul.f32 %v5654, 0.70710677
    %v5685 = vmul.f32 %v5659, 0.70710677
    %v5686 = vmul.f32 %v5664, 0.70710677
    %v5687 = vmul.f32 %v5669, 0.70710677
    %vm5688 = vcmp.ge.f32.partialorder %v5680, 0.0
    %vm5689 = vcmp.ge.f32.partialorder %v5681, 0.0
    %vm5690 = vcmp.ge.f32.partialorder %v5682, 0.0
    %vm5691 = vcmp.ge.f32.partialorder %v5683, 0.0
    %vm5692 = vcmp.ge.f32.partialorder %v5684, 0.0
    %vm5693 = vcmp.ge.f32.partialorder %v5685, 0.0
    %vm5694 = vcmp.ge.f32.partialorder %v5686, 0.0
    %vm5695 = vcmp.ge.f32.partialorder %v5687, 0.0
    %v5696 = vsel %vm5688, 1.0, -1.0
    %v5697 = vsel %vm5689, 1.0, -1.0
    %v5698 = vsel %vm5690, 1.0, -1.0
    %v5699 = vsel %vm5691, 1.0, -1.0
    %v5700 = vsel %vm5692, 1.0, -1.0
    %v5701 = vsel %vm5693, 1.0, -1.0
    %v5702 = vsel %vm5694, 1.0, -1.0
    %v5703 = vsel %vm5695, 1.0, -1.0
    %v5704 = vand.u32 2147483647, %v5680
    %v5705 = vand.u32 2147483647, %v5681
    %v5706 = vand.u32 2147483647, %v5682
    %v5707 = vand.u32 2147483647, %v5683
    %v5708 = vand.u32 2147483647, %v5684
    %v5709 = vand.u32 2147483647, %v5685
    %v5710 = vand.u32 2147483647, %v5686
    %v5711 = vand.u32 2147483647, %v5687
    %v5712 = vmul.f32 %v5704, 0.3275911
    %v5713 = vmul.f32 %v5705, 0.3275911
    %v5714 = vmul.f32 %v5706, 0.3275911
    %v5715 = vmul.f32 %v5707, 0.3275911
    %v5716 = vmul.f32 %v5708, 0.3275911
    %v5717 = vmul.f32 %v5709, 0.3275911
    %v5718 = vmul.f32 %v5710, 0.3275911
    %v5719 = vmul.f32 %v5711, 0.3275911
    %v5720 = vadd.f32 %v5712, 1.0
    %v5721 = vadd.f32 %v5713, 1.0
    %v5722 = vadd.f32 %v5714, 1.0
    %v5723 = vadd.f32 %v5715, 1.0
    %v5724 = vadd.f32 %v5716, 1.0
    %v5725 = vadd.f32 %v5717, 1.0
    %v5726 = vadd.f32 %v5718, 1.0
    %v5727 = vadd.f32 %v5719, 1.0
    %v5728 = vrcp.pop %v5720
    %v5729 = vrcp.pop %v5721
    %v5730 = vrcp.pop %v5722
    %v5731 = vrcp.pop %v5723
    %v5732 = vrcp.pop %v5724
    %v5733 = vrcp.pop %v5725
    %v5734 = vrcp.pop %v5726
    %v5735 = vrcp.pop %v5727
    %v5736 = vmul.f32 %v5728, 1.0614054
    %v5737 = vmul.f32 %v5729, 1.0614054
    %v5738 = vmul.f32 %v5730, 1.0614054
    %v5739 = vmul.f32 %v5731, 1.0614054
    %v5740 = vmul.f32 %v5732, 1.0614054
    %v5741 = vmul.f32 %v5733, 1.0614054
    %v5742 = vmul.f32 %v5734, 1.0614054
    %v5743 = vmul.f32 %v5735, 1.0614054
    %v5744 = vadd.f32 %v5736, -1.4531521
    %v5745 = vadd.f32 %v5737, -1.4531521
    %v5746 = vadd.f32 %v5738, -1.4531521
    %v5747 = vadd.f32 %v5739, -1.4531521
    %v5748 = vadd.f32 %v5740, -1.4531521
    %v5749 = vadd.f32 %v5741, -1.4531521
    %v5750 = vadd.f32 %v5742, -1.4531521
    %v5751 = vadd.f32 %v5743, -1.4531521
    %v5752 = vmul.f32 %v5744, %v5728
    %v5753 = vmul.f32 %v5745, %v5729
    %v5754 = vmul.f32 %v5746, %v5730
    %v5755 = vmul.f32 %v5747, %v5731
    %v5756 = vmul.f32 %v5748, %v5732
    %v5757 = vmul.f32 %v5749, %v5733
    %v5758 = vmul.f32 %v5750, %v5734
    %v5759 = vmul.f32 %v5751, %v5735
    %v5760 = vadd.f32 %v5752, 1.4214138
    %v5761 = vadd.f32 %v5753, 1.4214138
    %v5762 = vadd.f32 %v5754, 1.4214138
    %v5763 = vadd.f32 %v5755, 1.4214138
    %v5764 = vadd.f32 %v5756, 1.4214138
    %v5765 = vadd.f32 %v5757, 1.4214138
    %v5766 = vadd.f32 %v5758, 1.4214138
    %v5767 = vadd.f32 %v5759, 1.4214138
    %v5768 = vmul.f32 %v5760, %v5728
    %v5769 = vmul.f32 %v5761, %v5729
    %v5770 = vmul.f32 %v5762, %v5730
    %v5771 = vmul.f32 %v5763, %v5731
    %v5772 = vmul.f32 %v5764, %v5732
    %v5773 = vmul.f32 %v5765, %v5733
    %v5774 = vmul.f32 %v5766, %v5734
    %v5775 = vmul.f32 %v5767, %v5735
    %v5776 = vadd.f32 %v5768, -0.28449672
    %v5777 = vadd.f32 %v5769, -0.28449672
    %v5778 = vadd.f32 %v5770, -0.28449672
    %v5779 = vadd.f32 %v5771, -0.28449672
    %v5780 = vadd.f32 %v5772, -0.28449672
    %v5781 = vadd.f32 %v5773, -0.28449672
    %v5782 = vadd.f32 %v5774, -0.28449672
    %v5783 = vadd.f32 %v5775, -0.28449672
    %v5784 = vmul.f32 %v5776, %v5728
    %v5785 = vmul.f32 %v5777, %v5729
    %v5786 = vmul.f32 %v5778, %v5730
    %v5787 = vmul.f32 %v5779, %v5731
    %v5788 = vmul.f32 %v5780, %v5732
    %v5789 = vmul.f32 %v5781, %v5733
    %v5790 = vmul.f32 %v5782, %v5734
    %v5791 = vmul.f32 %v5783, %v5735
    %v5792 = vadd.f32 %v5784, 0.2548296
    %v5793 = vadd.f32 %v5785, 0.2548296
    %v5794 = vadd.f32 %v5786, 0.2548296
    %v5795 = vadd.f32 %v5787, 0.2548296
    %v5796 = vadd.f32 %v5788, 0.2548296
    %v5797 = vadd.f32 %v5789, 0.2548296
    %v5798 = vadd.f32 %v5790, 0.2548296
    %v5799 = vadd.f32 %v5791, 0.2548296
    %v5800 = vmul.f32 %v5792, %v5728
    %v5801 = vmul.f32 %v5793, %v5729
    %v5802 = vmul.f32 %v5794, %v5730
    %v5803 = vmul.f32 %v5795, %v5731
    %v5804 = vmul.f32 %v5796, %v5732
    %v5805 = vmul.f32 %v5797, %v5733
    %v5806 = vmul.f32 %v5798, %v5734
    %v5807 = vmul.f32 %v5799, %v5735
    %v5808 = vsub.f32 0.0, %v5704
    %v5809 = vsub.f32 0.0, %v5705
    %v5810 = vsub.f32 0.0, %v5706
    %v5811 = vsub.f32 0.0, %v5707
    %v5812 = vsub.f32 0.0, %v5708
    %v5813 = vsub.f32 0.0, %v5709
    %v5814 = vsub.f32 0.0, %v5710
    %v5815 = vsub.f32 0.0, %v5711
    %v5816 = vmul.f32 %v5808, %v5704
    %v5817 = vmul.f32 %v5809, %v5705
    %v5818 = vmul.f32 %v5810, %v5706
    %v5819 = vmul.f32 %v5811, %v5707
    %v5820 = vmul.f32 %v5812, %v5708
    %v5821 = vmul.f32 %v5813, %v5709
    %v5822 = vmul.f32 %v5814, %v5710
    %v5823 = vmul.f32 %v5815, %v5711
    %v5824 = vmul.f32 %v5816, 1.442695
    %v5825 = vpow.pop %v5824
    %v5826 = vmul.f32 %v5817, 1.442695
    %v5827 = vpow.pop %v5826
    %v5828 = vmul.f32 %v5818, 1.442695
    %v5829 = vpow.pop %v5828
    %v5830 = vmul.f32 %v5819, 1.442695
    %v5831 = vpow.pop %v5830
    %v5832 = vmul.f32 %v5820, 1.442695
    %v5833 = vpow.pop %v5832
    %v5834 = vmul.f32 %v5821, 1.442695
    %v5835 = vpow.pop %v5834
    %v5836 = vmul.f32 %v5822, 1.442695
    %v5837 = vpow.pop %v5836
    %v5838 = vmul.f32 %v5823, 1.442695
    %v5839 = vpow.pop %v5838
    %v5840 = vmul.f32 %v5800, %v5825
    %v5841 = vmul.f32 %v5801, %v5827
    %v5842 = vmul.f32 %v5802, %v5829
    %v5843 = vmul.f32 %v5803, %v5831
    %v5844 = vmul.f32 %v5804, %v5833
    %v5845 = vmul.f32 %v5805, %v5835
    %v5846 = vmul.f32 %v5806, %v5837
    %v5847 = vmul.f32 %v5807, %v5839
    %v5848 = vsub.f32 1.0, %v5840
    %v5849 = vsub.f32 1.0, %v5841
    %v5850 = vsub.f32 1.0, %v5842
    %v5851 = vsub.f32 1.0, %v5843
    %v5852 = vsub.f32 1.0, %v5844
    %v5853 = vsub.f32 1.0, %v5845
    %v5854 = vsub.f32 1.0, %v5846
    %v5855 = vsub.f32 1.0, %v5847
    %v5856 = vmul.f32 %v5696, %v5848
    %v5857 = vmul.f32 %v5697, %v5849
    %v5858 = vmul.f32 %v5698, %v5850
    %v5859 = vmul.f32 %v5699, %v5851
    %v5860 = vmul.f32 %v5700, %v5852
    %v5861 = vmul.f32 %v5701, %v5853
    %v5862 = vmul.f32 %v5702, %v5854
    %v5863 = vmul.f32 %v5703, %v5855
    %v5864 = vadd.f32 %v5856, 1.0
    %v5865 = vadd.f32 %v5857, 1.0
    %v5866 = vadd.f32 %v5858, 1.0
    %v5867 = vadd.f32 %v5859, 1.0
    %v5868 = vadd.f32 %v5860, 1.0
    %v5869 = vadd.f32 %v5861, 1.0
    %v5870 = vadd.f32 %v5862, 1.0
    %v5871 = vadd.f32 %v5863, 1.0
    %v5872 = vmul.f32 %v5672, %v5864
    %v5873 = vmul.f32 %v5673, %v5865
    %v5874 = vmul.f32 %v5674, %v5866
    %v5875 = vmul.f32 %v5675, %v5867
    %v5876 = vmul.f32 %v5676, %v5868
    %v5877 = vmul.f32 %v5677, %v5869
    %v5878 = vmul.f32 %v5678, %v5870
    %v5879 = vmul.f32 %v5679, %v5871
    %v5880 = vld [vmem:[%s2 + $0x140] sm:$0xff]
    %v5881 = vld [vmem:[%s2 + $0x148] sm:$0xff]
    %v5882 = vld [vmem:[%s2 + $0x150] sm:$0xff]
    %v5883 = vld [vmem:[%s2 + $0x158] sm:$0xff]
    %v5884 = vld [vmem:[%s2 + $0x168] sm:$0x1]
    %v5885 = vlaneseq
    %v5886 = vshrl.u32 %v5885, 7
    %v5887 = vsub.s32 0, %v5886
    %v5888 = vrot.slane %v5884, %v5887
    %v5890 = vsel %vm5115, %v5872, 0
    %v5893 = vsel %vm5115, %v5873, 0
    %v5896 = vsel %vm5115, %v5874, 0
    %v5899 = vsel %vm5115, %v5875, 0
    %v5902 = vsel %vm5115, %v5876, 0
    %v5905 = vsel %vm5115, %v5877, 0
    %v5908 = vsel %vm5115, %v5878, 0
    %v5911 = vsel %vm5115, %v5879, 0
    %5913 = vmatprep.subr.mxu0 0.0
    %5914 = vmatpush1.msra.mxu0 0.0
    %5915 = vmatprep.subr.mxu0 0.0
    %5916 = vmatpush1.msra.mxu0 0.0
    %5917 = vmatprep.subr.mxu0 0.0
    %5918 = vmatpush1.msra.mxu0 0.0
    %5919 = vmatprep.subr.mxu0 0.0
    %5920 = vmatpush1.msra.mxu0 0.0
    %5921 = vmatprep.subr.mxu0 0.0
    %5922 = vmatpush1.msra.mxu0 0.0
    %5923 = vmatprep.subr.mxu0 0.0
    %5924 = vmatpush1.msra.mxu0 0.0
    %5925 = vmatprep.subr.mxu0 0.0
    %5926 = vmatpush1.msra.mxu0 0.0
    %5927 = vmatprep.subr.mxu0 0.0
    %5928 = vmatpush1.msra.mxu0 0.0
    %5929 = vmatprep.subr.mxu0 0.0
    %5930 = vmatpush1.msra.mxu0 0.0
    %5931 = vmatprep.subr.mxu0 0.0
    %5932 = vmatpush1.msra.mxu0 0.0
    %5933 = vmatprep.subr.mxu0 0.0
    %5934 = vmatpush1.msra.mxu0 0.0
    %5935 = vmatprep.subr.mxu0 0.0
    %5936 = vmatpush1.msra.mxu0 0.0
    %5937 = vmatprep.subr.mxu0 0.0
    %5938 = vmatpush1.msra.mxu0 %v5883
    %5939 = vmatprep.subr.mxu0 0.0
    %5940 = vmatpush1.msra.mxu0 %v5882
    %5941 = vmatprep.subr.mxu0 0.0
    %5942 = vmatpush1.msra.mxu0 %v5881
    %5943 = vmatprep.subr.mxu0 0.0
    %5944 = vmatpush1.msra.mxu0 %v5880
    %5945 = vmatprep.subr.mxu0 0.0
    %5946 = vmatpush2.msra.mxu0 0.0
    %5947 = vmatprep.subr.mxu0 0.0
    %5948 = vmatpush2.msra.mxu0 0.0
    %5949 = vmatprep.subr.mxu0 0.0
    %5950 = vmatpush2.msra.mxu0 0.0
    %5951 = vmatprep.subr.mxu0 0.0
    %5952 = vmatpush2.msra.mxu0 0.0
    %5953 = vmatprep.subr.mxu0 0.0
    %5954 = vmatpush2.msra.mxu0 0.0
    %5955 = vmatprep.subr.mxu0 0.0
    %5956 = vmatpush2.msra.mxu0 0.0
    %5957 = vmatprep.subr.mxu0 0.0
    %5958 = vmatpush2.msra.mxu0 0.0
    %5959 = vmatprep.subr.mxu0 0.0
    %5960 = vmatpush2.msra.mxu0 0.0
    %5961 = vmatprep.subr.mxu0 0.0
    %5962 = vmatpush2.msra.mxu0 0.0
    %5963 = vmatprep.subr.mxu0 0.0
    %5964 = vmatpush2.msra.mxu0 0.0
    %5965 = vmatprep.subr.mxu0 0.0
    %5966 = vmatpush2.msra.mxu0 0.0
    %5967 = vmatprep.subr.mxu0 0.0
    %5968 = vmatpush2.msra.mxu0 0.0
    %5969 = vmatprep.subr.mxu0 0.0
    %5970 = vmatpush2.msra.mxu0 0.0
    %5971 = vmatprep.subr.mxu0 0.0
    %5972 = vmatpush2.msra.mxu0 0.0
    %5973 = vmatprep.subr.mxu0 0.0
    %5974 = vmatpush2.msra.mxu0 0.0
    %5975 = vmatprep.subr.mxu0 0.0
    %5976 = vmatpush2.msra.mxu0 0.0
    %5977 = vmatprep.mubr.f32.mxu0 0.0
    %5978 = vmatmul.mubr.f32.gmra.mxu0 %v5890
    %v5979 = vpop.f32.mrf.mxu0
    %v5980 = vadd.f32 %v5888, %v5979
    %v5981 = vpop.f32.mrf.mxu0
    %5982 = vmatprep.mubr.f32.mxu0 0.0
    %5983 = vmatmul.mubr.f32.gmra.mxu0 %v5893
    %v5984 = vpop.f32.mrf.mxu0
    %v5985 = vadd.f32 %v5888, %v5984
    %v5986 = vpop.f32.mrf.mxu0
    %5987 = vmatprep.mubr.f32.mxu0 0.0
    %5988 = vmatmul.mubr.f32.gmra.mxu0 %v5896
    %v5989 = vpop.f32.mrf.mxu0
    %v5990 = vadd.f32 %v5888, %v5989
    %v5991 = vpop.f32.mrf.mxu0
    %5992 = vmatprep.mubr.f32.mxu0 0.0
    %5993 = vmatmul.mubr.f32.gmra.mxu0 %v5899
    %v5994 = vpop.f32.mrf.mxu0
    %v5995 = vadd.f32 %v5888, %v5994
    %v5996 = vpop.f32.mrf.mxu0
    %5997 = vmatprep.mubr.f32.mxu0 0.0
    %5998 = vmatmul.mubr.f32.gmra.mxu0 %v5902
    %v5999 = vpop.f32.mrf.mxu0
    %v6000 = vadd.f32 %v5888, %v5999
    %v6001 = vpop.f32.mrf.mxu0
    %6002 = vmatprep.mubr.f32.mxu0 0.0
    %6003 = vmatmul.mubr.f32.gmra.mxu0 %v5905
    %v6004 = vpop.f32.mrf.mxu0
    %v6005 = vadd.f32 %v5888, %v6004
    %v6006 = vpop.f32.mrf.mxu0
    %6007 = vmatprep.mubr.f32.mxu0 0.0
    %6008 = vmatmul.mubr.f32.gmra.mxu0 %v5908
    %v6009 = vpop.f32.mrf.mxu0
    %v6010 = vadd.f32 %v5888, %v6009
    %v6011 = vpop.f32.mrf.mxu0
    %6012 = vmatprep.mubr.f32.mxu0 0.0
    %6013 = vmatmul.mubr.f32.gmra.mxu0 %v5911
    %v6014 = vpop.f32.mrf.mxu0
    %v6015 = vadd.f32 %v5888, %v6014
    %v6016 = vpop.f32.mrf.mxu0
    %6017 = vdwg.mxu0
    %6018 = vxpose.xlu0.b32.start [1/16] %v291, 128
    %6019 = vxpose.xlu0.b32.cont [2/16] %v292, 128
    %6020 = vxpose.xlu0.b32.cont [3/16] %v293, 128
    %6021 = vxpose.xlu0.b32.cont [4/16] %v294, 128
    %6022 = vxpose.xlu0.b32.cont [5/16] %v295, 128
    %6023 = vxpose.xlu0.b32.cont [6/16] %v296, 128
    %6024 = vxpose.xlu0.b32.cont [7/16] %v297, 128
    %6025 = vxpose.xlu0.b32.cont [8/16] %v298, 128
    %6026 = vxpose.xlu0.b32.cont [9/16] 0.0, 128
    %6027 = vxpose.xlu0.b32.cont [10/16] 0.0, 128
    %6028 = vxpose.xlu0.b32.cont [11/16] 0.0, 128
    %6029 = vxpose.xlu0.b32.cont [12/16] 0.0, 128
    %6030 = vxpose.xlu0.b32.cont [13/16] 0.0, 128
    %6031 = vxpose.xlu0.b32.cont [14/16] 0.0, 128
    %6032 = vxpose.xlu0.b32.cont [15/16] 0.0, 128
    %6033 = vxpose.xlu0.b32.end [16/16] 0.0, 128
    %v6034 = vpop.trf.xlu0
    %v6035 = vpop.trf.xlu0
    %v6036 = vpop.trf.xlu0
    %v6037 = vpop.trf.xlu0
    %v6038 = vpop.trf.xlu0
    %v6039 = vpop.trf.xlu0
    %v6040 = vpop.trf.xlu0
    %v6041 = vpop.trf.xlu0
    %v6042 = vpop.trf.xlu0
    %v6043 = vpop.trf.xlu0
    %v6044 = vpop.trf.xlu0
    %v6045 = vpop.trf.xlu0
    %v6046 = vpop.trf.xlu0
    %v6047 = vpop.trf.xlu0
    %v6048 = vpop.trf.xlu0
    %v6049 = vpop.trf.xlu0
    %vm6050 = vcmask 523264
    %v6052 = vsel %vm6050, %v6034, 0
    %v6055 = vsel %vm6050, %v6035, 0
    %6057 = vmatprep.subr.mxu0 0.0
    %6058 = vmatpush1.msra.mxu0 0.0
    %6059 = vmatprep.subr.mxu0 0.0
    %6060 = vmatpush1.msra.mxu0 0.0
    %6061 = vmatprep.subr.mxu0 0.0
    %6062 = vmatpush1.msra.mxu0 0.0
    %6063 = vmatprep.subr.mxu0 0.0
    %6064 = vmatpush1.msra.mxu0 0.0
    %6065 = vmatprep.subr.mxu0 0.0
    %6066 = vmatpush1.msra.mxu0 0.0
    %6067 = vmatprep.subr.mxu0 0.0
    %6068 = vmatpush1.msra.mxu0 0.0
    %6069 = vmatprep.subr.mxu0 0.0
    %6070 = vmatpush1.msra.mxu0 0.0
    %6071 = vmatprep.subr.mxu0 0.0
    %6072 = vmatpush1.msra.mxu0 0.0
    %6073 = vmatprep.subr.mxu0 0.0
    %6074 = vmatpush1.msra.mxu0 %v6015
    %6075 = vmatprep.subr.mxu0 0.0
    %6076 = vmatpush1.msra.mxu0 %v6010
    %6077 = vmatprep.subr.mxu0 0.0
    %6078 = vmatpush1.msra.mxu0 %v6005
    %6079 = vmatprep.subr.mxu0 0.0
    %6080 = vmatpush1.msra.mxu0 %v6000
    %6081 = vmatprep.subr.mxu0 0.0
    %6082 = vmatpush1.msra.mxu0 %v5995
    %6083 = vmatprep.subr.mxu0 0.0
    %6084 = vmatpush1.msra.mxu0 %v5990
    %6085 = vmatprep.subr.mxu0 0.0
    %6086 = vmatpush1.msra.mxu0 %v5985
    %6087 = vmatprep.subr.mxu0 0.0
    %6088 = vmatpush1.msra.mxu0 %v5980
    %6089 = vmatprep.subr.mxu0 0.0
    %6090 = vmatpush2.msra.mxu0 0.0
    %6091 = vmatprep.subr.mxu0 0.0
    %6092 = vmatpush2.msra.mxu0 0.0
    %6093 = vmatprep.subr.mxu0 0.0
    %6094 = vmatpush2.msra.mxu0 0.0
    %6095 = vmatprep.subr.mxu0 0.0
    %6096 = vmatpush2.msra.mxu0 0.0
    %6097 = vmatprep.subr.mxu0 0.0
    %6098 = vmatpush2.msra.mxu0 0.0
    %6099 = vmatprep.subr.mxu0 0.0
    %6100 = vmatpush2.msra.mxu0 0.0
    %6101 = vmatprep.subr.mxu0 0.0
    %6102 = vmatpush2.msra.mxu0 0.0
    %6103 = vmatprep.subr.mxu0 0.0
    %6104 = vmatpush2.msra.mxu0 0.0
    %6105 = vmatprep.subr.mxu0 0.0
    %6106 = vmatpush2.msra.mxu0 0.0
    %6107 = vmatprep.subr.mxu0 0.0
    %6108 = vmatpush2.msra.mxu0 0.0
    %6109 = vmatprep.subr.mxu0 0.0
    %6110 = vmatpush2.msra.mxu0 0.0
    %6111 = vmatprep.subr.mxu0 0.0
    %6112 = vmatpush2.msra.mxu0 0.0
    %6113 = vmatprep.subr.mxu0 0.0
    %6114 = vmatpush2.msra.mxu0 0.0
    %6115 = vmatprep.subr.mxu0 0.0
    %6116 = vmatpush2.msra.mxu0 0.0
    %6117 = vmatprep.subr.mxu0 0.0
    %6118 = vmatpush2.msra.mxu0 0.0
    %6119 = vmatprep.subr.mxu0 0.0
    %6120 = vmatpush2.msra.mxu0 0.0
    %6121 = vmatprep.mubr.f32.mxu0 0.0
    %6122 = vmatmul.mubr.f32.gmra.mxu0 %v6052
    %v6123 = vpop.f32.mrf.mxu0
    %v6124 = vadd.f32 0.0, %v6123
    %v6125 = vpop.f32.mrf.mxu0
    %6126 = vmatprep.mubr.f32.mxu0 0.0
    %6127 = vmatmul.mubr.f32.gmra.mxu0 %v6055
    %v6128 = vpop.f32.mrf.mxu0
    %v6129 = vadd.f32 0.0, %v6128
    %v6130 = vpop.f32.mrf.mxu0
    %6131 = vdwg.mxu0
    %v6132 = vadd.f32 %v159, %v6124
    %v6133 = vadd.f32 %v164, %v6129
    %v6134 = vld [vmem:[%s2 + $0x170] sm:$0x1]
    %v6135 = vld [vmem:[%s2 + $0x178] sm:$0x1]
    %v6136 = vsel %vm5115, %v6132, 0.0
    %6137 = vadd.xlane.f32.xlu0 %v6136
    %v6138 = vpop.xlane.xlu0 %6137
    %v6139 = vsel %vm5115, %v6133, 0.0
    %6140 = vadd.xlane.f32.xlu0 %v6139
    %v6141 = vpop.xlane.xlu0 %6140
    %v6142 = vrcp.pop 32.0
    %v6143 = vmul.f32 %v6138, %v6142
    %v6144 = vmul.f32 %v6141, %v6142
    %v6145 = vsub.f32 %v6132, %v6143
    %v6146 = vsub.f32 %v6133, %v6144
    %v6147 = vmul.f32 %v6145, %v6145
    %v6148 = vmul.f32 %v6146, %v6146
    %v6149 = vsel %vm5115, %v6147, 0.0
    %6150 = vadd.xlane.f32.xlu0 %v6149
    %v6151 = vpop.xlane.xlu0 %6150
    %v6152 = vsel %vm5115, %v6148, 0.0
    %6153 = vadd.xlane.f32.xlu0 %v6152
    %v6154 = vpop.xlane.xlu0 %6153
    %v6155 = vmul.f32 %v6151, %v6142
    %v6156 = vmul.f32 %v6154, %v6142
    %v6157 = vadd.f32 %v6155, 1e-05
    %v6158 = vadd.f32 %v6156, 1e-05
    %v6159 = vrsqrt.pop %v6157
    %v6160 = vrsqrt.pop %v6158
    %v6161 = vmul.f32 %v6145, %v6159
    %v6162 = vmul.f32 %v6146, %v6160
    %v6163 = vlaneseq
    %v6164 = vshrl.u32 %v6163, 7
    %v6165 = vsub.s32 0, %v6164
    %v6166 = vrot.slane %v6134, %v6165
    %v6167 = vmul.f32 %v6161, %v6166
    %v6168 = vmul.f32 %v6162, %v6166
    %v6169 = vlaneseq
    %v6170 = vshrl.u32 %v6169, 7
    %v6171 = vsub.s32 0, %v6170
    %v6172 = vrot.slane %v6135, %v6171
    %v6173 = vadd.f32 %v6167, %v6172
    %v6174 = vadd.f32 %v6168, %v6172
    %v6175 = vld [vmem:[%s2 + $0x180] sm:$0xff]
    %v6176 = vld [vmem:[%s2 + $0x188] sm:$0xff]
    %v6177 = vld [vmem:[%s2 + $0x190] sm:$0xff]
    %v6178 = vld [vmem:[%s2 + $0x198] sm:$0xff]
    %v6180 = vsel %vm5115, %v6173, 0
    %v6183 = vsel %vm5115, %v6174, 0
    %6185 = vmatprep.subr.mxu0 0.0
    %6186 = vmatpush1.msra.mxu0 0.0
    %6187 = vmatprep.subr.mxu0 0.0
    %6188 = vmatpush1.msra.mxu0 0.0
    %6189 = vmatprep.subr.mxu0 0.0
    %6190 = vmatpush1.msra.mxu0 0.0
    %6191 = vmatprep.subr.mxu0 0.0
    %6192 = vmatpush1.msra.mxu0 0.0
    %6193 = vmatprep.subr.mxu0 0.0
    %6194 = vmatpush1.msra.mxu0 0.0
    %6195 = vmatprep.subr.mxu0 0.0
    %6196 = vmatpush1.msra.mxu0 0.0
    %6197 = vmatprep.subr.mxu0 0.0
    %6198 = vmatpush1.msra.mxu0 0.0
    %6199 = vmatprep.subr.mxu0 0.0
    %6200 = vmatpush1.msra.mxu0 0.0
    %6201 = vmatprep.subr.mxu0 0.0
    %6202 = vmatpush1.msra.mxu0 0.0
    %6203 = vmatprep.subr.mxu0 0.0
    %6204 = vmatpush1.msra.mxu0 0.0
    %6205 = vmatprep.subr.mxu0 0.0
    %6206 = vmatpush1.msra.mxu0 0.0
    %6207 = vmatprep.subr.mxu0 0.0
    %6208 = vmatpush1.msra.mxu0 0.0
    %6209 = vmatprep.subr.mxu0 0.0
    %6210 = vmatpush1.msra.mxu0 %v6178
    %6211 = vmatprep.subr.mxu0 0.0
    %6212 = vmatpush1.msra.mxu0 %v6177
    %6213 = vmatprep.subr.mxu0 0.0
    %6214 = vmatpush1.msra.mxu0 %v6176
    %6215 = vmatprep.subr.mxu0 0.0
    %6216 = vmatpush1.msra.mxu0 %v6175
    %6217 = vmatprep.subr.mxu0 0.0
    %6218 = vmatpush2.msra.mxu0 0.0
    %6219 = vmatprep.subr.mxu0 0.0
    %6220 = vmatpush2.msra.mxu0 0.0
    %6221 = vmatprep.subr.mxu0 0.0
    %6222 = vmatpush2.msra.mxu0 0.0
    %6223 = vmatprep.subr.mxu0 0.0
    %6224 = vmatpush2.msra.mxu0 0.0
    %6225 = vmatprep.subr.mxu0 0.0
    %6226 = vmatpush2.msra.mxu0 0.0
    %6227 = vmatprep.subr.mxu0 0.0
    %6228 = vmatpush2.msra.mxu0 0.0
    %6229 = vmatprep.subr.mxu0 0.0
    %6230 = vmatpush2.msra.mxu0 0.0
    %6231 = vmatprep.subr.mxu0 0.0
    %6232 = vmatpush2.msra.mxu0 0.0
    %6233 = vmatprep.subr.mxu0 0.0
    %6234 = vmatpush2.msra.mxu0 0.0
    %6235 = vmatprep.subr.mxu0 0.0
    %6236 = vmatpush2.msra.mxu0 0.0
    %6237 = vmatprep.subr.mxu0 0.0
    %6238 = vmatpush2.msra.mxu0 0.0
    %6239 = vmatprep.subr.mxu0 0.0
    %6240 = vmatpush2.msra.mxu0 0.0
    %6241 = vmatprep.subr.mxu0 0.0
    %6242 = vmatpush2.msra.mxu0 0.0
    %6243 = vmatprep.subr.mxu0 0.0
    %6244 = vmatpush2.msra.mxu0 0.0
    %6245 = vmatprep.subr.mxu0 0.0
    %6246 = vmatpush2.msra.mxu0 0.0
    %6247 = vmatprep.subr.mxu0 0.0
    %6248 = vmatpush2.msra.mxu0 0.0
    %6249 = vmatprep.mubr.f32.mxu0 0.0
    %6250 = vmatmul.mubr.f32.gmra.mxu0 %v6180
    %v6251 = vpop.f32.mrf.mxu0
    %v6252 = vadd.f32 0.0, %v6251
    %v6253 = vpop.f32.mrf.mxu0
    %6254 = vmatprep.mubr.f32.mxu0 0.0
    %6255 = vmatmul.mubr.f32.gmra.mxu0 %v6183
    %v6256 = vpop.f32.mrf.mxu0
    %v6257 = vadd.f32 0.0, %v6256
    %v6258 = vpop.f32.mrf.mxu0
    %6259 = vdwg.mxu0
    %v6260 = vld [vmem:[%s2 + $0x1a8] sm:$0xff]
    %v6261 = vld [vmem:[%s2 + $0x1b0] sm:$0xff]
    %v6262 = vld [vmem:[%s2 + $0x1b8] sm:$0xff]
    %v6263 = vld [vmem:[%s2 + $0x1c0] sm:$0xff]
    %6264 = vmatprep.subr.mxu0 0.0
    %6265 = vmatpush1.msra.mxu0 0.0
    %6266 = vmatprep.subr.mxu0 0.0
    %6267 = vmatpush1.msra.mxu0 0.0
    %6268 = vmatprep.subr.mxu0 0.0
    %6269 = vmatpush1.msra.mxu0 0.0
    %6270 = vmatprep.subr.mxu0 0.0
    %6271 = vmatpush1.msra.mxu0 0.0
    %6272 = vmatprep.subr.mxu0 0.0
    %6273 = vmatpush1.msra.mxu0 0.0
    %6274 = vmatprep.subr.mxu0 0.0
    %6275 = vmatpush1.msra.mxu0 0.0
    %6276 = vmatprep.subr.mxu0 0.0
    %6277 = vmatpush1.msra.mxu0 0.0
    %6278 = vmatprep.subr.mxu0 0.0
    %6279 = vmatpush1.msra.mxu0 0.0
    %6280 = vmatprep.subr.mxu0 0.0
    %6281 = vmatpush1.msra.mxu0 0.0
    %6282 = vmatprep.subr.mxu0 0.0
    %6283 = vmatpush1.msra.mxu0 0.0
    %6284 = vmatprep.subr.mxu0 0.0
    %6285 = vmatpush1.msra.mxu0 0.0
    %6286 = vmatprep.subr.mxu0 0.0
    %6287 = vmatpush1.msra.mxu0 0.0
    %6288 = vmatprep.subr.mxu0 0.0
    %6289 = vmatpush1.msra.mxu0 %v6263
    %6290 = vmatprep.subr.mxu0 0.0
    %6291 = vmatpush1.msra.mxu0 %v6262
    %6292 = vmatprep.subr.mxu0 0.0
    %6293 = vmatpush1.msra.mxu0 %v6261
    %6294 = vmatprep.subr.mxu0 0.0
    %6295 = vmatpush1.msra.mxu0 %v6260
    %6296 = vmatprep.subr.mxu0 0.0
    %6297 = vmatpush2.msra.mxu0 0.0
    %6298 = vmatprep.subr.mxu0 0.0
    %6299 = vmatpush2.msra.mxu0 0.0
    %6300 = vmatprep.subr.mxu0 0.0
    %6301 = vmatpush2.msra.mxu0 0.0
    %6302 = vmatprep.subr.mxu0 0.0
    %6303 = vmatpush2.msra.mxu0 0.0
    %6304 = vmatprep.subr.mxu0 0.0
    %6305 = vmatpush2.msra.mxu0 0.0
    %6306 = vmatprep.subr.mxu0 0.0
    %6307 = vmatpush2.msra.mxu0 0.0
    %6308 = vmatprep.subr.mxu0 0.0
    %6309 = vmatpush2.msra.mxu0 0.0
    %6310 = vmatprep.subr.mxu0 0.0
    %6311 = vmatpush2.msra.mxu0 0.0
    %6312 = vmatprep.subr.mxu0 0.0
    %6313 = vmatpush2.msra.mxu0 0.0
    %6314 = vmatprep.subr.mxu0 0.0
    %6315 = vmatpush2.msra.mxu0 0.0
    %6316 = vmatprep.subr.mxu0 0.0
    %6317 = vmatpush2.msra.mxu0 0.0
    %6318 = vmatprep.subr.mxu0 0.0
    %6319 = vmatpush2.msra.mxu0 0.0
    %6320 = vmatprep.subr.mxu0 0.0
    %6321 = vmatpush2.msra.mxu0 0.0
    %6322 = vmatprep.subr.mxu0 0.0
    %6323 = vmatpush2.msra.mxu0 0.0
    %6324 = vmatprep.subr.mxu0 0.0
    %6325 = vmatpush2.msra.mxu0 0.0
    %6326 = vmatprep.subr.mxu0 0.0
    %6327 = vmatpush2.msra.mxu0 0.0
    %6328 = vmatprep.mubr.f32.mxu0 0.0
    %6329 = vmatmul.mubr.f32.gmra.mxu0 %v6180
    %v6330 = vpop.f32.mrf.mxu0
    %v6331 = vadd.f32 0.0, %v6330
    %v6332 = vpop.f32.mrf.mxu0
    %6333 = vmatprep.mubr.f32.mxu0 0.0
    %6334 = vmatmul.mubr.f32.gmra.mxu0 %v6183
    %v6335 = vpop.f32.mrf.mxu0
    %v6336 = vadd.f32 0.0, %v6335
    %v6337 = vpop.f32.mrf.mxu0
    %6338 = vdwg.mxu0
    %v6339 = vld [vmem:[%s2 + $0x1c8] sm:$0x3f]
    %v6341 = vsel %vm524, %v6252, 0
    %v6344 = vsel %vm524, %v6257, 0
    %vm6346 = vcmask 1045504
    %v6348 = vsel %vm6346, %v6339, 0
    %6350 = vmatprep.subr.mxu0 0.0
    %6351 = vmatpush1.msra.mxu0 0.0
    %6352 = vmatprep.subr.mxu0 0.0
    %6353 = vmatpush1.msra.mxu0 0.0
    %6354 = vmatprep.subr.mxu0 0.0
    %6355 = vmatpush1.msra.mxu0 0.0
    %6356 = vmatprep.subr.mxu0 0.0
    %6357 = vmatpush1.msra.mxu0 0.0
    %6358 = vmatprep.subr.mxu0 0.0
    %6359 = vmatpush1.msra.mxu0 0.0
    %6360 = vmatprep.subr.mxu0 0.0
    %6361 = vmatpush1.msra.mxu0 0.0
    %6362 = vmatprep.subr.mxu0 0.0
    %6363 = vmatpush1.msra.mxu0 0.0
    %6364 = vmatprep.subr.mxu0 0.0
    %6365 = vmatpush1.msra.mxu0 0.0
    %6366 = vmatprep.subr.mxu0 0.0
    %6367 = vmatpush1.msra.mxu0 0.0
    %6368 = vmatprep.subr.mxu0 0.0
    %6369 = vmatpush1.msra.mxu0 0.0
    %6370 = vmatprep.subr.mxu0 0.0
    %6371 = vmatpush1.msra.mxu0 0.0
    %6372 = vmatprep.subr.mxu0 0.0
    %6373 = vmatpush1.msra.mxu0 0.0
    %6374 = vmatprep.subr.mxu0 0.0
    %6375 = vmatpush1.msra.mxu0 0.0
    %6376 = vmatprep.subr.mxu0 0.0
    %6377 = vmatpush1.msra.mxu0 0.0
    %6378 = vmatprep.subr.mxu0 0.0
    %6379 = vmatpush1.msra.mxu0 0.0
    %6380 = vmatprep.subr.mxu0 0.0
    %6381 = vmatpush1.msra.mxu0 %v6348
    %6382 = vmatprep.subr.mxu0 0.0
    %6383 = vmatpush2.msra.mxu0 0.0
    %6384 = vmatprep.subr.mxu0 0.0
    %6385 = vmatpush2.msra.mxu0 0.0
    %6386 = vmatprep.subr.mxu0 0.0
    %6387 = vmatpush2.msra.mxu0 0.0
    %6388 = vmatprep.subr.mxu0 0.0
    %6389 = vmatpush2.msra.mxu0 0.0
    %6390 = vmatprep.subr.mxu0 0.0
    %6391 = vmatpush2.msra.mxu0 0.0
    %6392 = vmatprep.subr.mxu0 0.0
    %6393 = vmatpush2.msra.mxu0 0.0
    %6394 = vmatprep.subr.mxu0 0.0
    %6395 = vmatpush2.msra.mxu0 0.0
    %6396 = vmatprep.subr.mxu0 0.0
    %6397 = vmatpush2.msra.mxu0 0.0
    %6398 = vmatprep.subr.mxu0 0.0
    %6399 = vmatpush2.msra.mxu0 0.0
    %6400 = vmatprep.subr.mxu0 0.0
    %6401 = vmatpush2.msra.mxu0 0.0
    %6402 = vmatprep.subr.mxu0 0.0
    %6403 = vmatpush2.msra.mxu0 0.0
    %6404 = vmatprep.subr.mxu0 0.0
    %6405 = vmatpush2.msra.mxu0 0.0
    %6406 = vmatprep.subr.mxu0 0.0
    %6407 = vmatpush2.msra.mxu0 0.0
    %6408 = vmatprep.subr.mxu0 0.0
    %6409 = vmatpush2.msra.mxu0 0.0
    %6410 = vmatprep.subr.mxu0 0.0
    %6411 = vmatpush2.msra.mxu0 0.0
    %6412 = vmatprep.subr.mxu0 0.0
    %6413 = vmatpush2.msra.mxu0 0.0
    %6414 = vmatprep.mubr.f32.mxu0 0.0
    %6415 = vmatmul.mubr.f32.gmra.mxu0 %v6341
    %v6416 = vpop.f32.mrf.mxu0
    %v6417 = vadd.f32 0.0, %v6416
    %v6418 = vpop.f32.mrf.mxu0
    %6419 = vmatprep.mubr.f32.mxu0 0.0
    %6420 = vmatmul.mubr.f32.gmra.mxu0 %v6344
    %v6421 = vpop.f32.mrf.mxu0
    %v6422 = vadd.f32 0.0, %v6421
    %v6423 = vpop.f32.mrf.mxu0
    %6424 = vdwg.mxu0
    %v6425 = vadd.f32 %v6331, %v6417
    %v6426 = vadd.f32 %v6336, %v6422
    %6429 = vrot.lane.b32.xlu0 %v6331, 96
    %v6430 = vpop.permute.xlu0 %6429
    %6431 = vrot.lane.b32.xlu0 %v6336, 96
    %v6432 = vpop.permute.xlu0 %6431
    %6443 = vrot.lane.b32.xlu0 %v5073, 96
    %v6444 = vpop.permute.xlu0 %6443
    %6445 = vrot.lane.b32.xlu0 %v5078, 96
    %v6446 = vpop.permute.xlu0 %6445
    %6447 = vrot.lane.b32.xlu0 %v5083, 96
    %v6448 = vpop.permute.xlu0 %6447
    %6449 = vrot.lane.b32.xlu0 %v5088, 96
    %v6450 = vpop.permute.xlu0 %6449
    %6451 = vrot.lane.b32.xlu0 %v5093, 96
    %v6452 = vpop.permute.xlu0 %6451
    %6453 = vrot.lane.b32.xlu0 %v5098, 96
    %v6454 = vpop.permute.xlu0 %6453
    %6455 = vrot.lane.b32.xlu0 %v5103, 96
    %v6456 = vpop.permute.xlu0 %6455
    %6457 = vrot.lane.b32.xlu0 %v5108, 96
    %v6458 = vpop.permute.xlu0 %6457
    %6467 = vmatprep.subr.mxu0 0.0
    %6468 = vmatpush1.msra.mxu0 0.0
    %6469 = vmatprep.subr.mxu0 0.0
    %6470 = vmatpush1.msra.mxu0 0.0
    %6471 = vmatprep.subr.mxu0 0.0
    %6472 = vmatpush1.msra.mxu0 0.0
    %6473 = vmatprep.subr.mxu0 0.0
    %6474 = vmatpush1.msra.mxu0 0.0
    %6475 = vmatprep.subr.mxu0 0.0
    %6476 = vmatpush1.msra.mxu0 0.0
    %6477 = vmatprep.subr.mxu0 0.0
    %6478 = vmatpush1.msra.mxu0 0.0
    %6479 = vmatprep.subr.mxu0 0.0
    %6480 = vmatpush1.msra.mxu0 0.0
    %6481 = vmatprep.subr.mxu0 0.0
    %6482 = vmatpush1.msra.mxu0 0.0
    %6483 = vmatprep.subr.mxu0 0.0
    %6484 = vmatpush1.msra.mxu0 0.0
    %6485 = vmatprep.subr.mxu0 0.0
    %6486 = vmatpush1.msra.mxu0 0.0
    %6487 = vmatprep.subr.mxu0 0.0
    %6488 = vmatpush1.msra.mxu0 0.0
    %6489 = vmatprep.subr.mxu0 0.0
    %6490 = vmatpush1.msra.mxu0 0.0
    %6491 = vmatprep.subr.mxu0 0.0
    %6492 = vmatpush1.msra.mxu0 %v6432
    %6493 = vmatprep.subr.mxu0 0.0
    %6494 = vmatpush1.msra.mxu0 %v6430
    %6495 = vmatprep.subr.mxu0 0.0
    %6496 = vmatpush1.msra.mxu0 %v6426
    %6497 = vmatprep.subr.mxu0 0.0
    %6498 = vmatpush1.msra.mxu0 %v6425
    %6499 = vmatprep.subr.mxu0 0.0
    %6500 = vmatpush2.msra.mxu0 0.0
    %6501 = vmatprep.subr.mxu0 0.0
    %6502 = vmatpush2.msra.mxu0 0.0
    %6503 = vmatprep.subr.mxu0 0.0
    %6504 = vmatpush2.msra.mxu0 0.0
    %6505 = vmatprep.subr.mxu0 0.0
    %6506 = vmatpush2.msra.mxu0 0.0
    %6507 = vmatprep.subr.mxu0 0.0
    %6508 = vmatpush2.msra.mxu0 0.0
    %6509 = vmatprep.subr.mxu0 0.0
    %6510 = vmatpush2.msra.mxu0 0.0
    %6511 = vmatprep.subr.mxu0 0.0
    %6512 = vmatpush2.msra.mxu0 0.0
    %6513 = vmatprep.subr.mxu0 0.0
    %6514 = vmatpush2.msra.mxu0 0.0
    %6515 = vmatprep.subr.mxu0 0.0
    %6516 = vmatpush2.msra.mxu0 0.0
    %6517 = vmatprep.subr.mxu0 0.0
    %6518 = vmatpush2.msra.mxu0 0.0
    %6519 = vmatprep.subr.mxu0 0.0
    %6520 = vmatpush2.msra.mxu0 0.0
    %6521 = vmatprep.subr.mxu0 0.0
    %6522 = vmatpush2.msra.mxu0 0.0
    %6523 = vmatprep.subr.mxu0 0.0
    %6524 = vmatpush2.msra.mxu0 0.0
    %6525 = vmatprep.subr.mxu0 0.0
    %6526 = vmatpush2.msra.mxu0 0.0
    %6527 = vmatprep.subr.mxu0 0.0
    %6528 = vmatpush2.msra.mxu0 0.0
    %6529 = vmatprep.subr.mxu0 0.0
    %6530 = vmatpush2.msra.mxu0 0.0
    %6531 = vmatprep.mubr.f32.mxu0 0.0
    %6532 = vmatmul.mubr.f32.gmra.mxu0 %v5205
    %v6533 = vpop.f32.mrf.mxu0
    %v6534 = vadd.f32 %v6444, %v6533
    %v6535 = vpop.f32.mrf.mxu0
    %6536 = vmatprep.mubr.f32.mxu0 0.0
    %6537 = vmatmul.mubr.f32.gmra.mxu0 %v5207
    %v6538 = vpop.f32.mrf.mxu0
    %v6539 = vadd.f32 %v6446, %v6538
    %v6540 = vpop.f32.mrf.mxu0
    %6541 = vmatprep.mubr.f32.mxu0 0.0
    %6542 = vmatmul.mubr.f32.gmra.mxu0 %v5209
    %v6543 = vpop.f32.mrf.mxu0
    %v6544 = vadd.f32 %v6448, %v6543
    %v6545 = vpop.f32.mrf.mxu0
    %6546 = vmatprep.mubr.f32.mxu0 0.0
    %6547 = vmatmul.mubr.f32.gmra.mxu0 %v5211
    %v6548 = vpop.f32.mrf.mxu0
    %v6549 = vadd.f32 %v6450, %v6548
    %v6550 = vpop.f32.mrf.mxu0
    %6551 = vmatprep.mubr.f32.mxu0 0.0
    %6552 = vmatmul.mubr.f32.gmra.mxu0 %v5213
    %v6553 = vpop.f32.mrf.mxu0
    %v6554 = vadd.f32 %v6452, %v6553
    %v6555 = vpop.f32.mrf.mxu0
    %6556 = vmatprep.mubr.f32.mxu0 0.0
    %6557 = vmatmul.mubr.f32.gmra.mxu0 %v5215
    %v6558 = vpop.f32.mrf.mxu0
    %v6559 = vadd.f32 %v6454, %v6558
    %v6560 = vpop.f32.mrf.mxu0
    %6561 = vmatprep.mubr.f32.mxu0 0.0
    %6562 = vmatmul.mubr.f32.gmra.mxu0 %v5217
    %v6563 = vpop.f32.mrf.mxu0
    %v6564 = vadd.f32 %v6456, %v6563
    %v6565 = vpop.f32.mrf.mxu0
    %6566 = vmatprep.mubr.f32.mxu0 0.0
    %6567 = vmatmul.mubr.f32.gmra.mxu0 %v5219
    %v6568 = vpop.f32.mrf.mxu0
    %v6569 = vadd.f32 %v6458, %v6568
    %v6570 = vpop.f32.mrf.mxu0
    %6571 = vdwg.mxu0
    %6572 = vmatprep.subr.mxu0 0.0
    %6573 = vmatpush1.msra.mxu0 0.0
    %6574 = vmatprep.subr.mxu0 0.0
    %6575 = vmatpush1.msra.mxu0 0.0
    %6576 = vmatprep.subr.mxu0 0.0
    %6577 = vmatpush1.msra.mxu0 0.0
    %6578 = vmatprep.subr.mxu0 0.0
    %6579 = vmatpush1.msra.mxu0 0.0
    %6580 = vmatprep.subr.mxu0 0.0
    %6581 = vmatpush1.msra.mxu0 0.0
    %6582 = vmatprep.subr.mxu0 0.0
    %6583 = vmatpush1.msra.mxu0 0.0
    %6584 = vmatprep.subr.mxu0 0.0
    %6585 = vmatpush1.msra.mxu0 0.0
    %6586 = vmatprep.subr.mxu0 0.0
    %6587 = vmatpush1.msra.mxu0 0.0
    %6588 = vmatprep.subr.mxu0 0.0
    %6589 = vmatpush1.msra.mxu0 0.0
    %6590 = vmatprep.subr.mxu0 0.0
    %6591 = vmatpush1.msra.mxu0 0.0
    %6592 = vmatprep.subr.mxu0 0.0
    %6593 = vmatpush1.msra.mxu0 0.0
    %6594 = vmatprep.subr.mxu0 0.0
    %6595 = vmatpush1.msra.mxu0 0.0
    %6596 = vmatprep.subr.mxu0 0.0
    %6597 = vmatpush1.msra.mxu0 0.0
    %6598 = vmatprep.subr.mxu0 0.0
    %6599 = vmatpush1.msra.mxu0 0.0
    %6600 = vmatprep.subr.mxu0 0.0
    %6601 = vmatpush1.msra.mxu0 %v6257
    %6602 = vmatprep.subr.mxu0 0.0
    %6603 = vmatpush1.msra.mxu0 %v6252
    %6604 = vmatprep.subr.mxu0 0.0
    %6605 = vmatpush2.msra.mxu0 0.0
    %6606 = vmatprep.subr.mxu0 0.0
    %6607 = vmatpush2.msra.mxu0 0.0
    %6608 = vmatprep.subr.mxu0 0.0
    %6609 = vmatpush2.msra.mxu0 0.0
    %6610 = vmatprep.subr.mxu0 0.0
    %6611 = vmatpush2.msra.mxu0 0.0
    %6612 = vmatprep.subr.mxu0 0.0
    %6613 = vmatpush2.msra.mxu0 0.0
    %6614 = vmatprep.subr.mxu0 0.0
    %6615 = vmatpush2.msra.mxu0 0.0
    %6616 = vmatprep.subr.mxu0 0.0
    %6617 = vmatpush2.msra.mxu0 0.0
    %6618 = vmatprep.subr.mxu0 0.0
    %6619 = vmatpush2.msra.mxu0 0.0
    %6620 = vmatprep.subr.mxu0 0.0
    %6621 = vmatpush2.msra.mxu0 0.0
    %6622 = vmatprep.subr.mxu0 0.0
    %6623 = vmatpush2.msra.mxu0 0.0
    %6624 = vmatprep.subr.mxu0 0.0
    %6625 = vmatpush2.msra.mxu0 0.0
    %6626 = vmatprep.subr.mxu0 0.0
    %6627 = vmatpush2.msra.mxu0 0.0
    %6628 = vmatprep.subr.mxu0 0.0
    %6629 = vmatpush2.msra.mxu0 0.0
    %6630 = vmatprep.subr.mxu0 0.0
    %6631 = vmatpush2.msra.mxu0 0.0
    %6632 = vmatprep.subr.mxu0 0.0
    %6633 = vmatpush2.msra.mxu0 0.0
    %6634 = vmatprep.subr.mxu0 0.0
    %6635 = vmatpush2.msra.mxu0 0.0
    %6636 = vmatprep.mubr.f32.mxu0 0.0
    %6637 = vmatmul.mubr.f32.gmra.mxu0 %v772
    %v6638 = vpop.f32.mrf.mxu0
    %v6639 = vadd.f32 0.0, %v6638
    %v6640 = vpop.f32.mrf.mxu0
    %6641 = vmatprep.mubr.f32.mxu0 0.0
    %6642 = vmatmul.mubr.f32.gmra.mxu0 %v774
    %v6643 = vpop.f32.mrf.mxu0
    %v6644 = vadd.f32 0.0, %v6643
    %v6645 = vpop.f32.mrf.mxu0
    %6646 = vmatprep.mubr.f32.mxu0 0.0
    %6647 = vmatmul.mubr.f32.gmra.mxu0 %v776
    %v6648 = vpop.f32.mrf.mxu0
    %v6649 = vadd.f32 0.0, %v6648
    %v6650 = vpop.f32.mrf.mxu0
    %6651 = vmatprep.mubr.f32.mxu0 0.0
    %6652 = vmatmul.mubr.f32.gmra.mxu0 %v778
    %v6653 = vpop.f32.mrf.mxu0
    %v6654 = vadd.f32 0.0, %v6653
    %v6655 = vpop.f32.mrf.mxu0
    %6656 = vmatprep.mubr.f32.mxu0 0.0
    %6657 = vmatmul.mubr.f32.gmra.mxu0 %v780
    %v6658 = vpop.f32.mrf.mxu0
    %v6659 = vadd.f32 0.0, %v6658
    %v6660 = vpop.f32.mrf.mxu0
    %6661 = vmatprep.mubr.f32.mxu0 0.0
    %6662 = vmatmul.mubr.f32.gmra.mxu0 %v782
    %v6663 = vpop.f32.mrf.mxu0
    %v6664 = vadd.f32 0.0, %v6663
    %v6665 = vpop.f32.mrf.mxu0
    %6666 = vmatprep.mubr.f32.mxu0 0.0
    %6667 = vmatmul.mubr.f32.gmra.mxu0 %v784
    %v6668 = vpop.f32.mrf.mxu0
    %v6669 = vadd.f32 0.0, %v6668
    %v6670 = vpop.f32.mrf.mxu0
    %6671 = vmatprep.mubr.f32.mxu0 0.0
    %6672 = vmatmul.mubr.f32.gmra.mxu0 %v786
    %v6673 = vpop.f32.mrf.mxu0
    %v6674 = vadd.f32 0.0, %v6673
    %v6675 = vpop.f32.mrf.mxu0
    %6676 = vdwg.mxu0
    %v6678 = vsel %vm524, %v6639, 0
    %v6681 = vsel %vm524, %v6644, 0
    %v6684 = vsel %vm524, %v6649, 0
    %v6687 = vsel %vm524, %v6654, 0
    %v6690 = vsel %vm524, %v6659, 0
    %v6693 = vsel %vm524, %v6664, 0
    %v6696 = vsel %vm524, %v6669, 0
    %v6699 = vsel %vm524, %v6674, 0
    %v6702 = vsel %vm6346, %v17, 0
    %6704 = vmatprep.subr.mxu0 0.0
    %6705 = vmatpush1.msra.mxu0 0.0
    %6706 = vmatprep.subr.mxu0 0.0
    %6707 = vmatpush1.msra.mxu0 0.0
    %6708 = vmatprep.subr.mxu0 0.0
    %6709 = vmatpush1.msra.mxu0 0.0
    %6710 = vmatprep.subr.mxu0 0.0
    %6711 = vmatpush1.msra.mxu0 0.0
    %6712 = vmatprep.subr.mxu0 0.0
    %6713 = vmatpush1.msra.mxu0 0.0
    %6714 = vmatprep.subr.mxu0 0.0
    %6715 = vmatpush1.msra.mxu0 0.0
    %6716 = vmatprep.subr.mxu0 0.0
    %6717 = vmatpush1.msra.mxu0 0.0
    %6718 = vmatprep.subr.mxu0 0.0
    %6719 = vmatpush1.msra.mxu0 0.0
    %6720 = vmatprep.subr.mxu0 0.0
    %6721 = vmatpush1.msra.mxu0 0.0
    %6722 = vmatprep.subr.mxu0 0.0
    %6723 = vmatpush1.msra.mxu0 0.0
    %6724 = vmatprep.subr.mxu0 0.0
    %6725 = vmatpush1.msra.mxu0 0.0
    %6726 = vmatprep.subr.mxu0 0.0
    %6727 = vmatpush1.msra.mxu0 0.0
    %6728 = vmatprep.subr.mxu0 0.0
    %6729 = vmatpush1.msra.mxu0 0.0
    %6730 = vmatprep.subr.mxu0 0.0
    %6731 = vmatpush1.msra.mxu0 0.0
    %6732 = vmatprep.subr.mxu0 0.0
    %6733 = vmatpush1.msra.mxu0 0.0
    %6734 = vmatprep.subr.mxu0 0.0
    %6735 = vmatpush1.msra.mxu0 %v6702
    %6736 = vmatprep.subr.mxu0 0.0
    %6737 = vmatpush2.msra.mxu0 0.0
    %6738 = vmatprep.subr.mxu0 0.0
    %6739 = vmatpush2.msra.mxu0 0.0
    %6740 = vmatprep.subr.mxu0 0.0
    %6741 = vmatpush2.msra.mxu0 0.0
    %6742 = vmatprep.subr.mxu0 0.0
    %6743 = vmatpush2.msra.mxu0 0.0
    %6744 = vmatprep.subr.mxu0 0.0
    %6745 = vmatpush2.msra.mxu0 0.0
    %6746 = vmatprep.subr.mxu0 0.0
    %6747 = vmatpush2.msra.mxu0 0.0
    %6748 = vmatprep.subr.mxu0 0.0
    %6749 = vmatpush2.msra.mxu0 0.0
    %6750 = vmatprep.subr.mxu0 0.0
    %6751 = vmatpush2.msra.mxu0 0.0
    %6752 = vmatprep.subr.mxu0 0.0
    %6753 = vmatpush2.msra.mxu0 0.0
    %6754 = vmatprep.subr.mxu0 0.0
    %6755 = vmatpush2.msra.mxu0 0.0
    %6756 = vmatprep.subr.mxu0 0.0
    %6757 = vmatpush2.msra.mxu0 0.0
    %6758 = vmatprep.subr.mxu0 0.0
    %6759 = vmatpush2.msra.mxu0 0.0
    %6760 = vmatprep.subr.mxu0 0.0
    %6761 = vmatpush2.msra.mxu0 0.0
    %6762 = vmatprep.subr.mxu0 0.0
    %6763 = vmatpush2.msra.mxu0 0.0
    %6764 = vmatprep.subr.mxu0 0.0
    %6765 = vmatpush2.msra.mxu0 0.0
    %6766 = vmatprep.subr.mxu0 0.0
    %6767 = vmatpush2.msra.mxu0 0.0
    %6768 = vmatprep.mubr.f32.mxu0 0.0
    %6769 = vmatmul.mubr.f32.gmra.mxu0 %v6678
    %v6770 = vpop.f32.mrf.mxu0
    %v6771 = vadd.f32 0.0, %v6770
    %v6772 = vpop.f32.mrf.mxu0
    %6773 = vmatprep.mubr.f32.mxu0 0.0
    %6774 = vmatmul.mubr.f32.gmra.mxu0 %v6681
    %v6775 = vpop.f32.mrf.mxu0
    %v6776 = vadd.f32 0.0, %v6775
    %v6777 = vpop.f32.mrf.mxu0
    %6778 = vmatprep.mubr.f32.mxu0 0.0
    %6779 = vmatmul.mubr.f32.gmra.mxu0 %v6684
    %v6780 = vpop.f32.mrf.mxu0
    %v6781 = vadd.f32 0.0, %v6780
    %v6782 = vpop.f32.mrf.mxu0
    %6783 = vmatprep.mubr.f32.mxu0 0.0
    %6784 = vmatmul.mubr.f32.gmra.mxu0 %v6687
    %v6785 = vpop.f32.mrf.mxu0
    %v6786 = vadd.f32 0.0, %v6785
    %v6787 = vpop.f32.mrf.mxu0
    %6788 = vmatprep.mubr.f32.mxu0 0.0
    %6789 = vmatmul.mubr.f32.gmra.mxu0 %v6690
    %v6790 = vpop.f32.mrf.mxu0
    %v6791 = vadd.f32 0.0, %v6790
    %v6792 = vpop.f32.mrf.mxu0
    %6793 = vmatprep.mubr.f32.mxu0 0.0
    %6794 = vmatmul.mubr.f32.gmra.mxu0 %v6693
    %v6795 = vpop.f32.mrf.mxu0
    %v6796 = vadd.f32 0.0, %v6795
    %v6797 = vpop.f32.mrf.mxu0
    %6798 = vmatprep.mubr.f32.mxu0 0.0
    %6799 = vmatmul.mubr.f32.gmra.mxu0 %v6696
    %v6800 = vpop.f32.mrf.mxu0
    %v6801 = vadd.f32 0.0, %v6800
    %v6802 = vpop.f32.mrf.mxu0
    %6803 = vmatprep.mubr.f32.mxu0 0.0
    %6804 = vmatmul.mubr.f32.gmra.mxu0 %v6699
    %v6805 = vpop.f32.mrf.mxu0
    %v6806 = vadd.f32 0.0, %v6805
    %v6807 = vpop.f32.mrf.mxu0
    %6808 = vdwg.mxu0
    %v6809 = vmul.f32 %v6771, %v1390
    %v6810 = vmul.f32 %v6776, %v1395
    %v6811 = vmul.f32 %v6781, %v1400
    %v6812 = vmul.f32 %v6786, %v1405
    %v6813 = vmul.f32 %v6791, %v1410
    %v6814 = vmul.f32 %v6796, %v1415
    %v6815 = vmul.f32 %v6801, %v1420
    %v6816 = vmul.f32 %v6806, %v1425
    %vm6817 = vcmask 146432
    %v6819 = vsel %vm6817, %v6809, 0
    %v6822 = vsel %vm6817, %v6810, 0
    %v6825 = vsel %vm6817, %v6811, 0
    %v6828 = vsel %vm6817, %v6812, 0
    %v6831 = vsel %vm6817, %v6813, 0
    %v6834 = vsel %vm6817, %v6814, 0
    %v6837 = vsel %vm6817, %v6815, 0
    %v6840 = vsel %vm6817, %v6816, 0
    %vm6842 = vcmask 1041408
    %v6844 = vsel %vm6842, %v22, 0
    %6846 = vmatprep.subr.mxu0 0.0
    %6847 = vmatpush1.msra.mxu0 0.0
    %6848 = vmatprep.subr.mxu0 0.0
    %6849 = vmatpush1.msra.mxu0 0.0
    %6850 = vmatprep.subr.mxu0 0.0
    %6851 = vmatpush1.msra.mxu0 0.0
    %6852 = vmatprep.subr.mxu0 0.0
    %6853 = vmatpush1.msra.mxu0 0.0
    %6854 = vmatprep.subr.mxu0 0.0
    %6855 = vmatpush1.msra.mxu0 0.0
    %6856 = vmatprep.subr.mxu0 0.0
    %6857 = vmatpush1.msra.mxu0 0.0
    %6858 = vmatprep.subr.mxu0 0.0
    %6859 = vmatpush1.msra.mxu0 0.0
    %6860 = vmatprep.subr.mxu0 0.0
    %6861 = vmatpush1.msra.mxu0 0.0
    %6862 = vmatprep.subr.mxu0 0.0
    %6863 = vmatpush1.msra.mxu0 0.0
    %6864 = vmatprep.subr.mxu0 0.0
    %6865 = vmatpush1.msra.mxu0 0.0
    %6866 = vmatprep.subr.mxu0 0.0
    %6867 = vmatpush1.msra.mxu0 0.0
    %6868 = vmatprep.subr.mxu0 0.0
    %6869 = vmatpush1.msra.mxu0 0.0
    %6870 = vmatprep.subr.mxu0 0.0
    %6871 = vmatpush1.msra.mxu0 0.0
    %6872 = vmatprep.subr.mxu0 0.0
    %6873 = vmatpush1.msra.mxu0 %v6844
    %6874 = vmatprep.subr.mxu0 0.0
    %6875 = vmatpush1.msra.mxu0 %v21
    %6876 = vmatprep.subr.mxu0 0.0
    %6877 = vmatpush1.msra.mxu0 %v20
    %6878 = vmatprep.subr.mxu0 0.0
    %6879 = vmatpush2.msra.mxu0 0.0
    %6880 = vmatprep.subr.mxu0 0.0
    %6881 = vmatpush2.msra.mxu0 0.0
    %6882 = vmatprep.subr.mxu0 0.0
    %6883 = vmatpush2.msra.mxu0 0.0
    %6884 = vmatprep.subr.mxu0 0.0
    %6885 = vmatpush2.msra.mxu0 0.0
    %6886 = vmatprep.subr.mxu0 0.0
    %6887 = vmatpush2.msra.mxu0 0.0
    %6888 = vmatprep.subr.mxu0 0.0
    %6889 = vmatpush2.msra.mxu0 0.0
    %6890 = vmatprep.subr.mxu0 0.0
    %6891 = vmatpush2.msra.mxu0 0.0
    %6892 = vmatprep.subr.mxu0 0.0
    %6893 = vmatpush2.msra.mxu0 0.0
    %6894 = vmatprep.subr.mxu0 0.0
    %6895 = vmatpush2.msra.mxu0 0.0
    %6896 = vmatprep.subr.mxu0 0.0
    %6897 = vmatpush2.msra.mxu0 0.0
    %6898 = vmatprep.subr.mxu0 0.0
    %6899 = vmatpush2.msra.mxu0 0.0
    %6900 = vmatprep.subr.mxu0 0.0
    %6901 = vmatpush2.msra.mxu0 0.0
    %6902 = vmatprep.subr.mxu0 0.0
    %6903 = vmatpush2.msra.mxu0 0.0
    %6904 = vmatprep.subr.mxu0 0.0
    %6905 = vmatpush2.msra.mxu0 0.0
    %6906 = vmatprep.subr.mxu0 0.0
    %6907 = vmatpush2.msra.mxu0 0.0
    %6908 = vmatprep.subr.mxu0 0.0
    %6909 = vmatpush2.msra.mxu0 0.0
    %6910 = vmatprep.mubr.f32.mxu0 0.0
    %6911 = vmatmul.mubr.f32.gmra.mxu0 %v6819
    %v6912 = vpop.f32.mrf.mxu0
    %v6913 = vadd.f32 0.0, %v6912
    %v6914 = vpop.f32.mrf.mxu0
    %6915 = vmatprep.mubr.f32.mxu0 0.0
    %6916 = vmatmul.mubr.f32.gmra.mxu0 %v6822
    %v6917 = vpop.f32.mrf.mxu0
    %v6918 = vadd.f32 0.0, %v6917
    %v6919 = vpop.f32.mrf.mxu0
    %6920 = vmatprep.mubr.f32.mxu0 0.0
    %6921 = vmatmul.mubr.f32.gmra.mxu0 %v6825
    %v6922 = vpop.f32.mrf.mxu0
    %v6923 = vadd.f32 0.0, %v6922
    %v6924 = vpop.f32.mrf.mxu0
    %6925 = vmatprep.mubr.f32.mxu0 0.0
    %6926 = vmatmul.mubr.f32.gmra.mxu0 %v6828
    %v6927 = vpop.f32.mrf.mxu0
    %v6928 = vadd.f32 0.0, %v6927
    %v6929 = vpop.f32.mrf.mxu0
    %6930 = vmatprep.mubr.f32.mxu0 0.0
    %6931 = vmatmul.mubr.f32.gmra.mxu0 %v6831
    %v6932 = vpop.f32.mrf.mxu0
    %v6933 = vadd.f32 0.0, %v6932
    %v6934 = vpop.f32.mrf.mxu0
    %6935 = vmatprep.mubr.f32.mxu0 0.0
    %6936 = vmatmul.mubr.f32.gmra.mxu0 %v6834
    %v6937 = vpop.f32.mrf.mxu0
    %v6938 = vadd.f32 0.0, %v6937
    %v6939 = vpop.f32.mrf.mxu0
    %6940 = vmatprep.mubr.f32.mxu0 0.0
    %6941 = vmatmul.mubr.f32.gmra.mxu0 %v6837
    %v6942 = vpop.f32.mrf.mxu0
    %v6943 = vadd.f32 0.0, %v6942
    %v6944 = vpop.f32.mrf.mxu0
    %6945 = vmatprep.mubr.f32.mxu0 0.0
    %6946 = vmatmul.mubr.f32.gmra.mxu0 %v6840
    %v6947 = vpop.f32.mrf.mxu0
    %v6948 = vadd.f32 0.0, %v6947
    %v6949 = vpop.f32.mrf.mxu0
    %6950 = vdwg.mxu0
    %v6951 = vld [vmem:[%s2 + $0x1d0] sm:$0x3f]
    %v6953 = vsel %vm524, %v6913, 0
    %v6956 = vsel %vm524, %v6918, 0
    %v6959 = vsel %vm524, %v6923, 0
    %v6962 = vsel %vm524, %v6928, 0
    %v6965 = vsel %vm524, %v6933, 0
    %v6968 = vsel %vm524, %v6938, 0
    %v6971 = vsel %vm524, %v6943, 0
    %v6974 = vsel %vm524, %v6948, 0
    %v6977 = vsel %vm6346, %v6951, 0
    %6979 = vmatprep.subr.mxu0 0.0
    %6980 = vmatpush1.msra.mxu0 0.0
    %6981 = vmatprep.subr.mxu0 0.0
    %6982 = vmatpush1.msra.mxu0 0.0
    %6983 = vmatprep.subr.mxu0 0.0
    %6984 = vmatpush1.msra.mxu0 0.0
    %6985 = vmatprep.subr.mxu0 0.0
    %6986 = vmatpush1.msra.mxu0 0.0
    %6987 = vmatprep.subr.mxu0 0.0
    %6988 = vmatpush1.msra.mxu0 0.0
    %6989 = vmatprep.subr.mxu0 0.0
    %6990 = vmatpush1.msra.mxu0 0.0
    %6991 = vmatprep.subr.mxu0 0.0
    %6992 = vmatpush1.msra.mxu0 0.0
    %6993 = vmatprep.subr.mxu0 0.0
    %6994 = vmatpush1.msra.mxu0 0.0
    %6995 = vmatprep.subr.mxu0 0.0
    %6996 = vmatpush1.msra.mxu0 0.0
    %6997 = vmatprep.subr.mxu0 0.0
    %6998 = vmatpush1.msra.mxu0 0.0
    %6999 = vmatprep.subr.mxu0 0.0
    %7000 = vmatpush1.msra.mxu0 0.0
    %7001 = vmatprep.subr.mxu0 0.0
    %7002 = vmatpush1.msra.mxu0 0.0
    %7003 = vmatprep.subr.mxu0 0.0
    %7004 = vmatpush1.msra.mxu0 0.0
    %7005 = vmatprep.subr.mxu0 0.0
    %7006 = vmatpush1.msra.mxu0 0.0
    %7007 = vmatprep.subr.mxu0 0.0
    %7008 = vmatpush1.msra.mxu0 0.0
    %7009 = vmatprep.subr.mxu0 0.0
    %7010 = vmatpush1.msra.mxu0 %v6977
    %7011 = vmatprep.subr.mxu0 0.0
    %7012 = vmatpush2.msra.mxu0 0.0
    %7013 = vmatprep.subr.mxu0 0.0
    %7014 = vmatpush2.msra.mxu0 0.0
    %7015 = vmatprep.subr.mxu0 0.0
    %7016 = vmatpush2.msra.mxu0 0.0
    %7017 = vmatprep.subr.mxu0 0.0
    %7018 = vmatpush2.msra.mxu0 0.0
    %7019 = vmatprep.subr.mxu0 0.0
    %7020 = vmatpush2.msra.mxu0 0.0
    %7021 = vmatprep.subr.mxu0 0.0
    %7022 = vmatpush2.msra.mxu0 0.0
    %7023 = vmatprep.subr.mxu0 0.0
    %7024 = vmatpush2.msra.mxu0 0.0
    %7025 = vmatprep.subr.mxu0 0.0
    %7026 = vmatpush2.msra.mxu0 0.0
    %7027 = vmatprep.subr.mxu0 0.0
    %7028 = vmatpush2.msra.mxu0 0.0
    %7029 = vmatprep.subr.mxu0 0.0
    %7030 = vmatpush2.msra.mxu0 0.0
    %7031 = vmatprep.subr.mxu0 0.0
    %7032 = vmatpush2.msra.mxu0 0.0
    %7033 = vmatprep.subr.mxu0 0.0
    %7034 = vmatpush2.msra.mxu0 0.0
    %7035 = vmatprep.subr.mxu0 0.0
    %7036 = vmatpush2.msra.mxu0 0.0
    %7037 = vmatprep.subr.mxu0 0.0
    %7038 = vmatpush2.msra.mxu0 0.0
    %7039 = vmatprep.subr.mxu0 0.0
    %7040 = vmatpush2.msra.mxu0 0.0
    %7041 = vmatprep.subr.mxu0 0.0
    %7042 = vmatpush2.msra.mxu0 0.0
    %7043 = vmatprep.mubr.f32.mxu0 0.0
    %7044 = vmatmul.mubr.f32.gmra.mxu0 %v6953
    %v7045 = vpop.f32.mrf.mxu0
    %v7046 = vadd.f32 0.0, %v7045
    %v7047 = vpop.f32.mrf.mxu0
    %7048 = vmatprep.mubr.f32.mxu0 0.0
    %7049 = vmatmul.mubr.f32.gmra.mxu0 %v6956
    %v7050 = vpop.f32.mrf.mxu0
    %v7051 = vadd.f32 0.0, %v7050
    %v7052 = vpop.f32.mrf.mxu0
    %7053 = vmatprep.mubr.f32.mxu0 0.0
    %7054 = vmatmul.mubr.f32.gmra.mxu0 %v6959
    %v7055 = vpop.f32.mrf.mxu0
    %v7056 = vadd.f32 0.0, %v7055
    %v7057 = vpop.f32.mrf.mxu0
    %7058 = vmatprep.mubr.f32.mxu0 0.0
    %7059 = vmatmul.mubr.f32.gmra.mxu0 %v6962
    %v7060 = vpop.f32.mrf.mxu0
    %v7061 = vadd.f32 0.0, %v7060
    %v7062 = vpop.f32.mrf.mxu0
    %7063 = vmatprep.mubr.f32.mxu0 0.0
    %7064 = vmatmul.mubr.f32.gmra.mxu0 %v6965
    %v7065 = vpop.f32.mrf.mxu0
    %v7066 = vadd.f32 0.0, %v7065
    %v7067 = vpop.f32.mrf.mxu0
    %7068 = vmatprep.mubr.f32.mxu0 0.0
    %7069 = vmatmul.mubr.f32.gmra.mxu0 %v6968
    %v7070 = vpop.f32.mrf.mxu0
    %v7071 = vadd.f32 0.0, %v7070
    %v7072 = vpop.f32.mrf.mxu0
    %7073 = vmatprep.mubr.f32.mxu0 0.0
    %7074 = vmatmul.mubr.f32.gmra.mxu0 %v6971
    %v7075 = vpop.f32.mrf.mxu0
    %v7076 = vadd.f32 0.0, %v7075
    %v7077 = vpop.f32.mrf.mxu0
    %7078 = vmatprep.mubr.f32.mxu0 0.0
    %7079 = vmatmul.mubr.f32.gmra.mxu0 %v6974
    %v7080 = vpop.f32.mrf.mxu0
    %v7081 = vadd.f32 0.0, %v7080
    %v7082 = vpop.f32.mrf.mxu0
    %7083 = vdwg.mxu0
    %v7084 = vadd.f32 %v6534, %v7046
    %v7085 = vadd.f32 %v6539, %v7051
    %v7086 = vadd.f32 %v6544, %v7056
    %v7087 = vadd.f32 %v6549, %v7061
    %v7088 = vadd.f32 %v6554, %v7066
    %v7089 = vadd.f32 %v6559, %v7071
    %v7090 = vadd.f32 %v6564, %v7076
    %v7091 = vadd.f32 %v6569, %v7081
    %v7092 = vmul.f32 %v7084, 0.5
    %v7093 = vmul.f32 %v7085, 0.5
    %v7094 = vmul.f32 %v7086, 0.5
    %v7095 = vmul.f32 %v7087, 0.5
    %v7096 = vmul.f32 %v7088, 0.5
    %v7097 = vmul.f32 %v7089, 0.5
    %v7098 = vmul.f32 %v7090, 0.5
    %v7099 = vmul.f32 %v7091, 0.5
    %v7100 = vmul.f32 %v7084, 0.70710677
    %v7101 = vmul.f32 %v7085, 0.70710677
    %v7102 = vmul.f32 %v7086, 0.70710677
    %v7103 = vmul.f32 %v7087, 0.70710677
    %v7104 = vmul.f32 %v7088, 0.70710677
    %v7105 = vmul.f32 %v7089, 0.70710677
    %v7106 = vmul.f32 %v7090, 0.70710677
    %v7107 = vmul.f32 %v7091, 0.70710677
    %vm7108 = vcmp.ge.f32.partialorder %v7100, 0.0
    %vm7109 = vcmp.ge.f32.partialorder %v7101, 0.0
    %vm7110 = vcmp.ge.f32.partialorder %v7102, 0.0
    %vm7111 = vcmp.ge.f32.partialorder %v7103, 0.0
    %vm7112 = vcmp.ge.f32.partialorder %v7104, 0.0
    %vm7113 = vcmp.ge.f32.partialorder %v7105, 0.0
    %vm7114 = vcmp.ge.f32.partialorder %v7106, 0.0
    %vm7115 = vcmp.ge.f32.partialorder %v7107, 0.0
    %v7116 = vsel %vm7108, 1.0, -1.0
    %v7117 = vsel %vm7109, 1.0, -1.0
    %v7118 = vsel %vm7110, 1.0, -1.0
    %v7119 = vsel %vm7111, 1.0, -1.0
    %v7120 = vsel %vm7112, 1.0, -1.0
    %v7121 = vsel %vm7113, 1.0, -1.0
    %v7122 = vsel %vm7114, 1.0, -1.0
    %v7123 = vsel %vm7115, 1.0, -1.0
    %v7124 = vand.u32 2147483647, %v7100
    %v7125 = vand.u32 2147483647, %v7101
    %v7126 = vand.u32 2147483647, %v7102
    %v7127 = vand.u32 2147483647, %v7103
    %v7128 = vand.u32 2147483647, %v7104
    %v7129 = vand.u32 2147483647, %v7105
    %v7130 = vand.u32 2147483647, %v7106
    %v7131 = vand.u32 2147483647, %v7107
    %v7132 = vmul.f32 %v7124, 0.3275911
    %v7133 = vmul.f32 %v7125, 0.3275911
    %v7134 = vmul.f32 %v7126, 0.3275911
    %v7135 = vmul.f32 %v7127, 0.3275911
    %v7136 = vmul.f32 %v7128, 0.3275911
    %v7137 = vmul.f32 %v7129, 0.3275911
    %v7138 = vmul.f32 %v7130, 0.3275911
    %v7139 = vmul.f32 %v7131, 0.3275911
    %v7140 = vadd.f32 %v7132, 1.0
    %v7141 = vadd.f32 %v7133, 1.0
    %v7142 = vadd.f32 %v7134, 1.0
    %v7143 = vadd.f32 %v7135, 1.0
    %v7144 = vadd.f32 %v7136, 1.0
    %v7145 = vadd.f32 %v7137, 1.0
    %v7146 = vadd.f32 %v7138, 1.0
    %v7147 = vadd.f32 %v7139, 1.0
    %v7148 = vrcp.pop %v7140
    %v7149 = vrcp.pop %v7141
    %v7150 = vrcp.pop %v7142
    %v7151 = vrcp.pop %v7143
    %v7152 = vrcp.pop %v7144
    %v7153 = vrcp.pop %v7145
    %v7154 = vrcp.pop %v7146
    %v7155 = vrcp.pop %v7147
    %v7156 = vmul.f32 %v7148, 1.0614054
    %v7157 = vmul.f32 %v7149, 1.0614054
    %v7158 = vmul.f32 %v7150, 1.0614054
    %v7159 = vmul.f32 %v7151, 1.0614054
    %v7160 = vmul.f32 %v7152, 1.0614054
    %v7161 = vmul.f32 %v7153, 1.0614054
    %v7162 = vmul.f32 %v7154, 1.0614054
    %v7163 = vmul.f32 %v7155, 1.0614054
    %v7164 = vadd.f32 %v7156, -1.4531521
    %v7165 = vadd.f32 %v7157, -1.4531521
    %v7166 = vadd.f32 %v7158, -1.4531521
    %v7167 = vadd.f32 %v7159, -1.4531521
    %v7168 = vadd.f32 %v7160, -1.4531521
    %v7169 = vadd.f32 %v7161, -1.4531521
    %v7170 = vadd.f32 %v7162, -1.4531521
    %v7171 = vadd.f32 %v7163, -1.4531521
    %v7172 = vmul.f32 %v7164, %v7148
    %v7173 = vmul.f32 %v7165, %v7149
    %v7174 = vmul.f32 %v7166, %v7150
    %v7175 = vmul.f32 %v7167, %v7151
    %v7176 = vmul.f32 %v7168, %v7152
    %v7177 = vmul.f32 %v7169, %v7153
    %v7178 = vmul.f32 %v7170, %v7154
    %v7179 = vmul.f32 %v7171, %v7155
    %v7180 = vadd.f32 %v7172, 1.4214138
    %v7181 = vadd.f32 %v7173, 1.4214138
    %v7182 = vadd.f32 %v7174, 1.4214138
    %v7183 = vadd.f32 %v7175, 1.4214138
    %v7184 = vadd.f32 %v7176, 1.4214138
    %v7185 = vadd.f32 %v7177, 1.4214138
    %v7186 = vadd.f32 %v7178, 1.4214138
    %v7187 = vadd.f32 %v7179, 1.4214138
    %v7188 = vmul.f32 %v7180, %v7148
    %v7189 = vmul.f32 %v7181, %v7149
    %v7190 = vmul.f32 %v7182, %v7150
    %v7191 = vmul.f32 %v7183, %v7151
    %v7192 = vmul.f32 %v7184, %v7152
    %v7193 = vmul.f32 %v7185, %v7153
    %v7194 = vmul.f32 %v7186, %v7154
    %v7195 = vmul.f32 %v7187, %v7155
    %v7196 = vadd.f32 %v7188, -0.28449672
    %v7197 = vadd.f32 %v7189, -0.28449672
    %v7198 = vadd.f32 %v7190, -0.28449672
    %v7199 = vadd.f32 %v7191, -0.28449672
    %v7200 = vadd.f32 %v7192, -0.28449672
    %v7201 = vadd.f32 %v7193, -0.28449672
    %v7202 = vadd.f32 %v7194, -0.28449672
    %v7203 = vadd.f32 %v7195, -0.28449672
    %v7204 = vmul.f32 %v7196, %v7148
    %v7205 = vmul.f32 %v7197, %v7149
    %v7206 = vmul.f32 %v7198, %v7150
    %v7207 = vmul.f32 %v7199, %v7151
    %v7208 = vmul.f32 %v7200, %v7152
    %v7209 = vmul.f32 %v7201, %v7153
    %v7210 = vmul.f32 %v7202, %v7154
    %v7211 = vmul.f32 %v7203, %v7155
    %v7212 = vadd.f32 %v7204, 0.2548296
    %v7213 = vadd.f32 %v7205, 0.2548296
    %v7214 = vadd.f32 %v7206, 0.2548296
    %v7215 = vadd.f32 %v7207, 0.2548296
    %v7216 = vadd.f32 %v7208, 0.2548296
    %v7217 = vadd.f32 %v7209, 0.2548296
    %v7218 = vadd.f32 %v7210, 0.2548296
    %v7219 = vadd.f32 %v7211, 0.2548296
    %v7220 = vmul.f32 %v7212, %v7148
    %v7221 = vmul.f32 %v7213, %v7149
    %v7222 = vmul.f32 %v7214, %v7150
    %v7223 = vmul.f32 %v7215, %v7151
    %v7224 = vmul.f32 %v7216, %v7152
    %v7225 = vmul.f32 %v7217, %v7153
    %v7226 = vmul.f32 %v7218, %v7154
    %v7227 = vmul.f32 %v7219, %v7155
    %v7228 = vsub.f32 0.0, %v7124
    %v7229 = vsub.f32 0.0, %v7125
    %v7230 = vsub.f32 0.0, %v7126
    %v7231 = vsub.f32 0.0, %v7127
    %v7232 = vsub.f32 0.0, %v7128
    %v7233 = vsub.f32 0.0, %v7129
    %v7234 = vsub.f32 0.0, %v7130
    %v7235 = vsub.f32 0.0, %v7131
    %v7236 = vmul.f32 %v7228, %v7124
    %v7237 = vmul.f32 %v7229, %v7125
    %v7238 = vmul.f32 %v7230, %v7126
    %v7239 = vmul.f32 %v7231, %v7127
    %v7240 = vmul.f32 %v7232, %v7128
    %v7241 = vmul.f32 %v7233, %v7129
    %v7242 = vmul.f32 %v7234, %v7130
    %v7243 = vmul.f32 %v7235, %v7131
    %v7244 = vmul.f32 %v7236, 1.442695
    %v7245 = vpow.pop %v7244
    %v7246 = vmul.f32 %v7237, 1.442695
    %v7247 = vpow.pop %v7246
    %v7248 = vmul.f32 %v7238, 1.442695
    %v7249 = vpow.pop %v7248
    %v7250 = vmul.f32 %v7239, 1.442695
    %v7251 = vpow.pop %v7250
    %v7252 = vmul.f32 %v7240, 1.442695
    %v7253 = vpow.pop %v7252
    %v7254 = vmul.f32 %v7241, 1.442695
    %v7255 = vpow.pop %v7254
    %v7256 = vmul.f32 %v7242, 1.442695
    %v7257 = vpow.pop %v7256
    %v7258 = vmul.f32 %v7243, 1.442695
    %v7259 = vpow.pop %v7258
    %v7260 = vmul.f32 %v7220, %v7245
    %v7261 = vmul.f32 %v7221, %v7247
    %v7262 = vmul.f32 %v7222, %v7249
    %v7263 = vmul.f32 %v7223, %v7251
    %v7264 = vmul.f32 %v7224, %v7253
    %v7265 = vmul.f32 %v7225, %v7255
    %v7266 = vmul.f32 %v7226, %v7257
    %v7267 = vmul.f32 %v7227, %v7259
    %v7268 = vsub.f32 1.0, %v7260
    %v7269 = vsub.f32 1.0, %v7261
    %v7270 = vsub.f32 1.0, %v7262
    %v7271 = vsub.f32 1.0, %v7263
    %v7272 = vsub.f32 1.0, %v7264
    %v7273 = vsub.f32 1.0, %v7265
    %v7274 = vsub.f32 1.0, %v7266
    %v7275 = vsub.f32 1.0, %v7267
    %v7276 = vmul.f32 %v7116, %v7268
    %v7277 = vmul.f32 %v7117, %v7269
    %v7278 = vmul.f32 %v7118, %v7270
    %v7279 = vmul.f32 %v7119, %v7271
    %v7280 = vmul.f32 %v7120, %v7272
    %v7281 = vmul.f32 %v7121, %v7273
    %v7282 = vmul.f32 %v7122, %v7274
    %v7283 = vmul.f32 %v7123, %v7275
    %v7284 = vadd.f32 %v7276, 1.0
    %v7285 = vadd.f32 %v7277, 1.0
    %v7286 = vadd.f32 %v7278, 1.0
    %v7287 = vadd.f32 %v7279, 1.0
    %v7288 = vadd.f32 %v7280, 1.0
    %v7289 = vadd.f32 %v7281, 1.0
    %v7290 = vadd.f32 %v7282, 1.0
    %v7291 = vadd.f32 %v7283, 1.0
    %v7292 = vmul.f32 %v7092, %v7284
    %v7293 = vmul.f32 %v7093, %v7285
    %v7294 = vmul.f32 %v7094, %v7286
    %v7295 = vmul.f32 %v7095, %v7287
    %v7296 = vmul.f32 %v7096, %v7288
    %v7297 = vmul.f32 %v7097, %v7289
    %v7298 = vmul.f32 %v7098, %v7290
    %v7299 = vmul.f32 %v7099, %v7291
    %v7300 = vld [vmem:[%s2 + $0x1d8] sm:$0xff]
    %v7301 = vld [vmem:[%s2 + $0x1e0] sm:$0xff]
    %v7302 = vld [vmem:[%s2 + $0x1e8] sm:$0xff]
    %v7303 = vld [vmem:[%s2 + $0x1f0] sm:$0xff]
    %v7304 = vld [vmem:[%s2 + $0x218] sm:$0x1]
    %v7305 = vlaneseq
    %v7306 = vshrl.u32 %v7305, 7
    %v7307 = vsub.s32 0, %v7306
    %v7308 = vrot.slane %v7304, %v7307
    %v7310 = vsel %vm5115, %v7292, 0
    %v7313 = vsel %vm5115, %v7293, 0
    %v7316 = vsel %vm5115, %v7294, 0
    %v7319 = vsel %vm5115, %v7295, 0
    %v7322 = vsel %vm5115, %v7296, 0
    %v7325 = vsel %vm5115, %v7297, 0
    %v7328 = vsel %vm5115, %v7298, 0
    %v7331 = vsel %vm5115, %v7299, 0
    %7333 = vmatprep.subr.mxu0 0.0
    %7334 = vmatpush1.msra.mxu0 0.0
    %7335 = vmatprep.subr.mxu0 0.0
    %7336 = vmatpush1.msra.mxu0 0.0
    %7337 = vmatprep.subr.mxu0 0.0
    %7338 = vmatpush1.msra.mxu0 0.0
    %7339 = vmatprep.subr.mxu0 0.0
    %7340 = vmatpush1.msra.mxu0 0.0
    %7341 = vmatprep.subr.mxu0 0.0
    %7342 = vmatpush1.msra.mxu0 0.0
    %7343 = vmatprep.subr.mxu0 0.0
    %7344 = vmatpush1.msra.mxu0 0.0
    %7345 = vmatprep.subr.mxu0 0.0
    %7346 = vmatpush1.msra.mxu0 0.0
    %7347 = vmatprep.subr.mxu0 0.0
    %7348 = vmatpush1.msra.mxu0 0.0
    %7349 = vmatprep.subr.mxu0 0.0
    %7350 = vmatpush1.msra.mxu0 0.0
    %7351 = vmatprep.subr.mxu0 0.0
    %7352 = vmatpush1.msra.mxu0 0.0
    %7353 = vmatprep.subr.mxu0 0.0
    %7354 = vmatpush1.msra.mxu0 0.0
    %7355 = vmatprep.subr.mxu0 0.0
    %7356 = vmatpush1.msra.mxu0 0.0
    %7357 = vmatprep.subr.mxu0 0.0
    %7358 = vmatpush1.msra.mxu0 %v7303
    %7359 = vmatprep.subr.mxu0 0.0
    %7360 = vmatpush1.msra.mxu0 %v7302
    %7361 = vmatprep.subr.mxu0 0.0
    %7362 = vmatpush1.msra.mxu0 %v7301
    %7363 = vmatprep.subr.mxu0 0.0
    %7364 = vmatpush1.msra.mxu0 %v7300
    %7365 = vmatprep.subr.mxu0 0.0
    %7366 = vmatpush2.msra.mxu0 0.0
    %7367 = vmatprep.subr.mxu0 0.0
    %7368 = vmatpush2.msra.mxu0 0.0
    %7369 = vmatprep.subr.mxu0 0.0
    %7370 = vmatpush2.msra.mxu0 0.0
    %7371 = vmatprep.subr.mxu0 0.0
    %7372 = vmatpush2.msra.mxu0 0.0
    %7373 = vmatprep.subr.mxu0 0.0
    %7374 = vmatpush2.msra.mxu0 0.0
    %7375 = vmatprep.subr.mxu0 0.0
    %7376 = vmatpush2.msra.mxu0 0.0
    %7377 = vmatprep.subr.mxu0 0.0
    %7378 = vmatpush2.msra.mxu0 0.0
    %7379 = vmatprep.subr.mxu0 0.0
    %7380 = vmatpush2.msra.mxu0 0.0
    %7381 = vmatprep.subr.mxu0 0.0
    %7382 = vmatpush2.msra.mxu0 0.0
    %7383 = vmatprep.subr.mxu0 0.0
    %7384 = vmatpush2.msra.mxu0 0.0
    %7385 = vmatprep.subr.mxu0 0.0
    %7386 = vmatpush2.msra.mxu0 0.0
    %7387 = vmatprep.subr.mxu0 0.0
    %7388 = vmatpush2.msra.mxu0 0.0
    %7389 = vmatprep.subr.mxu0 0.0
    %7390 = vmatpush2.msra.mxu0 0.0
    %7391 = vmatprep.subr.mxu0 0.0
    %7392 = vmatpush2.msra.mxu0 0.0
    %7393 = vmatprep.subr.mxu0 0.0
    %7394 = vmatpush2.msra.mxu0 0.0
    %7395 = vmatprep.subr.mxu0 0.0
    %7396 = vmatpush2.msra.mxu0 0.0
    %7397 = vmatprep.mubr.f32.mxu0 0.0
    %7398 = vmatmul.mubr.f32.gmra.mxu0 %v7310
    %v7399 = vpop.f32.mrf.mxu0
    %v7400 = vadd.f32 %v7308, %v7399
    %v7401 = vpop.f32.mrf.mxu0
    %7402 = vmatprep.mubr.f32.mxu0 0.0
    %7403 = vmatmul.mubr.f32.gmra.mxu0 %v7313
    %v7404 = vpop.f32.mrf.mxu0
    %v7405 = vadd.f32 %v7308, %v7404
    %v7406 = vpop.f32.mrf.mxu0
    %7407 = vmatprep.mubr.f32.mxu0 0.0
    %7408 = vmatmul.mubr.f32.gmra.mxu0 %v7316
    %v7409 = vpop.f32.mrf.mxu0
    %v7410 = vadd.f32 %v7308, %v7409
    %v7411 = vpop.f32.mrf.mxu0
    %7412 = vmatprep.mubr.f32.mxu0 0.0
    %7413 = vmatmul.mubr.f32.gmra.mxu0 %v7319
    %v7414 = vpop.f32.mrf.mxu0
    %v7415 = vadd.f32 %v7308, %v7414
    %v7416 = vpop.f32.mrf.mxu0
    %7417 = vmatprep.mubr.f32.mxu0 0.0
    %7418 = vmatmul.mubr.f32.gmra.mxu0 %v7322
    %v7419 = vpop.f32.mrf.mxu0
    %v7420 = vadd.f32 %v7308, %v7419
    %v7421 = vpop.f32.mrf.mxu0
    %7422 = vmatprep.mubr.f32.mxu0 0.0
    %7423 = vmatmul.mubr.f32.gmra.mxu0 %v7325
    %v7424 = vpop.f32.mrf.mxu0
    %v7425 = vadd.f32 %v7308, %v7424
    %v7426 = vpop.f32.mrf.mxu0
    %7427 = vmatprep.mubr.f32.mxu0 0.0
    %7428 = vmatmul.mubr.f32.gmra.mxu0 %v7328
    %v7429 = vpop.f32.mrf.mxu0
    %v7430 = vadd.f32 %v7308, %v7429
    %v7431 = vpop.f32.mrf.mxu0
    %7432 = vmatprep.mubr.f32.mxu0 0.0
    %7433 = vmatmul.mubr.f32.gmra.mxu0 %v7331
    %v7434 = vpop.f32.mrf.mxu0
    %v7435 = vadd.f32 %v7308, %v7434
    %v7436 = vpop.f32.mrf.mxu0
    %7437 = vdwg.mxu0
    %v7438 = vmul.f32 %v7400, 0.5
    %v7439 = vmul.f32 %v7405, 0.5
    %v7440 = vmul.f32 %v7410, 0.5
    %v7441 = vmul.f32 %v7415, 0.5
    %v7442 = vmul.f32 %v7420, 0.5
    %v7443 = vmul.f32 %v7425, 0.5
    %v7444 = vmul.f32 %v7430, 0.5
    %v7445 = vmul.f32 %v7435, 0.5
    %v7446 = vmul.f32 %v7400, 0.70710677
    %v7447 = vmul.f32 %v7405, 0.70710677
    %v7448 = vmul.f32 %v7410, 0.70710677
    %v7449 = vmul.f32 %v7415, 0.70710677
    %v7450 = vmul.f32 %v7420, 0.70710677
    %v7451 = vmul.f32 %v7425, 0.70710677
    %v7452 = vmul.f32 %v7430, 0.70710677
    %v7453 = vmul.f32 %v7435, 0.70710677
    %vm7454 = vcmp.ge.f32.partialorder %v7446, 0.0
    %vm7455 = vcmp.ge.f32.partialorder %v7447, 0.0
    %vm7456 = vcmp.ge.f32.partialorder %v7448, 0.0
    %vm7457 = vcmp.ge.f32.partialorder %v7449, 0.0
    %vm7458 = vcmp.ge.f32.partialorder %v7450, 0.0
    %vm7459 = vcmp.ge.f32.partialorder %v7451, 0.0
    %vm7460 = vcmp.ge.f32.partialorder %v7452, 0.0
    %vm7461 = vcmp.ge.f32.partialorder %v7453, 0.0
    %v7462 = vsel %vm7454, 1.0, -1.0
    %v7463 = vsel %vm7455, 1.0, -1.0
    %v7464 = vsel %vm7456, 1.0, -1.0
    %v7465 = vsel %vm7457, 1.0, -1.0
    %v7466 = vsel %vm7458, 1.0, -1.0
    %v7467 = vsel %vm7459, 1.0, -1.0
    %v7468 = vsel %vm7460, 1.0, -1.0
    %v7469 = vsel %vm7461, 1.0, -1.0
    %v7470 = vand.u32 2147483647, %v7446
    %v7471 = vand.u32 2147483647, %v7447
    %v7472 = vand.u32 2147483647, %v7448
    %v7473 = vand.u32 2147483647, %v7449
    %v7474 = vand.u32 2147483647, %v7450
    %v7475 = vand.u32 2147483647, %v7451
    %v7476 = vand.u32 2147483647, %v7452
    %v7477 = vand.u32 2147483647, %v7453
    %v7478 = vmul.f32 %v7470, 0.3275911
    %v7479 = vmul.f32 %v7471, 0.3275911
    %v7480 = vmul.f32 %v7472, 0.3275911
    %v7481 = vmul.f32 %v7473, 0.3275911
    %v7482 = vmul.f32 %v7474, 0.3275911
    %v7483 = vmul.f32 %v7475, 0.3275911
    %v7484 = vmul.f32 %v7476, 0.3275911
    %v7485 = vmul.f32 %v7477, 0.3275911
    %v7486 = vadd.f32 %v7478, 1.0
    %v7487 = vadd.f32 %v7479, 1.0
    %v7488 = vadd.f32 %v7480, 1.0
    %v7489 = vadd.f32 %v7481, 1.0
    %v7490 = vadd.f32 %v7482, 1.0
    %v7491 = vadd.f32 %v7483, 1.0
    %v7492 = vadd.f32 %v7484, 1.0
    %v7493 = vadd.f32 %v7485, 1.0
    %v7494 = vrcp.pop %v7486
    %v7495 = vrcp.pop %v7487
    %v7496 = vrcp.pop %v7488
    %v7497 = vrcp.pop %v7489
    %v7498 = vrcp.pop %v7490
    %v7499 = vrcp.pop %v7491
    %v7500 = vrcp.pop %v7492
    %v7501 = vrcp.pop %v7493
    %v7502 = vmul.f32 %v7494, 1.0614054
    %v7503 = vmul.f32 %v7495, 1.0614054
    %v7504 = vmul.f32 %v7496, 1.0614054
    %v7505 = vmul.f32 %v7497, 1.0614054
    %v7506 = vmul.f32 %v7498, 1.0614054
    %v7507 = vmul.f32 %v7499, 1.0614054
    %v7508 = vmul.f32 %v7500, 1.0614054
    %v7509 = vmul.f32 %v7501, 1.0614054
    %v7510 = vadd.f32 %v7502, -1.4531521
    %v7511 = vadd.f32 %v7503, -1.4531521
    %v7512 = vadd.f32 %v7504, -1.4531521
    %v7513 = vadd.f32 %v7505, -1.4531521
    %v7514 = vadd.f32 %v7506, -1.4531521
    %v7515 = vadd.f32 %v7507, -1.4531521
    %v7516 = vadd.f32 %v7508, -1.4531521
    %v7517 = vadd.f32 %v7509, -1.4531521
    %v7518 = vmul.f32 %v7510, %v7494
    %v7519 = vmul.f32 %v7511, %v7495
    %v7520 = vmul.f32 %v7512, %v7496
    %v7521 = vmul.f32 %v7513, %v7497
    %v7522 = vmul.f32 %v7514, %v7498
    %v7523 = vmul.f32 %v7515, %v7499
    %v7524 = vmul.f32 %v7516, %v7500
    %v7525 = vmul.f32 %v7517, %v7501
    %v7526 = vadd.f32 %v7518, 1.4214138
    %v7527 = vadd.f32 %v7519, 1.4214138
    %v7528 = vadd.f32 %v7520, 1.4214138
    %v7529 = vadd.f32 %v7521, 1.4214138
    %v7530 = vadd.f32 %v7522, 1.4214138
    %v7531 = vadd.f32 %v7523, 1.4214138
    %v7532 = vadd.f32 %v7524, 1.4214138
    %v7533 = vadd.f32 %v7525, 1.4214138
    %v7534 = vmul.f32 %v7526, %v7494
    %v7535 = vmul.f32 %v7527, %v7495
    %v7536 = vmul.f32 %v7528, %v7496
    %v7537 = vmul.f32 %v7529, %v7497
    %v7538 = vmul.f32 %v7530, %v7498
    %v7539 = vmul.f32 %v7531, %v7499
    %v7540 = vmul.f32 %v7532, %v7500
    %v7541 = vmul.f32 %v7533, %v7501
    %v7542 = vadd.f32 %v7534, -0.28449672
    %v7543 = vadd.f32 %v7535, -0.28449672
    %v7544 = vadd.f32 %v7536, -0.28449672
    %v7545 = vadd.f32 %v7537, -0.28449672
    %v7546 = vadd.f32 %v7538, -0.28449672
    %v7547 = vadd.f32 %v7539, -0.28449672
    %v7548 = vadd.f32 %v7540, -0.28449672
    %v7549 = vadd.f32 %v7541, -0.28449672
    %v7550 = vmul.f32 %v7542, %v7494
    %v7551 = vmul.f32 %v7543, %v7495
    %v7552 = vmul.f32 %v7544, %v7496
    %v7553 = vmul.f32 %v7545, %v7497
    %v7554 = vmul.f32 %v7546, %v7498
    %v7555 = vmul.f32 %v7547, %v7499
    %v7556 = vmul.f32 %v7548, %v7500
    %v7557 = vmul.f32 %v7549, %v7501
    %v7558 = vadd.f32 %v7550, 0.2548296
    %v7559 = vadd.f32 %v7551, 0.2548296
    %v7560 = vadd.f32 %v7552, 0.2548296
    %v7561 = vadd.f32 %v7553, 0.2548296
    %v7562 = vadd.f32 %v7554, 0.2548296
    %v7563 = vadd.f32 %v7555, 0.2548296
    %v7564 = vadd.f32 %v7556, 0.2548296
    %v7565 = vadd.f32 %v7557, 0.2548296
    %v7566 = vmul.f32 %v7558, %v7494
    %v7567 = vmul.f32 %v7559, %v7495
    %v7568 = vmul.f32 %v7560, %v7496
    %v7569 = vmul.f32 %v7561, %v7497
    %v7570 = vmul.f32 %v7562, %v7498
    %v7571 = vmul.f32 %v7563, %v7499
    %v7572 = vmul.f32 %v7564, %v7500
    %v7573 = vmul.f32 %v7565, %v7501
    %v7574 = vsub.f32 0.0, %v7470
    %v7575 = vsub.f32 0.0, %v7471
    %v7576 = vsub.f32 0.0, %v7472
    %v7577 = vsub.f32 0.0, %v7473
    %v7578 = vsub.f32 0.0, %v7474
    %v7579 = vsub.f32 0.0, %v7475
    %v7580 = vsub.f32 0.0, %v7476
    %v7581 = vsub.f32 0.0, %v7477
    %v7582 = vmul.f32 %v7574, %v7470
    %v7583 = vmul.f32 %v7575, %v7471
    %v7584 = vmul.f32 %v7576, %v7472
    %v7585 = vmul.f32 %v7577, %v7473
    %v7586 = vmul.f32 %v7578, %v7474
    %v7587 = vmul.f32 %v7579, %v7475
    %v7588 = vmul.f32 %v7580, %v7476
    %v7589 = vmul.f32 %v7581, %v7477
    %v7590 = vmul.f32 %v7582, 1.442695
    %v7591 = vpow.pop %v7590
    %v7592 = vmul.f32 %v7583, 1.442695
    %v7593 = vpow.pop %v7592
    %v7594 = vmul.f32 %v7584, 1.442695
    %v7595 = vpow.pop %v7594
    %v7596 = vmul.f32 %v7585, 1.442695
    %v7597 = vpow.pop %v7596
    %v7598 = vmul.f32 %v7586, 1.442695
    %v7599 = vpow.pop %v7598
    %v7600 = vmul.f32 %v7587, 1.442695
    %v7601 = vpow.pop %v7600
    %v7602 = vmul.f32 %v7588, 1.442695
    %v7603 = vpow.pop %v7602
    %v7604 = vmul.f32 %v7589, 1.442695
    %v7605 = vpow.pop %v7604
    %v7606 = vmul.f32 %v7566, %v7591
    %v7607 = vmul.f32 %v7567, %v7593
    %v7608 = vmul.f32 %v7568, %v7595
    %v7609 = vmul.f32 %v7569, %v7597
    %v7610 = vmul.f32 %v7570, %v7599
    %v7611 = vmul.f32 %v7571, %v7601
    %v7612 = vmul.f32 %v7572, %v7603
    %v7613 = vmul.f32 %v7573, %v7605
    %v7614 = vsub.f32 1.0, %v7606
    %v7615 = vsub.f32 1.0, %v7607
    %v7616 = vsub.f32 1.0, %v7608
    %v7617 = vsub.f32 1.0, %v7609
    %v7618 = vsub.f32 1.0, %v7610
    %v7619 = vsub.f32 1.0, %v7611
    %v7620 = vsub.f32 1.0, %v7612
    %v7621 = vsub.f32 1.0, %v7613
    %v7622 = vmul.f32 %v7462, %v7614
    %v7623 = vmul.f32 %v7463, %v7615
    %v7624 = vmul.f32 %v7464, %v7616
    %v7625 = vmul.f32 %v7465, %v7617
    %v7626 = vmul.f32 %v7466, %v7618
    %v7627 = vmul.f32 %v7467, %v7619
    %v7628 = vmul.f32 %v7468, %v7620
    %v7629 = vmul.f32 %v7469, %v7621
    %v7630 = vadd.f32 %v7622, 1.0
    %v7631 = vadd.f32 %v7623, 1.0
    %v7632 = vadd.f32 %v7624, 1.0
    %v7633 = vadd.f32 %v7625, 1.0
    %v7634 = vadd.f32 %v7626, 1.0
    %v7635 = vadd.f32 %v7627, 1.0
    %v7636 = vadd.f32 %v7628, 1.0
    %v7637 = vadd.f32 %v7629, 1.0
    %v7638 = vmul.f32 %v7438, %v7630
    %v7639 = vmul.f32 %v7439, %v7631
    %v7640 = vmul.f32 %v7440, %v7632
    %v7641 = vmul.f32 %v7441, %v7633
    %v7642 = vmul.f32 %v7442, %v7634
    %v7643 = vmul.f32 %v7443, %v7635
    %v7644 = vmul.f32 %v7444, %v7636
    %v7645 = vmul.f32 %v7445, %v7637
    %v7646 = vld [vmem:[%s2 + $0x1f8] sm:$0xff]
    %v7647 = vld [vmem:[%s2 + $0x200] sm:$0xff]
    %v7648 = vld [vmem:[%s2 + $0x208] sm:$0xff]
    %v7649 = vld [vmem:[%s2 + $0x210] sm:$0xff]
    %v7650 = vld [vmem:[%s2 + $0x220] sm:$0x1]
    %v7651 = vlaneseq
    %v7652 = vshrl.u32 %v7651, 7
    %v7653 = vsub.s32 0, %v7652
    %v7654 = vrot.slane %v7650, %v7653
    %v7656 = vsel %vm5115, %v7638, 0
    %v7659 = vsel %vm5115, %v7639, 0
    %v7662 = vsel %vm5115, %v7640, 0
    %v7665 = vsel %vm5115, %v7641, 0
    %v7668 = vsel %vm5115, %v7642, 0
    %v7671 = vsel %vm5115, %v7643, 0
    %v7674 = vsel %vm5115, %v7644, 0
    %v7677 = vsel %vm5115, %v7645, 0
    %7679 = vmatprep.subr.mxu0 0.0
    %7680 = vmatpush1.msra.mxu0 0.0
    %7681 = vmatprep.subr.mxu0 0.0
    %7682 = vmatpush1.msra.mxu0 0.0
    %7683 = vmatprep.subr.mxu0 0.0
    %7684 = vmatpush1.msra.mxu0 0.0
    %7685 = vmatprep.subr.mxu0 0.0
    %7686 = vmatpush1.msra.mxu0 0.0
    %7687 = vmatprep.subr.mxu0 0.0
    %7688 = vmatpush1.msra.mxu0 0.0
    %7689 = vmatprep.subr.mxu0 0.0
    %7690 = vmatpush1.msra.mxu0 0.0
    %7691 = vmatprep.subr.mxu0 0.0
    %7692 = vmatpush1.msra.mxu0 0.0
    %7693 = vmatprep.subr.mxu0 0.0
    %7694 = vmatpush1.msra.mxu0 0.0
    %7695 = vmatprep.subr.mxu0 0.0
    %7696 = vmatpush1.msra.mxu0 0.0
    %7697 = vmatprep.subr.mxu0 0.0
    %7698 = vmatpush1.msra.mxu0 0.0
    %7699 = vmatprep.subr.mxu0 0.0
    %7700 = vmatpush1.msra.mxu0 0.0
    %7701 = vmatprep.subr.mxu0 0.0
    %7702 = vmatpush1.msra.mxu0 0.0
    %7703 = vmatprep.subr.mxu0 0.0
    %7704 = vmatpush1.msra.mxu0 %v7649
    %7705 = vmatprep.subr.mxu0 0.0
    %7706 = vmatpush1.msra.mxu0 %v7648
    %7707 = vmatprep.subr.mxu0 0.0
    %7708 = vmatpush1.msra.mxu0 %v7647
    %7709 = vmatprep.subr.mxu0 0.0
    %7710 = vmatpush1.msra.mxu0 %v7646
    %7711 = vmatprep.subr.mxu0 0.0
    %7712 = vmatpush2.msra.mxu0 0.0
    %7713 = vmatprep.subr.mxu0 0.0
    %7714 = vmatpush2.msra.mxu0 0.0
    %7715 = vmatprep.subr.mxu0 0.0
    %7716 = vmatpush2.msra.mxu0 0.0
    %7717 = vmatprep.subr.mxu0 0.0
    %7718 = vmatpush2.msra.mxu0 0.0
    %7719 = vmatprep.subr.mxu0 0.0
    %7720 = vmatpush2.msra.mxu0 0.0
    %7721 = vmatprep.subr.mxu0 0.0
    %7722 = vmatpush2.msra.mxu0 0.0
    %7723 = vmatprep.subr.mxu0 0.0
    %7724 = vmatpush2.msra.mxu0 0.0
    %7725 = vmatprep.subr.mxu0 0.0
    %7726 = vmatpush2.msra.mxu0 0.0
    %7727 = vmatprep.subr.mxu0 0.0
    %7728 = vmatpush2.msra.mxu0 0.0
    %7729 = vmatprep.subr.mxu0 0.0
    %7730 = vmatpush2.msra.mxu0 0.0
    %7731 = vmatprep.subr.mxu0 0.0
    %7732 = vmatpush2.msra.mxu0 0.0
    %7733 = vmatprep.subr.mxu0 0.0
    %7734 = vmatpush2.msra.mxu0 0.0
    %7735 = vmatprep.subr.mxu0 0.0
    %7736 = vmatpush2.msra.mxu0 0.0
    %7737 = vmatprep.subr.mxu0 0.0
    %7738 = vmatpush2.msra.mxu0 0.0
    %7739 = vmatprep.subr.mxu0 0.0
    %7740 = vmatpush2.msra.mxu0 0.0
    %7741 = vmatprep.subr.mxu0 0.0
    %7742 = vmatpush2.msra.mxu0 0.0
    %7743 = vmatprep.mubr.f32.mxu0 0.0
    %7744 = vmatmul.mubr.f32.gmra.mxu0 %v7656
    %v7745 = vpop.f32.mrf.mxu0
    %v7746 = vadd.f32 %v7654, %v7745
    %v7747 = vpop.f32.mrf.mxu0
    %7748 = vmatprep.mubr.f32.mxu0 0.0
    %7749 = vmatmul.mubr.f32.gmra.mxu0 %v7659
    %v7750 = vpop.f32.mrf.mxu0
    %v7751 = vadd.f32 %v7654, %v7750
    %v7752 = vpop.f32.mrf.mxu0
    %7753 = vmatprep.mubr.f32.mxu0 0.0
    %7754 = vmatmul.mubr.f32.gmra.mxu0 %v7662
    %v7755 = vpop.f32.mrf.mxu0
    %v7756 = vadd.f32 %v7654, %v7755
    %v7757 = vpop.f32.mrf.mxu0
    %7758 = vmatprep.mubr.f32.mxu0 0.0
    %7759 = vmatmul.mubr.f32.gmra.mxu0 %v7665
    %v7760 = vpop.f32.mrf.mxu0
    %v7761 = vadd.f32 %v7654, %v7760
    %v7762 = vpop.f32.mrf.mxu0
    %7763 = vmatprep.mubr.f32.mxu0 0.0
    %7764 = vmatmul.mubr.f32.gmra.mxu0 %v7668
    %v7765 = vpop.f32.mrf.mxu0
    %v7766 = vadd.f32 %v7654, %v7765
    %v7767 = vpop.f32.mrf.mxu0
    %7768 = vmatprep.mubr.f32.mxu0 0.0
    %7769 = vmatmul.mubr.f32.gmra.mxu0 %v7671
    %v7770 = vpop.f32.mrf.mxu0
    %v7771 = vadd.f32 %v7654, %v7770
    %v7772 = vpop.f32.mrf.mxu0
    %7773 = vmatprep.mubr.f32.mxu0 0.0
    %7774 = vmatmul.mubr.f32.gmra.mxu0 %v7674
    %v7775 = vpop.f32.mrf.mxu0
    %v7776 = vadd.f32 %v7654, %v7775
    %v7777 = vpop.f32.mrf.mxu0
    %7778 = vmatprep.mubr.f32.mxu0 0.0
    %7779 = vmatmul.mubr.f32.gmra.mxu0 %v7677
    %v7780 = vpop.f32.mrf.mxu0
    %v7781 = vadd.f32 %v7654, %v7780
    %v7782 = vpop.f32.mrf.mxu0
    %7783 = vdwg.mxu0
    %7784 = vmatprep.subr.mxu0 0.0
    %7785 = vmatpush1.msra.mxu0 0.0
    %7786 = vmatprep.subr.mxu0 0.0
    %7787 = vmatpush1.msra.mxu0 0.0
    %7788 = vmatprep.subr.mxu0 0.0
    %7789 = vmatpush1.msra.mxu0 0.0
    %7790 = vmatprep.subr.mxu0 0.0
    %7791 = vmatpush1.msra.mxu0 0.0
    %7792 = vmatprep.subr.mxu0 0.0
    %7793 = vmatpush1.msra.mxu0 0.0
    %7794 = vmatprep.subr.mxu0 0.0
    %7795 = vmatpush1.msra.mxu0 0.0
    %7796 = vmatprep.subr.mxu0 0.0
    %7797 = vmatpush1.msra.mxu0 0.0
    %7798 = vmatprep.subr.mxu0 0.0
    %7799 = vmatpush1.msra.mxu0 0.0
    %7800 = vmatprep.subr.mxu0 0.0
    %7801 = vmatpush1.msra.mxu0 %v7781
    %7802 = vmatprep.subr.mxu0 0.0
    %7803 = vmatpush1.msra.mxu0 %v7776
    %7804 = vmatprep.subr.mxu0 0.0
    %7805 = vmatpush1.msra.mxu0 %v7771
    %7806 = vmatprep.subr.mxu0 0.0
    %7807 = vmatpush1.msra.mxu0 %v7766
    %7808 = vmatprep.subr.mxu0 0.0
    %7809 = vmatpush1.msra.mxu0 %v7761
    %7810 = vmatprep.subr.mxu0 0.0
    %7811 = vmatpush1.msra.mxu0 %v7756
    %7812 = vmatprep.subr.mxu0 0.0
    %7813 = vmatpush1.msra.mxu0 %v7751
    %7814 = vmatprep.subr.mxu0 0.0
    %7815 = vmatpush1.msra.mxu0 %v7746
    %7816 = vmatprep.subr.mxu0 0.0
    %7817 = vmatpush2.msra.mxu0 0.0
    %7818 = vmatprep.subr.mxu0 0.0
    %7819 = vmatpush2.msra.mxu0 0.0
    %7820 = vmatprep.subr.mxu0 0.0
    %7821 = vmatpush2.msra.mxu0 0.0
    %7822 = vmatprep.subr.mxu0 0.0
    %7823 = vmatpush2.msra.mxu0 0.0
    %7824 = vmatprep.subr.mxu0 0.0
    %7825 = vmatpush2.msra.mxu0 0.0
    %7826 = vmatprep.subr.mxu0 0.0
    %7827 = vmatpush2.msra.mxu0 0.0
    %7828 = vmatprep.subr.mxu0 0.0
    %7829 = vmatpush2.msra.mxu0 0.0
    %7830 = vmatprep.subr.mxu0 0.0
    %7831 = vmatpush2.msra.mxu0 0.0
    %7832 = vmatprep.subr.mxu0 0.0
    %7833 = vmatpush2.msra.mxu0 0.0
    %7834 = vmatprep.subr.mxu0 0.0
    %7835 = vmatpush2.msra.mxu0 0.0
    %7836 = vmatprep.subr.mxu0 0.0
    %7837 = vmatpush2.msra.mxu0 0.0
    %7838 = vmatprep.subr.mxu0 0.0
    %7839 = vmatpush2.msra.mxu0 0.0
    %7840 = vmatprep.subr.mxu0 0.0
    %7841 = vmatpush2.msra.mxu0 0.0
    %7842 = vmatprep.subr.mxu0 0.0
    %7843 = vmatpush2.msra.mxu0 0.0
    %7844 = vmatprep.subr.mxu0 0.0
    %7845 = vmatpush2.msra.mxu0 0.0
    %7846 = vmatprep.subr.mxu0 0.0
    %7847 = vmatpush2.msra.mxu0 0.0
    %7848 = vmatprep.mubr.f32.mxu0 0.0
    %7849 = vmatmul.mubr.f32.gmra.mxu0 %v6052
    %v7850 = vpop.f32.mrf.mxu0
    %v7851 = vadd.f32 0.0, %v7850
    %v7852 = vpop.f32.mrf.mxu0
    %7853 = vmatprep.mubr.f32.mxu0 0.0
    %7854 = vmatmul.mubr.f32.gmra.mxu0 %v6055
    %v7855 = vpop.f32.mrf.mxu0
    %v7856 = vadd.f32 0.0, %v7855
    %v7857 = vpop.f32.mrf.mxu0
    %7858 = vdwg.mxu0
    %v7859 = vadd.f32 %v6173, %v7851
    %v7860 = vadd.f32 %v6174, %v7856
    %v7861 = vld [vmem:[%s2 + $0x228] sm:$0x1]
    %v7862 = vld [vmem:[%s2 + $0x230] sm:$0x1]
    %v7863 = vsel %vm5115, %v7859, 0.0
    %7864 = vadd.xlane.f32.xlu0 %v7863
    %v7865 = vpop.xlane.xlu0 %7864
    %v7866 = vsel %vm5115, %v7860, 0.0
    %7867 = vadd.xlane.f32.xlu0 %v7866
    %v7868 = vpop.xlane.xlu0 %7867
    %v7869 = vmul.f32 %v7865, %v6142
    %v7870 = vmul.f32 %v7868, %v6142
    %v7871 = vsub.f32 %v7859, %v7869
    %v7872 = vsub.f32 %v7860, %v7870
    %v7873 = vmul.f32 %v7871, %v7871
    %v7874 = vmul.f32 %v7872, %v7872
    %v7875 = vsel %vm5115, %v7873, 0.0
    %7876 = vadd.xlane.f32.xlu0 %v7875
    %v7877 = vpop.xlane.xlu0 %7876
    %v7878 = vsel %vm5115, %v7874, 0.0
    %7879 = vadd.xlane.f32.xlu0 %v7878
    %v7880 = vpop.xlane.xlu0 %7879
    %v7881 = vmul.f32 %v7877, %v6142
    %v7882 = vmul.f32 %v7880, %v6142
    %v7883 = vadd.f32 %v7881, 1e-05
    %v7884 = vadd.f32 %v7882, 1e-05
    %v7885 = vrsqrt.pop %v7883
    %v7886 = vrsqrt.pop %v7884
    %v7887 = vmul.f32 %v7871, %v7885
    %v7888 = vmul.f32 %v7872, %v7886
    %v7889 = vlaneseq
    %v7890 = vshrl.u32 %v7889, 7
    %v7891 = vsub.s32 0, %v7890
    %v7892 = vrot.slane %v7861, %v7891
    %v7893 = vmul.f32 %v7887, %v7892
    %v7894 = vmul.f32 %v7888, %v7892
    %v7895 = vlaneseq
    %v7896 = vshrl.u32 %v7895, 7
    %v7897 = vsub.s32 0, %v7896
    %v7898 = vrot.slane %v7862, %v7897
    %v7899 = vadd.f32 %v7893, %v7898
    %v7900 = vadd.f32 %v7894, %v7898
    %v7901 = vld [vmem:[%s2 + $0x238] sm:$0xff]
    %v7902 = vld [vmem:[%s2 + $0x240] sm:$0xff]
    %v7903 = vld [vmem:[%s2 + $0x248] sm:$0xff]
    %v7904 = vld [vmem:[%s2 + $0x250] sm:$0xff]
    %v7905 = vld [vmem:[%s2 + $0x258] sm:$0x3f]
    %v7907 = vsel %vm6346, %v7905, 0
    %7909 = vmatprep.subr.mxu0 0.0
    %7910 = vmatpush1.msra.mxu0 0.0
    %7911 = vmatprep.subr.mxu0 0.0
    %7912 = vmatpush1.msra.mxu0 0.0
    %7913 = vmatprep.subr.mxu0 0.0
    %7914 = vmatpush1.msra.mxu0 0.0
    %7915 = vmatprep.subr.mxu0 0.0
    %7916 = vmatpush1.msra.mxu0 0.0
    %7917 = vmatprep.subr.mxu0 0.0
    %7918 = vmatpush1.msra.mxu0 0.0
    %7919 = vmatprep.subr.mxu0 0.0
    %7920 = vmatpush1.msra.mxu0 0.0
    %7921 = vmatprep.subr.mxu0 0.0
    %7922 = vmatpush1.msra.mxu0 0.0
    %7923 = vmatprep.subr.mxu0 0.0
    %7924 = vmatpush1.msra.mxu0 0.0
    %7925 = vmatprep.subr.mxu0 0.0
    %7926 = vmatpush1.msra.mxu0 0.0
    %7927 = vmatprep.subr.mxu0 0.0
    %7928 = vmatpush1.msra.mxu0 0.0
    %7929 = vmatprep.subr.mxu0 0.0
    %7930 = vmatpush1.msra.mxu0 0.0
    %7931 = vmatprep.subr.mxu0 0.0
    %7932 = vmatpush1.msra.mxu0 0.0
    %7933 = vmatprep.subr.mxu0 0.0
    %7934 = vmatpush1.msra.mxu0 0.0
    %7935 = vmatprep.subr.mxu0 0.0
    %7936 = vmatpush1.msra.mxu0 0.0
    %7937 = vmatprep.subr.mxu0 0.0
    %7938 = vmatpush1.msra.mxu0 0.0
    %7939 = vmatprep.subr.mxu0 0.0
    %7940 = vmatpush1.msra.mxu0 %v7907
    %7941 = vmatprep.subr.mxu0 0.0
    %7942 = vmatpush2.msra.mxu0 0.0
    %7943 = vmatprep.subr.mxu0 0.0
    %7944 = vmatpush2.msra.mxu0 0.0
    %7945 = vmatprep.subr.mxu0 0.0
    %7946 = vmatpush2.msra.mxu0 0.0
    %7947 = vmatprep.subr.mxu0 0.0
    %7948 = vmatpush2.msra.mxu0 0.0
    %7949 = vmatprep.subr.mxu0 0.0
    %7950 = vmatpush2.msra.mxu0 0.0
    %7951 = vmatprep.subr.mxu0 0.0
    %7952 = vmatpush2.msra.mxu0 0.0
    %7953 = vmatprep.subr.mxu0 0.0
    %7954 = vmatpush2.msra.mxu0 0.0
    %7955 = vmatprep.subr.mxu0 0.0
    %7956 = vmatpush2.msra.mxu0 0.0
    %7957 = vmatprep.subr.mxu0 0.0
    %7958 = vmatpush2.msra.mxu0 0.0
    %7959 = vmatprep.subr.mxu0 0.0
    %7960 = vmatpush2.msra.mxu0 0.0
    %7961 = vmatprep.subr.mxu0 0.0
    %7962 = vmatpush2.msra.mxu0 0.0
    %7963 = vmatprep.subr.mxu0 0.0
    %7964 = vmatpush2.msra.mxu0 0.0
    %7965 = vmatprep.subr.mxu0 0.0
    %7966 = vmatpush2.msra.mxu0 0.0
    %7967 = vmatprep.subr.mxu0 0.0
    %7968 = vmatpush2.msra.mxu0 0.0
    %7969 = vmatprep.subr.mxu0 0.0
    %7970 = vmatpush2.msra.mxu0 0.0
    %7971 = vmatprep.subr.mxu0 0.0
    %7972 = vmatpush2.msra.mxu0 0.0
    %7973 = vmatprep.mubr.f32.mxu0 0.0
    %7974 = vmatmul.mubr.f32.gmra.mxu0 %v6341
    %v7975 = vpop.f32.mrf.mxu0
    %v7976 = vadd.f32 0.0, %v7975
    %v7977 = vpop.f32.mrf.mxu0
    %7978 = vmatprep.mubr.f32.mxu0 0.0
    %7979 = vmatmul.mubr.f32.gmra.mxu0 %v6344
    %v7980 = vpop.f32.mrf.mxu0
    %v7981 = vadd.f32 0.0, %v7980
    %v7982 = vpop.f32.mrf.mxu0
    %7983 = vdwg.mxu0
    %v7985 = vsel %vm5115, %v7899, 0
    %v7988 = vsel %vm5115, %v7900, 0
    %7990 = vmatprep.subr.mxu0 0.0
    %7991 = vmatpush1.msra.mxu0 0.0
    %7992 = vmatprep.subr.mxu0 0.0
    %7993 = vmatpush1.msra.mxu0 0.0
    %7994 = vmatprep.subr.mxu0 0.0
    %7995 = vmatpush1.msra.mxu0 0.0
    %7996 = vmatprep.subr.mxu0 0.0
    %7997 = vmatpush1.msra.mxu0 0.0
    %7998 = vmatprep.subr.mxu0 0.0
    %7999 = vmatpush1.msra.mxu0 0.0
    %8000 = vmatprep.subr.mxu0 0.0
    %8001 = vmatpush1.msra.mxu0 0.0
    %8002 = vmatprep.subr.mxu0 0.0
    %8003 = vmatpush1.msra.mxu0 0.0
    %8004 = vmatprep.subr.mxu0 0.0
    %8005 = vmatpush1.msra.mxu0 0.0
    %8006 = vmatprep.subr.mxu0 0.0
    %8007 = vmatpush1.msra.mxu0 0.0
    %8008 = vmatprep.subr.mxu0 0.0
    %8009 = vmatpush1.msra.mxu0 0.0
    %8010 = vmatprep.subr.mxu0 0.0
    %8011 = vmatpush1.msra.mxu0 0.0
    %8012 = vmatprep.subr.mxu0 0.0
    %8013 = vmatpush1.msra.mxu0 0.0
    %8014 = vmatprep.subr.mxu0 0.0
    %8015 = vmatpush1.msra.mxu0 %v7904
    %8016 = vmatprep.subr.mxu0 0.0
    %8017 = vmatpush1.msra.mxu0 %v7903
    %8018 = vmatprep.subr.mxu0 0.0
    %8019 = vmatpush1.msra.mxu0 %v7902
    %8020 = vmatprep.subr.mxu0 0.0
    %8021 = vmatpush1.msra.mxu0 %v7901
    %8022 = vmatprep.subr.mxu0 0.0
    %8023 = vmatpush2.msra.mxu0 0.0
    %8024 = vmatprep.subr.mxu0 0.0
    %8025 = vmatpush2.msra.mxu0 0.0
    %8026 = vmatprep.subr.mxu0 0.0
    %8027 = vmatpush2.msra.mxu0 0.0
    %8028 = vmatprep.subr.mxu0 0.0
    %8029 = vmatpush2.msra.mxu0 0.0
    %8030 = vmatprep.subr.mxu0 0.0
    %8031 = vmatpush2.msra.mxu0 0.0
    %8032 = vmatprep.subr.mxu0 0.0
    %8033 = vmatpush2.msra.mxu0 0.0
    %8034 = vmatprep.subr.mxu0 0.0
    %8035 = vmatpush2.msra.mxu0 0.0
    %8036 = vmatprep.subr.mxu0 0.0
    %8037 = vmatpush2.msra.mxu0 0.0
    %8038 = vmatprep.subr.mxu0 0.0
    %8039 = vmatpush2.msra.mxu0 0.0
    %8040 = vmatprep.subr.mxu0 0.0
    %8041 = vmatpush2.msra.mxu0 0.0
    %8042 = vmatprep.subr.mxu0 0.0
    %8043 = vmatpush2.msra.mxu0 0.0
    %8044 = vmatprep.subr.mxu0 0.0
    %8045 = vmatpush2.msra.mxu0 0.0
    %8046 = vmatprep.subr.mxu0 0.0
    %8047 = vmatpush2.msra.mxu0 0.0
    %8048 = vmatprep.subr.mxu0 0.0
    %8049 = vmatpush2.msra.mxu0 0.0
    %8050 = vmatprep.subr.mxu0 0.0
    %8051 = vmatpush2.msra.mxu0 0.0
    %8052 = vmatprep.subr.mxu0 0.0
    %8053 = vmatpush2.msra.mxu0 0.0
    %8054 = vmatprep.mubr.f32.mxu0 0.0
    %8055 = vmatmul.mubr.f32.gmra.mxu0 %v7985
    %v8056 = vpop.f32.mrf.mxu0
    %v8057 = vadd.f32 %v7976, %v8056
    %v8058 = vpop.f32.mrf.mxu0
    %8059 = vmatprep.mubr.f32.mxu0 0.0
    %8060 = vmatmul.mubr.f32.gmra.mxu0 %v7988
    %v8061 = vpop.f32.mrf.mxu0
    %v8062 = vadd.f32 %v7981, %v8061
    %v8063 = vpop.f32.mrf.mxu0
    %8064 = vdwg.mxu0
    %v8065 = vadd.f32 %v6252, %v8057
    %v8066 = vadd.f32 %v6257, %v8062
    %v8068 = vsel %vm524, %v8065, 0
    %v8071 = vsel %vm524, %v8066, 0
    %8073 = vmatprep.subr.mxu0 0.0
    %8074 = vmatpush1.msra.mxu0 0.0
    %8075 = vmatprep.subr.mxu0 0.0
    %8076 = vmatpush1.msra.mxu0 0.0
    %8077 = vmatprep.subr.mxu0 0.0
    %8078 = vmatpush1.msra.mxu0 0.0
    %8079 = vmatprep.subr.mxu0 0.0
    %8080 = vmatpush1.msra.mxu0 0.0
    %8081 = vmatprep.subr.mxu0 0.0
    %8082 = vmatpush1.msra.mxu0 0.0
    %8083 = vmatprep.subr.mxu0 0.0
    %8084 = vmatpush1.msra.mxu0 0.0
    %8085 = vmatprep.subr.mxu0 0.0
    %8086 = vmatpush1.msra.mxu0 0.0
    %8087 = vmatprep.subr.mxu0 0.0
    %8088 = vmatpush1.msra.mxu0 0.0
    %8089 = vmatprep.subr.mxu0 0.0
    %8090 = vmatpush1.msra.mxu0 0.0
    %8091 = vmatprep.subr.mxu0 0.0
    %8092 = vmatpush1.msra.mxu0 0.0
    %8093 = vmatprep.subr.mxu0 0.0
    %8094 = vmatpush1.msra.mxu0 0.0
    %8095 = vmatprep.subr.mxu0 0.0
    %8096 = vmatpush1.msra.mxu0 0.0
    %8097 = vmatprep.subr.mxu0 0.0
    %8098 = vmatpush1.msra.mxu0 0.0
    %8099 = vmatprep.subr.mxu0 0.0
    %8100 = vmatpush1.msra.mxu0 0.0
    %8101 = vmatprep.subr.mxu0 0.0
    %8102 = vmatpush1.msra.mxu0 0.0
    %8103 = vmatprep.subr.mxu0 0.0
    %8104 = vmatpush1.msra.mxu0 %v6702
    %8105 = vmatprep.subr.mxu0 0.0
    %8106 = vmatpush2.msra.mxu0 0.0
    %8107 = vmatprep.subr.mxu0 0.0
    %8108 = vmatpush2.msra.mxu0 0.0
    %8109 = vmatprep.subr.mxu0 0.0
    %8110 = vmatpush2.msra.mxu0 0.0
    %8111 = vmatprep.subr.mxu0 0.0
    %8112 = vmatpush2.msra.mxu0 0.0
    %8113 = vmatprep.subr.mxu0 0.0
    %8114 = vmatpush2.msra.mxu0 0.0
    %8115 = vmatprep.subr.mxu0 0.0
    %8116 = vmatpush2.msra.mxu0 0.0
    %8117 = vmatprep.subr.mxu0 0.0
    %8118 = vmatpush2.msra.mxu0 0.0
    %8119 = vmatprep.subr.mxu0 0.0
    %8120 = vmatpush2.msra.mxu0 0.0
    %8121 = vmatprep.subr.mxu0 0.0
    %8122 = vmatpush2.msra.mxu0 0.0
    %8123 = vmatprep.subr.mxu0 0.0
    %8124 = vmatpush2.msra.mxu0 0.0
    %8125 = vmatprep.subr.mxu0 0.0
    %8126 = vmatpush2.msra.mxu0 0.0
    %8127 = vmatprep.subr.mxu0 0.0
    %8128 = vmatpush2.msra.mxu0 0.0
    %8129 = vmatprep.subr.mxu0 0.0
    %8130 = vmatpush2.msra.mxu0 0.0
    %8131 = vmatprep.subr.mxu0 0.0
    %8132 = vmatpush2.msra.mxu0 0.0
    %8133 = vmatprep.subr.mxu0 0.0
    %8134 = vmatpush2.msra.mxu0 0.0
    %8135 = vmatprep.subr.mxu0 0.0
    %8136 = vmatpush2.msra.mxu0 0.0
    %8137 = vmatprep.mubr.f32.mxu0 0.0
    %8138 = vmatmul.mubr.f32.gmra.mxu0 %v8068
    %v8139 = vpop.f32.mrf.mxu0
    %v8140 = vadd.f32 0.0, %v8139
    %v8141 = vpop.f32.mrf.mxu0
    %8142 = vmatprep.mubr.f32.mxu0 0.0
    %8143 = vmatmul.mubr.f32.gmra.mxu0 %v8071
    %v8144 = vpop.f32.mrf.mxu0
    %v8145 = vadd.f32 0.0, %v8144
    %v8146 = vpop.f32.mrf.mxu0
    %8147 = vdwg.mxu0
    %v8148 = vmul.f32 %v8140, %v611
    %v8149 = vmul.f32 %v8145, %v616
    %v8151 = vsel %vm6817, %v8148, 0
    %v8154 = vsel %vm6817, %v8149, 0
    %8156 = vmatprep.subr.mxu0 0.0
    %8157 = vmatpush1.msra.mxu0 0.0
    %8158 = vmatprep.subr.mxu0 0.0
    %8159 = vmatpush1.msra.mxu0 0.0
    %8160 = vmatprep.subr.mxu0 0.0
    %8161 = vmatpush1.msra.mxu0 0.0
    %8162 = vmatprep.subr.mxu0 0.0
    %8163 = vmatpush1.msra.mxu0 0.0
    %8164 = vmatprep.subr.mxu0 0.0
    %8165 = vmatpush1.msra.mxu0 0.0
    %8166 = vmatprep.subr.mxu0 0.0
    %8167 = vmatpush1.msra.mxu0 0.0
    %8168 = vmatprep.subr.mxu0 0.0
    %8169 = vmatpush1.msra.mxu0 0.0
    %8170 = vmatprep.subr.mxu0 0.0
    %8171 = vmatpush1.msra.mxu0 0.0
    %8172 = vmatprep.subr.mxu0 0.0
    %8173 = vmatpush1.msra.mxu0 0.0
    %8174 = vmatprep.subr.mxu0 0.0
    %8175 = vmatpush1.msra.mxu0 0.0
    %8176 = vmatprep.subr.mxu0 0.0
    %8177 = vmatpush1.msra.mxu0 0.0
    %8178 = vmatprep.subr.mxu0 0.0
    %8179 = vmatpush1.msra.mxu0 0.0
    %8180 = vmatprep.subr.mxu0 0.0
    %8181 = vmatpush1.msra.mxu0 0.0
    %8182 = vmatprep.subr.mxu0 0.0
    %8183 = vmatpush1.msra.mxu0 %v6844
    %8184 = vmatprep.subr.mxu0 0.0
    %8185 = vmatpush1.msra.mxu0 %v21
    %8186 = vmatprep.subr.mxu0 0.0
    %8187 = vmatpush1.msra.mxu0 %v20
    %8188 = vmatprep.subr.mxu0 0.0
    %8189 = vmatpush2.msra.mxu0 0.0
    %8190 = vmatprep.subr.mxu0 0.0
    %8191 = vmatpush2.msra.mxu0 0.0
    %8192 = vmatprep.subr.mxu0 0.0
    %8193 = vmatpush2.msra.mxu0 0.0
    %8194 = vmatprep.subr.mxu0 0.0
    %8195 = vmatpush2.msra.mxu0 0.0
    %8196 = vmatprep.subr.mxu0 0.0
    %8197 = vmatpush2.msra.mxu0 0.0
    %8198 = vmatprep.subr.mxu0 0.0
    %8199 = vmatpush2.msra.mxu0 0.0
    %8200 = vmatprep.subr.mxu0 0.0
    %8201 = vmatpush2.msra.mxu0 0.0
    %8202 = vmatprep.subr.mxu0 0.0
    %8203 = vmatpush2.msra.mxu0 0.0
    %8204 = vmatprep.subr.mxu0 0.0
    %8205 = vmatpush2.msra.mxu0 0.0
    %8206 = vmatprep.subr.mxu0 0.0
    %8207 = vmatpush2.msra.mxu0 0.0
    %8208 = vmatprep.subr.mxu0 0.0
    %8209 = vmatpush2.msra.mxu0 0.0
    %8210 = vmatprep.subr.mxu0 0.0
    %8211 = vmatpush2.msra.mxu0 0.0
    %8212 = vmatprep.subr.mxu0 0.0
    %8213 = vmatpush2.msra.mxu0 0.0
    %8214 = vmatprep.subr.mxu0 0.0
    %8215 = vmatpush2.msra.mxu0 0.0
    %8216 = vmatprep.subr.mxu0 0.0
    %8217 = vmatpush2.msra.mxu0 0.0
    %8218 = vmatprep.subr.mxu0 0.0
    %8219 = vmatpush2.msra.mxu0 0.0
    %8220 = vmatprep.mubr.f32.mxu0 0.0
    %8221 = vmatmul.mubr.f32.gmra.mxu0 %v8151
    %v8222 = vpop.f32.mrf.mxu0
    %v8223 = vadd.f32 0.0, %v8222
    %v8224 = vpop.f32.mrf.mxu0
    %8225 = vmatprep.mubr.f32.mxu0 0.0
    %8226 = vmatmul.mubr.f32.gmra.mxu0 %v8154
    %v8227 = vpop.f32.mrf.mxu0
    %v8228 = vadd.f32 0.0, %v8227
    %v8229 = vpop.f32.mrf.mxu0
    %8230 = vdwg.mxu0
    %8231 = vst.msk [vmem:[#allocation2] sm:$0xff] %vm5115, %v7899
    %8232 = vst.msk [vmem:[#allocation2 + $0x8] sm:$0xff] %vm5115, %v7900
    %8233 = vst.msk [vmem:[%s4] sm:$0xff] %vm524, %v8223
    %8234 = vst.msk [vmem:[%s4 + $0x8] sm:$0xff] %vm524, %v8228
    // Predicated region
    $region14: #{protein_motion_mpnn_forward.1} parent=1 // pred_check
      _
    $region15: #{protein_motion_mpnn_forward.1} parent=1 // pred_check_branch
      %8236 = sbr.rel (0) target = $region17
    $region16: #{protein_motion_mpnn_forward.1} parent=1 // pred_region
      %s8238 = ssub.s32 256, 256
      %8239 = vsyncadd [#allocation3], %s8238
      %s8240 = sshll.u32 [#allocation2], 4
      %s8241 = int_to_ptr.vmem [resolvable:$true] %s8240
      %8246 = dma.vmem_to_hbm [thread:$0]  %s8241, 256, %s3, [#allocation3], 128, 128, 8
    $region17: #{protein_motion_mpnn_forward.1} parent=1 // pred_fallthru
      _
    // Predicated region
    $region18: #{protein_motion_mpnn_forward.1} parent=1 // pred_check
      _
    $region19: #{protein_motion_mpnn_forward.1} parent=1 // pred_check_branch
      %8248 = sbr.rel (0) target = $region21
    $region20: #{protein_motion_mpnn_forward.1} parent=1 // pred_region
      _
    $region21: #{protein_motion_mpnn_forward.1} parent=1 // pred_fallthru
      _
    // Predicated region
    $region22: #{protein_motion_mpnn_forward.1} parent=1 // pred_check
      _
    $region23: #{protein_motion_mpnn_forward.1} parent=1 // pred_check_branch
      %8250 = sbr.rel (0) target = $region25
    $region24: #{protein_motion_mpnn_forward.1} parent=1 // pred_region
      %8251 = dma.done [#allocation3], 256
    $region25: #{protein_motion_mpnn_forward.1} parent=1 // pred_fallthru
      _
    // Predicated region
    $region26: #{protein_motion_mpnn_forward.1} parent=1 // pred_check
      _
    $region27: #{protein_motion_mpnn_forward.1} parent=1 // pred_check_branch
      %8253 = sbr.rel (0) target = $region29
    $region28: #{protein_motion_mpnn_forward.1} parent=1 // pred_region
      _
    $region29: #{protein_motion_mpnn_forward.1} parent=1 // pred_fallthru
      _
    %8254 = vsyncpa [#allocation3], 1

</llo_original>
